<compile_context>
chip_gen: v7x
topology: tpu7x:2x2x1
jax: 0.10.0
libtpu: 0.0.40
codegen_flags: <defaults>
</compile_context>

<pallas_src>
import math
from dataclasses import dataclass

import numpy as np
import jax
import jax.numpy as jnp
from jax import lax
from jax.experimental import pallas as pl
from jax.experimental.pallas import tpu as pltpu


@dataclass
class MambaConfig:
    d_model: int = 8
    n_layer: int = 2
    d_state: int = 4
    expand: int = 2
    d_conv: int = 4
    dt_min: float = 0.001
    dt_max: float = 0.1
    dt_init: str = "random"
    dt_scale: float = 1.0
    dt_init_floor: float = 1e-4
    bias: bool = False        # bias for in_proj / out_proj
    conv_bias: bool = True


_EXPM_TERMS = 25   # Taylor terms for expm(delta*A); ||delta*A|| <~ 2.5 -> error << f32 eps
_LN_EPS = 1e-5


# --------------------------------------------------------------------------
# The single fused whole-model kernel (one invocation per batch element)
# --------------------------------------------------------------------------
def _make_model_kernel(*, n_layer, T, d, d_inner, N, n_terms, K, use_proj_bias):
    NN = N * N

    def _layernorm(x, g, b):
        xm = x - jnp.mean(x, axis=-1, keepdims=True)
        var = jnp.mean(xm * xm, axis=-1, keepdims=True)
        return xm * lax.rsqrt(var + _LN_EPS) * g + b

    def kernel(x_ref, emb_w_ref, emb_b_ref,
               ln_g_ref, ln_b_ref, w_in_ref,
               conv_w_ref, conv_b_ref,
               w_ssm_ref, b_ssm_ref, a_pows_ref,
               shift_ref, smat_ref, w_out_ref,
               fin_g_ref, fin_b_ref, head_w_ref, head_b_ref,
               *rest):
        o_ref = rest[-1]
        if use_proj_bias:
            b_in_ref, b_out_ref = rest[0], rest[1]

        smat = smat_ref[...]                                    # [NN, NN]
        shifts = [shift_ref[k] for k in range(K)]               # K x [T, T]
        row_iota = lax.broadcasted_iota(jnp.int32, (T, 1), 0)

        # embedding Linear(1, d): outer-product broadcast on the VPU (no MXU needed)
        h = x_ref[...] * emb_w_ref[...] + emb_b_ref[...]        # [T, d]

        for l in range(n_layer):
            residual = h
            xn = _layernorm(h, ln_g_ref[l], ln_b_ref[l])

            # in_proj, split into SSM branch x1 and gate branch x2
            xp = jnp.dot(xn, w_in_ref[l], preferred_element_type=jnp.float32)   # [T, 2*di]
            if use_proj_bias:
                xp = xp + b_in_ref[l]
            x1 = xp[:, :d_inner]
            x2 = xp[:, d_inner:]

            # depthwise causal conv: tap k contributes w[k] * x1[t - (K-1-k)] (zero-padded),
            # realised as a matmul with a precomputed causal shift matrix per tap.
            u = jnp.zeros((T, d_inner), jnp.float32) + conv_b_ref[l]
            for k in range(K):
                shifted = jnp.dot(shifts[k], x1, preferred_element_type=jnp.float32)
                u = u + shifted * conv_w_ref[l, k]

            # fused SSM projections: columns = [delta | B replicated NN | C | D]
            proj = (jnp.dot(u, w_ssm_ref[l], preferred_element_type=jnp.float32)
                    + b_ssm_ref[l])                              # [T, 2 + NN + N]
            delta = jax.nn.sigmoid(proj[:, 0:1])                 # [T, 1]
            b_rep = proj[:, 1:1 + NN]                            # [T, NN]  (B_t[j] at col 1+i*N+j)
            c_all = proj[:, 1 + NN:1 + NN + N]                   # [T, N]
            d_all = proj[:, 1 + NN + N:2 + NN + N]               # [T, 1]

            # A_disc[t] = expm(delta[t] * A[t])  via Taylor series over precomputed A^k/k!
            # TODO(synk): torch.matrix_exp has no Pallas primitive; a 25-term Taylor series
            # on host-precomputed scaled matrix powers is used (exact to f32 at these norms).
            a_disc = jnp.zeros((T, NN), jnp.float32)
            dpow = jnp.ones((T, 1), jnp.float32)
            for k in range(n_terms):
                a_disc = a_disc + dpow * a_pows_ref[l, k]
                dpow = dpow * delta

            # sequential scan (statically unrolled); state kept in vregs in replicated form:
            #   state_rep[0, i*N + j] == state[j]   for every i
            # so  new_state = (A_disc * state_rep) @ smat  reproduces  A @ state, replicated.
            state_rep = jnp.zeros((1, NN), jnp.float32)
            y = jnp.zeros((T, 1), jnp.float32)
            for t in range(T):
                a_t = a_disc[t:t + 1, :]                                        # [1, NN]
                state_rep = jnp.dot(a_t * state_rep, smat,
                                    preferred_element_type=jnp.float32) + b_rep[t:t + 1, :]
                y_t = jnp.sum(c_all[t:t + 1, :] * state_rep[:, :N],
                              axis=-1, keepdims=True) + d_all[t:t + 1, :]       # [1, 1]
                y = jnp.where(row_iota == t, y_t, y)

            # silu gate, out_proj, residual
            gate = y * jax.nn.sigmoid(y)                          # [T, 1]
            gated = x2 * gate                                     # [T, di]
            out = jnp.dot(gated, w_out_ref[l], preferred_element_type=jnp.float32)
            if use_proj_bias:
                out = out + b_out_ref[l]
            h = out + residual

        hn = _layernorm(h, fin_g_ref[...], fin_b_ref[...])
        o_ref[...] = (jnp.dot(hn, head_w_ref[...], preferred_element_type=jnp.float32)
                      + head_b_ref[...])

    return kernel


# --------------------------------------------------------------------------
# Parameter packing (host-side, pure JAX/numpy; parameter-only preprocessing)
# --------------------------------------------------------------------------
def _pack_params(params, cfg):
    d = cfg.d_model
    di = d * cfg.expand
    N = cfg.d_state
    NN = N * N
    rep = np.arange(NN) % N            # replicate B columns N times (row-major i*N+j -> j)

    ln_g, ln_b, w_in, b_in = [], [], [], []
    conv_w, conv_b, w_ssm, b_ssm, a_pows, w_out, b_out = [], [], [], [], [], [], []
    for lp in params["layers"]:
        ln_g.append(lp["norm"]["g"][None, :])
        ln_b.append(lp["norm"]["b"][None, :])
        w_in.append(lp["in_proj"]["w"])
        w_out.append(lp["out_proj"]["w"])
        if cfg.bias:
            b_in.append(lp["in_proj"]["b"][None, :])
            b_out.append(lp["out_proj"]["b"][None, :])
        conv_w.append(lp["conv"]["w"])                       # [K, 1, di]
        conv_b.append(lp["conv"]["b"][None, :])              # [1, di]

        s = lp["ssm"]
        w_ssm.append(jnp.concatenate(
            [s["delta"][:, None], s["B_proj"]["w"][:, rep],
             s["C_proj"]["w"], s["D_proj"]["w"]], axis=1))   # [di, 2+NN+N]
        b_ssm.append(jnp.concatenate(
            [jnp.zeros((1,), jnp.float32), s["B_proj"]["b"][rep],
             s["C_proj"]["b"], s["D_proj"]["b"]])[None, :])  # [1, 2+NN+N]

        # Taylor powers A^k / k! (row-major flattened to N*N lanes)
        A = s["A"]                                            # [di, N, N]
        p = jnp.broadcast_to(jnp.eye(N, dtype=jnp.float32), (di, N, N))
        pows = [p]
        for k in range(1, _EXPM_TERMS):
            p = jnp.matmul(pows[-1], A) / float(k)
            pows.append(p)
        a_pows.append(jnp.stack(pows, axis=0).reshape(_EXPM_TERMS, di, NN))

    packed = {
        "ln_g": jnp.stack(ln_g), "ln_b": jnp.stack(ln_b),
        "w_in": jnp.stack(w_in), "w_out": jnp.stack(w_out),
        "conv_w": jnp.stack(conv_w), "conv_b": jnp.stack(conv_b),
        "w_ssm": jnp.stack(w_ssm), "b_ssm": jnp.stack(b_ssm),
        "a_pows": jnp.stack(a_pows),
    }
    if cfg.bias:
        packed["b_in"] = jnp.stack(b_in)
        packed["b_out"] = jnp.stack(b_out)
    return packed


# --------------------------------------------------------------------------
# Forward pass: one pallas_call for the whole model, grid = (batch,)
# --------------------------------------------------------------------------
def mamba_forward(params, x, cfg):
    B, T = x.shape
    d = cfg.d_model
    di = d * cfg.expand
    N = cfg.d_state
    K = cfg.d_conv
    L = cfg.n_layer
    NN = N * N
    assert T == di, "PyTorch SSM broadcast requires seq_len == d_model * expand"

    pk = _pack_params(params, cfg)

    # static helper matrices: causal shift per conv tap, and the replicated group-sum
    # matrix used by the scan (smat[m, m'] = 1 iff m // N == m' % N).
    shift = np.stack([np.eye(T, k=-(K - 1 - k)) for k in range(K)]).astype(np.float32)
    m = np.arange(NN)
    smat = (m[:, None] // N == m[None, :] % N).astype(np.float32)

    x_col = x.reshape(B * T, 1).astype(jnp.float32)

    inputs = [
        x_col,
        params["embed"]["w"], params["embed"]["b"][None, :],
        pk["ln_g"], pk["ln_b"], pk["w_in"],
        pk["conv_w"], pk["conv_b"],
        pk["w_ssm"], pk["b_ssm"], pk["a_pows"],
        jnp.asarray(shift), jnp.asarray(smat), pk["w_out"],
        params["norm"]["g"][None, :], params["norm"]["b"][None, :],
        params["head"]["w"], params["head"]["b"][None, :],
    ]

    def _full_spec(a):
        nd = a.ndim
        return pl.BlockSpec(tuple(a.shape), lambda b, _nd=nd: (0,) * _nd)

    in_specs = [pl.BlockSpec((T, 1), lambda b: (b, 0))] + [_full_spec(a) for a in inputs[1:]]
    if cfg.bias:
        inputs += [pk["b_in"], pk["b_out"]]
        in_specs += [_full_spec(pk["b_in"]), _full_spec(pk["b_out"])]

    kernel = _make_model_kernel(n_layer=L, T=T, d=d, d_inner=di, N=N,
                                n_terms=_EXPM_TERMS, K=K, use_proj_bias=cfg.bias)

    out = pl.pallas_call(
        kernel,
        out_shape=jax.ShapeDtypeStruct((B * T, 1), jnp.float32),
        grid=(B,),
        in_specs=in_specs,
        out_specs=pl.BlockSpec((T, 1), lambda b: (b, 0)),
        compiler_params=pltpu.CompilerParams(dimension_semantics=("parallel",)),
    )(*inputs)
    return out.reshape(B, T, 1)


# --------------------------------------------------------------------------
# Deterministic parameter init (synthetic; shapes follow the torch module)
# --------------------------------------------------------------------------
def _linear_init(key, fan_in, fan_out, use_bias=True):
    kw, kb = jax.random.split(key)
    bound = 1.0 / math.sqrt(fan_in)
    w = jax.random.uniform(kw, (fan_in, fan_out), jnp.float32, -bound, bound)
    if use_bias:
        b = jax.random.uniform(kb, (fan_out,), jnp.float32, -bound, bound)
    else:
        b = jnp.zeros((fan_out,), jnp.float32)
    return {"w": w, "b": b}


def _init_layer(key, cfg):
    d, di, N, K = cfg.d_model, cfg.d_model * cfg.expand, cfg.d_state, cfg.d_conv
    k = jax.random.split(key, 9)
    cbound = 1.0 / math.sqrt(K)
    conv_w = jax.random.uniform(k[0], (K, 1, di), jnp.float32, -cbound, cbound)  # w[k,0,c] == torch_w[c,0,k]
    conv_b = (jax.random.uniform(k[1], (di,), jnp.float32, -cbound, cbound)
              if cfg.conv_bias else jnp.zeros((di,), jnp.float32))
    # delta init follows the dt_init == "random" path of SSM._init_delta
    dlog = jax.random.uniform(k[2], (di,), jnp.float32,
                              math.log(cfg.dt_min), math.log(cfg.dt_max))
    delta = jnp.maximum(jnp.exp(dlog) * cfg.dt_scale, cfg.dt_init_floor)
    ssm = {
        "A": 0.5 * jax.random.normal(k[3], (di, N, N), jnp.float32),  # tamed randn for f32 stability
        "delta": delta,
        "B_proj": _linear_init(k[4], di, N),
        "C_proj": _linear_init(k[5], di, N),
        "D_proj": _linear_init(k[6], di, 1),
    }
    return {
        "norm": {"g": jnp.ones((d,), jnp.float32), "b": jnp.zeros((d,), jnp.float32)},
        "in_proj": _linear_init(k[7], d, 2 * di, use_bias=cfg.bias),
        "out_proj": _linear_init(k[8], di, d, use_bias=cfg.bias),
        "conv": {"w": conv_w, "b": conv_b},
        "ssm": ssm,
    }


def init_params(key, cfg):
    keys = jax.random.split(key, 3 + cfg.n_layer)
    return {
        "embed": _linear_init(keys[0], 1, cfg.d_model),
        "head": _linear_init(keys[1], cfg.d_model, 1),
        "norm": {"g": jnp.ones((cfg.d_model,), jnp.float32),
                 "b": jnp.zeros((cfg.d_model,), jnp.float32)},
        "layers": [_init_layer(keys[3 + i], cfg) for i in range(cfg.n_layer)],
    }


if __name__ == "__main__":
    cfg = MambaConfig()
    key = jax.random.PRNGKey(0)
    kp, kx = jax.random.split(key)
    params = init_params(kp, cfg)

    batch = 2
    seq_len = cfg.d_model * cfg.expand   # = 16; required by the PyTorch SSM broadcast
    x = jax.random.normal(kx, (batch, seq_len), jnp.float32)

    fwd = jax.jit(lambda p, xx: mamba_forward(p, xx, cfg))
    out = fwd(params, x)
    out = jax.block_until_ready(out)
    assert out.shape == (batch, seq_len, 1)
    print("KERNEL_OK")
</pallas_src>

<mosaic_0001>
module attributes {stable_mosaic.version = 11 : i64} {
  func.func @kernel(%arg0: i32, %arg1: memref<16x1xf32, #tpu.memory_space<vmem>>, %arg2: memref<1x8xf32, #tpu.memory_space<vmem>>, %arg3: memref<1x8xf32, #tpu.memory_space<vmem>>, %arg4: memref<2x1x8xf32, #tpu.memory_space<vmem>>, %arg5: memref<2x1x8xf32, #tpu.memory_space<vmem>>, %arg6: memref<2x8x32xf32, #tpu.memory_space<vmem>>, %arg7: memref<2x4x1x16xf32, #tpu.memory_space<vmem>>, %arg8: memref<2x1x16xf32, #tpu.memory_space<vmem>>, %arg9: memref<2x16x22xf32, #tpu.memory_space<vmem>>, %arg10: memref<2x1x22xf32, #tpu.memory_space<vmem>>, %arg11: memref<2x25x16x16xf32, #tpu.memory_space<vmem>>, %arg12: memref<4x16x16xf32, #tpu.memory_space<vmem>>, %arg13: memref<16x16xf32, #tpu.memory_space<vmem>>, %arg14: memref<2x16x8xf32, #tpu.memory_space<vmem>>, %arg15: memref<1x8xf32, #tpu.memory_space<vmem>>, %arg16: memref<1x8xf32, #tpu.memory_space<vmem>>, %arg17: memref<8x1xf32, #tpu.memory_space<vmem>>, %arg18: memref<1x1xf32, #tpu.memory_space<vmem>>, %arg19: memref<16x1xf32, #tpu.memory_space<vmem>>) attributes {dimension_semantics = [#tpu.dimension_semantics<parallel>], iteration_bounds = array<i64: 2>, scalar_prefetch = 0 : i64, scratch_operands = 0 : i64, tpu.core_type = #tpu.core_type<tc>, window_params = [{transform_indices = @transform_0, window_bounds = array<i64: 16, 1>}, {pipeline_mode = #tpu.pipeline_mode<synchronous>, transform_indices = @transform_1, window_bounds = array<i64: 1, 8>}, {pipeline_mode = #tpu.pipeline_mode<synchronous>, transform_indices = @transform_2, window_bounds = array<i64: 1, 8>}, {pipeline_mode = #tpu.pipeline_mode<synchronous>, transform_indices = @transform_3, window_bounds = array<i64: 2, 1, 8>}, {pipeline_mode = #tpu.pipeline_mode<synchronous>, transform_indices = @transform_4, window_bounds = array<i64: 2, 1, 8>}, {pipeline_mode = #tpu.pipeline_mode<synchronous>, transform_indices = @transform_5, window_bounds = array<i64: 2, 8, 32>}, {pipeline_mode = #tpu.pipeline_mode<synchronous>, transform_indices = @transform_6, window_bounds = array<i64: 2, 4, 1, 16>}, {pipeline_mode = #tpu.pipeline_mode<synchronous>, transform_indices = @transform_7, window_bounds = array<i64: 2, 1, 16>}, {pipeline_mode = #tpu.pipeline_mode<synchronous>, transform_indices = @transform_8, window_bounds = array<i64: 2, 16, 22>}, {pipeline_mode = #tpu.pipeline_mode<synchronous>, transform_indices = @transform_9, window_bounds = array<i64: 2, 1, 22>}, {pipeline_mode = #tpu.pipeline_mode<synchronous>, transform_indices = @transform_10, window_bounds = array<i64: 2, 25, 16, 16>}, {pipeline_mode = #tpu.pipeline_mode<synchronous>, transform_indices = @transform_11, window_bounds = array<i64: 4, 16, 16>}, {pipeline_mode = #tpu.pipeline_mode<synchronous>, transform_indices = @transform_12, window_bounds = array<i64: 16, 16>}, {pipeline_mode = #tpu.pipeline_mode<synchronous>, transform_indices = @transform_13, window_bounds = array<i64: 2, 16, 8>}, {pipeline_mode = #tpu.pipeline_mode<synchronous>, transform_indices = @transform_14, window_bounds = array<i64: 1, 8>}, {pipeline_mode = #tpu.pipeline_mode<synchronous>, transform_indices = @transform_15, window_bounds = array<i64: 1, 8>}, {pipeline_mode = #tpu.pipeline_mode<synchronous>, transform_indices = @transform_16, window_bounds = array<i64: 8, 1>}, {pipeline_mode = #tpu.pipeline_mode<synchronous>, transform_indices = @transform_17, window_bounds = array<i64: 1, 1>}, {transform_indices = @transform_18, window_bounds = array<i64: 16, 1>}]} {
    %c0 = arith.constant 0 : index
    %c0_0 = arith.constant 0 : index
    %0 = vector.load %arg13[%c0, %c0_0] : memref<16x16xf32, #tpu.memory_space<vmem>>, vector<16x16xf32>
    %c0_1 = arith.constant 0 : index
    %c0_2 = arith.constant 0 : index
    %c0_3 = arith.constant 0 : index
    %1 = vector.load %arg12[%c0_1, %c0_2, %c0_3] : memref<4x16x16xf32, #tpu.memory_space<vmem>>, vector<1x16x16xf32>
    %2 = vector.shape_cast %1 : vector<1x16x16xf32> to vector<16x16xf32>
    %c1 = arith.constant 1 : index
    %c0_4 = arith.constant 0 : index
    %c0_5 = arith.constant 0 : index
    %3 = vector.load %arg12[%c1, %c0_4, %c0_5] : memref<4x16x16xf32, #tpu.memory_space<vmem>>, vector<1x16x16xf32>
    %4 = vector.shape_cast %3 : vector<1x16x16xf32> to vector<16x16xf32>
    %c2 = arith.constant 2 : index
    %c0_6 = arith.constant 0 : index
    %c0_7 = arith.constant 0 : index
    %5 = vector.load %arg12[%c2, %c0_6, %c0_7] : memref<4x16x16xf32, #tpu.memory_space<vmem>>, vector<1x16x16xf32>
    %6 = vector.shape_cast %5 : vector<1x16x16xf32> to vector<16x16xf32>
    %c3 = arith.constant 3 : index
    %c0_8 = arith.constant 0 : index
    %c0_9 = arith.constant 0 : index
    %7 = vector.load %arg12[%c3, %c0_8, %c0_9] : memref<4x16x16xf32, #tpu.memory_space<vmem>>, vector<1x16x16xf32>
    %8 = vector.shape_cast %7 : vector<1x16x16xf32> to vector<16x16xf32>
    %9 = tpu.iota {dimensions = array<i32: 0>} : vector<16x1xi32>
    %c0_10 = arith.constant 0 : index
    %c0_11 = arith.constant 0 : index
    %10 = vector.load %arg1[%c0_10, %c0_11] : memref<16x1xf32, #tpu.memory_space<vmem>>, vector<16x1xf32>
    %c0_12 = arith.constant 0 : index
    %c0_13 = arith.constant 0 : index
    %11 = vector.load %arg2[%c0_12, %c0_13] : memref<1x8xf32, #tpu.memory_space<vmem>>, vector<1x8xf32>
    %12 = vector.broadcast %10 : vector<16x1xf32> to vector<16x8xf32>
    %13 = vector.broadcast %11 : vector<1x8xf32> to vector<16x8xf32>
    %14 = arith.mulf %12, %13 : vector<16x8xf32>
    %c0_14 = arith.constant 0 : index
    %c0_15 = arith.constant 0 : index
    %15 = vector.load %arg3[%c0_14, %c0_15] : memref<1x8xf32, #tpu.memory_space<vmem>>, vector<1x8xf32>
    %16 = vector.broadcast %15 : vector<1x8xf32> to vector<16x8xf32>
    %17 = arith.addf %14, %16 : vector<16x8xf32>
    %c0_16 = arith.constant 0 : index
    %c0_17 = arith.constant 0 : index
    %c0_18 = arith.constant 0 : index
    %18 = vector.load %arg4[%c0_16, %c0_17, %c0_18] : memref<2x1x8xf32, #tpu.memory_space<vmem>>, vector<1x1x8xf32>
    %19 = vector.shape_cast %18 : vector<1x1x8xf32> to vector<1x8xf32>
    %c0_19 = arith.constant 0 : index
    %c0_20 = arith.constant 0 : index
    %c0_21 = arith.constant 0 : index
    %20 = vector.load %arg5[%c0_19, %c0_20, %c0_21] : memref<2x1x8xf32, #tpu.memory_space<vmem>>, vector<1x1x8xf32>
    %21 = vector.shape_cast %20 : vector<1x1x8xf32> to vector<1x8xf32>
    %cst = arith.constant dense<0.000000e+00> : vector<16xf32>
    %22 = vector.multi_reduction <add>, %17, %cst [1] : vector<16x8xf32> to vector<16xf32>
    %23 = vector.shape_cast %22 : vector<16xf32> to vector<16x1xf32>
    %cst_22 = arith.constant 8.000000e+00 : f32
    %24 = vector.broadcast %cst_22 : f32 to vector<16x1xf32>
    %25 = arith.divf %23, %24 : vector<16x1xf32>
    %26 = vector.broadcast %25 : vector<16x1xf32> to vector<16x8xf32>
    %27 = arith.subf %17, %26 : vector<16x8xf32>
    %28 = arith.mulf %27, %27 : vector<16x8xf32>
    %cst_23 = arith.constant dense<0.000000e+00> : vector<16xf32>
    %29 = vector.multi_reduction <add>, %28, %cst_23 [1] : vector<16x8xf32> to vector<16xf32>
    %30 = vector.shape_cast %29 : vector<16xf32> to vector<16x1xf32>
    %cst_24 = arith.constant 8.000000e+00 : f32
    %31 = vector.broadcast %cst_24 : f32 to vector<16x1xf32>
    %32 = arith.divf %30, %31 : vector<16x1xf32>
    %cst_25 = arith.constant 9.99999974E-6 : f32
    %33 = vector.broadcast %cst_25 : f32 to vector<16x1xf32>
    %34 = arith.addf %32, %33 : vector<16x1xf32>
    %35 = math.rsqrt %34 : vector<16x1xf32>
    %36 = vector.broadcast %35 : vector<16x1xf32> to vector<16x8xf32>
    %37 = arith.mulf %27, %36 : vector<16x8xf32>
    %38 = vector.broadcast %19 : vector<1x8xf32> to vector<16x8xf32>
    %39 = arith.mulf %37, %38 : vector<16x8xf32>
    %40 = vector.broadcast %21 : vector<1x8xf32> to vector<16x8xf32>
    %41 = arith.addf %39, %40 : vector<16x8xf32>
    %c0_26 = arith.constant 0 : index
    %c0_27 = arith.constant 0 : index
    %c0_28 = arith.constant 0 : index
    %42 = vector.load %arg6[%c0_26, %c0_27, %c0_28] : memref<2x8x32xf32, #tpu.memory_space<vmem>>, vector<1x8x32xf32>
    %43 = vector.shape_cast %42 : vector<1x8x32xf32> to vector<8x32xf32>
    %cst_29 = arith.constant dense<0.000000e+00> : vector<16x32xf32>
    %44 = tpu.matmul %41, %43, %cst_29 {dimension_numbers = #tpu.dot_dimension_numbers<[1], [0], [0], [1], [0, 0, 1, 1], [], []>} : vector<16x8xf32>, vector<8x32xf32>, vector<16x32xf32> -> vector<16x32xf32>
    %45 = vector.extract_strided_slice %44 {offsets = [0, 0], sizes = [16, 16], strides = [1, 1]} : vector<16x32xf32> to vector<16x16xf32>
    %46 = vector.extract_strided_slice %44 {offsets = [0, 16], sizes = [16, 16], strides = [1, 1]} : vector<16x32xf32> to vector<16x16xf32>
    %cst_30 = arith.constant 0.000000e+00 : f32
    %47 = vector.broadcast %cst_30 : f32 to vector<16x16xf32>
    %c0_31 = arith.constant 0 : index
    %c0_32 = arith.constant 0 : index
    %c0_33 = arith.constant 0 : index
    %48 = vector.load %arg8[%c0_31, %c0_32, %c0_33] : memref<2x1x16xf32, #tpu.memory_space<vmem>>, vector<1x1x16xf32>
    %49 = vector.shape_cast %48 : vector<1x1x16xf32> to vector<1x16xf32>
    %50 = vector.broadcast %49 : vector<1x16xf32> to vector<16x16xf32>
    %51 = arith.addf %47, %50 : vector<16x16xf32>
    %cst_34 = arith.constant dense<0.000000e+00> : vector<16x16xf32>
    %52 = tpu.matmul %2, %45, %cst_34 {dimension_numbers = #tpu.dot_dimension_numbers<[1], [0], [0], [1], [0, 0, 1, 1], [], []>} : vector<16x16xf32>, vector<16x16xf32>, vector<16x16xf32> -> vector<16x16xf32>
    %c0_35 = arith.constant 0 : index
    %c0_36 = arith.constant 0 : index
    %c0_37 = arith.constant 0 : index
    %c0_38 = arith.constant 0 : index
    %53 = vector.load %arg7[%c0_35, %c0_36, %c0_37, %c0_38] : memref<2x4x1x16xf32, #tpu.memory_space<vmem>>, vector<1x1x1x16xf32>
    %54 = vector.shape_cast %53 : vector<1x1x1x16xf32> to vector<1x16xf32>
    %55 = vector.broadcast %54 : vector<1x16xf32> to vector<16x16xf32>
    %56 = arith.mulf %52, %55 : vector<16x16xf32>
    %57 = arith.addf %51, %56 : vector<16x16xf32>
    %cst_39 = arith.constant dense<0.000000e+00> : vector<16x16xf32>
    %58 = tpu.matmul %4, %45, %cst_39 {dimension_numbers = #tpu.dot_dimension_numbers<[1], [0], [0], [1], [0, 0, 1, 1], [], []>} : vector<16x16xf32>, vector<16x16xf32>, vector<16x16xf32> -> vector<16x16xf32>
    %c0_40 = arith.constant 0 : index
    %c1_41 = arith.constant 1 : index
    %c0_42 = arith.constant 0 : index
    %c0_43 = arith.constant 0 : index
    %59 = vector.load %arg7[%c0_40, %c1_41, %c0_42, %c0_43] : memref<2x4x1x16xf32, #tpu.memory_space<vmem>>, vector<1x1x1x16xf32>
    %60 = vector.shape_cast %59 : vector<1x1x1x16xf32> to vector<1x16xf32>
    %61 = vector.broadcast %60 : vector<1x16xf32> to vector<16x16xf32>
    %62 = arith.mulf %58, %61 : vector<16x16xf32>
    %63 = arith.addf %57, %62 : vector<16x16xf32>
    %cst_44 = arith.constant dense<0.000000e+00> : vector<16x16xf32>
    %64 = tpu.matmul %6, %45, %cst_44 {dimension_numbers = #tpu.dot_dimension_numbers<[1], [0], [0], [1], [0, 0, 1, 1], [], []>} : vector<16x16xf32>, vector<16x16xf32>, vector<16x16xf32> -> vector<16x16xf32>
    %c0_45 = arith.constant 0 : index
    %c2_46 = arith.constant 2 : index
    %c0_47 = arith.constant 0 : index
    %c0_48 = arith.constant 0 : index
    %65 = vector.load %arg7[%c0_45, %c2_46, %c0_47, %c0_48] : memref<2x4x1x16xf32, #tpu.memory_space<vmem>>, vector<1x1x1x16xf32>
    %66 = vector.shape_cast %65 : vector<1x1x1x16xf32> to vector<1x16xf32>
    %67 = vector.broadcast %66 : vector<1x16xf32> to vector<16x16xf32>
    %68 = arith.mulf %64, %67 : vector<16x16xf32>
    %69 = arith.addf %63, %68 : vector<16x16xf32>
    %cst_49 = arith.constant dense<0.000000e+00> : vector<16x16xf32>
    %70 = tpu.matmul %8, %45, %cst_49 {dimension_numbers = #tpu.dot_dimension_numbers<[1], [0], [0], [1], [0, 0, 1, 1], [], []>} : vector<16x16xf32>, vector<16x16xf32>, vector<16x16xf32> -> vector<16x16xf32>
    %c0_50 = arith.constant 0 : index
    %c3_51 = arith.constant 3 : index
    %c0_52 = arith.constant 0 : index
    %c0_53 = arith.constant 0 : index
    %71 = vector.load %arg7[%c0_50, %c3_51, %c0_52, %c0_53] : memref<2x4x1x16xf32, #tpu.memory_space<vmem>>, vector<1x1x1x16xf32>
    %72 = vector.shape_cast %71 : vector<1x1x1x16xf32> to vector<1x16xf32>
    %73 = vector.broadcast %72 : vector<1x16xf32> to vector<16x16xf32>
    %74 = arith.mulf %70, %73 : vector<16x16xf32>
    %75 = arith.addf %69, %74 : vector<16x16xf32>
    %c0_54 = arith.constant 0 : index
    %c0_55 = arith.constant 0 : index
    %c0_56 = arith.constant 0 : index
    %76 = vector.load %arg9[%c0_54, %c0_55, %c0_56] : memref<2x16x22xf32, #tpu.memory_space<vmem>>, vector<1x16x22xf32>
    %77 = vector.shape_cast %76 : vector<1x16x22xf32> to vector<16x22xf32>
    %cst_57 = arith.constant dense<0.000000e+00> : vector<16x22xf32>
    %78 = tpu.matmul %75, %77, %cst_57 {dimension_numbers = #tpu.dot_dimension_numbers<[1], [0], [0], [1], [0, 0, 1, 1], [], []>} : vector<16x16xf32>, vector<16x22xf32>, vector<16x22xf32> -> vector<16x22xf32>
    %c0_58 = arith.constant 0 : index
    %c0_59 = arith.constant 0 : index
    %c0_60 = arith.constant 0 : index
    %79 = vector.load %arg10[%c0_58, %c0_59, %c0_60] : memref<2x1x22xf32, #tpu.memory_space<vmem>>, vector<1x1x22xf32>
    %80 = vector.shape_cast %79 : vector<1x1x22xf32> to vector<1x22xf32>
    %81 = vector.broadcast %80 : vector<1x22xf32> to vector<16x22xf32>
    %82 = arith.addf %78, %81 : vector<16x22xf32>
    %83 = vector.extract_strided_slice %82 {offsets = [0, 0], sizes = [16, 1], strides = [1, 1]} : vector<16x22xf32> to vector<16x1xf32>
    %84 = arith.negf %83 : vector<16x1xf32>
    %85 = math.exp %84 : vector<16x1xf32>
    %cst_61 = arith.constant 1.000000e+00 : f32
    %86 = vector.broadcast %cst_61 : f32 to vector<16x1xf32>
    %87 = arith.addf %86, %85 : vector<16x1xf32>
    %88 = arith.divf %86, %87 : vector<16x1xf32>
    %89 = vector.extract_strided_slice %82 {offsets = [0, 1], sizes = [16, 16], strides = [1, 1]} : vector<16x22xf32> to vector<16x16xf32>
    %90 = vector.extract_strided_slice %82 {offsets = [0, 17], sizes = [16, 4], strides = [1, 1]} : vector<16x22xf32> to vector<16x4xf32>
    %91 = vector.extract_strided_slice %82 {offsets = [0, 21], sizes = [16, 1], strides = [1, 1]} : vector<16x22xf32> to vector<16x1xf32>
    %cst_62 = arith.constant 0.000000e+00 : f32
    %92 = vector.broadcast %cst_62 : f32 to vector<16x16xf32>
    %cst_63 = arith.constant 1.000000e+00 : f32
    %93 = vector.broadcast %cst_63 : f32 to vector<16x1xf32>
    %c0_64 = arith.constant 0 : index
    %c0_65 = arith.constant 0 : index
    %c0_66 = arith.constant 0 : index
    %c0_67 = arith.constant 0 : index
    %94 = vector.load %arg11[%c0_64, %c0_65, %c0_66, %c0_67] : memref<2x25x16x16xf32, #tpu.memory_space<vmem>>, vector<1x1x16x16xf32>
    %95 = vector.shape_cast %94 : vector<1x1x16x16xf32> to vector<16x16xf32>
    %96 = vector.broadcast %93 : vector<16x1xf32> to vector<16x16xf32>
    %97 = arith.mulf %96, %95 : vector<16x16xf32>
    %98 = arith.addf %92, %97 : vector<16x16xf32>
    %99 = arith.mulf %93, %88 : vector<16x1xf32>
    %c0_68 = arith.constant 0 : index
    %c1_69 = arith.constant 1 : index
    %c0_70 = arith.constant 0 : index
    %c0_71 = arith.constant 0 : index
    %100 = vector.load %arg11[%c0_68, %c1_69, %c0_70, %c0_71] : memref<2x25x16x16xf32, #tpu.memory_space<vmem>>, vector<1x1x16x16xf32>
    %101 = vector.shape_cast %100 : vector<1x1x16x16xf32> to vector<16x16xf32>
    %102 = vector.broadcast %99 : vector<16x1xf32> to vector<16x16xf32>
    %103 = arith.mulf %102, %101 : vector<16x16xf32>
    %104 = arith.addf %98, %103 : vector<16x16xf32>
    %105 = arith.mulf %99, %88 : vector<16x1xf32>
    %c0_72 = arith.constant 0 : index
    %c2_73 = arith.constant 2 : index
    %c0_74 = arith.constant 0 : index
    %c0_75 = arith.constant 0 : index
    %106 = vector.load %arg11[%c0_72, %c2_73, %c0_74, %c0_75] : memref<2x25x16x16xf32, #tpu.memory_space<vmem>>, vector<1x1x16x16xf32>
    %107 = vector.shape_cast %106 : vector<1x1x16x16xf32> to vector<16x16xf32>
    %108 = vector.broadcast %105 : vector<16x1xf32> to vector<16x16xf32>
    %109 = arith.mulf %108, %107 : vector<16x16xf32>
    %110 = arith.addf %104, %109 : vector<16x16xf32>
    %111 = arith.mulf %105, %88 : vector<16x1xf32>
    %c0_76 = arith.constant 0 : index
    %c3_77 = arith.constant 3 : index
    %c0_78 = arith.constant 0 : index
    %c0_79 = arith.constant 0 : index
    %112 = vector.load %arg11[%c0_76, %c3_77, %c0_78, %c0_79] : memref<2x25x16x16xf32, #tpu.memory_space<vmem>>, vector<1x1x16x16xf32>
    %113 = vector.shape_cast %112 : vector<1x1x16x16xf32> to vector<16x16xf32>
    %114 = vector.broadcast %111 : vector<16x1xf32> to vector<16x16xf32>
    %115 = arith.mulf %114, %113 : vector<16x16xf32>
    %116 = arith.addf %110, %115 : vector<16x16xf32>
    %117 = arith.mulf %111, %88 : vector<16x1xf32>
    %c0_80 = arith.constant 0 : index
    %c4 = arith.constant 4 : index
    %c0_81 = arith.constant 0 : index
    %c0_82 = arith.constant 0 : index
    %118 = vector.load %arg11[%c0_80, %c4, %c0_81, %c0_82] : memref<2x25x16x16xf32, #tpu.memory_space<vmem>>, vector<1x1x16x16xf32>
    %119 = vector.shape_cast %118 : vector<1x1x16x16xf32> to vector<16x16xf32>
    %120 = vector.broadcast %117 : vector<16x1xf32> to vector<16x16xf32>
    %121 = arith.mulf %120, %119 : vector<16x16xf32>
    %122 = arith.addf %116, %121 : vector<16x16xf32>
    %123 = arith.mulf %117, %88 : vector<16x1xf32>
    %c0_83 = arith.constant 0 : index
    %c5 = arith.constant 5 : index
    %c0_84 = arith.constant 0 : index
    %c0_85 = arith.constant 0 : index
    %124 = vector.load %arg11[%c0_83, %c5, %c0_84, %c0_85] : memref<2x25x16x16xf32, #tpu.memory_space<vmem>>, vector<1x1x16x16xf32>
    %125 = vector.shape_cast %124 : vector<1x1x16x16xf32> to vector<16x16xf32>
    %126 = vector.broadcast %123 : vector<16x1xf32> to vector<16x16xf32>
    %127 = arith.mulf %126, %125 : vector<16x16xf32>
    %128 = arith.addf %122, %127 : vector<16x16xf32>
    %129 = arith.mulf %123, %88 : vector<16x1xf32>
    %c0_86 = arith.constant 0 : index
    %c6 = arith.constant 6 : index
    %c0_87 = arith.constant 0 : index
    %c0_88 = arith.constant 0 : index
    %130 = vector.load %arg11[%c0_86, %c6, %c0_87, %c0_88] : memref<2x25x16x16xf32, #tpu.memory_space<vmem>>, vector<1x1x16x16xf32>
    %131 = vector.shape_cast %130 : vector<1x1x16x16xf32> to vector<16x16xf32>
    %132 = vector.broadcast %129 : vector<16x1xf32> to vector<16x16xf32>
    %133 = arith.mulf %132, %131 : vector<16x16xf32>
    %134 = arith.addf %128, %133 : vector<16x16xf32>
    %135 = arith.mulf %129, %88 : vector<16x1xf32>
    %c0_89 = arith.constant 0 : index
    %c7 = arith.constant 7 : index
    %c0_90 = arith.constant 0 : index
    %c0_91 = arith.constant 0 : index
    %136 = vector.load %arg11[%c0_89, %c7, %c0_90, %c0_91] : memref<2x25x16x16xf32, #tpu.memory_space<vmem>>, vector<1x1x16x16xf32>
    %137 = vector.shape_cast %136 : vector<1x1x16x16xf32> to vector<16x16xf32>
    %138 = vector.broadcast %135 : vector<16x1xf32> to vector<16x16xf32>
    %139 = arith.mulf %138, %137 : vector<16x16xf32>
    %140 = arith.addf %134, %139 : vector<16x16xf32>
    %141 = arith.mulf %135, %88 : vector<16x1xf32>
    %c0_92 = arith.constant 0 : index
    %c8 = arith.constant 8 : index
    %c0_93 = arith.constant 0 : index
    %c0_94 = arith.constant 0 : index
    %142 = vector.load %arg11[%c0_92, %c8, %c0_93, %c0_94] : memref<2x25x16x16xf32, #tpu.memory_space<vmem>>, vector<1x1x16x16xf32>
    %143 = vector.shape_cast %142 : vector<1x1x16x16xf32> to vector<16x16xf32>
    %144 = vector.broadcast %141 : vector<16x1xf32> to vector<16x16xf32>
    %145 = arith.mulf %144, %143 : vector<16x16xf32>
    %146 = arith.addf %140, %145 : vector<16x16xf32>
    %147 = arith.mulf %141, %88 : vector<16x1xf32>
    %c0_95 = arith.constant 0 : index
    %c9 = arith.constant 9 : index
    %c0_96 = arith.constant 0 : index
    %c0_97 = arith.constant 0 : index
    %148 = vector.load %arg11[%c0_95, %c9, %c0_96, %c0_97] : memref<2x25x16x16xf32, #tpu.memory_space<vmem>>, vector<1x1x16x16xf32>
    %149 = vector.shape_cast %148 : vector<1x1x16x16xf32> to vector<16x16xf32>
    %150 = vector.broadcast %147 : vector<16x1xf32> to vector<16x16xf32>
    %151 = arith.mulf %150, %149 : vector<16x16xf32>
    %152 = arith.addf %146, %151 : vector<16x16xf32>
    %153 = arith.mulf %147, %88 : vector<16x1xf32>
    %c0_98 = arith.constant 0 : index
    %c10 = arith.constant 10 : index
    %c0_99 = arith.constant 0 : index
    %c0_100 = arith.constant 0 : index
    %154 = vector.load %arg11[%c0_98, %c10, %c0_99, %c0_100] : memref<2x25x16x16xf32, #tpu.memory_space<vmem>>, vector<1x1x16x16xf32>
    %155 = vector.shape_cast %154 : vector<1x1x16x16xf32> to vector<16x16xf32>
    %156 = vector.broadcast %153 : vector<16x1xf32> to vector<16x16xf32>
    %157 = arith.mulf %156, %155 : vector<16x16xf32>
    %158 = arith.addf %152, %157 : vector<16x16xf32>
    %159 = arith.mulf %153, %88 : vector<16x1xf32>
    %c0_101 = arith.constant 0 : index
    %c11 = arith.constant 11 : index
    %c0_102 = arith.constant 0 : index
    %c0_103 = arith.constant 0 : index
    %160 = vector.load %arg11[%c0_101, %c11, %c0_102, %c0_103] : memref<2x25x16x16xf32, #tpu.memory_space<vmem>>, vector<1x1x16x16xf32>
    %161 = vector.shape_cast %160 : vector<1x1x16x16xf32> to vector<16x16xf32>
    %162 = vector.broadcast %159 : vector<16x1xf32> to vector<16x16xf32>
    %163 = arith.mulf %162, %161 : vector<16x16xf32>
    %164 = arith.addf %158, %163 : vector<16x16xf32>
    %165 = arith.mulf %159, %88 : vector<16x1xf32>
    %c0_104 = arith.constant 0 : index
    %c12 = arith.constant 12 : index
    %c0_105 = arith.constant 0 : index
    %c0_106 = arith.constant 0 : index
    %166 = vector.load %arg11[%c0_104, %c12, %c0_105, %c0_106] : memref<2x25x16x16xf32, #tpu.memory_space<vmem>>, vector<1x1x16x16xf32>
    %167 = vector.shape_cast %166 : vector<1x1x16x16xf32> to vector<16x16xf32>
    %168 = vector.broadcast %165 : vector<16x1xf32> to vector<16x16xf32>
    %169 = arith.mulf %168, %167 : vector<16x16xf32>
    %170 = arith.addf %164, %169 : vector<16x16xf32>
    %171 = arith.mulf %165, %88 : vector<16x1xf32>
    %c0_107 = arith.constant 0 : index
    %c13 = arith.constant 13 : index
    %c0_108 = arith.constant 0 : index
    %c0_109 = arith.constant 0 : index
    %172 = vector.load %arg11[%c0_107, %c13, %c0_108, %c0_109] : memref<2x25x16x16xf32, #tpu.memory_space<vmem>>, vector<1x1x16x16xf32>
    %173 = vector.shape_cast %172 : vector<1x1x16x16xf32> to vector<16x16xf32>
    %174 = vector.broadcast %171 : vector<16x1xf32> to vector<16x16xf32>
    %175 = arith.mulf %174, %173 : vector<16x16xf32>
    %176 = arith.addf %170, %175 : vector<16x16xf32>
    %177 = arith.mulf %171, %88 : vector<16x1xf32>
    %c0_110 = arith.constant 0 : index
    %c14 = arith.constant 14 : index
    %c0_111 = arith.constant 0 : index
    %c0_112 = arith.constant 0 : index
    %178 = vector.load %arg11[%c0_110, %c14, %c0_111, %c0_112] : memref<2x25x16x16xf32, #tpu.memory_space<vmem>>, vector<1x1x16x16xf32>
    %179 = vector.shape_cast %178 : vector<1x1x16x16xf32> to vector<16x16xf32>
    %180 = vector.broadcast %177 : vector<16x1xf32> to vector<16x16xf32>
    %181 = arith.mulf %180, %179 : vector<16x16xf32>
    %182 = arith.addf %176, %181 : vector<16x16xf32>
    %183 = arith.mulf %177, %88 : vector<16x1xf32>
    %c0_113 = arith.constant 0 : index
    %c15 = arith.constant 15 : index
    %c0_114 = arith.constant 0 : index
    %c0_115 = arith.constant 0 : index
    %184 = vector.load %arg11[%c0_113, %c15, %c0_114, %c0_115] : memref<2x25x16x16xf32, #tpu.memory_space<vmem>>, vector<1x1x16x16xf32>
    %185 = vector.shape_cast %184 : vector<1x1x16x16xf32> to vector<16x16xf32>
    %186 = vector.broadcast %183 : vector<16x1xf32> to vector<16x16xf32>
    %187 = arith.mulf %186, %185 : vector<16x16xf32>
    %188 = arith.addf %182, %187 : vector<16x16xf32>
    %189 = arith.mulf %183, %88 : vector<16x1xf32>
    %c0_116 = arith.constant 0 : index
    %c16 = arith.constant 16 : index
    %c0_117 = arith.constant 0 : index
    %c0_118 = arith.constant 0 : index
    %190 = vector.load %arg11[%c0_116, %c16, %c0_117, %c0_118] : memref<2x25x16x16xf32, #tpu.memory_space<vmem>>, vector<1x1x16x16xf32>
    %191 = vector.shape_cast %190 : vector<1x1x16x16xf32> to vector<16x16xf32>
    %192 = vector.broadcast %189 : vector<16x1xf32> to vector<16x16xf32>
    %193 = arith.mulf %192, %191 : vector<16x16xf32>
    %194 = arith.addf %188, %193 : vector<16x16xf32>
    %195 = arith.mulf %189, %88 : vector<16x1xf32>
    %c0_119 = arith.constant 0 : index
    %c17 = arith.constant 17 : index
    %c0_120 = arith.constant 0 : index
    %c0_121 = arith.constant 0 : index
    %196 = vector.load %arg11[%c0_119, %c17, %c0_120, %c0_121] : memref<2x25x16x16xf32, #tpu.memory_space<vmem>>, vector<1x1x16x16xf32>
    %197 = vector.shape_cast %196 : vector<1x1x16x16xf32> to vector<16x16xf32>
    %198 = vector.broadcast %195 : vector<16x1xf32> to vector<16x16xf32>
    %199 = arith.mulf %198, %197 : vector<16x16xf32>
    %200 = arith.addf %194, %199 : vector<16x16xf32>
    %201 = arith.mulf %195, %88 : vector<16x1xf32>
    %c0_122 = arith.constant 0 : index
    %c18 = arith.constant 18 : index
    %c0_123 = arith.constant 0 : index
    %c0_124 = arith.constant 0 : index
    %202 = vector.load %arg11[%c0_122, %c18, %c0_123, %c0_124] : memref<2x25x16x16xf32, #tpu.memory_space<vmem>>, vector<1x1x16x16xf32>
    %203 = vector.shape_cast %202 : vector<1x1x16x16xf32> to vector<16x16xf32>
    %204 = vector.broadcast %201 : vector<16x1xf32> to vector<16x16xf32>
    %205 = arith.mulf %204, %203 : vector<16x16xf32>
    %206 = arith.addf %200, %205 : vector<16x16xf32>
    %207 = arith.mulf %201, %88 : vector<16x1xf32>
    %c0_125 = arith.constant 0 : index
    %c19 = arith.constant 19 : index
    %c0_126 = arith.constant 0 : index
    %c0_127 = arith.constant 0 : index
    %208 = vector.load %arg11[%c0_125, %c19, %c0_126, %c0_127] : memref<2x25x16x16xf32, #tpu.memory_space<vmem>>, vector<1x1x16x16xf32>
    %209 = vector.shape_cast %208 : vector<1x1x16x16xf32> to vector<16x16xf32>
    %210 = vector.broadcast %207 : vector<16x1xf32> to vector<16x16xf32>
    %211 = arith.mulf %210, %209 : vector<16x16xf32>
    %212 = arith.addf %206, %211 : vector<16x16xf32>
    %213 = arith.mulf %207, %88 : vector<16x1xf32>
    %c0_128 = arith.constant 0 : index
    %c20 = arith.constant 20 : index
    %c0_129 = arith.constant 0 : index
    %c0_130 = arith.constant 0 : index
    %214 = vector.load %arg11[%c0_128, %c20, %c0_129, %c0_130] : memref<2x25x16x16xf32, #tpu.memory_space<vmem>>, vector<1x1x16x16xf32>
    %215 = vector.shape_cast %214 : vector<1x1x16x16xf32> to vector<16x16xf32>
    %216 = vector.broadcast %213 : vector<16x1xf32> to vector<16x16xf32>
    %217 = arith.mulf %216, %215 : vector<16x16xf32>
    %218 = arith.addf %212, %217 : vector<16x16xf32>
    %219 = arith.mulf %213, %88 : vector<16x1xf32>
    %c0_131 = arith.constant 0 : index
    %c21 = arith.constant 21 : index
    %c0_132 = arith.constant 0 : index
    %c0_133 = arith.constant 0 : index
    %220 = vector.load %arg11[%c0_131, %c21, %c0_132, %c0_133] : memref<2x25x16x16xf32, #tpu.memory_space<vmem>>, vector<1x1x16x16xf32>
    %221 = vector.shape_cast %220 : vector<1x1x16x16xf32> to vector<16x16xf32>
    %222 = vector.broadcast %219 : vector<16x1xf32> to vector<16x16xf32>
    %223 = arith.mulf %222, %221 : vector<16x16xf32>
    %224 = arith.addf %218, %223 : vector<16x16xf32>
    %225 = arith.mulf %219, %88 : vector<16x1xf32>
    %c0_134 = arith.constant 0 : index
    %c22 = arith.constant 22 : index
    %c0_135 = arith.constant 0 : index
    %c0_136 = arith.constant 0 : index
    %226 = vector.load %arg11[%c0_134, %c22, %c0_135, %c0_136] : memref<2x25x16x16xf32, #tpu.memory_space<vmem>>, vector<1x1x16x16xf32>
    %227 = vector.shape_cast %226 : vector<1x1x16x16xf32> to vector<16x16xf32>
    %228 = vector.broadcast %225 : vector<16x1xf32> to vector<16x16xf32>
    %229 = arith.mulf %228, %227 : vector<16x16xf32>
    %230 = arith.addf %224, %229 : vector<16x16xf32>
    %231 = arith.mulf %225, %88 : vector<16x1xf32>
    %c0_137 = arith.constant 0 : index
    %c23 = arith.constant 23 : index
    %c0_138 = arith.constant 0 : index
    %c0_139 = arith.constant 0 : index
    %232 = vector.load %arg11[%c0_137, %c23, %c0_138, %c0_139] : memref<2x25x16x16xf32, #tpu.memory_space<vmem>>, vector<1x1x16x16xf32>
    %233 = vector.shape_cast %232 : vector<1x1x16x16xf32> to vector<16x16xf32>
    %234 = vector.broadcast %231 : vector<16x1xf32> to vector<16x16xf32>
    %235 = arith.mulf %234, %233 : vector<16x16xf32>
    %236 = arith.addf %230, %235 : vector<16x16xf32>
    %237 = arith.mulf %231, %88 : vector<16x1xf32>
    %c0_140 = arith.constant 0 : index
    %c24 = arith.constant 24 : index
    %c0_141 = arith.constant 0 : index
    %c0_142 = arith.constant 0 : index
    %238 = vector.load %arg11[%c0_140, %c24, %c0_141, %c0_142] : memref<2x25x16x16xf32, #tpu.memory_space<vmem>>, vector<1x1x16x16xf32>
    %239 = vector.shape_cast %238 : vector<1x1x16x16xf32> to vector<16x16xf32>
    %240 = vector.broadcast %237 : vector<16x1xf32> to vector<16x16xf32>
    %241 = arith.mulf %240, %239 : vector<16x16xf32>
    %242 = arith.addf %236, %241 : vector<16x16xf32>
    %cst_143 = arith.constant 0.000000e+00 : f32
    %243 = vector.broadcast %cst_143 : f32 to vector<1x16xf32>
    %cst_144 = arith.constant 0.000000e+00 : f32
    %244 = vector.broadcast %cst_144 : f32 to vector<16x1xf32>
    %245 = vector.extract_strided_slice %242 {offsets = [0, 0], sizes = [1, 16], strides = [1, 1]} : vector<16x16xf32> to vector<1x16xf32>
    %246 = arith.mulf %245, %243 : vector<1x16xf32>
    %cst_145 = arith.constant dense<0.000000e+00> : vector<1x16xf32>
    %247 = tpu.matmul %246, %0, %cst_145 {dimension_numbers = #tpu.dot_dimension_numbers<[1], [0], [0], [1], [0, 0, 1, 1], [], []>} : vector<1x16xf32>, vector<16x16xf32>, vector<1x16xf32> -> vector<1x16xf32>
    %248 = vector.extract_strided_slice %89 {offsets = [0, 0], sizes = [1, 16], strides = [1, 1]} : vector<16x16xf32> to vector<1x16xf32>
    %249 = arith.addf %247, %248 : vector<1x16xf32>
    %250 = vector.extract_strided_slice %90 {offsets = [0, 0], sizes = [1, 4], strides = [1, 1]} : vector<16x4xf32> to vector<1x4xf32>
    %251 = vector.extract_strided_slice %249 {offsets = [0, 0], sizes = [1, 4], strides = [1, 1]} : vector<1x16xf32> to vector<1x4xf32>
    %252 = arith.mulf %250, %251 : vector<1x4xf32>
    %cst_146 = arith.constant dense<0.000000e+00> : vector<1xf32>
    %253 = vector.multi_reduction <add>, %252, %cst_146 [1] : vector<1x4xf32> to vector<1xf32>
    %254 = vector.shape_cast %253 : vector<1xf32> to vector<1x1xf32>
    %255 = vector.extract_strided_slice %91 {offsets = [0, 0], sizes = [1, 1], strides = [1, 1]} : vector<16x1xf32> to vector<1x1xf32>
    %256 = arith.addf %254, %255 : vector<1x1xf32>
    %c0_i32 = arith.constant 0 : i32
    %257 = vector.broadcast %c0_i32 : i32 to vector<16x1xi32>
    %258 = arith.cmpi eq, %9, %257 : vector<16x1xi32>
    %259 = vector.shape_cast %256 : vector<1x1xf32> to vector<1x1xf32>
    %260 = vector.broadcast %259 : vector<1x1xf32> to vector<16x1xf32>
    %261 = arith.select %258, %260, %244 : vector<16x1xi1>, vector<16x1xf32>
    %262 = vector.extract_strided_slice %242 {offsets = [1, 0], sizes = [1, 16], strides = [1, 1]} : vector<16x16xf32> to vector<1x16xf32>
    %263 = arith.mulf %262, %249 : vector<1x16xf32>
    %cst_147 = arith.constant dense<0.000000e+00> : vector<1x16xf32>
    %264 = tpu.matmul %263, %0, %cst_147 {dimension_numbers = #tpu.dot_dimension_numbers<[1], [0], [0], [1], [0, 0, 1, 1], [], []>} : vector<1x16xf32>, vector<16x16xf32>, vector<1x16xf32> -> vector<1x16xf32>
    %265 = vector.extract_strided_slice %89 {offsets = [1, 0], sizes = [1, 16], strides = [1, 1]} : vector<16x16xf32> to vector<1x16xf32>
    %266 = arith.addf %264, %265 : vector<1x16xf32>
    %267 = vector.extract_strided_slice %90 {offsets = [1, 0], sizes = [1, 4], strides = [1, 1]} : vector<16x4xf32> to vector<1x4xf32>
    %268 = vector.extract_strided_slice %266 {offsets = [0, 0], sizes = [1, 4], strides = [1, 1]} : vector<1x16xf32> to vector<1x4xf32>
    %269 = arith.mulf %267, %268 : vector<1x4xf32>
    %cst_148 = arith.constant dense<0.000000e+00> : vector<1xf32>
    %270 = vector.multi_reduction <add>, %269, %cst_148 [1] : vector<1x4xf32> to vector<1xf32>
    %271 = vector.shape_cast %270 : vector<1xf32> to vector<1x1xf32>
    %272 = vector.extract_strided_slice %91 {offsets = [1, 0], sizes = [1, 1], strides = [1, 1]} : vector<16x1xf32> to vector<1x1xf32>
    %273 = arith.addf %271, %272 : vector<1x1xf32>
    %c1_i32 = arith.constant 1 : i32
    %274 = vector.broadcast %c1_i32 : i32 to vector<16x1xi32>
    %275 = arith.cmpi eq, %9, %274 : vector<16x1xi32>
    %276 = vector.shape_cast %273 : vector<1x1xf32> to vector<1x1xf32>
    %277 = vector.broadcast %276 : vector<1x1xf32> to vector<16x1xf32>
    %278 = arith.select %275, %277, %261 : vector<16x1xi1>, vector<16x1xf32>
    %279 = vector.extract_strided_slice %242 {offsets = [2, 0], sizes = [1, 16], strides = [1, 1]} : vector<16x16xf32> to vector<1x16xf32>
    %280 = arith.mulf %279, %266 : vector<1x16xf32>
    %cst_149 = arith.constant dense<0.000000e+00> : vector<1x16xf32>
    %281 = tpu.matmul %280, %0, %cst_149 {dimension_numbers = #tpu.dot_dimension_numbers<[1], [0], [0], [1], [0, 0, 1, 1], [], []>} : vector<1x16xf32>, vector<16x16xf32>, vector<1x16xf32> -> vector<1x16xf32>
    %282 = vector.extract_strided_slice %89 {offsets = [2, 0], sizes = [1, 16], strides = [1, 1]} : vector<16x16xf32> to vector<1x16xf32>
    %283 = arith.addf %281, %282 : vector<1x16xf32>
    %284 = vector.extract_strided_slice %90 {offsets = [2, 0], sizes = [1, 4], strides = [1, 1]} : vector<16x4xf32> to vector<1x4xf32>
    %285 = vector.extract_strided_slice %283 {offsets = [0, 0], sizes = [1, 4], strides = [1, 1]} : vector<1x16xf32> to vector<1x4xf32>
    %286 = arith.mulf %284, %285 : vector<1x4xf32>
    %cst_150 = arith.constant dense<0.000000e+00> : vector<1xf32>
    %287 = vector.multi_reduction <add>, %286, %cst_150 [1] : vector<1x4xf32> to vector<1xf32>
    %288 = vector.shape_cast %287 : vector<1xf32> to vector<1x1xf32>
    %289 = vector.extract_strided_slice %91 {offsets = [2, 0], sizes = [1, 1], strides = [1, 1]} : vector<16x1xf32> to vector<1x1xf32>
    %290 = arith.addf %288, %289 : vector<1x1xf32>
    %c2_i32 = arith.constant 2 : i32
    %291 = vector.broadcast %c2_i32 : i32 to vector<16x1xi32>
    %292 = arith.cmpi eq, %9, %291 : vector<16x1xi32>
    %293 = vector.shape_cast %290 : vector<1x1xf32> to vector<1x1xf32>
    %294 = vector.broadcast %293 : vector<1x1xf32> to vector<16x1xf32>
    %295 = arith.select %292, %294, %278 : vector<16x1xi1>, vector<16x1xf32>
    %296 = vector.extract_strided_slice %242 {offsets = [3, 0], sizes = [1, 16], strides = [1, 1]} : vector<16x16xf32> to vector<1x16xf32>
    %297 = arith.mulf %296, %283 : vector<1x16xf32>
    %cst_151 = arith.constant dense<0.000000e+00> : vector<1x16xf32>
    %298 = tpu.matmul %297, %0, %cst_151 {dimension_numbers = #tpu.dot_dimension_numbers<[1], [0], [0], [1], [0, 0, 1, 1], [], []>} : vector<1x16xf32>, vector<16x16xf32>, vector<1x16xf32> -> vector<1x16xf32>
    %299 = vector.extract_strided_slice %89 {offsets = [3, 0], sizes = [1, 16], strides = [1, 1]} : vector<16x16xf32> to vector<1x16xf32>
    %300 = arith.addf %298, %299 : vector<1x16xf32>
    %301 = vector.extract_strided_slice %90 {offsets = [3, 0], sizes = [1, 4], strides = [1, 1]} : vector<16x4xf32> to vector<1x4xf32>
    %302 = vector.extract_strided_slice %300 {offsets = [0, 0], sizes = [1, 4], strides = [1, 1]} : vector<1x16xf32> to vector<1x4xf32>
    %303 = arith.mulf %301, %302 : vector<1x4xf32>
    %cst_152 = arith.constant dense<0.000000e+00> : vector<1xf32>
    %304 = vector.multi_reduction <add>, %303, %cst_152 [1] : vector<1x4xf32> to vector<1xf32>
    %305 = vector.shape_cast %304 : vector<1xf32> to vector<1x1xf32>
    %306 = vector.extract_strided_slice %91 {offsets = [3, 0], sizes = [1, 1], strides = [1, 1]} : vector<16x1xf32> to vector<1x1xf32>
    %307 = arith.addf %305, %306 : vector<1x1xf32>
    %c3_i32 = arith.constant 3 : i32
    %308 = vector.broadcast %c3_i32 : i32 to vector<16x1xi32>
    %309 = arith.cmpi eq, %9, %308 : vector<16x1xi32>
    %310 = vector.shape_cast %307 : vector<1x1xf32> to vector<1x1xf32>
    %311 = vector.broadcast %310 : vector<1x1xf32> to vector<16x1xf32>
    %312 = arith.select %309, %311, %295 : vector<16x1xi1>, vector<16x1xf32>
    %313 = vector.extract_strided_slice %242 {offsets = [4, 0], sizes = [1, 16], strides = [1, 1]} : vector<16x16xf32> to vector<1x16xf32>
    %314 = arith.mulf %313, %300 : vector<1x16xf32>
    %cst_153 = arith.constant dense<0.000000e+00> : vector<1x16xf32>
    %315 = tpu.matmul %314, %0, %cst_153 {dimension_numbers = #tpu.dot_dimension_numbers<[1], [0], [0], [1], [0, 0, 1, 1], [], []>} : vector<1x16xf32>, vector<16x16xf32>, vector<1x16xf32> -> vector<1x16xf32>
    %316 = vector.extract_strided_slice %89 {offsets = [4, 0], sizes = [1, 16], strides = [1, 1]} : vector<16x16xf32> to vector<1x16xf32>
    %317 = arith.addf %315, %316 : vector<1x16xf32>
    %318 = vector.extract_strided_slice %90 {offsets = [4, 0], sizes = [1, 4], strides = [1, 1]} : vector<16x4xf32> to vector<1x4xf32>
    %319 = vector.extract_strided_slice %317 {offsets = [0, 0], sizes = [1, 4], strides = [1, 1]} : vector<1x16xf32> to vector<1x4xf32>
    %320 = arith.mulf %318, %319 : vector<1x4xf32>
    %cst_154 = arith.constant dense<0.000000e+00> : vector<1xf32>
    %321 = vector.multi_reduction <add>, %320, %cst_154 [1] : vector<1x4xf32> to vector<1xf32>
    %322 = vector.shape_cast %321 : vector<1xf32> to vector<1x1xf32>
    %323 = vector.extract_strided_slice %91 {offsets = [4, 0], sizes = [1, 1], strides = [1, 1]} : vector<16x1xf32> to vector<1x1xf32>
    %324 = arith.addf %322, %323 : vector<1x1xf32>
    %c4_i32 = arith.constant 4 : i32
    %325 = vector.broadcast %c4_i32 : i32 to vector<16x1xi32>
    %326 = arith.cmpi eq, %9, %325 : vector<16x1xi32>
    %327 = vector.shape_cast %324 : vector<1x1xf32> to vector<1x1xf32>
    %328 = vector.broadcast %327 : vector<1x1xf32> to vector<16x1xf32>
    %329 = arith.select %326, %328, %312 : vector<16x1xi1>, vector<16x1xf32>
    %330 = vector.extract_strided_slice %242 {offsets = [5, 0], sizes = [1, 16], strides = [1, 1]} : vector<16x16xf32> to vector<1x16xf32>
    %331 = arith.mulf %330, %317 : vector<1x16xf32>
    %cst_155 = arith.constant dense<0.000000e+00> : vector<1x16xf32>
    %332 = tpu.matmul %331, %0, %cst_155 {dimension_numbers = #tpu.dot_dimension_numbers<[1], [0], [0], [1], [0, 0, 1, 1], [], []>} : vector<1x16xf32>, vector<16x16xf32>, vector<1x16xf32> -> vector<1x16xf32>
    %333 = vector.extract_strided_slice %89 {offsets = [5, 0], sizes = [1, 16], strides = [1, 1]} : vector<16x16xf32> to vector<1x16xf32>
    %334 = arith.addf %332, %333 : vector<1x16xf32>
    %335 = vector.extract_strided_slice %90 {offsets = [5, 0], sizes = [1, 4], strides = [1, 1]} : vector<16x4xf32> to vector<1x4xf32>
    %336 = vector.extract_strided_slice %334 {offsets = [0, 0], sizes = [1, 4], strides = [1, 1]} : vector<1x16xf32> to vector<1x4xf32>
    %337 = arith.mulf %335, %336 : vector<1x4xf32>
    %cst_156 = arith.constant dense<0.000000e+00> : vector<1xf32>
    %338 = vector.multi_reduction <add>, %337, %cst_156 [1] : vector<1x4xf32> to vector<1xf32>
    %339 = vector.shape_cast %338 : vector<1xf32> to vector<1x1xf32>
    %340 = vector.extract_strided_slice %91 {offsets = [5, 0], sizes = [1, 1], strides = [1, 1]} : vector<16x1xf32> to vector<1x1xf32>
    %341 = arith.addf %339, %340 : vector<1x1xf32>
    %c5_i32 = arith.constant 5 : i32
    %342 = vector.broadcast %c5_i32 : i32 to vector<16x1xi32>
    %343 = arith.cmpi eq, %9, %342 : vector<16x1xi32>
    %344 = vector.shape_cast %341 : vector<1x1xf32> to vector<1x1xf32>
    %345 = vector.broadcast %344 : vector<1x1xf32> to vector<16x1xf32>
    %346 = arith.select %343, %345, %329 : vector<16x1xi1>, vector<16x1xf32>
    %347 = vector.extract_strided_slice %242 {offsets = [6, 0], sizes = [1, 16], strides = [1, 1]} : vector<16x16xf32> to vector<1x16xf32>
    %348 = arith.mulf %347, %334 : vector<1x16xf32>
    %cst_157 = arith.constant dense<0.000000e+00> : vector<1x16xf32>
    %349 = tpu.matmul %348, %0, %cst_157 {dimension_numbers = #tpu.dot_dimension_numbers<[1], [0], [0], [1], [0, 0, 1, 1], [], []>} : vector<1x16xf32>, vector<16x16xf32>, vector<1x16xf32> -> vector<1x16xf32>
    %350 = vector.extract_strided_slice %89 {offsets = [6, 0], sizes = [1, 16], strides = [1, 1]} : vector<16x16xf32> to vector<1x16xf32>
    %351 = arith.addf %349, %350 : vector<1x16xf32>
    %352 = vector.extract_strided_slice %90 {offsets = [6, 0], sizes = [1, 4], strides = [1, 1]} : vector<16x4xf32> to vector<1x4xf32>
    %353 = vector.extract_strided_slice %351 {offsets = [0, 0], sizes = [1, 4], strides = [1, 1]} : vector<1x16xf32> to vector<1x4xf32>
    %354 = arith.mulf %352, %353 : vector<1x4xf32>
    %cst_158 = arith.constant dense<0.000000e+00> : vector<1xf32>
    %355 = vector.multi_reduction <add>, %354, %cst_158 [1] : vector<1x4xf32> to vector<1xf32>
    %356 = vector.shape_cast %355 : vector<1xf32> to vector<1x1xf32>
    %357 = vector.extract_strided_slice %91 {offsets = [6, 0], sizes = [1, 1], strides = [1, 1]} : vector<16x1xf32> to vector<1x1xf32>
    %358 = arith.addf %356, %357 : vector<1x1xf32>
    %c6_i32 = arith.constant 6 : i32
    %359 = vector.broadcast %c6_i32 : i32 to vector<16x1xi32>
    %360 = arith.cmpi eq, %9, %359 : vector<16x1xi32>
    %361 = vector.shape_cast %358 : vector<1x1xf32> to vector<1x1xf32>
    %362 = vector.broadcast %361 : vector<1x1xf32> to vector<16x1xf32>
    %363 = arith.select %360, %362, %346 : vector<16x1xi1>, vector<16x1xf32>
    %364 = vector.extract_strided_slice %242 {offsets = [7, 0], sizes = [1, 16], strides = [1, 1]} : vector<16x16xf32> to vector<1x16xf32>
    %365 = arith.mulf %364, %351 : vector<1x16xf32>
    %cst_159 = arith.constant dense<0.000000e+00> : vector<1x16xf32>
    %366 = tpu.matmul %365, %0, %cst_159 {dimension_numbers = #tpu.dot_dimension_numbers<[1], [0], [0], [1], [0, 0, 1, 1], [], []>} : vector<1x16xf32>, vector<16x16xf32>, vector<1x16xf32> -> vector<1x16xf32>
    %367 = vector.extract_strided_slice %89 {offsets = [7, 0], sizes = [1, 16], strides = [1, 1]} : vector<16x16xf32> to vector<1x16xf32>
    %368 = arith.addf %366, %367 : vector<1x16xf32>
    %369 = vector.extract_strided_slice %90 {offsets = [7, 0], sizes = [1, 4], strides = [1, 1]} : vector<16x4xf32> to vector<1x4xf32>
    %370 = vector.extract_strided_slice %368 {offsets = [0, 0], sizes = [1, 4], strides = [1, 1]} : vector<1x16xf32> to vector<1x4xf32>
    %371 = arith.mulf %369, %370 : vector<1x4xf32>
    %cst_160 = arith.constant dense<0.000000e+00> : vector<1xf32>
    %372 = vector.multi_reduction <add>, %371, %cst_160 [1] : vector<1x4xf32> to vector<1xf32>
    %373 = vector.shape_cast %372 : vector<1xf32> to vector<1x1xf32>
    %374 = vector.extract_strided_slice %91 {offsets = [7, 0], sizes = [1, 1], strides = [1, 1]} : vector<16x1xf32> to vector<1x1xf32>
    %375 = arith.addf %373, %374 : vector<1x1xf32>
    %c7_i32 = arith.constant 7 : i32
    %376 = vector.broadcast %c7_i32 : i32 to vector<16x1xi32>
    %377 = arith.cmpi eq, %9, %376 : vector<16x1xi32>
    %378 = vector.shape_cast %375 : vector<1x1xf32> to vector<1x1xf32>
    %379 = vector.broadcast %378 : vector<1x1xf32> to vector<16x1xf32>
    %380 = arith.select %377, %379, %363 : vector<16x1xi1>, vector<16x1xf32>
    %381 = vector.extract_strided_slice %242 {offsets = [8, 0], sizes = [1, 16], strides = [1, 1]} : vector<16x16xf32> to vector<1x16xf32>
    %382 = arith.mulf %381, %368 : vector<1x16xf32>
    %cst_161 = arith.constant dense<0.000000e+00> : vector<1x16xf32>
    %383 = tpu.matmul %382, %0, %cst_161 {dimension_numbers = #tpu.dot_dimension_numbers<[1], [0], [0], [1], [0, 0, 1, 1], [], []>} : vector<1x16xf32>, vector<16x16xf32>, vector<1x16xf32> -> vector<1x16xf32>
    %384 = vector.extract_strided_slice %89 {offsets = [8, 0], sizes = [1, 16], strides = [1, 1]} : vector<16x16xf32> to vector<1x16xf32>
    %385 = arith.addf %383, %384 : vector<1x16xf32>
    %386 = vector.extract_strided_slice %90 {offsets = [8, 0], sizes = [1, 4], strides = [1, 1]} : vector<16x4xf32> to vector<1x4xf32>
    %387 = vector.extract_strided_slice %385 {offsets = [0, 0], sizes = [1, 4], strides = [1, 1]} : vector<1x16xf32> to vector<1x4xf32>
    %388 = arith.mulf %386, %387 : vector<1x4xf32>
    %cst_162 = arith.constant dense<0.000000e+00> : vector<1xf32>
    %389 = vector.multi_reduction <add>, %388, %cst_162 [1] : vector<1x4xf32> to vector<1xf32>
    %390 = vector.shape_cast %389 : vector<1xf32> to vector<1x1xf32>
    %391 = vector.extract_strided_slice %91 {offsets = [8, 0], sizes = [1, 1], strides = [1, 1]} : vector<16x1xf32> to vector<1x1xf32>
    %392 = arith.addf %390, %391 : vector<1x1xf32>
    %c8_i32 = arith.constant 8 : i32
    %393 = vector.broadcast %c8_i32 : i32 to vector<16x1xi32>
    %394 = arith.cmpi eq, %9, %393 : vector<16x1xi32>
    %395 = vector.shape_cast %392 : vector<1x1xf32> to vector<1x1xf32>
    %396 = vector.broadcast %395 : vector<1x1xf32> to vector<16x1xf32>
    %397 = arith.select %394, %396, %380 : vector<16x1xi1>, vector<16x1xf32>
    %398 = vector.extract_strided_slice %242 {offsets = [9, 0], sizes = [1, 16], strides = [1, 1]} : vector<16x16xf32> to vector<1x16xf32>
    %399 = arith.mulf %398, %385 : vector<1x16xf32>
    %cst_163 = arith.constant dense<0.000000e+00> : vector<1x16xf32>
    %400 = tpu.matmul %399, %0, %cst_163 {dimension_numbers = #tpu.dot_dimension_numbers<[1], [0], [0], [1], [0, 0, 1, 1], [], []>} : vector<1x16xf32>, vector<16x16xf32>, vector<1x16xf32> -> vector<1x16xf32>
    %401 = vector.extract_strided_slice %89 {offsets = [9, 0], sizes = [1, 16], strides = [1, 1]} : vector<16x16xf32> to vector<1x16xf32>
    %402 = arith.addf %400, %401 : vector<1x16xf32>
    %403 = vector.extract_strided_slice %90 {offsets = [9, 0], sizes = [1, 4], strides = [1, 1]} : vector<16x4xf32> to vector<1x4xf32>
    %404 = vector.extract_strided_slice %402 {offsets = [0, 0], sizes = [1, 4], strides = [1, 1]} : vector<1x16xf32> to vector<1x4xf32>
    %405 = arith.mulf %403, %404 : vector<1x4xf32>
    %cst_164 = arith.constant dense<0.000000e+00> : vector<1xf32>
    %406 = vector.multi_reduction <add>, %405, %cst_164 [1] : vector<1x4xf32> to vector<1xf32>
    %407 = vector.shape_cast %406 : vector<1xf32> to vector<1x1xf32>
    %408 = vector.extract_strided_slice %91 {offsets = [9, 0], sizes = [1, 1], strides = [1, 1]} : vector<16x1xf32> to vector<1x1xf32>
    %409 = arith.addf %407, %408 : vector<1x1xf32>
    %c9_i32 = arith.constant 9 : i32
    %410 = vector.broadcast %c9_i32 : i32 to vector<16x1xi32>
    %411 = arith.cmpi eq, %9, %410 : vector<16x1xi32>
    %412 = vector.shape_cast %409 : vector<1x1xf32> to vector<1x1xf32>
    %413 = vector.broadcast %412 : vector<1x1xf32> to vector<16x1xf32>
    %414 = arith.select %411, %413, %397 : vector<16x1xi1>, vector<16x1xf32>
    %415 = vector.extract_strided_slice %242 {offsets = [10, 0], sizes = [1, 16], strides = [1, 1]} : vector<16x16xf32> to vector<1x16xf32>
    %416 = arith.mulf %415, %402 : vector<1x16xf32>
    %cst_165 = arith.constant dense<0.000000e+00> : vector<1x16xf32>
    %417 = tpu.matmul %416, %0, %cst_165 {dimension_numbers = #tpu.dot_dimension_numbers<[1], [0], [0], [1], [0, 0, 1, 1], [], []>} : vector<1x16xf32>, vector<16x16xf32>, vector<1x16xf32> -> vector<1x16xf32>
    %418 = vector.extract_strided_slice %89 {offsets = [10, 0], sizes = [1, 16], strides = [1, 1]} : vector<16x16xf32> to vector<1x16xf32>
    %419 = arith.addf %417, %418 : vector<1x16xf32>
    %420 = vector.extract_strided_slice %90 {offsets = [10, 0], sizes = [1, 4], strides = [1, 1]} : vector<16x4xf32> to vector<1x4xf32>
    %421 = vector.extract_strided_slice %419 {offsets = [0, 0], sizes = [1, 4], strides = [1, 1]} : vector<1x16xf32> to vector<1x4xf32>
    %422 = arith.mulf %420, %421 : vector<1x4xf32>
    %cst_166 = arith.constant dense<0.000000e+00> : vector<1xf32>
    %423 = vector.multi_reduction <add>, %422, %cst_166 [1] : vector<1x4xf32> to vector<1xf32>
    %424 = vector.shape_cast %423 : vector<1xf32> to vector<1x1xf32>
    %425 = vector.extract_strided_slice %91 {offsets = [10, 0], sizes = [1, 1], strides = [1, 1]} : vector<16x1xf32> to vector<1x1xf32>
    %426 = arith.addf %424, %425 : vector<1x1xf32>
    %c10_i32 = arith.constant 10 : i32
    %427 = vector.broadcast %c10_i32 : i32 to vector<16x1xi32>
    %428 = arith.cmpi eq, %9, %427 : vector<16x1xi32>
    %429 = vector.shape_cast %426 : vector<1x1xf32> to vector<1x1xf32>
    %430 = vector.broadcast %429 : vector<1x1xf32> to vector<16x1xf32>
    %431 = arith.select %428, %430, %414 : vector<16x1xi1>, vector<16x1xf32>
    %432 = vector.extract_strided_slice %242 {offsets = [11, 0], sizes = [1, 16], strides = [1, 1]} : vector<16x16xf32> to vector<1x16xf32>
    %433 = arith.mulf %432, %419 : vector<1x16xf32>
    %cst_167 = arith.constant dense<0.000000e+00> : vector<1x16xf32>
    %434 = tpu.matmul %433, %0, %cst_167 {dimension_numbers = #tpu.dot_dimension_numbers<[1], [0], [0], [1], [0, 0, 1, 1], [], []>} : vector<1x16xf32>, vector<16x16xf32>, vector<1x16xf32> -> vector<1x16xf32>
    %435 = vector.extract_strided_slice %89 {offsets = [11, 0], sizes = [1, 16], strides = [1, 1]} : vector<16x16xf32> to vector<1x16xf32>
    %436 = arith.addf %434, %435 : vector<1x16xf32>
    %437 = vector.extract_strided_slice %90 {offsets = [11, 0], sizes = [1, 4], strides = [1, 1]} : vector<16x4xf32> to vector<1x4xf32>
    %438 = vector.extract_strided_slice %436 {offsets = [0, 0], sizes = [1, 4], strides = [1, 1]} : vector<1x16xf32> to vector<1x4xf32>
    %439 = arith.mulf %437, %438 : vector<1x4xf32>
    %cst_168 = arith.constant dense<0.000000e+00> : vector<1xf32>
    %440 = vector.multi_reduction <add>, %439, %cst_168 [1] : vector<1x4xf32> to vector<1xf32>
    %441 = vector.shape_cast %440 : vector<1xf32> to vector<1x1xf32>
    %442 = vector.extract_strided_slice %91 {offsets = [11, 0], sizes = [1, 1], strides = [1, 1]} : vector<16x1xf32> to vector<1x1xf32>
    %443 = arith.addf %441, %442 : vector<1x1xf32>
    %c11_i32 = arith.constant 11 : i32
    %444 = vector.broadcast %c11_i32 : i32 to vector<16x1xi32>
    %445 = arith.cmpi eq, %9, %444 : vector<16x1xi32>
    %446 = vector.shape_cast %443 : vector<1x1xf32> to vector<1x1xf32>
    %447 = vector.broadcast %446 : vector<1x1xf32> to vector<16x1xf32>
    %448 = arith.select %445, %447, %431 : vector<16x1xi1>, vector<16x1xf32>
    %449 = vector.extract_strided_slice %242 {offsets = [12, 0], sizes = [1, 16], strides = [1, 1]} : vector<16x16xf32> to vector<1x16xf32>
    %450 = arith.mulf %449, %436 : vector<1x16xf32>
    %cst_169 = arith.constant dense<0.000000e+00> : vector<1x16xf32>
    %451 = tpu.matmul %450, %0, %cst_169 {dimension_numbers = #tpu.dot_dimension_numbers<[1], [0], [0], [1], [0, 0, 1, 1], [], []>} : vector<1x16xf32>, vector<16x16xf32>, vector<1x16xf32> -> vector<1x16xf32>
    %452 = vector.extract_strided_slice %89 {offsets = [12, 0], sizes = [1, 16], strides = [1, 1]} : vector<16x16xf32> to vector<1x16xf32>
    %453 = arith.addf %451, %452 : vector<1x16xf32>
    %454 = vector.extract_strided_slice %90 {offsets = [12, 0], sizes = [1, 4], strides = [1, 1]} : vector<16x4xf32> to vector<1x4xf32>
    %455 = vector.extract_strided_slice %453 {offsets = [0, 0], sizes = [1, 4], strides = [1, 1]} : vector<1x16xf32> to vector<1x4xf32>
    %456 = arith.mulf %454, %455 : vector<1x4xf32>
    %cst_170 = arith.constant dense<0.000000e+00> : vector<1xf32>
    %457 = vector.multi_reduction <add>, %456, %cst_170 [1] : vector<1x4xf32> to vector<1xf32>
    %458 = vector.shape_cast %457 : vector<1xf32> to vector<1x1xf32>
    %459 = vector.extract_strided_slice %91 {offsets = [12, 0], sizes = [1, 1], strides = [1, 1]} : vector<16x1xf32> to vector<1x1xf32>
    %460 = arith.addf %458, %459 : vector<1x1xf32>
    %c12_i32 = arith.constant 12 : i32
    %461 = vector.broadcast %c12_i32 : i32 to vector<16x1xi32>
    %462 = arith.cmpi eq, %9, %461 : vector<16x1xi32>
    %463 = vector.shape_cast %460 : vector<1x1xf32> to vector<1x1xf32>
    %464 = vector.broadcast %463 : vector<1x1xf32> to vector<16x1xf32>
    %465 = arith.select %462, %464, %448 : vector<16x1xi1>, vector<16x1xf32>
    %466 = vector.extract_strided_slice %242 {offsets = [13, 0], sizes = [1, 16], strides = [1, 1]} : vector<16x16xf32> to vector<1x16xf32>
    %467 = arith.mulf %466, %453 : vector<1x16xf32>
    %cst_171 = arith.constant dense<0.000000e+00> : vector<1x16xf32>
    %468 = tpu.matmul %467, %0, %cst_171 {dimension_numbers = #tpu.dot_dimension_numbers<[1], [0], [0], [1], [0, 0, 1, 1], [], []>} : vector<1x16xf32>, vector<16x16xf32>, vector<1x16xf32> -> vector<1x16xf32>
    %469 = vector.extract_strided_slice %89 {offsets = [13, 0], sizes = [1, 16], strides = [1, 1]} : vector<16x16xf32> to vector<1x16xf32>
    %470 = arith.addf %468, %469 : vector<1x16xf32>
    %471 = vector.extract_strided_slice %90 {offsets = [13, 0], sizes = [1, 4], strides = [1, 1]} : vector<16x4xf32> to vector<1x4xf32>
    %472 = vector.extract_strided_slice %470 {offsets = [0, 0], sizes = [1, 4], strides = [1, 1]} : vector<1x16xf32> to vector<1x4xf32>
    %473 = arith.mulf %471, %472 : vector<1x4xf32>
    %cst_172 = arith.constant dense<0.000000e+00> : vector<1xf32>
    %474 = vector.multi_reduction <add>, %473, %cst_172 [1] : vector<1x4xf32> to vector<1xf32>
    %475 = vector.shape_cast %474 : vector<1xf32> to vector<1x1xf32>
    %476 = vector.extract_strided_slice %91 {offsets = [13, 0], sizes = [1, 1], strides = [1, 1]} : vector<16x1xf32> to vector<1x1xf32>
    %477 = arith.addf %475, %476 : vector<1x1xf32>
    %c13_i32 = arith.constant 13 : i32
    %478 = vector.broadcast %c13_i32 : i32 to vector<16x1xi32>
    %479 = arith.cmpi eq, %9, %478 : vector<16x1xi32>
    %480 = vector.shape_cast %477 : vector<1x1xf32> to vector<1x1xf32>
    %481 = vector.broadcast %480 : vector<1x1xf32> to vector<16x1xf32>
    %482 = arith.select %479, %481, %465 : vector<16x1xi1>, vector<16x1xf32>
    %483 = vector.extract_strided_slice %242 {offsets = [14, 0], sizes = [1, 16], strides = [1, 1]} : vector<16x16xf32> to vector<1x16xf32>
    %484 = arith.mulf %483, %470 : vector<1x16xf32>
    %cst_173 = arith.constant dense<0.000000e+00> : vector<1x16xf32>
    %485 = tpu.matmul %484, %0, %cst_173 {dimension_numbers = #tpu.dot_dimension_numbers<[1], [0], [0], [1], [0, 0, 1, 1], [], []>} : vector<1x16xf32>, vector<16x16xf32>, vector<1x16xf32> -> vector<1x16xf32>
    %486 = vector.extract_strided_slice %89 {offsets = [14, 0], sizes = [1, 16], strides = [1, 1]} : vector<16x16xf32> to vector<1x16xf32>
    %487 = arith.addf %485, %486 : vector<1x16xf32>
    %488 = vector.extract_strided_slice %90 {offsets = [14, 0], sizes = [1, 4], strides = [1, 1]} : vector<16x4xf32> to vector<1x4xf32>
    %489 = vector.extract_strided_slice %487 {offsets = [0, 0], sizes = [1, 4], strides = [1, 1]} : vector<1x16xf32> to vector<1x4xf32>
    %490 = arith.mulf %488, %489 : vector<1x4xf32>
    %cst_174 = arith.constant dense<0.000000e+00> : vector<1xf32>
    %491 = vector.multi_reduction <add>, %490, %cst_174 [1] : vector<1x4xf32> to vector<1xf32>
    %492 = vector.shape_cast %491 : vector<1xf32> to vector<1x1xf32>
    %493 = vector.extract_strided_slice %91 {offsets = [14, 0], sizes = [1, 1], strides = [1, 1]} : vector<16x1xf32> to vector<1x1xf32>
    %494 = arith.addf %492, %493 : vector<1x1xf32>
    %c14_i32 = arith.constant 14 : i32
    %495 = vector.broadcast %c14_i32 : i32 to vector<16x1xi32>
    %496 = arith.cmpi eq, %9, %495 : vector<16x1xi32>
    %497 = vector.shape_cast %494 : vector<1x1xf32> to vector<1x1xf32>
    %498 = vector.broadcast %497 : vector<1x1xf32> to vector<16x1xf32>
    %499 = arith.select %496, %498, %482 : vector<16x1xi1>, vector<16x1xf32>
    %500 = vector.extract_strided_slice %242 {offsets = [15, 0], sizes = [1, 16], strides = [1, 1]} : vector<16x16xf32> to vector<1x16xf32>
    %501 = arith.mulf %500, %487 : vector<1x16xf32>
    %cst_175 = arith.constant dense<0.000000e+00> : vector<1x16xf32>
    %502 = tpu.matmul %501, %0, %cst_175 {dimension_numbers = #tpu.dot_dimension_numbers<[1], [0], [0], [1], [0, 0, 1, 1], [], []>} : vector<1x16xf32>, vector<16x16xf32>, vector<1x16xf32> -> vector<1x16xf32>
    %503 = vector.extract_strided_slice %89 {offsets = [15, 0], sizes = [1, 16], strides = [1, 1]} : vector<16x16xf32> to vector<1x16xf32>
    %504 = arith.addf %502, %503 : vector<1x16xf32>
    %505 = vector.extract_strided_slice %90 {offsets = [15, 0], sizes = [1, 4], strides = [1, 1]} : vector<16x4xf32> to vector<1x4xf32>
    %506 = vector.extract_strided_slice %504 {offsets = [0, 0], sizes = [1, 4], strides = [1, 1]} : vector<1x16xf32> to vector<1x4xf32>
    %507 = arith.mulf %505, %506 : vector<1x4xf32>
    %cst_176 = arith.constant dense<0.000000e+00> : vector<1xf32>
    %508 = vector.multi_reduction <add>, %507, %cst_176 [1] : vector<1x4xf32> to vector<1xf32>
    %509 = vector.shape_cast %508 : vector<1xf32> to vector<1x1xf32>
    %510 = vector.extract_strided_slice %91 {offsets = [15, 0], sizes = [1, 1], strides = [1, 1]} : vector<16x1xf32> to vector<1x1xf32>
    %511 = arith.addf %509, %510 : vector<1x1xf32>
    %c15_i32 = arith.constant 15 : i32
    %512 = vector.broadcast %c15_i32 : i32 to vector<16x1xi32>
    %513 = arith.cmpi eq, %9, %512 : vector<16x1xi32>
    %514 = vector.shape_cast %511 : vector<1x1xf32> to vector<1x1xf32>
    %515 = vector.broadcast %514 : vector<1x1xf32> to vector<16x1xf32>
    %516 = arith.select %513, %515, %499 : vector<16x1xi1>, vector<16x1xf32>
    %517 = arith.negf %516 : vector<16x1xf32>
    %518 = math.exp %517 : vector<16x1xf32>
    %cst_177 = arith.constant 1.000000e+00 : f32
    %519 = vector.broadcast %cst_177 : f32 to vector<16x1xf32>
    %520 = arith.addf %519, %518 : vector<16x1xf32>
    %521 = arith.divf %519, %520 : vector<16x1xf32>
    %522 = arith.mulf %516, %521 : vector<16x1xf32>
    %523 = vector.broadcast %522 : vector<16x1xf32> to vector<16x16xf32>
    %524 = arith.mulf %46, %523 : vector<16x16xf32>
    %c0_178 = arith.constant 0 : index
    %c0_179 = arith.constant 0 : index
    %c0_180 = arith.constant 0 : index
    %525 = vector.load %arg14[%c0_178, %c0_179, %c0_180] : memref<2x16x8xf32, #tpu.memory_space<vmem>>, vector<1x16x8xf32>
    %526 = vector.shape_cast %525 : vector<1x16x8xf32> to vector<16x8xf32>
    %cst_181 = arith.constant dense<0.000000e+00> : vector<16x8xf32>
    %527 = tpu.matmul %524, %526, %cst_181 {dimension_numbers = #tpu.dot_dimension_numbers<[1], [0], [0], [1], [0, 0, 1, 1], [], []>} : vector<16x16xf32>, vector<16x8xf32>, vector<16x8xf32> -> vector<16x8xf32>
    %528 = arith.addf %527, %17 : vector<16x8xf32>
    %c1_182 = arith.constant 1 : index
    %c0_183 = arith.constant 0 : index
    %c0_184 = arith.constant 0 : index
    %529 = vector.load %arg4[%c1_182, %c0_183, %c0_184] : memref<2x1x8xf32, #tpu.memory_space<vmem>>, vector<1x1x8xf32>
    %530 = vector.shape_cast %529 : vector<1x1x8xf32> to vector<1x8xf32>
    %c1_185 = arith.constant 1 : index
    %c0_186 = arith.constant 0 : index
    %c0_187 = arith.constant 0 : index
    %531 = vector.load %arg5[%c1_185, %c0_186, %c0_187] : memref<2x1x8xf32, #tpu.memory_space<vmem>>, vector<1x1x8xf32>
    %532 = vector.shape_cast %531 : vector<1x1x8xf32> to vector<1x8xf32>
    %cst_188 = arith.constant dense<0.000000e+00> : vector<16xf32>
    %533 = vector.multi_reduction <add>, %528, %cst_188 [1] : vector<16x8xf32> to vector<16xf32>
    %534 = vector.shape_cast %533 : vector<16xf32> to vector<16x1xf32>
    %cst_189 = arith.constant 8.000000e+00 : f32
    %535 = vector.broadcast %cst_189 : f32 to vector<16x1xf32>
    %536 = arith.divf %534, %535 : vector<16x1xf32>
    %537 = vector.broadcast %536 : vector<16x1xf32> to vector<16x8xf32>
    %538 = arith.subf %528, %537 : vector<16x8xf32>
    %539 = arith.mulf %538, %538 : vector<16x8xf32>
    %cst_190 = arith.constant dense<0.000000e+00> : vector<16xf32>
    %540 = vector.multi_reduction <add>, %539, %cst_190 [1] : vector<16x8xf32> to vector<16xf32>
    %541 = vector.shape_cast %540 : vector<16xf32> to vector<16x1xf32>
    %cst_191 = arith.constant 8.000000e+00 : f32
    %542 = vector.broadcast %cst_191 : f32 to vector<16x1xf32>
    %543 = arith.divf %541, %542 : vector<16x1xf32>
    %cst_192 = arith.constant 9.99999974E-6 : f32
    %544 = vector.broadcast %cst_192 : f32 to vector<16x1xf32>
    %545 = arith.addf %543, %544 : vector<16x1xf32>
    %546 = math.rsqrt %545 : vector<16x1xf32>
    %547 = vector.broadcast %546 : vector<16x1xf32> to vector<16x8xf32>
    %548 = arith.mulf %538, %547 : vector<16x8xf32>
    %549 = vector.broadcast %530 : vector<1x8xf32> to vector<16x8xf32>
    %550 = arith.mulf %548, %549 : vector<16x8xf32>
    %551 = vector.broadcast %532 : vector<1x8xf32> to vector<16x8xf32>
    %552 = arith.addf %550, %551 : vector<16x8xf32>
    %c1_193 = arith.constant 1 : index
    %c0_194 = arith.constant 0 : index
    %c0_195 = arith.constant 0 : index
    %553 = vector.load %arg6[%c1_193, %c0_194, %c0_195] : memref<2x8x32xf32, #tpu.memory_space<vmem>>, vector<1x8x32xf32>
    %554 = vector.shape_cast %553 : vector<1x8x32xf32> to vector<8x32xf32>
    %cst_196 = arith.constant dense<0.000000e+00> : vector<16x32xf32>
    %555 = tpu.matmul %552, %554, %cst_196 {dimension_numbers = #tpu.dot_dimension_numbers<[1], [0], [0], [1], [0, 0, 1, 1], [], []>} : vector<16x8xf32>, vector<8x32xf32>, vector<16x32xf32> -> vector<16x32xf32>
    %556 = vector.extract_strided_slice %555 {offsets = [0, 0], sizes = [16, 16], strides = [1, 1]} : vector<16x32xf32> to vector<16x16xf32>
    %557 = vector.extract_strided_slice %555 {offsets = [0, 16], sizes = [16, 16], strides = [1, 1]} : vector<16x32xf32> to vector<16x16xf32>
    %cst_197 = arith.constant 0.000000e+00 : f32
    %558 = vector.broadcast %cst_197 : f32 to vector<16x16xf32>
    %c1_198 = arith.constant 1 : index
    %c0_199 = arith.constant 0 : index
    %c0_200 = arith.constant 0 : index
    %559 = vector.load %arg8[%c1_198, %c0_199, %c0_200] : memref<2x1x16xf32, #tpu.memory_space<vmem>>, vector<1x1x16xf32>
    %560 = vector.shape_cast %559 : vector<1x1x16xf32> to vector<1x16xf32>
    %561 = vector.broadcast %560 : vector<1x16xf32> to vector<16x16xf32>
    %562 = arith.addf %558, %561 : vector<16x16xf32>
    %cst_201 = arith.constant dense<0.000000e+00> : vector<16x16xf32>
    %563 = tpu.matmul %2, %556, %cst_201 {dimension_numbers = #tpu.dot_dimension_numbers<[1], [0], [0], [1], [0, 0, 1, 1], [], []>} : vector<16x16xf32>, vector<16x16xf32>, vector<16x16xf32> -> vector<16x16xf32>
    %c1_202 = arith.constant 1 : index
    %c0_203 = arith.constant 0 : index
    %c0_204 = arith.constant 0 : index
    %c0_205 = arith.constant 0 : index
    %564 = vector.load %arg7[%c1_202, %c0_203, %c0_204, %c0_205] : memref<2x4x1x16xf32, #tpu.memory_space<vmem>>, vector<1x1x1x16xf32>
    %565 = vector.shape_cast %564 : vector<1x1x1x16xf32> to vector<1x16xf32>
    %566 = vector.broadcast %565 : vector<1x16xf32> to vector<16x16xf32>
    %567 = arith.mulf %563, %566 : vector<16x16xf32>
    %568 = arith.addf %562, %567 : vector<16x16xf32>
    %cst_206 = arith.constant dense<0.000000e+00> : vector<16x16xf32>
    %569 = tpu.matmul %4, %556, %cst_206 {dimension_numbers = #tpu.dot_dimension_numbers<[1], [0], [0], [1], [0, 0, 1, 1], [], []>} : vector<16x16xf32>, vector<16x16xf32>, vector<16x16xf32> -> vector<16x16xf32>
    %c1_207 = arith.constant 1 : index
    %c1_208 = arith.constant 1 : index
    %c0_209 = arith.constant 0 : index
    %c0_210 = arith.constant 0 : index
    %570 = vector.load %arg7[%c1_207, %c1_208, %c0_209, %c0_210] : memref<2x4x1x16xf32, #tpu.memory_space<vmem>>, vector<1x1x1x16xf32>
    %571 = vector.shape_cast %570 : vector<1x1x1x16xf32> to vector<1x16xf32>
    %572 = vector.broadcast %571 : vector<1x16xf32> to vector<16x16xf32>
    %573 = arith.mulf %569, %572 : vector<16x16xf32>
    %574 = arith.addf %568, %573 : vector<16x16xf32>
    %cst_211 = arith.constant dense<0.000000e+00> : vector<16x16xf32>
    %575 = tpu.matmul %6, %556, %cst_211 {dimension_numbers = #tpu.dot_dimension_numbers<[1], [0], [0], [1], [0, 0, 1, 1], [], []>} : vector<16x16xf32>, vector<16x16xf32>, vector<16x16xf32> -> vector<16x16xf32>
    %c1_212 = arith.constant 1 : index
    %c2_213 = arith.constant 2 : index
    %c0_214 = arith.constant 0 : index
    %c0_215 = arith.constant 0 : index
    %576 = vector.load %arg7[%c1_212, %c2_213, %c0_214, %c0_215] : memref<2x4x1x16xf32, #tpu.memory_space<vmem>>, vector<1x1x1x16xf32>
    %577 = vector.shape_cast %576 : vector<1x1x1x16xf32> to vector<1x16xf32>
    %578 = vector.broadcast %577 : vector<1x16xf32> to vector<16x16xf32>
    %579 = arith.mulf %575, %578 : vector<16x16xf32>
    %580 = arith.addf %574, %579 : vector<16x16xf32>
    %cst_216 = arith.constant dense<0.000000e+00> : vector<16x16xf32>
    %581 = tpu.matmul %8, %556, %cst_216 {dimension_numbers = #tpu.dot_dimension_numbers<[1], [0], [0], [1], [0, 0, 1, 1], [], []>} : vector<16x16xf32>, vector<16x16xf32>, vector<16x16xf32> -> vector<16x16xf32>
    %c1_217 = arith.constant 1 : index
    %c3_218 = arith.constant 3 : index
    %c0_219 = arith.constant 0 : index
    %c0_220 = arith.constant 0 : index
    %582 = vector.load %arg7[%c1_217, %c3_218, %c0_219, %c0_220] : memref<2x4x1x16xf32, #tpu.memory_space<vmem>>, vector<1x1x1x16xf32>
    %583 = vector.shape_cast %582 : vector<1x1x1x16xf32> to vector<1x16xf32>
    %584 = vector.broadcast %583 : vector<1x16xf32> to vector<16x16xf32>
    %585 = arith.mulf %581, %584 : vector<16x16xf32>
    %586 = arith.addf %580, %585 : vector<16x16xf32>
    %c1_221 = arith.constant 1 : index
    %c0_222 = arith.constant 0 : index
    %c0_223 = arith.constant 0 : index
    %587 = vector.load %arg9[%c1_221, %c0_222, %c0_223] : memref<2x16x22xf32, #tpu.memory_space<vmem>>, vector<1x16x22xf32>
    %588 = vector.shape_cast %587 : vector<1x16x22xf32> to vector<16x22xf32>
    %cst_224 = arith.constant dense<0.000000e+00> : vector<16x22xf32>
    %589 = tpu.matmul %586, %588, %cst_224 {dimension_numbers = #tpu.dot_dimension_numbers<[1], [0], [0], [1], [0, 0, 1, 1], [], []>} : vector<16x16xf32>, vector<16x22xf32>, vector<16x22xf32> -> vector<16x22xf32>
    %c1_225 = arith.constant 1 : index
    %c0_226 = arith.constant 0 : index
    %c0_227 = arith.constant 0 : index
    %590 = vector.load %arg10[%c1_225, %c0_226, %c0_227] : memref<2x1x22xf32, #tpu.memory_space<vmem>>, vector<1x1x22xf32>
    %591 = vector.shape_cast %590 : vector<1x1x22xf32> to vector<1x22xf32>
    %592 = vector.broadcast %591 : vector<1x22xf32> to vector<16x22xf32>
    %593 = arith.addf %589, %592 : vector<16x22xf32>
    %594 = vector.extract_strided_slice %593 {offsets = [0, 0], sizes = [16, 1], strides = [1, 1]} : vector<16x22xf32> to vector<16x1xf32>
    %595 = arith.negf %594 : vector<16x1xf32>
    %596 = math.exp %595 : vector<16x1xf32>
    %cst_228 = arith.constant 1.000000e+00 : f32
    %597 = vector.broadcast %cst_228 : f32 to vector<16x1xf32>
    %598 = arith.addf %597, %596 : vector<16x1xf32>
    %599 = arith.divf %597, %598 : vector<16x1xf32>
    %600 = vector.extract_strided_slice %593 {offsets = [0, 1], sizes = [16, 16], strides = [1, 1]} : vector<16x22xf32> to vector<16x16xf32>
    %601 = vector.extract_strided_slice %593 {offsets = [0, 17], sizes = [16, 4], strides = [1, 1]} : vector<16x22xf32> to vector<16x4xf32>
    %602 = vector.extract_strided_slice %593 {offsets = [0, 21], sizes = [16, 1], strides = [1, 1]} : vector<16x22xf32> to vector<16x1xf32>
    %cst_229 = arith.constant 0.000000e+00 : f32
    %603 = vector.broadcast %cst_229 : f32 to vector<16x16xf32>
    %cst_230 = arith.constant 1.000000e+00 : f32
    %604 = vector.broadcast %cst_230 : f32 to vector<16x1xf32>
    %c1_231 = arith.constant 1 : index
    %c0_232 = arith.constant 0 : index
    %c0_233 = arith.constant 0 : index
    %c0_234 = arith.constant 0 : index
    %605 = vector.load %arg11[%c1_231, %c0_232, %c0_233, %c0_234] : memref<2x25x16x16xf32, #tpu.memory_space<vmem>>, vector<1x1x16x16xf32>
    %606 = vector.shape_cast %605 : vector<1x1x16x16xf32> to vector<16x16xf32>
    %607 = vector.broadcast %604 : vector<16x1xf32> to vector<16x16xf32>
    %608 = arith.mulf %607, %606 : vector<16x16xf32>
    %609 = arith.addf %603, %608 : vector<16x16xf32>
    %610 = arith.mulf %604, %599 : vector<16x1xf32>
    %c1_235 = arith.constant 1 : index
    %c1_236 = arith.constant 1 : index
    %c0_237 = arith.constant 0 : index
    %c0_238 = arith.constant 0 : index
    %611 = vector.load %arg11[%c1_235, %c1_236, %c0_237, %c0_238] : memref<2x25x16x16xf32, #tpu.memory_space<vmem>>, vector<1x1x16x16xf32>
    %612 = vector.shape_cast %611 : vector<1x1x16x16xf32> to vector<16x16xf32>
    %613 = vector.broadcast %610 : vector<16x1xf32> to vector<16x16xf32>
    %614 = arith.mulf %613, %612 : vector<16x16xf32>
    %615 = arith.addf %609, %614 : vector<16x16xf32>
    %616 = arith.mulf %610, %599 : vector<16x1xf32>
    %c1_239 = arith.constant 1 : index
    %c2_240 = arith.constant 2 : index
    %c0_241 = arith.constant 0 : index
    %c0_242 = arith.constant 0 : index
    %617 = vector.load %arg11[%c1_239, %c2_240, %c0_241, %c0_242] : memref<2x25x16x16xf32, #tpu.memory_space<vmem>>, vector<1x1x16x16xf32>
    %618 = vector.shape_cast %617 : vector<1x1x16x16xf32> to vector<16x16xf32>
    %619 = vector.broadcast %616 : vector<16x1xf32> to vector<16x16xf32>
    %620 = arith.mulf %619, %618 : vector<16x16xf32>
    %621 = arith.addf %615, %620 : vector<16x16xf32>
    %622 = arith.mulf %616, %599 : vector<16x1xf32>
    %c1_243 = arith.constant 1 : index
    %c3_244 = arith.constant 3 : index
    %c0_245 = arith.constant 0 : index
    %c0_246 = arith.constant 0 : index
    %623 = vector.load %arg11[%c1_243, %c3_244, %c0_245, %c0_246] : memref<2x25x16x16xf32, #tpu.memory_space<vmem>>, vector<1x1x16x16xf32>
    %624 = vector.shape_cast %623 : vector<1x1x16x16xf32> to vector<16x16xf32>
    %625 = vector.broadcast %622 : vector<16x1xf32> to vector<16x16xf32>
    %626 = arith.mulf %625, %624 : vector<16x16xf32>
    %627 = arith.addf %621, %626 : vector<16x16xf32>
    %628 = arith.mulf %622, %599 : vector<16x1xf32>
    %c1_247 = arith.constant 1 : index
    %c4_248 = arith.constant 4 : index
    %c0_249 = arith.constant 0 : index
    %c0_250 = arith.constant 0 : index
    %629 = vector.load %arg11[%c1_247, %c4_248, %c0_249, %c0_250] : memref<2x25x16x16xf32, #tpu.memory_space<vmem>>, vector<1x1x16x16xf32>
    %630 = vector.shape_cast %629 : vector<1x1x16x16xf32> to vector<16x16xf32>
    %631 = vector.broadcast %628 : vector<16x1xf32> to vector<16x16xf32>
    %632 = arith.mulf %631, %630 : vector<16x16xf32>
    %633 = arith.addf %627, %632 : vector<16x16xf32>
    %634 = arith.mulf %628, %599 : vector<16x1xf32>
    %c1_251 = arith.constant 1 : index
    %c5_252 = arith.constant 5 : index
    %c0_253 = arith.constant 0 : index
    %c0_254 = arith.constant 0 : index
    %635 = vector.load %arg11[%c1_251, %c5_252, %c0_253, %c0_254] : memref<2x25x16x16xf32, #tpu.memory_space<vmem>>, vector<1x1x16x16xf32>
    %636 = vector.shape_cast %635 : vector<1x1x16x16xf32> to vector<16x16xf32>
    %637 = vector.broadcast %634 : vector<16x1xf32> to vector<16x16xf32>
    %638 = arith.mulf %637, %636 : vector<16x16xf32>
    %639 = arith.addf %633, %638 : vector<16x16xf32>
    %640 = arith.mulf %634, %599 : vector<16x1xf32>
    %c1_255 = arith.constant 1 : index
    %c6_256 = arith.constant 6 : index
    %c0_257 = arith.constant 0 : index
    %c0_258 = arith.constant 0 : index
    %641 = vector.load %arg11[%c1_255, %c6_256, %c0_257, %c0_258] : memref<2x25x16x16xf32, #tpu.memory_space<vmem>>, vector<1x1x16x16xf32>
    %642 = vector.shape_cast %641 : vector<1x1x16x16xf32> to vector<16x16xf32>
    %643 = vector.broadcast %640 : vector<16x1xf32> to vector<16x16xf32>
    %644 = arith.mulf %643, %642 : vector<16x16xf32>
    %645 = arith.addf %639, %644 : vector<16x16xf32>
    %646 = arith.mulf %640, %599 : vector<16x1xf32>
    %c1_259 = arith.constant 1 : index
    %c7_260 = arith.constant 7 : index
    %c0_261 = arith.constant 0 : index
    %c0_262 = arith.constant 0 : index
    %647 = vector.load %arg11[%c1_259, %c7_260, %c0_261, %c0_262] : memref<2x25x16x16xf32, #tpu.memory_space<vmem>>, vector<1x1x16x16xf32>
    %648 = vector.shape_cast %647 : vector<1x1x16x16xf32> to vector<16x16xf32>
    %649 = vector.broadcast %646 : vector<16x1xf32> to vector<16x16xf32>
    %650 = arith.mulf %649, %648 : vector<16x16xf32>
    %651 = arith.addf %645, %650 : vector<16x16xf32>
    %652 = arith.mulf %646, %599 : vector<16x1xf32>
    %c1_263 = arith.constant 1 : index
    %c8_264 = arith.constant 8 : index
    %c0_265 = arith.constant 0 : index
    %c0_266 = arith.constant 0 : index
    %653 = vector.load %arg11[%c1_263, %c8_264, %c0_265, %c0_266] : memref<2x25x16x16xf32, #tpu.memory_space<vmem>>, vector<1x1x16x16xf32>
    %654 = vector.shape_cast %653 : vector<1x1x16x16xf32> to vector<16x16xf32>
    %655 = vector.broadcast %652 : vector<16x1xf32> to vector<16x16xf32>
    %656 = arith.mulf %655, %654 : vector<16x16xf32>
    %657 = arith.addf %651, %656 : vector<16x16xf32>
    %658 = arith.mulf %652, %599 : vector<16x1xf32>
    %c1_267 = arith.constant 1 : index
    %c9_268 = arith.constant 9 : index
    %c0_269 = arith.constant 0 : index
    %c0_270 = arith.constant 0 : index
    %659 = vector.load %arg11[%c1_267, %c9_268, %c0_269, %c0_270] : memref<2x25x16x16xf32, #tpu.memory_space<vmem>>, vector<1x1x16x16xf32>
    %660 = vector.shape_cast %659 : vector<1x1x16x16xf32> to vector<16x16xf32>
    %661 = vector.broadcast %658 : vector<16x1xf32> to vector<16x16xf32>
    %662 = arith.mulf %661, %660 : vector<16x16xf32>
    %663 = arith.addf %657, %662 : vector<16x16xf32>
    %664 = arith.mulf %658, %599 : vector<16x1xf32>
    %c1_271 = arith.constant 1 : index
    %c10_272 = arith.constant 10 : index
    %c0_273 = arith.constant 0 : index
    %c0_274 = arith.constant 0 : index
    %665 = vector.load %arg11[%c1_271, %c10_272, %c0_273, %c0_274] : memref<2x25x16x16xf32, #tpu.memory_space<vmem>>, vector<1x1x16x16xf32>
    %666 = vector.shape_cast %665 : vector<1x1x16x16xf32> to vector<16x16xf32>
    %667 = vector.broadcast %664 : vector<16x1xf32> to vector<16x16xf32>
    %668 = arith.mulf %667, %666 : vector<16x16xf32>
    %669 = arith.addf %663, %668 : vector<16x16xf32>
    %670 = arith.mulf %664, %599 : vector<16x1xf32>
    %c1_275 = arith.constant 1 : index
    %c11_276 = arith.constant 11 : index
    %c0_277 = arith.constant 0 : index
    %c0_278 = arith.constant 0 : index
    %671 = vector.load %arg11[%c1_275, %c11_276, %c0_277, %c0_278] : memref<2x25x16x16xf32, #tpu.memory_space<vmem>>, vector<1x1x16x16xf32>
    %672 = vector.shape_cast %671 : vector<1x1x16x16xf32> to vector<16x16xf32>
    %673 = vector.broadcast %670 : vector<16x1xf32> to vector<16x16xf32>
    %674 = arith.mulf %673, %672 : vector<16x16xf32>
    %675 = arith.addf %669, %674 : vector<16x16xf32>
    %676 = arith.mulf %670, %599 : vector<16x1xf32>
    %c1_279 = arith.constant 1 : index
    %c12_280 = arith.constant 12 : index
    %c0_281 = arith.constant 0 : index
    %c0_282 = arith.constant 0 : index
    %677 = vector.load %arg11[%c1_279, %c12_280, %c0_281, %c0_282] : memref<2x25x16x16xf32, #tpu.memory_space<vmem>>, vector<1x1x16x16xf32>
    %678 = vector.shape_cast %677 : vector<1x1x16x16xf32> to vector<16x16xf32>
    %679 = vector.broadcast %676 : vector<16x1xf32> to vector<16x16xf32>
    %680 = arith.mulf %679, %678 : vector<16x16xf32>
    %681 = arith.addf %675, %680 : vector<16x16xf32>
    %682 = arith.mulf %676, %599 : vector<16x1xf32>
    %c1_283 = arith.constant 1 : index
    %c13_284 = arith.constant 13 : index
    %c0_285 = arith.constant 0 : index
    %c0_286 = arith.constant 0 : index
    %683 = vector.load %arg11[%c1_283, %c13_284, %c0_285, %c0_286] : memref<2x25x16x16xf32, #tpu.memory_space<vmem>>, vector<1x1x16x16xf32>
    %684 = vector.shape_cast %683 : vector<1x1x16x16xf32> to vector<16x16xf32>
    %685 = vector.broadcast %682 : vector<16x1xf32> to vector<16x16xf32>
    %686 = arith.mulf %685, %684 : vector<16x16xf32>
    %687 = arith.addf %681, %686 : vector<16x16xf32>
    %688 = arith.mulf %682, %599 : vector<16x1xf32>
    %c1_287 = arith.constant 1 : index
    %c14_288 = arith.constant 14 : index
    %c0_289 = arith.constant 0 : index
    %c0_290 = arith.constant 0 : index
    %689 = vector.load %arg11[%c1_287, %c14_288, %c0_289, %c0_290] : memref<2x25x16x16xf32, #tpu.memory_space<vmem>>, vector<1x1x16x16xf32>
    %690 = vector.shape_cast %689 : vector<1x1x16x16xf32> to vector<16x16xf32>
    %691 = vector.broadcast %688 : vector<16x1xf32> to vector<16x16xf32>
    %692 = arith.mulf %691, %690 : vector<16x16xf32>
    %693 = arith.addf %687, %692 : vector<16x16xf32>
    %694 = arith.mulf %688, %599 : vector<16x1xf32>
    %c1_291 = arith.constant 1 : index
    %c15_292 = arith.constant 15 : index
    %c0_293 = arith.constant 0 : index
    %c0_294 = arith.constant 0 : index
    %695 = vector.load %arg11[%c1_291, %c15_292, %c0_293, %c0_294] : memref<2x25x16x16xf32, #tpu.memory_space<vmem>>, vector<1x1x16x16xf32>
    %696 = vector.shape_cast %695 : vector<1x1x16x16xf32> to vector<16x16xf32>
    %697 = vector.broadcast %694 : vector<16x1xf32> to vector<16x16xf32>
    %698 = arith.mulf %697, %696 : vector<16x16xf32>
    %699 = arith.addf %693, %698 : vector<16x16xf32>
    %700 = arith.mulf %694, %599 : vector<16x1xf32>
    %c1_295 = arith.constant 1 : index
    %c16_296 = arith.constant 16 : index
    %c0_297 = arith.constant 0 : index
    %c0_298 = arith.constant 0 : index
    %701 = vector.load %arg11[%c1_295, %c16_296, %c0_297, %c0_298] : memref<2x25x16x16xf32, #tpu.memory_space<vmem>>, vector<1x1x16x16xf32>
    %702 = vector.shape_cast %701 : vector<1x1x16x16xf32> to vector<16x16xf32>
    %703 = vector.broadcast %700 : vector<16x1xf32> to vector<16x16xf32>
    %704 = arith.mulf %703, %702 : vector<16x16xf32>
    %705 = arith.addf %699, %704 : vector<16x16xf32>
    %706 = arith.mulf %700, %599 : vector<16x1xf32>
    %c1_299 = arith.constant 1 : index
    %c17_300 = arith.constant 17 : index
    %c0_301 = arith.constant 0 : index
    %c0_302 = arith.constant 0 : index
    %707 = vector.load %arg11[%c1_299, %c17_300, %c0_301, %c0_302] : memref<2x25x16x16xf32, #tpu.memory_space<vmem>>, vector<1x1x16x16xf32>
    %708 = vector.shape_cast %707 : vector<1x1x16x16xf32> to vector<16x16xf32>
    %709 = vector.broadcast %706 : vector<16x1xf32> to vector<16x16xf32>
    %710 = arith.mulf %709, %708 : vector<16x16xf32>
    %711 = arith.addf %705, %710 : vector<16x16xf32>
    %712 = arith.mulf %706, %599 : vector<16x1xf32>
    %c1_303 = arith.constant 1 : index
    %c18_304 = arith.constant 18 : index
    %c0_305 = arith.constant 0 : index
    %c0_306 = arith.constant 0 : index
    %713 = vector.load %arg11[%c1_303, %c18_304, %c0_305, %c0_306] : memref<2x25x16x16xf32, #tpu.memory_space<vmem>>, vector<1x1x16x16xf32>
    %714 = vector.shape_cast %713 : vector<1x1x16x16xf32> to vector<16x16xf32>
    %715 = vector.broadcast %712 : vector<16x1xf32> to vector<16x16xf32>
    %716 = arith.mulf %715, %714 : vector<16x16xf32>
    %717 = arith.addf %711, %716 : vector<16x16xf32>
    %718 = arith.mulf %712, %599 : vector<16x1xf32>
    %c1_307 = arith.constant 1 : index
    %c19_308 = arith.constant 19 : index
    %c0_309 = arith.constant 0 : index
    %c0_310 = arith.constant 0 : index
    %719 = vector.load %arg11[%c1_307, %c19_308, %c0_309, %c0_310] : memref<2x25x16x16xf32, #tpu.memory_space<vmem>>, vector<1x1x16x16xf32>
    %720 = vector.shape_cast %719 : vector<1x1x16x16xf32> to vector<16x16xf32>
    %721 = vector.broadcast %718 : vector<16x1xf32> to vector<16x16xf32>
    %722 = arith.mulf %721, %720 : vector<16x16xf32>
    %723 = arith.addf %717, %722 : vector<16x16xf32>
    %724 = arith.mulf %718, %599 : vector<16x1xf32>
    %c1_311 = arith.constant 1 : index
    %c20_312 = arith.constant 20 : index
    %c0_313 = arith.constant 0 : index
    %c0_314 = arith.constant 0 : index
    %725 = vector.load %arg11[%c1_311, %c20_312, %c0_313, %c0_314] : memref<2x25x16x16xf32, #tpu.memory_space<vmem>>, vector<1x1x16x16xf32>
    %726 = vector.shape_cast %725 : vector<1x1x16x16xf32> to vector<16x16xf32>
    %727 = vector.broadcast %724 : vector<16x1xf32> to vector<16x16xf32>
    %728 = arith.mulf %727, %726 : vector<16x16xf32>
    %729 = arith.addf %723, %728 : vector<16x16xf32>
    %730 = arith.mulf %724, %599 : vector<16x1xf32>
    %c1_315 = arith.constant 1 : index
    %c21_316 = arith.constant 21 : index
    %c0_317 = arith.constant 0 : index
    %c0_318 = arith.constant 0 : index
    %731 = vector.load %arg11[%c1_315, %c21_316, %c0_317, %c0_318] : memref<2x25x16x16xf32, #tpu.memory_space<vmem>>, vector<1x1x16x16xf32>
    %732 = vector.shape_cast %731 : vector<1x1x16x16xf32> to vector<16x16xf32>
    %733 = vector.broadcast %730 : vector<16x1xf32> to vector<16x16xf32>
    %734 = arith.mulf %733, %732 : vector<16x16xf32>
    %735 = arith.addf %729, %734 : vector<16x16xf32>
    %736 = arith.mulf %730, %599 : vector<16x1xf32>
    %c1_319 = arith.constant 1 : index
    %c22_320 = arith.constant 22 : index
    %c0_321 = arith.constant 0 : index
    %c0_322 = arith.constant 0 : index
    %737 = vector.load %arg11[%c1_319, %c22_320, %c0_321, %c0_322] : memref<2x25x16x16xf32, #tpu.memory_space<vmem>>, vector<1x1x16x16xf32>
    %738 = vector.shape_cast %737 : vector<1x1x16x16xf32> to vector<16x16xf32>
    %739 = vector.broadcast %736 : vector<16x1xf32> to vector<16x16xf32>
    %740 = arith.mulf %739, %738 : vector<16x16xf32>
    %741 = arith.addf %735, %740 : vector<16x16xf32>
    %742 = arith.mulf %736, %599 : vector<16x1xf32>
    %c1_323 = arith.constant 1 : index
    %c23_324 = arith.constant 23 : index
    %c0_325 = arith.constant 0 : index
    %c0_326 = arith.constant 0 : index
    %743 = vector.load %arg11[%c1_323, %c23_324, %c0_325, %c0_326] : memref<2x25x16x16xf32, #tpu.memory_space<vmem>>, vector<1x1x16x16xf32>
    %744 = vector.shape_cast %743 : vector<1x1x16x16xf32> to vector<16x16xf32>
    %745 = vector.broadcast %742 : vector<16x1xf32> to vector<16x16xf32>
    %746 = arith.mulf %745, %744 : vector<16x16xf32>
    %747 = arith.addf %741, %746 : vector<16x16xf32>
    %748 = arith.mulf %742, %599 : vector<16x1xf32>
    %c1_327 = arith.constant 1 : index
    %c24_328 = arith.constant 24 : index
    %c0_329 = arith.constant 0 : index
    %c0_330 = arith.constant 0 : index
    %749 = vector.load %arg11[%c1_327, %c24_328, %c0_329, %c0_330] : memref<2x25x16x16xf32, #tpu.memory_space<vmem>>, vector<1x1x16x16xf32>
    %750 = vector.shape_cast %749 : vector<1x1x16x16xf32> to vector<16x16xf32>
    %751 = vector.broadcast %748 : vector<16x1xf32> to vector<16x16xf32>
    %752 = arith.mulf %751, %750 : vector<16x16xf32>
    %753 = arith.addf %747, %752 : vector<16x16xf32>
    %cst_331 = arith.constant 0.000000e+00 : f32
    %754 = vector.broadcast %cst_331 : f32 to vector<1x16xf32>
    %cst_332 = arith.constant 0.000000e+00 : f32
    %755 = vector.broadcast %cst_332 : f32 to vector<16x1xf32>
    %756 = vector.extract_strided_slice %753 {offsets = [0, 0], sizes = [1, 16], strides = [1, 1]} : vector<16x16xf32> to vector<1x16xf32>
    %757 = arith.mulf %756, %754 : vector<1x16xf32>
    %cst_333 = arith.constant dense<0.000000e+00> : vector<1x16xf32>
    %758 = tpu.matmul %757, %0, %cst_333 {dimension_numbers = #tpu.dot_dimension_numbers<[1], [0], [0], [1], [0, 0, 1, 1], [], []>} : vector<1x16xf32>, vector<16x16xf32>, vector<1x16xf32> -> vector<1x16xf32>
    %759 = vector.extract_strided_slice %600 {offsets = [0, 0], sizes = [1, 16], strides = [1, 1]} : vector<16x16xf32> to vector<1x16xf32>
    %760 = arith.addf %758, %759 : vector<1x16xf32>
    %761 = vector.extract_strided_slice %601 {offsets = [0, 0], sizes = [1, 4], strides = [1, 1]} : vector<16x4xf32> to vector<1x4xf32>
    %762 = vector.extract_strided_slice %760 {offsets = [0, 0], sizes = [1, 4], strides = [1, 1]} : vector<1x16xf32> to vector<1x4xf32>
    %763 = arith.mulf %761, %762 : vector<1x4xf32>
    %cst_334 = arith.constant dense<0.000000e+00> : vector<1xf32>
    %764 = vector.multi_reduction <add>, %763, %cst_334 [1] : vector<1x4xf32> to vector<1xf32>
    %765 = vector.shape_cast %764 : vector<1xf32> to vector<1x1xf32>
    %766 = vector.extract_strided_slice %602 {offsets = [0, 0], sizes = [1, 1], strides = [1, 1]} : vector<16x1xf32> to vector<1x1xf32>
    %767 = arith.addf %765, %766 : vector<1x1xf32>
    %c0_i32_335 = arith.constant 0 : i32
    %768 = vector.broadcast %c0_i32_335 : i32 to vector<16x1xi32>
    %769 = arith.cmpi eq, %9, %768 : vector<16x1xi32>
    %770 = vector.shape_cast %767 : vector<1x1xf32> to vector<1x1xf32>
    %771 = vector.broadcast %770 : vector<1x1xf32> to vector<16x1xf32>
    %772 = arith.select %769, %771, %755 : vector<16x1xi1>, vector<16x1xf32>
    %773 = vector.extract_strided_slice %753 {offsets = [1, 0], sizes = [1, 16], strides = [1, 1]} : vector<16x16xf32> to vector<1x16xf32>
    %774 = arith.mulf %773, %760 : vector<1x16xf32>
    %cst_336 = arith.constant dense<0.000000e+00> : vector<1x16xf32>
    %775 = tpu.matmul %774, %0, %cst_336 {dimension_numbers = #tpu.dot_dimension_numbers<[1], [0], [0], [1], [0, 0, 1, 1], [], []>} : vector<1x16xf32>, vector<16x16xf32>, vector<1x16xf32> -> vector<1x16xf32>
    %776 = vector.extract_strided_slice %600 {offsets = [1, 0], sizes = [1, 16], strides = [1, 1]} : vector<16x16xf32> to vector<1x16xf32>
    %777 = arith.addf %775, %776 : vector<1x16xf32>
    %778 = vector.extract_strided_slice %601 {offsets = [1, 0], sizes = [1, 4], strides = [1, 1]} : vector<16x4xf32> to vector<1x4xf32>
    %779 = vector.extract_strided_slice %777 {offsets = [0, 0], sizes = [1, 4], strides = [1, 1]} : vector<1x16xf32> to vector<1x4xf32>
    %780 = arith.mulf %778, %779 : vector<1x4xf32>
    %cst_337 = arith.constant dense<0.000000e+00> : vector<1xf32>
    %781 = vector.multi_reduction <add>, %780, %cst_337 [1] : vector<1x4xf32> to vector<1xf32>
    %782 = vector.shape_cast %781 : vector<1xf32> to vector<1x1xf32>
    %783 = vector.extract_strided_slice %602 {offsets = [1, 0], sizes = [1, 1], strides = [1, 1]} : vector<16x1xf32> to vector<1x1xf32>
    %784 = arith.addf %782, %783 : vector<1x1xf32>
    %c1_i32_338 = arith.constant 1 : i32
    %785 = vector.broadcast %c1_i32_338 : i32 to vector<16x1xi32>
    %786 = arith.cmpi eq, %9, %785 : vector<16x1xi32>
    %787 = vector.shape_cast %784 : vector<1x1xf32> to vector<1x1xf32>
    %788 = vector.broadcast %787 : vector<1x1xf32> to vector<16x1xf32>
    %789 = arith.select %786, %788, %772 : vector<16x1xi1>, vector<16x1xf32>
    %790 = vector.extract_strided_slice %753 {offsets = [2, 0], sizes = [1, 16], strides = [1, 1]} : vector<16x16xf32> to vector<1x16xf32>
    %791 = arith.mulf %790, %777 : vector<1x16xf32>
    %cst_339 = arith.constant dense<0.000000e+00> : vector<1x16xf32>
    %792 = tpu.matmul %791, %0, %cst_339 {dimension_numbers = #tpu.dot_dimension_numbers<[1], [0], [0], [1], [0, 0, 1, 1], [], []>} : vector<1x16xf32>, vector<16x16xf32>, vector<1x16xf32> -> vector<1x16xf32>
    %793 = vector.extract_strided_slice %600 {offsets = [2, 0], sizes = [1, 16], strides = [1, 1]} : vector<16x16xf32> to vector<1x16xf32>
    %794 = arith.addf %792, %793 : vector<1x16xf32>
    %795 = vector.extract_strided_slice %601 {offsets = [2, 0], sizes = [1, 4], strides = [1, 1]} : vector<16x4xf32> to vector<1x4xf32>
    %796 = vector.extract_strided_slice %794 {offsets = [0, 0], sizes = [1, 4], strides = [1, 1]} : vector<1x16xf32> to vector<1x4xf32>
    %797 = arith.mulf %795, %796 : vector<1x4xf32>
    %cst_340 = arith.constant dense<0.000000e+00> : vector<1xf32>
    %798 = vector.multi_reduction <add>, %797, %cst_340 [1] : vector<1x4xf32> to vector<1xf32>
    %799 = vector.shape_cast %798 : vector<1xf32> to vector<1x1xf32>
    %800 = vector.extract_strided_slice %602 {offsets = [2, 0], sizes = [1, 1], strides = [1, 1]} : vector<16x1xf32> to vector<1x1xf32>
    %801 = arith.addf %799, %800 : vector<1x1xf32>
    %c2_i32_341 = arith.constant 2 : i32
    %802 = vector.broadcast %c2_i32_341 : i32 to vector<16x1xi32>
    %803 = arith.cmpi eq, %9, %802 : vector<16x1xi32>
    %804 = vector.shape_cast %801 : vector<1x1xf32> to vector<1x1xf32>
    %805 = vector.broadcast %804 : vector<1x1xf32> to vector<16x1xf32>
    %806 = arith.select %803, %805, %789 : vector<16x1xi1>, vector<16x1xf32>
    %807 = vector.extract_strided_slice %753 {offsets = [3, 0], sizes = [1, 16], strides = [1, 1]} : vector<16x16xf32> to vector<1x16xf32>
    %808 = arith.mulf %807, %794 : vector<1x16xf32>
    %cst_342 = arith.constant dense<0.000000e+00> : vector<1x16xf32>
    %809 = tpu.matmul %808, %0, %cst_342 {dimension_numbers = #tpu.dot_dimension_numbers<[1], [0], [0], [1], [0, 0, 1, 1], [], []>} : vector<1x16xf32>, vector<16x16xf32>, vector<1x16xf32> -> vector<1x16xf32>
    %810 = vector.extract_strided_slice %600 {offsets = [3, 0], sizes = [1, 16], strides = [1, 1]} : vector<16x16xf32> to vector<1x16xf32>
    %811 = arith.addf %809, %810 : vector<1x16xf32>
    %812 = vector.extract_strided_slice %601 {offsets = [3, 0], sizes = [1, 4], strides = [1, 1]} : vector<16x4xf32> to vector<1x4xf32>
    %813 = vector.extract_strided_slice %811 {offsets = [0, 0], sizes = [1, 4], strides = [1, 1]} : vector<1x16xf32> to vector<1x4xf32>
    %814 = arith.mulf %812, %813 : vector<1x4xf32>
    %cst_343 = arith.constant dense<0.000000e+00> : vector<1xf32>
    %815 = vector.multi_reduction <add>, %814, %cst_343 [1] : vector<1x4xf32> to vector<1xf32>
    %816 = vector.shape_cast %815 : vector<1xf32> to vector<1x1xf32>
    %817 = vector.extract_strided_slice %602 {offsets = [3, 0], sizes = [1, 1], strides = [1, 1]} : vector<16x1xf32> to vector<1x1xf32>
    %818 = arith.addf %816, %817 : vector<1x1xf32>
    %c3_i32_344 = arith.constant 3 : i32
    %819 = vector.broadcast %c3_i32_344 : i32 to vector<16x1xi32>
    %820 = arith.cmpi eq, %9, %819 : vector<16x1xi32>
    %821 = vector.shape_cast %818 : vector<1x1xf32> to vector<1x1xf32>
    %822 = vector.broadcast %821 : vector<1x1xf32> to vector<16x1xf32>
    %823 = arith.select %820, %822, %806 : vector<16x1xi1>, vector<16x1xf32>
    %824 = vector.extract_strided_slice %753 {offsets = [4, 0], sizes = [1, 16], strides = [1, 1]} : vector<16x16xf32> to vector<1x16xf32>
    %825 = arith.mulf %824, %811 : vector<1x16xf32>
    %cst_345 = arith.constant dense<0.000000e+00> : vector<1x16xf32>
    %826 = tpu.matmul %825, %0, %cst_345 {dimension_numbers = #tpu.dot_dimension_numbers<[1], [0], [0], [1], [0, 0, 1, 1], [], []>} : vector<1x16xf32>, vector<16x16xf32>, vector<1x16xf32> -> vector<1x16xf32>
    %827 = vector.extract_strided_slice %600 {offsets = [4, 0], sizes = [1, 16], strides = [1, 1]} : vector<16x16xf32> to vector<1x16xf32>
    %828 = arith.addf %826, %827 : vector<1x16xf32>
    %829 = vector.extract_strided_slice %601 {offsets = [4, 0], sizes = [1, 4], strides = [1, 1]} : vector<16x4xf32> to vector<1x4xf32>
    %830 = vector.extract_strided_slice %828 {offsets = [0, 0], sizes = [1, 4], strides = [1, 1]} : vector<1x16xf32> to vector<1x4xf32>
    %831 = arith.mulf %829, %830 : vector<1x4xf32>
    %cst_346 = arith.constant dense<0.000000e+00> : vector<1xf32>
    %832 = vector.multi_reduction <add>, %831, %cst_346 [1] : vector<1x4xf32> to vector<1xf32>
    %833 = vector.shape_cast %832 : vector<1xf32> to vector<1x1xf32>
    %834 = vector.extract_strided_slice %602 {offsets = [4, 0], sizes = [1, 1], strides = [1, 1]} : vector<16x1xf32> to vector<1x1xf32>
    %835 = arith.addf %833, %834 : vector<1x1xf32>
    %c4_i32_347 = arith.constant 4 : i32
    %836 = vector.broadcast %c4_i32_347 : i32 to vector<16x1xi32>
    %837 = arith.cmpi eq, %9, %836 : vector<16x1xi32>
    %838 = vector.shape_cast %835 : vector<1x1xf32> to vector<1x1xf32>
    %839 = vector.broadcast %838 : vector<1x1xf32> to vector<16x1xf32>
    %840 = arith.select %837, %839, %823 : vector<16x1xi1>, vector<16x1xf32>
    %841 = vector.extract_strided_slice %753 {offsets = [5, 0], sizes = [1, 16], strides = [1, 1]} : vector<16x16xf32> to vector<1x16xf32>
    %842 = arith.mulf %841, %828 : vector<1x16xf32>
    %cst_348 = arith.constant dense<0.000000e+00> : vector<1x16xf32>
    %843 = tpu.matmul %842, %0, %cst_348 {dimension_numbers = #tpu.dot_dimension_numbers<[1], [0], [0], [1], [0, 0, 1, 1], [], []>} : vector<1x16xf32>, vector<16x16xf32>, vector<1x16xf32> -> vector<1x16xf32>
    %844 = vector.extract_strided_slice %600 {offsets = [5, 0], sizes = [1, 16], strides = [1, 1]} : vector<16x16xf32> to vector<1x16xf32>
    %845 = arith.addf %843, %844 : vector<1x16xf32>
    %846 = vector.extract_strided_slice %601 {offsets = [5, 0], sizes = [1, 4], strides = [1, 1]} : vector<16x4xf32> to vector<1x4xf32>
    %847 = vector.extract_strided_slice %845 {offsets = [0, 0], sizes = [1, 4], strides = [1, 1]} : vector<1x16xf32> to vector<1x4xf32>
    %848 = arith.mulf %846, %847 : vector<1x4xf32>
    %cst_349 = arith.constant dense<0.000000e+00> : vector<1xf32>
    %849 = vector.multi_reduction <add>, %848, %cst_349 [1] : vector<1x4xf32> to vector<1xf32>
    %850 = vector.shape_cast %849 : vector<1xf32> to vector<1x1xf32>
    %851 = vector.extract_strided_slice %602 {offsets = [5, 0], sizes = [1, 1], strides = [1, 1]} : vector<16x1xf32> to vector<1x1xf32>
    %852 = arith.addf %850, %851 : vector<1x1xf32>
    %c5_i32_350 = arith.constant 5 : i32
    %853 = vector.broadcast %c5_i32_350 : i32 to vector<16x1xi32>
    %854 = arith.cmpi eq, %9, %853 : vector<16x1xi32>
    %855 = vector.shape_cast %852 : vector<1x1xf32> to vector<1x1xf32>
    %856 = vector.broadcast %855 : vector<1x1xf32> to vector<16x1xf32>
    %857 = arith.select %854, %856, %840 : vector<16x1xi1>, vector<16x1xf32>
    %858 = vector.extract_strided_slice %753 {offsets = [6, 0], sizes = [1, 16], strides = [1, 1]} : vector<16x16xf32> to vector<1x16xf32>
    %859 = arith.mulf %858, %845 : vector<1x16xf32>
    %cst_351 = arith.constant dense<0.000000e+00> : vector<1x16xf32>
    %860 = tpu.matmul %859, %0, %cst_351 {dimension_numbers = #tpu.dot_dimension_numbers<[1], [0], [0], [1], [0, 0, 1, 1], [], []>} : vector<1x16xf32>, vector<16x16xf32>, vector<1x16xf32> -> vector<1x16xf32>
    %861 = vector.extract_strided_slice %600 {offsets = [6, 0], sizes = [1, 16], strides = [1, 1]} : vector<16x16xf32> to vector<1x16xf32>
    %862 = arith.addf %860, %861 : vector<1x16xf32>
    %863 = vector.extract_strided_slice %601 {offsets = [6, 0], sizes = [1, 4], strides = [1, 1]} : vector<16x4xf32> to vector<1x4xf32>
    %864 = vector.extract_strided_slice %862 {offsets = [0, 0], sizes = [1, 4], strides = [1, 1]} : vector<1x16xf32> to vector<1x4xf32>
    %865 = arith.mulf %863, %864 : vector<1x4xf32>
    %cst_352 = arith.constant dense<0.000000e+00> : vector<1xf32>
    %866 = vector.multi_reduction <add>, %865, %cst_352 [1] : vector<1x4xf32> to vector<1xf32>
    %867 = vector.shape_cast %866 : vector<1xf32> to vector<1x1xf32>
    %868 = vector.extract_strided_slice %602 {offsets = [6, 0], sizes = [1, 1], strides = [1, 1]} : vector<16x1xf32> to vector<1x1xf32>
    %869 = arith.addf %867, %868 : vector<1x1xf32>
    %c6_i32_353 = arith.constant 6 : i32
    %870 = vector.broadcast %c6_i32_353 : i32 to vector<16x1xi32>
    %871 = arith.cmpi eq, %9, %870 : vector<16x1xi32>
    %872 = vector.shape_cast %869 : vector<1x1xf32> to vector<1x1xf32>
    %873 = vector.broadcast %872 : vector<1x1xf32> to vector<16x1xf32>
    %874 = arith.select %871, %873, %857 : vector<16x1xi1>, vector<16x1xf32>
    %875 = vector.extract_strided_slice %753 {offsets = [7, 0], sizes = [1, 16], strides = [1, 1]} : vector<16x16xf32> to vector<1x16xf32>
    %876 = arith.mulf %875, %862 : vector<1x16xf32>
    %cst_354 = arith.constant dense<0.000000e+00> : vector<1x16xf32>
    %877 = tpu.matmul %876, %0, %cst_354 {dimension_numbers = #tpu.dot_dimension_numbers<[1], [0], [0], [1], [0, 0, 1, 1], [], []>} : vector<1x16xf32>, vector<16x16xf32>, vector<1x16xf32> -> vector<1x16xf32>
    %878 = vector.extract_strided_slice %600 {offsets = [7, 0], sizes = [1, 16], strides = [1, 1]} : vector<16x16xf32> to vector<1x16xf32>
    %879 = arith.addf %877, %878 : vector<1x16xf32>
    %880 = vector.extract_strided_slice %601 {offsets = [7, 0], sizes = [1, 4], strides = [1, 1]} : vector<16x4xf32> to vector<1x4xf32>
    %881 = vector.extract_strided_slice %879 {offsets = [0, 0], sizes = [1, 4], strides = [1, 1]} : vector<1x16xf32> to vector<1x4xf32>
    %882 = arith.mulf %880, %881 : vector<1x4xf32>
    %cst_355 = arith.constant dense<0.000000e+00> : vector<1xf32>
    %883 = vector.multi_reduction <add>, %882, %cst_355 [1] : vector<1x4xf32> to vector<1xf32>
    %884 = vector.shape_cast %883 : vector<1xf32> to vector<1x1xf32>
    %885 = vector.extract_strided_slice %602 {offsets = [7, 0], sizes = [1, 1], strides = [1, 1]} : vector<16x1xf32> to vector<1x1xf32>
    %886 = arith.addf %884, %885 : vector<1x1xf32>
    %c7_i32_356 = arith.constant 7 : i32
    %887 = vector.broadcast %c7_i32_356 : i32 to vector<16x1xi32>
    %888 = arith.cmpi eq, %9, %887 : vector<16x1xi32>
    %889 = vector.shape_cast %886 : vector<1x1xf32> to vector<1x1xf32>
    %890 = vector.broadcast %889 : vector<1x1xf32> to vector<16x1xf32>
    %891 = arith.select %888, %890, %874 : vector<16x1xi1>, vector<16x1xf32>
    %892 = vector.extract_strided_slice %753 {offsets = [8, 0], sizes = [1, 16], strides = [1, 1]} : vector<16x16xf32> to vector<1x16xf32>
    %893 = arith.mulf %892, %879 : vector<1x16xf32>
    %cst_357 = arith.constant dense<0.000000e+00> : vector<1x16xf32>
    %894 = tpu.matmul %893, %0, %cst_357 {dimension_numbers = #tpu.dot_dimension_numbers<[1], [0], [0], [1], [0, 0, 1, 1], [], []>} : vector<1x16xf32>, vector<16x16xf32>, vector<1x16xf32> -> vector<1x16xf32>
    %895 = vector.extract_strided_slice %600 {offsets = [8, 0], sizes = [1, 16], strides = [1, 1]} : vector<16x16xf32> to vector<1x16xf32>
    %896 = arith.addf %894, %895 : vector<1x16xf32>
    %897 = vector.extract_strided_slice %601 {offsets = [8, 0], sizes = [1, 4], strides = [1, 1]} : vector<16x4xf32> to vector<1x4xf32>
    %898 = vector.extract_strided_slice %896 {offsets = [0, 0], sizes = [1, 4], strides = [1, 1]} : vector<1x16xf32> to vector<1x4xf32>
    %899 = arith.mulf %897, %898 : vector<1x4xf32>
    %cst_358 = arith.constant dense<0.000000e+00> : vector<1xf32>
    %900 = vector.multi_reduction <add>, %899, %cst_358 [1] : vector<1x4xf32> to vector<1xf32>
    %901 = vector.shape_cast %900 : vector<1xf32> to vector<1x1xf32>
    %902 = vector.extract_strided_slice %602 {offsets = [8, 0], sizes = [1, 1], strides = [1, 1]} : vector<16x1xf32> to vector<1x1xf32>
    %903 = arith.addf %901, %902 : vector<1x1xf32>
    %c8_i32_359 = arith.constant 8 : i32
    %904 = vector.broadcast %c8_i32_359 : i32 to vector<16x1xi32>
    %905 = arith.cmpi eq, %9, %904 : vector<16x1xi32>
    %906 = vector.shape_cast %903 : vector<1x1xf32> to vector<1x1xf32>
    %907 = vector.broadcast %906 : vector<1x1xf32> to vector<16x1xf32>
    %908 = arith.select %905, %907, %891 : vector<16x1xi1>, vector<16x1xf32>
    %909 = vector.extract_strided_slice %753 {offsets = [9, 0], sizes = [1, 16], strides = [1, 1]} : vector<16x16xf32> to vector<1x16xf32>
    %910 = arith.mulf %909, %896 : vector<1x16xf32>
    %cst_360 = arith.constant dense<0.000000e+00> : vector<1x16xf32>
    %911 = tpu.matmul %910, %0, %cst_360 {dimension_numbers = #tpu.dot_dimension_numbers<[1], [0], [0], [1], [0, 0, 1, 1], [], []>} : vector<1x16xf32>, vector<16x16xf32>, vector<1x16xf32> -> vector<1x16xf32>
    %912 = vector.extract_strided_slice %600 {offsets = [9, 0], sizes = [1, 16], strides = [1, 1]} : vector<16x16xf32> to vector<1x16xf32>
    %913 = arith.addf %911, %912 : vector<1x16xf32>
    %914 = vector.extract_strided_slice %601 {offsets = [9, 0], sizes = [1, 4], strides = [1, 1]} : vector<16x4xf32> to vector<1x4xf32>
    %915 = vector.extract_strided_slice %913 {offsets = [0, 0], sizes = [1, 4], strides = [1, 1]} : vector<1x16xf32> to vector<1x4xf32>
    %916 = arith.mulf %914, %915 : vector<1x4xf32>
    %cst_361 = arith.constant dense<0.000000e+00> : vector<1xf32>
    %917 = vector.multi_reduction <add>, %916, %cst_361 [1] : vector<1x4xf32> to vector<1xf32>
    %918 = vector.shape_cast %917 : vector<1xf32> to vector<1x1xf32>
    %919 = vector.extract_strided_slice %602 {offsets = [9, 0], sizes = [1, 1], strides = [1, 1]} : vector<16x1xf32> to vector<1x1xf32>
    %920 = arith.addf %918, %919 : vector<1x1xf32>
    %c9_i32_362 = arith.constant 9 : i32
    %921 = vector.broadcast %c9_i32_362 : i32 to vector<16x1xi32>
    %922 = arith.cmpi eq, %9, %921 : vector<16x1xi32>
    %923 = vector.shape_cast %920 : vector<1x1xf32> to vector<1x1xf32>
    %924 = vector.broadcast %923 : vector<1x1xf32> to vector<16x1xf32>
    %925 = arith.select %922, %924, %908 : vector<16x1xi1>, vector<16x1xf32>
    %926 = vector.extract_strided_slice %753 {offsets = [10, 0], sizes = [1, 16], strides = [1, 1]} : vector<16x16xf32> to vector<1x16xf32>
    %927 = arith.mulf %926, %913 : vector<1x16xf32>
    %cst_363 = arith.constant dense<0.000000e+00> : vector<1x16xf32>
    %928 = tpu.matmul %927, %0, %cst_363 {dimension_numbers = #tpu.dot_dimension_numbers<[1], [0], [0], [1], [0, 0, 1, 1], [], []>} : vector<1x16xf32>, vector<16x16xf32>, vector<1x16xf32> -> vector<1x16xf32>
    %929 = vector.extract_strided_slice %600 {offsets = [10, 0], sizes = [1, 16], strides = [1, 1]} : vector<16x16xf32> to vector<1x16xf32>
    %930 = arith.addf %928, %929 : vector<1x16xf32>
    %931 = vector.extract_strided_slice %601 {offsets = [10, 0], sizes = [1, 4], strides = [1, 1]} : vector<16x4xf32> to vector<1x4xf32>
    %932 = vector.extract_strided_slice %930 {offsets = [0, 0], sizes = [1, 4], strides = [1, 1]} : vector<1x16xf32> to vector<1x4xf32>
    %933 = arith.mulf %931, %932 : vector<1x4xf32>
    %cst_364 = arith.constant dense<0.000000e+00> : vector<1xf32>
    %934 = vector.multi_reduction <add>, %933, %cst_364 [1] : vector<1x4xf32> to vector<1xf32>
    %935 = vector.shape_cast %934 : vector<1xf32> to vector<1x1xf32>
    %936 = vector.extract_strided_slice %602 {offsets = [10, 0], sizes = [1, 1], strides = [1, 1]} : vector<16x1xf32> to vector<1x1xf32>
    %937 = arith.addf %935, %936 : vector<1x1xf32>
    %c10_i32_365 = arith.constant 10 : i32
    %938 = vector.broadcast %c10_i32_365 : i32 to vector<16x1xi32>
    %939 = arith.cmpi eq, %9, %938 : vector<16x1xi32>
    %940 = vector.shape_cast %937 : vector<1x1xf32> to vector<1x1xf32>
    %941 = vector.broadcast %940 : vector<1x1xf32> to vector<16x1xf32>
    %942 = arith.select %939, %941, %925 : vector<16x1xi1>, vector<16x1xf32>
    %943 = vector.extract_strided_slice %753 {offsets = [11, 0], sizes = [1, 16], strides = [1, 1]} : vector<16x16xf32> to vector<1x16xf32>
    %944 = arith.mulf %943, %930 : vector<1x16xf32>
    %cst_366 = arith.constant dense<0.000000e+00> : vector<1x16xf32>
    %945 = tpu.matmul %944, %0, %cst_366 {dimension_numbers = #tpu.dot_dimension_numbers<[1], [0], [0], [1], [0, 0, 1, 1], [], []>} : vector<1x16xf32>, vector<16x16xf32>, vector<1x16xf32> -> vector<1x16xf32>
    %946 = vector.extract_strided_slice %600 {offsets = [11, 0], sizes = [1, 16], strides = [1, 1]} : vector<16x16xf32> to vector<1x16xf32>
    %947 = arith.addf %945, %946 : vector<1x16xf32>
    %948 = vector.extract_strided_slice %601 {offsets = [11, 0], sizes = [1, 4], strides = [1, 1]} : vector<16x4xf32> to vector<1x4xf32>
    %949 = vector.extract_strided_slice %947 {offsets = [0, 0], sizes = [1, 4], strides = [1, 1]} : vector<1x16xf32> to vector<1x4xf32>
    %950 = arith.mulf %948, %949 : vector<1x4xf32>
    %cst_367 = arith.constant dense<0.000000e+00> : vector<1xf32>
    %951 = vector.multi_reduction <add>, %950, %cst_367 [1] : vector<1x4xf32> to vector<1xf32>
    %952 = vector.shape_cast %951 : vector<1xf32> to vector<1x1xf32>
    %953 = vector.extract_strided_slice %602 {offsets = [11, 0], sizes = [1, 1], strides = [1, 1]} : vector<16x1xf32> to vector<1x1xf32>
    %954 = arith.addf %952, %953 : vector<1x1xf32>
    %c11_i32_368 = arith.constant 11 : i32
    %955 = vector.broadcast %c11_i32_368 : i32 to vector<16x1xi32>
    %956 = arith.cmpi eq, %9, %955 : vector<16x1xi32>
    %957 = vector.shape_cast %954 : vector<1x1xf32> to vector<1x1xf32>
    %958 = vector.broadcast %957 : vector<1x1xf32> to vector<16x1xf32>
    %959 = arith.select %956, %958, %942 : vector<16x1xi1>, vector<16x1xf32>
    %960 = vector.extract_strided_slice %753 {offsets = [12, 0], sizes = [1, 16], strides = [1, 1]} : vector<16x16xf32> to vector<1x16xf32>
    %961 = arith.mulf %960, %947 : vector<1x16xf32>
    %cst_369 = arith.constant dense<0.000000e+00> : vector<1x16xf32>
    %962 = tpu.matmul %961, %0, %cst_369 {dimension_numbers = #tpu.dot_dimension_numbers<[1], [0], [0], [1], [0, 0, 1, 1], [], []>} : vector<1x16xf32>, vector<16x16xf32>, vector<1x16xf32> -> vector<1x16xf32>
    %963 = vector.extract_strided_slice %600 {offsets = [12, 0], sizes = [1, 16], strides = [1, 1]} : vector<16x16xf32> to vector<1x16xf32>
    %964 = arith.addf %962, %963 : vector<1x16xf32>
    %965 = vector.extract_strided_slice %601 {offsets = [12, 0], sizes = [1, 4], strides = [1, 1]} : vector<16x4xf32> to vector<1x4xf32>
    %966 = vector.extract_strided_slice %964 {offsets = [0, 0], sizes = [1, 4], strides = [1, 1]} : vector<1x16xf32> to vector<1x4xf32>
    %967 = arith.mulf %965, %966 : vector<1x4xf32>
    %cst_370 = arith.constant dense<0.000000e+00> : vector<1xf32>
    %968 = vector.multi_reduction <add>, %967, %cst_370 [1] : vector<1x4xf32> to vector<1xf32>
    %969 = vector.shape_cast %968 : vector<1xf32> to vector<1x1xf32>
    %970 = vector.extract_strided_slice %602 {offsets = [12, 0], sizes = [1, 1], strides = [1, 1]} : vector<16x1xf32> to vector<1x1xf32>
    %971 = arith.addf %969, %970 : vector<1x1xf32>
    %c12_i32_371 = arith.constant 12 : i32
    %972 = vector.broadcast %c12_i32_371 : i32 to vector<16x1xi32>
    %973 = arith.cmpi eq, %9, %972 : vector<16x1xi32>
    %974 = vector.shape_cast %971 : vector<1x1xf32> to vector<1x1xf32>
    %975 = vector.broadcast %974 : vector<1x1xf32> to vector<16x1xf32>
    %976 = arith.select %973, %975, %959 : vector<16x1xi1>, vector<16x1xf32>
    %977 = vector.extract_strided_slice %753 {offsets = [13, 0], sizes = [1, 16], strides = [1, 1]} : vector<16x16xf32> to vector<1x16xf32>
    %978 = arith.mulf %977, %964 : vector<1x16xf32>
    %cst_372 = arith.constant dense<0.000000e+00> : vector<1x16xf32>
    %979 = tpu.matmul %978, %0, %cst_372 {dimension_numbers = #tpu.dot_dimension_numbers<[1], [0], [0], [1], [0, 0, 1, 1], [], []>} : vector<1x16xf32>, vector<16x16xf32>, vector<1x16xf32> -> vector<1x16xf32>
    %980 = vector.extract_strided_slice %600 {offsets = [13, 0], sizes = [1, 16], strides = [1, 1]} : vector<16x16xf32> to vector<1x16xf32>
    %981 = arith.addf %979, %980 : vector<1x16xf32>
    %982 = vector.extract_strided_slice %601 {offsets = [13, 0], sizes = [1, 4], strides = [1, 1]} : vector<16x4xf32> to vector<1x4xf32>
    %983 = vector.extract_strided_slice %981 {offsets = [0, 0], sizes = [1, 4], strides = [1, 1]} : vector<1x16xf32> to vector<1x4xf32>
    %984 = arith.mulf %982, %983 : vector<1x4xf32>
    %cst_373 = arith.constant dense<0.000000e+00> : vector<1xf32>
    %985 = vector.multi_reduction <add>, %984, %cst_373 [1] : vector<1x4xf32> to vector<1xf32>
    %986 = vector.shape_cast %985 : vector<1xf32> to vector<1x1xf32>
    %987 = vector.extract_strided_slice %602 {offsets = [13, 0], sizes = [1, 1], strides = [1, 1]} : vector<16x1xf32> to vector<1x1xf32>
    %988 = arith.addf %986, %987 : vector<1x1xf32>
    %c13_i32_374 = arith.constant 13 : i32
    %989 = vector.broadcast %c13_i32_374 : i32 to vector<16x1xi32>
    %990 = arith.cmpi eq, %9, %989 : vector<16x1xi32>
    %991 = vector.shape_cast %988 : vector<1x1xf32> to vector<1x1xf32>
    %992 = vector.broadcast %991 : vector<1x1xf32> to vector<16x1xf32>
    %993 = arith.select %990, %992, %976 : vector<16x1xi1>, vector<16x1xf32>
    %994 = vector.extract_strided_slice %753 {offsets = [14, 0], sizes = [1, 16], strides = [1, 1]} : vector<16x16xf32> to vector<1x16xf32>
    %995 = arith.mulf %994, %981 : vector<1x16xf32>
    %cst_375 = arith.constant dense<0.000000e+00> : vector<1x16xf32>
    %996 = tpu.matmul %995, %0, %cst_375 {dimension_numbers = #tpu.dot_dimension_numbers<[1], [0], [0], [1], [0, 0, 1, 1], [], []>} : vector<1x16xf32>, vector<16x16xf32>, vector<1x16xf32> -> vector<1x16xf32>
    %997 = vector.extract_strided_slice %600 {offsets = [14, 0], sizes = [1, 16], strides = [1, 1]} : vector<16x16xf32> to vector<1x16xf32>
    %998 = arith.addf %996, %997 : vector<1x16xf32>
    %999 = vector.extract_strided_slice %601 {offsets = [14, 0], sizes = [1, 4], strides = [1, 1]} : vector<16x4xf32> to vector<1x4xf32>
    %1000 = vector.extract_strided_slice %998 {offsets = [0, 0], sizes = [1, 4], strides = [1, 1]} : vector<1x16xf32> to vector<1x4xf32>
    %1001 = arith.mulf %999, %1000 : vector<1x4xf32>
    %cst_376 = arith.constant dense<0.000000e+00> : vector<1xf32>
    %1002 = vector.multi_reduction <add>, %1001, %cst_376 [1] : vector<1x4xf32> to vector<1xf32>
    %1003 = vector.shape_cast %1002 : vector<1xf32> to vector<1x1xf32>
    %1004 = vector.extract_strided_slice %602 {offsets = [14, 0], sizes = [1, 1], strides = [1, 1]} : vector<16x1xf32> to vector<1x1xf32>
    %1005 = arith.addf %1003, %1004 : vector<1x1xf32>
    %c14_i32_377 = arith.constant 14 : i32
    %1006 = vector.broadcast %c14_i32_377 : i32 to vector<16x1xi32>
    %1007 = arith.cmpi eq, %9, %1006 : vector<16x1xi32>
    %1008 = vector.shape_cast %1005 : vector<1x1xf32> to vector<1x1xf32>
    %1009 = vector.broadcast %1008 : vector<1x1xf32> to vector<16x1xf32>
    %1010 = arith.select %1007, %1009, %993 : vector<16x1xi1>, vector<16x1xf32>
    %1011 = vector.extract_strided_slice %753 {offsets = [15, 0], sizes = [1, 16], strides = [1, 1]} : vector<16x16xf32> to vector<1x16xf32>
    %1012 = arith.mulf %1011, %998 : vector<1x16xf32>
    %cst_378 = arith.constant dense<0.000000e+00> : vector<1x16xf32>
    %1013 = tpu.matmul %1012, %0, %cst_378 {dimension_numbers = #tpu.dot_dimension_numbers<[1], [0], [0], [1], [0, 0, 1, 1], [], []>} : vector<1x16xf32>, vector<16x16xf32>, vector<1x16xf32> -> vector<1x16xf32>
    %1014 = vector.extract_strided_slice %600 {offsets = [15, 0], sizes = [1, 16], strides = [1, 1]} : vector<16x16xf32> to vector<1x16xf32>
    %1015 = arith.addf %1013, %1014 : vector<1x16xf32>
    %1016 = vector.extract_strided_slice %601 {offsets = [15, 0], sizes = [1, 4], strides = [1, 1]} : vector<16x4xf32> to vector<1x4xf32>
    %1017 = vector.extract_strided_slice %1015 {offsets = [0, 0], sizes = [1, 4], strides = [1, 1]} : vector<1x16xf32> to vector<1x4xf32>
    %1018 = arith.mulf %1016, %1017 : vector<1x4xf32>
    %cst_379 = arith.constant dense<0.000000e+00> : vector<1xf32>
    %1019 = vector.multi_reduction <add>, %1018, %cst_379 [1] : vector<1x4xf32> to vector<1xf32>
    %1020 = vector.shape_cast %1019 : vector<1xf32> to vector<1x1xf32>
    %1021 = vector.extract_strided_slice %602 {offsets = [15, 0], sizes = [1, 1], strides = [1, 1]} : vector<16x1xf32> to vector<1x1xf32>
    %1022 = arith.addf %1020, %1021 : vector<1x1xf32>
    %c15_i32_380 = arith.constant 15 : i32
    %1023 = vector.broadcast %c15_i32_380 : i32 to vector<16x1xi32>
    %1024 = arith.cmpi eq, %9, %1023 : vector<16x1xi32>
    %1025 = vector.shape_cast %1022 : vector<1x1xf32> to vector<1x1xf32>
    %1026 = vector.broadcast %1025 : vector<1x1xf32> to vector<16x1xf32>
    %1027 = arith.select %1024, %1026, %1010 : vector<16x1xi1>, vector<16x1xf32>
    %1028 = arith.negf %1027 : vector<16x1xf32>
    %1029 = math.exp %1028 : vector<16x1xf32>
    %cst_381 = arith.constant 1.000000e+00 : f32
    %1030 = vector.broadcast %cst_381 : f32 to vector<16x1xf32>
    %1031 = arith.addf %1030, %1029 : vector<16x1xf32>
    %1032 = arith.divf %1030, %1031 : vector<16x1xf32>
    %1033 = arith.mulf %1027, %1032 : vector<16x1xf32>
    %1034 = vector.broadcast %1033 : vector<16x1xf32> to vector<16x16xf32>
    %1035 = arith.mulf %557, %1034 : vector<16x16xf32>
    %c1_382 = arith.constant 1 : index
    %c0_383 = arith.constant 0 : index
    %c0_384 = arith.constant 0 : index
    %1036 = vector.load %arg14[%c1_382, %c0_383, %c0_384] : memref<2x16x8xf32, #tpu.memory_space<vmem>>, vector<1x16x8xf32>
    %1037 = vector.shape_cast %1036 : vector<1x16x8xf32> to vector<16x8xf32>
    %cst_385 = arith.constant dense<0.000000e+00> : vector<16x8xf32>
    %1038 = tpu.matmul %1035, %1037, %cst_385 {dimension_numbers = #tpu.dot_dimension_numbers<[1], [0], [0], [1], [0, 0, 1, 1], [], []>} : vector<16x16xf32>, vector<16x8xf32>, vector<16x8xf32> -> vector<16x8xf32>
    %1039 = arith.addf %1038, %528 : vector<16x8xf32>
    %c0_386 = arith.constant 0 : index
    %c0_387 = arith.constant 0 : index
    %1040 = vector.load %arg15[%c0_386, %c0_387] : memref<1x8xf32, #tpu.memory_space<vmem>>, vector<1x8xf32>
    %c0_388 = arith.constant 0 : index
    %c0_389 = arith.constant 0 : index
    %1041 = vector.load %arg16[%c0_388, %c0_389] : memref<1x8xf32, #tpu.memory_space<vmem>>, vector<1x8xf32>
    %cst_390 = arith.constant dense<0.000000e+00> : vector<16xf32>
    %1042 = vector.multi_reduction <add>, %1039, %cst_390 [1] : vector<16x8xf32> to vector<16xf32>
    %1043 = vector.shape_cast %1042 : vector<16xf32> to vector<16x1xf32>
    %cst_391 = arith.constant 8.000000e+00 : f32
    %1044 = vector.broadcast %cst_391 : f32 to vector<16x1xf32>
    %1045 = arith.divf %1043, %1044 : vector<16x1xf32>
    %1046 = vector.broadcast %1045 : vector<16x1xf32> to vector<16x8xf32>
    %1047 = arith.subf %1039, %1046 : vector<16x8xf32>
    %1048 = arith.mulf %1047, %1047 : vector<16x8xf32>
    %cst_392 = arith.constant dense<0.000000e+00> : vector<16xf32>
    %1049 = vector.multi_reduction <add>, %1048, %cst_392 [1] : vector<16x8xf32> to vector<16xf32>
    %1050 = vector.shape_cast %1049 : vector<16xf32> to vector<16x1xf32>
    %cst_393 = arith.constant 8.000000e+00 : f32
    %1051 = vector.broadcast %cst_393 : f32 to vector<16x1xf32>
    %1052 = arith.divf %1050, %1051 : vector<16x1xf32>
    %cst_394 = arith.constant 9.99999974E-6 : f32
    %1053 = vector.broadcast %cst_394 : f32 to vector<16x1xf32>
    %1054 = arith.addf %1052, %1053 : vector<16x1xf32>
    %1055 = math.rsqrt %1054 : vector<16x1xf32>
    %1056 = vector.broadcast %1055 : vector<16x1xf32> to vector<16x8xf32>
    %1057 = arith.mulf %1047, %1056 : vector<16x8xf32>
    %1058 = vector.broadcast %1040 : vector<1x8xf32> to vector<16x8xf32>
    %1059 = arith.mulf %1057, %1058 : vector<16x8xf32>
    %1060 = vector.broadcast %1041 : vector<1x8xf32> to vector<16x8xf32>
    %1061 = arith.addf %1059, %1060 : vector<16x8xf32>
    %c0_395 = arith.constant 0 : index
    %c0_396 = arith.constant 0 : index
    %1062 = vector.load %arg17[%c0_395, %c0_396] : memref<8x1xf32, #tpu.memory_space<vmem>>, vector<8x1xf32>
    %cst_397 = arith.constant dense<0.000000e+00> : vector<16x1xf32>
    %1063 = tpu.matmul %1061, %1062, %cst_397 {dimension_numbers = #tpu.dot_dimension_numbers<[1], [0], [0], [1], [0, 0, 1, 1], [], []>} : vector<16x8xf32>, vector<8x1xf32>, vector<16x1xf32> -> vector<16x1xf32>
    %c0_398 = arith.constant 0 : index
    %c0_399 = arith.constant 0 : index
    %1064 = vector.load %arg18[%c0_398, %c0_399] : memref<1x1xf32, #tpu.memory_space<vmem>>, vector<1x1xf32>
    %1065 = vector.broadcast %1064 : vector<1x1xf32> to vector<16x1xf32>
    %1066 = arith.addf %1063, %1065 : vector<16x1xf32>
    %c0_400 = arith.constant 0 : index
    %c0_401 = arith.constant 0 : index
    %1067 = vector.load %arg19[%c0_400, %c0_401] : memref<16x1xf32, #tpu.memory_space<vmem>>, vector<16x1xf32>
    tpu.vector_store %arg19[%c0_400, %c0_401], %1066 {strides = array<i32>} : memref<16x1xf32, #tpu.memory_space<vmem>>, vector<16x1xf32>,
    return
  }
  func.func @transform_0(%arg0: i32) -> (i32, i32) {
    %c0_i32 = arith.constant 0 : i32
    %c0_i32_0 = arith.constant 0 : i32
    return %arg0, %c0_i32 : i32, i32
  }
  func.func @transform_1(%arg0: i32) -> (i32, i32) {
    %c0_i32 = arith.constant 0 : i32
    %c0_i32_0 = arith.constant 0 : i32
    %c0_i32_1 = arith.constant 0 : i32
    return %c0_i32, %c0_i32_0 : i32, i32
  }
  func.func @transform_2(%arg0: i32) -> (i32, i32) {
    %c0_i32 = arith.constant 0 : i32
    %c0_i32_0 = arith.constant 0 : i32
    %c0_i32_1 = arith.constant 0 : i32
    return %c0_i32, %c0_i32_0 : i32, i32
  }
  func.func @transform_3(%arg0: i32) -> (i32, i32, i32) {
    %c0_i32 = arith.constant 0 : i32
    %c0_i32_0 = arith.constant 0 : i32
    %c0_i32_1 = arith.constant 0 : i32
    %c0_i32_2 = arith.constant 0 : i32
    return %c0_i32, %c0_i32_0, %c0_i32_1 : i32, i32, i32
  }
  func.func @transform_4(%arg0: i32) -> (i32, i32, i32) {
    %c0_i32 = arith.constant 0 : i32
    %c0_i32_0 = arith.constant 0 : i32
    %c0_i32_1 = arith.constant 0 : i32
    %c0_i32_2 = arith.constant 0 : i32
    return %c0_i32, %c0_i32_0, %c0_i32_1 : i32, i32, i32
  }
  func.func @transform_5(%arg0: i32) -> (i32, i32, i32) {
    %c0_i32 = arith.constant 0 : i32
    %c0_i32_0 = arith.constant 0 : i32
    %c0_i32_1 = arith.constant 0 : i32
    %c0_i32_2 = arith.constant 0 : i32
    return %c0_i32, %c0_i32_0, %c0_i32_1 : i32, i32, i32
  }
  func.func @transform_6(%arg0: i32) -> (i32, i32, i32, i32) {
    %c0_i32 = arith.constant 0 : i32
    %c0_i32_0 = arith.constant 0 : i32
    %c0_i32_1 = arith.constant 0 : i32
    %c0_i32_2 = arith.constant 0 : i32
    %c0_i32_3 = arith.constant 0 : i32
    return %c0_i32, %c0_i32_0, %c0_i32_1, %c0_i32_2 : i32, i32, i32, i32
  }
  func.func @transform_7(%arg0: i32) -> (i32, i32, i32) {
    %c0_i32 = arith.constant 0 : i32
    %c0_i32_0 = arith.constant 0 : i32
    %c0_i32_1 = arith.constant 0 : i32
    %c0_i32_2 = arith.constant 0 : i32
    return %c0_i32, %c0_i32_0, %c0_i32_1 : i32, i32, i32
  }
  func.func @transform_8(%arg0: i32) -> (i32, i32, i32) {
    %c0_i32 = arith.constant 0 : i32
    %c0_i32_0 = arith.constant 0 : i32
    %c0_i32_1 = arith.constant 0 : i32
    %c0_i32_2 = arith.constant 0 : i32
    return %c0_i32, %c0_i32_0, %c0_i32_1 : i32, i32, i32
  }
  func.func @transform_9(%arg0: i32) -> (i32, i32, i32) {
    %c0_i32 = arith.constant 0 : i32
    %c0_i32_0 = arith.constant 0 : i32
    %c0_i32_1 = arith.constant 0 : i32
    %c0_i32_2 = arith.constant 0 : i32
    return %c0_i32, %c0_i32_0, %c0_i32_1 : i32, i32, i32
  }
  func.func @transform_10(%arg0: i32) -> (i32, i32, i32, i32) {
    %c0_i32 = arith.constant 0 : i32
    %c0_i32_0 = arith.constant 0 : i32
    %c0_i32_1 = arith.constant 0 : i32
    %c0_i32_2 = arith.constant 0 : i32
    %c0_i32_3 = arith.constant 0 : i32
    return %c0_i32, %c0_i32_0, %c0_i32_1, %c0_i32_2 : i32, i32, i32, i32
  }
  func.func @transform_11(%arg0: i32) -> (i32, i32, i32) {
    %c0_i32 = arith.constant 0 : i32
    %c0_i32_0 = arith.constant 0 : i32
    %c0_i32_1 = arith.constant 0 : i32
    %c0_i32_2 = arith.constant 0 : i32
    return %c0_i32, %c0_i32_0, %c0_i32_1 : i32, i32, i32
  }
  func.func @transform_12(%arg0: i32) -> (i32, i32) {
    %c0_i32 = arith.constant 0 : i32
    %c0_i32_0 = arith.constant 0 : i32
    %c0_i32_1 = arith.constant 0 : i32
    return %c0_i32, %c0_i32_0 : i32, i32
  }
  func.func @transform_13(%arg0: i32) -> (i32, i32, i32) {
    %c0_i32 = arith.constant 0 : i32
    %c0_i32_0 = arith.constant 0 : i32
    %c0_i32_1 = arith.constant 0 : i32
    %c0_i32_2 = arith.constant 0 : i32
    return %c0_i32, %c0_i32_0, %c0_i32_1 : i32, i32, i32
  }
  func.func @transform_14(%arg0: i32) -> (i32, i32) {
    %c0_i32 = arith.constant 0 : i32
    %c0_i32_0 = arith.constant 0 : i32
    %c0_i32_1 = arith.constant 0 : i32
    return %c0_i32, %c0_i32_0 : i32, i32
  }
  func.func @transform_15(%arg0: i32) -> (i32, i32) {
    %c0_i32 = arith.constant 0 : i32
    %c0_i32_0 = arith.constant 0 : i32
    %c0_i32_1 = arith.constant 0 : i32
    return %c0_i32, %c0_i32_0 : i32, i32
  }
  func.func @transform_16(%arg0: i32) -> (i32, i32) {
    %c0_i32 = arith.constant 0 : i32
    %c0_i32_0 = arith.constant 0 : i32
    %c0_i32_1 = arith.constant 0 : i32
    return %c0_i32, %c0_i32_0 : i32, i32
  }
  func.func @transform_17(%arg0: i32) -> (i32, i32) {
    %c0_i32 = arith.constant 0 : i32
    %c0_i32_0 = arith.constant 0 : i32
    %c0_i32_1 = arith.constant 0 : i32
    return %c0_i32, %c0_i32_0 : i32, i32
  }
  func.func @transform_18(%arg0: i32) -> (i32, i32) {
    %c0_i32 = arith.constant 0 : i32
    %c0_i32_0 = arith.constant 0 : i32
    return %arg0, %c0_i32 : i32, i32
  }
}

</mosaic_0001>

<llo_original>
// kernel: _lambda_.1
$region0: #{_lambda_.1}
  #allocation0 [shape = 'u32[]', space=smem, size = 0x4, offset = 0x4, fixed_abs, tag = 'smem constant byte address 0x4 - core index']
  #allocation1 [shape = 'u32[144,128]{1,0:T(1,128)}', space=vmem, size = 0x12000, scoped, tag = 'internal scratch']
  #allocation2 [shape = 'f32[1,1]{1,0:T(1,128)S(1)}', space=vmem, size = 0x200, scoped, tag = 'scoped memory for _lambda_.1']
  %s0 = inlined_call_operand.vmem [shape: f32[32,1], index: 0, kind: input, shape index: {}]
  %s1 = inlined_call_operand.vmem [shape: f32[1,8], index: 1, kind: input, shape index: {}]
  %s2 = inlined_call_operand.vmem [shape: f32[1,8], index: 2, kind: input, shape index: {}]
  %s3 = inlined_call_operand.vmem [shape: f32[2,1,8], index: 3, kind: input, shape index: {}]
  %s4 = inlined_call_operand.vmem [shape: f32[2,1,8], index: 4, kind: input, shape index: {}]
  %s5 = inlined_call_operand.vmem [shape: f32[2,8,32], index: 5, kind: input, shape index: {}]
  %s6 = inlined_call_operand.vmem [shape: f32[2,4,1,16], index: 6, kind: input, shape index: {}]
  %s7 = inlined_call_operand.vmem [shape: f32[2,1,16], index: 7, kind: input, shape index: {}]
  %s8 = inlined_call_operand.vmem [shape: f32[2,16,22], index: 8, kind: input, shape index: {}]
  %s9 = inlined_call_operand.vmem [shape: f32[2,1,22], index: 9, kind: input, shape index: {}]
  %s10 = inlined_call_operand.vmem [shape: f32[2,25,16,16], index: 10, kind: input, shape index: {}]
  %s11 = inlined_call_operand.vmem [shape: f32[4,16,16], index: 11, kind: input, shape index: {}]
  %s12 = inlined_call_operand.vmem [shape: f32[16,16], index: 12, kind: input, shape index: {}]
  %s13 = inlined_call_operand.vmem [shape: f32[2,16,8], index: 13, kind: input, shape index: {}]
  %s14 = inlined_call_operand.vmem [shape: f32[1,8], index: 14, kind: input, shape index: {}]
  %s15 = inlined_call_operand.vmem [shape: f32[1,8], index: 15, kind: input, shape index: {}]
  %s16 = inlined_call_operand.vmem [shape: f32[8,1], index: 16, kind: input, shape index: {}]
  %s17 = inlined_call_operand.<no memory space> [shape: f32[1,1], index: 17, kind: input, shape index: {}]
  %s18 = inlined_call_operand.vmem [shape: f32[32,1], index: 18, kind: output, shape index: {}]
  %s19 = sld [smem:[#allocation0]]
  $region105: #{_lambda_.1} parent=0
    _
  %s21 = ssub.s32 1, %s19
  %s22 = scalar_select 0, %s21, %s19
  %v23 = vstv %s17
  %24 = vst [vmem:[#allocation2] sm:$0x1] %v23
  loop: start=0, step=1, limit=4
  $region2: #{_lambda_.1} parent=0 // loop_pre_header
    _
  $region3: #{_lambda_.1} parent=0 // loop_header
    %s26 = sphi 0, %s30
    %p27 = scmp.ge.s32.totalorder %s26, 4
    %s36 = sphi 0, %s38
    %s39 = sphi 0, %s36
    %s40 = sphi 0, %s39
    %s56 = sphi 0, %s40
    %s60 = sphi 0, %s60
    %s62 = sphi 0, %s60
    %s63 = sphi 0, %s62
    %s77 = sphi 0, %s63
    %s81 = sphi 0, %s81
    %s83 = sphi 0, %s81
    %s84 = sphi 0, %s83
    %s98 = sphi 0, %s84
    %s102 = sphi 0, %s102
    %s104 = sphi 0, %s102
    %s105 = sphi 0, %s104
    %s119 = sphi 0, %s105
    %s123 = sphi 0, %s123
    %s125 = sphi 0, %s123
    %s126 = sphi 0, %s125
    %s140 = sphi 0, %s126
    %s144 = sphi 0, %s144
    %s146 = sphi 0, %s144
    %s147 = sphi 0, %s146
    %s161 = sphi 0, %s147
    %s165 = sphi 0, %s165
    %s167 = sphi 0, %s165
    %s168 = sphi 0, %s167
    %s182 = sphi 0, %s168
    %s186 = sphi 0, %s186
    %s188 = sphi 0, %s186
    %s189 = sphi 0, %s188
    %s203 = sphi 0, %s189
    %s207 = sphi 0, %s207
    %s209 = sphi 0, %s207
    %s210 = sphi 0, %s209
    %s224 = sphi 0, %s210
    %s228 = sphi 0, %s228
    %s230 = sphi 0, %s228
    %s231 = sphi 0, %s230
    %s245 = sphi 0, %s231
    %s249 = sphi 0, %s249
    %s251 = sphi 0, %s249
    %s252 = sphi 0, %s251
    %s266 = sphi 0, %s252
    %s270 = sphi 0, %s270
    %s272 = sphi 0, %s270
    %s273 = sphi 0, %s272
    %s287 = sphi 0, %s273
    %s291 = sphi 0, %s291
    %s293 = sphi 0, %s291
    %s294 = sphi 0, %s293
    %s308 = sphi 0, %s294
    %s312 = sphi 0, %s312
    %s314 = sphi 0, %s312
    %s315 = sphi 0, %s314
    %s329 = sphi 0, %s315
    %s333 = sphi 0, %s333
    %s335 = sphi 0, %s333
    %s336 = sphi 0, %s335
    %s350 = sphi 0, %s336
    %s354 = sphi 0, %s354
    %s356 = sphi 0, %s354
    %s357 = sphi 0, %s356
    %s371 = sphi 0, %s357
    %s375 = sphi 0, %s375
    %s377 = sphi 0, %s375
    %s378 = sphi 0, %s377
    %s392 = sphi 0, %s378
    %s396 = sphi 0, %s396
    %s398 = sphi 0, %s396
    %s399 = sphi 0, %s398
    %s413 = sphi 0, %s399
    %s419 = sphi 0, %s421
    %s422 = sphi 0, %s419
    %s423 = sphi 0, %s422
    %s439 = sphi 0, %s423
  $region4: #{_lambda_.1} parent=0 // loop_header_branch
    %29 = sbr.rel (%p27) target = $region8
  $region5: #{_lambda_.1} parent=0 // loop_body
    %s31 = ssub.s32 %s26, 1
    %s32 = ssub.s32 %s26, 2
    %s33 = sadd.s32 %s26, 1
    %s34 = ssub.s32 %s26, %s33
    %p35 = scmp.eq.s32.totalorder %s34, 0
    %s37 = sadd.s32 %s36, 1
    %s38 = scalar_select %p35, %s36, %s37
    %p41 = pneg %p35
    %p42 = scmp.eq.s32.totalorder %s26, 1
    %p43 = por %p41, %p42
    %p44 = scmp.ne.s32.totalorder %s36, %s39
    %p45 = scmp.eq.s32.totalorder %s26, 0
    %p46 = por %p44, %p45
    %p47 = scmp.ne.s32.totalorder %s36, %s39
    %p48 = scmp.eq.s32.totalorder %s31, 1
    %p49 = por %p47, %p48
    %p50 = scmp.ne.s32.totalorder %s39, %s40
    %p51 = scmp.eq.s32.totalorder %s31, 0
    %p52 = por %p50, %p51
    %p53 = scmp.ne.s32.totalorder %s39, %s40
    %p54 = scmp.eq.s32.totalorder %s32, 1
    %p55 = por %p53, %p54
    %p57 = scmp.ne.s32.totalorder %s40, %s56
    %p58 = scmp.eq.s32.totalorder %s32, 0
    %p59 = por %p57, %p58
    %s61 = sadd.s32 %s60, 1
    %p64 = scmp.eq.s32.totalorder %s26, 1
    %p65 = scmp.ne.s32.totalorder %s60, %s62
    %p66 = scmp.eq.s32.totalorder %s26, 0
    %p67 = por %p65, %p66
    %p68 = scmp.ne.s32.totalorder %s60, %s62
    %p69 = scmp.eq.s32.totalorder %s31, 1
    %p70 = por %p68, %p69
    %p71 = scmp.ne.s32.totalorder %s62, %s63
    %p72 = scmp.eq.s32.totalorder %s31, 0
    %p73 = por %p71, %p72
    %p74 = scmp.ne.s32.totalorder %s62, %s63
    %p75 = scmp.eq.s32.totalorder %s32, 1
    %p76 = por %p74, %p75
    %p78 = scmp.ne.s32.totalorder %s63, %s77
    %p79 = scmp.eq.s32.totalorder %s32, 0
    %p80 = por %p78, %p79
    %s82 = sadd.s32 %s81, 1
    %p85 = scmp.eq.s32.totalorder %s26, 1
    %p86 = scmp.ne.s32.totalorder %s81, %s83
    %p87 = scmp.eq.s32.totalorder %s26, 0
    %p88 = por %p86, %p87
    %p89 = scmp.ne.s32.totalorder %s81, %s83
    %p90 = scmp.eq.s32.totalorder %s31, 1
    %p91 = por %p89, %p90
    %p92 = scmp.ne.s32.totalorder %s83, %s84
    %p93 = scmp.eq.s32.totalorder %s31, 0
    %p94 = por %p92, %p93
    %p95 = scmp.ne.s32.totalorder %s83, %s84
    %p96 = scmp.eq.s32.totalorder %s32, 1
    %p97 = por %p95, %p96
    %p99 = scmp.ne.s32.totalorder %s84, %s98
    %p100 = scmp.eq.s32.totalorder %s32, 0
    %p101 = por %p99, %p100
    %s103 = sadd.s32 %s102, 1
    %p106 = scmp.eq.s32.totalorder %s26, 1
    %p107 = scmp.ne.s32.totalorder %s102, %s104
    %p108 = scmp.eq.s32.totalorder %s26, 0
    %p109 = por %p107, %p108
    %p110 = scmp.ne.s32.totalorder %s102, %s104
    %p111 = scmp.eq.s32.totalorder %s31, 1
    %p112 = por %p110, %p111
    %p113 = scmp.ne.s32.totalorder %s104, %s105
    %p114 = scmp.eq.s32.totalorder %s31, 0
    %p115 = por %p113, %p114
    %p116 = scmp.ne.s32.totalorder %s104, %s105
    %p117 = scmp.eq.s32.totalorder %s32, 1
    %p118 = por %p116, %p117
    %p120 = scmp.ne.s32.totalorder %s105, %s119
    %p121 = scmp.eq.s32.totalorder %s32, 0
    %p122 = por %p120, %p121
    %s124 = sadd.s32 %s123, 1
    %p127 = scmp.eq.s32.totalorder %s26, 1
    %p128 = scmp.ne.s32.totalorder %s123, %s125
    %p129 = scmp.eq.s32.totalorder %s26, 0
    %p130 = por %p128, %p129
    %p131 = scmp.ne.s32.totalorder %s123, %s125
    %p132 = scmp.eq.s32.totalorder %s31, 1
    %p133 = por %p131, %p132
    %p134 = scmp.ne.s32.totalorder %s125, %s126
    %p135 = scmp.eq.s32.totalorder %s31, 0
    %p136 = por %p134, %p135
    %p137 = scmp.ne.s32.totalorder %s125, %s126
    %p138 = scmp.eq.s32.totalorder %s32, 1
    %p139 = por %p137, %p138
    %p141 = scmp.ne.s32.totalorder %s126, %s140
    %p142 = scmp.eq.s32.totalorder %s32, 0
    %p143 = por %p141, %p142
    %s145 = sadd.s32 %s144, 1
    %p148 = scmp.eq.s32.totalorder %s26, 1
    %p149 = scmp.ne.s32.totalorder %s144, %s146
    %p150 = scmp.eq.s32.totalorder %s26, 0
    %p151 = por %p149, %p150
    %p152 = scmp.ne.s32.totalorder %s144, %s146
    %p153 = scmp.eq.s32.totalorder %s31, 1
    %p154 = por %p152, %p153
    %p155 = scmp.ne.s32.totalorder %s146, %s147
    %p156 = scmp.eq.s32.totalorder %s31, 0
    %p157 = por %p155, %p156
    %p158 = scmp.ne.s32.totalorder %s146, %s147
    %p159 = scmp.eq.s32.totalorder %s32, 1
    %p160 = por %p158, %p159
    %p162 = scmp.ne.s32.totalorder %s147, %s161
    %p163 = scmp.eq.s32.totalorder %s32, 0
    %p164 = por %p162, %p163
    %s166 = sadd.s32 %s165, 1
    %p169 = scmp.eq.s32.totalorder %s26, 1
    %p170 = scmp.ne.s32.totalorder %s165, %s167
    %p171 = scmp.eq.s32.totalorder %s26, 0
    %p172 = por %p170, %p171
    %p173 = scmp.ne.s32.totalorder %s165, %s167
    %p174 = scmp.eq.s32.totalorder %s31, 1
    %p175 = por %p173, %p174
    %p176 = scmp.ne.s32.totalorder %s167, %s168
    %p177 = scmp.eq.s32.totalorder %s31, 0
    %p178 = por %p176, %p177
    %p179 = scmp.ne.s32.totalorder %s167, %s168
    %p180 = scmp.eq.s32.totalorder %s32, 1
    %p181 = por %p179, %p180
    %p183 = scmp.ne.s32.totalorder %s168, %s182
    %p184 = scmp.eq.s32.totalorder %s32, 0
    %p185 = por %p183, %p184
    %s187 = sadd.s32 %s186, 1
    %p190 = scmp.eq.s32.totalorder %s26, 1
    %p191 = scmp.ne.s32.totalorder %s186, %s188
    %p192 = scmp.eq.s32.totalorder %s26, 0
    %p193 = por %p191, %p192
    %p194 = scmp.ne.s32.totalorder %s186, %s188
    %p195 = scmp.eq.s32.totalorder %s31, 1
    %p196 = por %p194, %p195
    %p197 = scmp.ne.s32.totalorder %s188, %s189
    %p198 = scmp.eq.s32.totalorder %s31, 0
    %p199 = por %p197, %p198
    %p200 = scmp.ne.s32.totalorder %s188, %s189
    %p201 = scmp.eq.s32.totalorder %s32, 1
    %p202 = por %p200, %p201
    %p204 = scmp.ne.s32.totalorder %s189, %s203
    %p205 = scmp.eq.s32.totalorder %s32, 0
    %p206 = por %p204, %p205
    %s208 = sadd.s32 %s207, 1
    %p211 = scmp.eq.s32.totalorder %s26, 1
    %p212 = scmp.ne.s32.totalorder %s207, %s209
    %p213 = scmp.eq.s32.totalorder %s26, 0
    %p214 = por %p212, %p213
    %p215 = scmp.ne.s32.totalorder %s207, %s209
    %p216 = scmp.eq.s32.totalorder %s31, 1
    %p217 = por %p215, %p216
    %p218 = scmp.ne.s32.totalorder %s209, %s210
    %p219 = scmp.eq.s32.totalorder %s31, 0
    %p220 = por %p218, %p219
    %p221 = scmp.ne.s32.totalorder %s209, %s210
    %p222 = scmp.eq.s32.totalorder %s32, 1
    %p223 = por %p221, %p222
    %p225 = scmp.ne.s32.totalorder %s210, %s224
    %p226 = scmp.eq.s32.totalorder %s32, 0
    %p227 = por %p225, %p226
    %s229 = sadd.s32 %s228, 1
    %p232 = scmp.eq.s32.totalorder %s26, 1
    %p233 = scmp.ne.s32.totalorder %s228, %s230
    %p234 = scmp.eq.s32.totalorder %s26, 0
    %p235 = por %p233, %p234
    %p236 = scmp.ne.s32.totalorder %s228, %s230
    %p237 = scmp.eq.s32.totalorder %s31, 1
    %p238 = por %p236, %p237
    %p239 = scmp.ne.s32.totalorder %s230, %s231
    %p240 = scmp.eq.s32.totalorder %s31, 0
    %p241 = por %p239, %p240
    %p242 = scmp.ne.s32.totalorder %s230, %s231
    %p243 = scmp.eq.s32.totalorder %s32, 1
    %p244 = por %p242, %p243
    %p246 = scmp.ne.s32.totalorder %s231, %s245
    %p247 = scmp.eq.s32.totalorder %s32, 0
    %p248 = por %p246, %p247
    %s250 = sadd.s32 %s249, 1
    %p253 = scmp.eq.s32.totalorder %s26, 1
    %p254 = scmp.ne.s32.totalorder %s249, %s251
    %p255 = scmp.eq.s32.totalorder %s26, 0
    %p256 = por %p254, %p255
    %p257 = scmp.ne.s32.totalorder %s249, %s251
    %p258 = scmp.eq.s32.totalorder %s31, 1
    %p259 = por %p257, %p258
    %p260 = scmp.ne.s32.totalorder %s251, %s252
    %p261 = scmp.eq.s32.totalorder %s31, 0
    %p262 = por %p260, %p261
    %p263 = scmp.ne.s32.totalorder %s251, %s252
    %p264 = scmp.eq.s32.totalorder %s32, 1
    %p265 = por %p263, %p264
    %p267 = scmp.ne.s32.totalorder %s252, %s266
    %p268 = scmp.eq.s32.totalorder %s32, 0
    %p269 = por %p267, %p268
    %s271 = sadd.s32 %s270, 1
    %p274 = scmp.eq.s32.totalorder %s26, 1
    %p275 = scmp.ne.s32.totalorder %s270, %s272
    %p276 = scmp.eq.s32.totalorder %s26, 0
    %p277 = por %p275, %p276
    %p278 = scmp.ne.s32.totalorder %s270, %s272
    %p279 = scmp.eq.s32.totalorder %s31, 1
    %p280 = por %p278, %p279
    %p281 = scmp.ne.s32.totalorder %s272, %s273
    %p282 = scmp.eq.s32.totalorder %s31, 0
    %p283 = por %p281, %p282
    %p284 = scmp.ne.s32.totalorder %s272, %s273
    %p285 = scmp.eq.s32.totalorder %s32, 1
    %p286 = por %p284, %p285
    %p288 = scmp.ne.s32.totalorder %s273, %s287
    %p289 = scmp.eq.s32.totalorder %s32, 0
    %p290 = por %p288, %p289
    %s292 = sadd.s32 %s291, 1
    %p295 = scmp.eq.s32.totalorder %s26, 1
    %p296 = scmp.ne.s32.totalorder %s291, %s293
    %p297 = scmp.eq.s32.totalorder %s26, 0
    %p298 = por %p296, %p297
    %p299 = scmp.ne.s32.totalorder %s291, %s293
    %p300 = scmp.eq.s32.totalorder %s31, 1
    %p301 = por %p299, %p300
    %p302 = scmp.ne.s32.totalorder %s293, %s294
    %p303 = scmp.eq.s32.totalorder %s31, 0
    %p304 = por %p302, %p303
    %p305 = scmp.ne.s32.totalorder %s293, %s294
    %p306 = scmp.eq.s32.totalorder %s32, 1
    %p307 = por %p305, %p306
    %p309 = scmp.ne.s32.totalorder %s294, %s308
    %p310 = scmp.eq.s32.totalorder %s32, 0
    %p311 = por %p309, %p310
    %s313 = sadd.s32 %s312, 1
    %p316 = scmp.eq.s32.totalorder %s26, 1
    %p317 = scmp.ne.s32.totalorder %s312, %s314
    %p318 = scmp.eq.s32.totalorder %s26, 0
    %p319 = por %p317, %p318
    %p320 = scmp.ne.s32.totalorder %s312, %s314
    %p321 = scmp.eq.s32.totalorder %s31, 1
    %p322 = por %p320, %p321
    %p323 = scmp.ne.s32.totalorder %s314, %s315
    %p324 = scmp.eq.s32.totalorder %s31, 0
    %p325 = por %p323, %p324
    %p326 = scmp.ne.s32.totalorder %s314, %s315
    %p327 = scmp.eq.s32.totalorder %s32, 1
    %p328 = por %p326, %p327
    %p330 = scmp.ne.s32.totalorder %s315, %s329
    %p331 = scmp.eq.s32.totalorder %s32, 0
    %p332 = por %p330, %p331
    %s334 = sadd.s32 %s333, 1
    %p337 = scmp.eq.s32.totalorder %s26, 1
    %p338 = scmp.ne.s32.totalorder %s333, %s335
    %p339 = scmp.eq.s32.totalorder %s26, 0
    %p340 = por %p338, %p339
    %p341 = scmp.ne.s32.totalorder %s333, %s335
    %p342 = scmp.eq.s32.totalorder %s31, 1
    %p343 = por %p341, %p342
    %p344 = scmp.ne.s32.totalorder %s335, %s336
    %p345 = scmp.eq.s32.totalorder %s31, 0
    %p346 = por %p344, %p345
    %p347 = scmp.ne.s32.totalorder %s335, %s336
    %p348 = scmp.eq.s32.totalorder %s32, 1
    %p349 = por %p347, %p348
    %p351 = scmp.ne.s32.totalorder %s336, %s350
    %p352 = scmp.eq.s32.totalorder %s32, 0
    %p353 = por %p351, %p352
    %s355 = sadd.s32 %s354, 1
    %p358 = scmp.eq.s32.totalorder %s26, 1
    %p359 = scmp.ne.s32.totalorder %s354, %s356
    %p360 = scmp.eq.s32.totalorder %s26, 0
    %p361 = por %p359, %p360
    %p362 = scmp.ne.s32.totalorder %s354, %s356
    %p363 = scmp.eq.s32.totalorder %s31, 1
    %p364 = por %p362, %p363
    %p365 = scmp.ne.s32.totalorder %s356, %s357
    %p366 = scmp.eq.s32.totalorder %s31, 0
    %p367 = por %p365, %p366
    %p368 = scmp.ne.s32.totalorder %s356, %s357
    %p369 = scmp.eq.s32.totalorder %s32, 1
    %p370 = por %p368, %p369
    %p372 = scmp.ne.s32.totalorder %s357, %s371
    %p373 = scmp.eq.s32.totalorder %s32, 0
    %p374 = por %p372, %p373
    %s376 = sadd.s32 %s375, 1
    %p379 = scmp.eq.s32.totalorder %s26, 1
    %p380 = scmp.ne.s32.totalorder %s375, %s377
    %p381 = scmp.eq.s32.totalorder %s26, 0
    %p382 = por %p380, %p381
    %p383 = scmp.ne.s32.totalorder %s375, %s377
    %p384 = scmp.eq.s32.totalorder %s31, 1
    %p385 = por %p383, %p384
    %p386 = scmp.ne.s32.totalorder %s377, %s378
    %p387 = scmp.eq.s32.totalorder %s31, 0
    %p388 = por %p386, %p387
    %p389 = scmp.ne.s32.totalorder %s377, %s378
    %p390 = scmp.eq.s32.totalorder %s32, 1
    %p391 = por %p389, %p390
    %p393 = scmp.ne.s32.totalorder %s378, %s392
    %p394 = scmp.eq.s32.totalorder %s32, 0
    %p395 = por %p393, %p394
    %s397 = sadd.s32 %s396, 1
    %p400 = scmp.eq.s32.totalorder %s26, 1
    %p401 = scmp.ne.s32.totalorder %s396, %s398
    %p402 = scmp.eq.s32.totalorder %s26, 0
    %p403 = por %p401, %p402
    %p404 = scmp.ne.s32.totalorder %s396, %s398
    %p405 = scmp.eq.s32.totalorder %s31, 1
    %p406 = por %p404, %p405
    %p407 = scmp.ne.s32.totalorder %s398, %s399
    %p408 = scmp.eq.s32.totalorder %s31, 0
    %p409 = por %p407, %p408
    %p410 = scmp.ne.s32.totalorder %s398, %s399
    %p411 = scmp.eq.s32.totalorder %s32, 1
    %p412 = por %p410, %p411
    %p414 = scmp.ne.s32.totalorder %s399, %s413
    %p415 = scmp.eq.s32.totalorder %s32, 0
    %p416 = por %p414, %p415
    %s417 = ssub.s32 %s26, %s33
    %p418 = scmp.eq.s32.totalorder %s417, 0
    %s420 = sadd.s32 %s419, 1
    %s421 = scalar_select %p418, %s419, %s420
    %p424 = pneg %p418
    %p425 = scmp.eq.s32.totalorder %s26, 1
    %p426 = por %p424, %p425
    %p427 = scmp.ne.s32.totalorder %s419, %s422
    %p428 = scmp.eq.s32.totalorder %s26, 0
    %p429 = por %p427, %p428
    %p430 = scmp.ne.s32.totalorder %s419, %s422
    %p431 = scmp.eq.s32.totalorder %s31, 1
    %p432 = por %p430, %p431
    %p433 = scmp.ne.s32.totalorder %s422, %s423
    %p434 = scmp.eq.s32.totalorder %s31, 0
    %p435 = por %p433, %p434
    %p436 = scmp.ne.s32.totalorder %s422, %s423
    %p437 = scmp.eq.s32.totalorder %s32, 1
    %p438 = por %p436, %p437
    %p440 = scmp.ne.s32.totalorder %s423, %s439
    %p441 = scmp.eq.s32.totalorder %s32, 0
    %p442 = por %p440, %p441
    %p443 = scmp.le.s32.totalorder 1, %s26
    %p444 = scmp.lt.s32.totalorder %s26, 3
    %p445 = pnand %p443, %p444
    %p446 = pneg %p445
    // Predicated region
    $region9: #{_lambda_.1} parent=5 // pred_check
      _
    $region10: #{_lambda_.1} parent=5 // pred_check_branch
      %448 = sbr.rel (%p445) target = $region12
    $region11: #{_lambda_.1} parent=5 // pred_region
      %s449 = ssub.s32 %s26, 1
      // Predicated region
      $region13: #{_lambda_.1} parent=11 // pred_check
        %p450 = pneg %p73
      $region14: #{_lambda_.1} parent=11 // pred_check_branch
        %452 = sbr.rel (%p450) target = $region16
      $region15: #{_lambda_.1} parent=11 // pred_region
        _
      $region16: #{_lambda_.1} parent=11 // pred_fallthru
        _
      // Predicated region
      $region17: #{_lambda_.1} parent=11 // pred_check
        %p453 = pneg %p94
      $region18: #{_lambda_.1} parent=11 // pred_check_branch
        %455 = sbr.rel (%p453) target = $region20
      $region19: #{_lambda_.1} parent=11 // pred_region
        _
      $region20: #{_lambda_.1} parent=11 // pred_fallthru
        _
      // Predicated region
      $region21: #{_lambda_.1} parent=11 // pred_check
        %p456 = pneg %p115
      $region22: #{_lambda_.1} parent=11 // pred_check_branch
        %458 = sbr.rel (%p456) target = $region24
      $region23: #{_lambda_.1} parent=11 // pred_region
        _
      $region24: #{_lambda_.1} parent=11 // pred_fallthru
        _
      // Predicated region
      $region25: #{_lambda_.1} parent=11 // pred_check
        %p459 = pneg %p136
      $region26: #{_lambda_.1} parent=11 // pred_check_branch
        %461 = sbr.rel (%p459) target = $region28
      $region27: #{_lambda_.1} parent=11 // pred_region
        _
      $region28: #{_lambda_.1} parent=11 // pred_fallthru
        _
      // Predicated region
      $region29: #{_lambda_.1} parent=11 // pred_check
        %p462 = pneg %p157
      $region30: #{_lambda_.1} parent=11 // pred_check_branch
        %464 = sbr.rel (%p462) target = $region32
      $region31: #{_lambda_.1} parent=11 // pred_region
        _
      $region32: #{_lambda_.1} parent=11 // pred_fallthru
        _
      // Predicated region
      $region33: #{_lambda_.1} parent=11 // pred_check
        %p465 = pneg %p178
      $region34: #{_lambda_.1} parent=11 // pred_check_branch
        %467 = sbr.rel (%p465) target = $region36
      $region35: #{_lambda_.1} parent=11 // pred_region
        _
      $region36: #{_lambda_.1} parent=11 // pred_fallthru
        _
      // Predicated region
      $region37: #{_lambda_.1} parent=11 // pred_check
        %p468 = pneg %p199
      $region38: #{_lambda_.1} parent=11 // pred_check_branch
        %470 = sbr.rel (%p468) target = $region40
      $region39: #{_lambda_.1} parent=11 // pred_region
        _
      $region40: #{_lambda_.1} parent=11 // pred_fallthru
        _
      // Predicated region
      $region41: #{_lambda_.1} parent=11 // pred_check
        %p471 = pneg %p220
      $region42: #{_lambda_.1} parent=11 // pred_check_branch
        %473 = sbr.rel (%p471) target = $region44
      $region43: #{_lambda_.1} parent=11 // pred_region
        _
      $region44: #{_lambda_.1} parent=11 // pred_fallthru
        _
      // Predicated region
      $region45: #{_lambda_.1} parent=11 // pred_check
        %p474 = pneg %p241
      $region46: #{_lambda_.1} parent=11 // pred_check_branch
        %476 = sbr.rel (%p474) target = $region48
      $region47: #{_lambda_.1} parent=11 // pred_region
        _
      $region48: #{_lambda_.1} parent=11 // pred_fallthru
        _
      // Predicated region
      $region49: #{_lambda_.1} parent=11 // pred_check
        %p477 = pneg %p262
      $region50: #{_lambda_.1} parent=11 // pred_check_branch
        %479 = sbr.rel (%p477) target = $region52
      $region51: #{_lambda_.1} parent=11 // pred_region
        _
      $region52: #{_lambda_.1} parent=11 // pred_fallthru
        _
      // Predicated region
      $region53: #{_lambda_.1} parent=11 // pred_check
        %p480 = pneg %p283
      $region54: #{_lambda_.1} parent=11 // pred_check_branch
        %482 = sbr.rel (%p480) target = $region56
      $region55: #{_lambda_.1} parent=11 // pred_region
        _
      $region56: #{_lambda_.1} parent=11 // pred_fallthru
        _
      // Predicated region
      $region57: #{_lambda_.1} parent=11 // pred_check
        %p483 = pneg %p304
      $region58: #{_lambda_.1} parent=11 // pred_check_branch
        %485 = sbr.rel (%p483) target = $region60
      $region59: #{_lambda_.1} parent=11 // pred_region
        _
      $region60: #{_lambda_.1} parent=11 // pred_fallthru
        _
      // Predicated region
      $region61: #{_lambda_.1} parent=11 // pred_check
        %p486 = pneg %p325
      $region62: #{_lambda_.1} parent=11 // pred_check_branch
        %488 = sbr.rel (%p486) target = $region64
      $region63: #{_lambda_.1} parent=11 // pred_region
        _
      $region64: #{_lambda_.1} parent=11 // pred_fallthru
        _
      // Predicated region
      $region65: #{_lambda_.1} parent=11 // pred_check
        %p489 = pneg %p346
      $region66: #{_lambda_.1} parent=11 // pred_check_branch
        %491 = sbr.rel (%p489) target = $region68
      $region67: #{_lambda_.1} parent=11 // pred_region
        _
      $region68: #{_lambda_.1} parent=11 // pred_fallthru
        _
      // Predicated region
      $region69: #{_lambda_.1} parent=11 // pred_check
        %p492 = pneg %p367
      $region70: #{_lambda_.1} parent=11 // pred_check_branch
        %494 = sbr.rel (%p492) target = $region72
      $region71: #{_lambda_.1} parent=11 // pred_region
        _
      $region72: #{_lambda_.1} parent=11 // pred_fallthru
        _
      // Predicated region
      $region73: #{_lambda_.1} parent=11 // pred_check
        %p495 = pneg %p388
      $region74: #{_lambda_.1} parent=11 // pred_check_branch
        %497 = sbr.rel (%p495) target = $region76
      $region75: #{_lambda_.1} parent=11 // pred_region
        _
      $region76: #{_lambda_.1} parent=11 // pred_fallthru
        _
      // Predicated region
      $region77: #{_lambda_.1} parent=11 // pred_check
        %p498 = pneg %p409
      $region78: #{_lambda_.1} parent=11 // pred_check_branch
        %500 = sbr.rel (%p498) target = $region80
      $region79: #{_lambda_.1} parent=11 // pred_region
        _
      $region80: #{_lambda_.1} parent=11 // pred_fallthru
        _
    $region12: #{_lambda_.1} parent=5 // pred_fallthru
      _
    %p501 = scmp.lt.s32.totalorder %s26, 2
    // Predicated region
    $region81: #{_lambda_.1} parent=5 // pred_check
      %p502 = pneg %p501
    $region82: #{_lambda_.1} parent=5 // pred_check_branch
      %504 = sbr.rel (%p502) target = $region84
    $region83: #{_lambda_.1} parent=5 // pred_region
      // Predicated region
      $region85: #{_lambda_.1} parent=83 // pred_check
        %p505 = pneg %p46
      $region86: #{_lambda_.1} parent=83 // pred_check_branch
        %507 = sbr.rel (%p505) target = $region88
      $region87: #{_lambda_.1} parent=83 // pred_region
        %s508 = smul.u32 2, %s26
        %p509 = scmp.lt.s32.totalorder %s508, 3
        %s510 = scalar_select %p509, %s508, 3
        %s511 = smul.addr %s510, 8
        %s512 = scalar_lea.vmem %s0, %s511
        %s513 = smul.u32 2, %s26
      $region88: #{_lambda_.1} parent=83 // pred_fallthru
        _
    $region84: #{_lambda_.1} parent=5 // pred_fallthru
      _
    %p514 = scmp.le.s32.totalorder 1, %s26
    %p515 = scmp.lt.s32.totalorder %s26, 3
    %p516 = pnand %p514, %p515
    %p517 = pneg %p516
    // Predicated region
    $region89: #{_lambda_.1} parent=5 // pred_check
      _
    $region90: #{_lambda_.1} parent=5 // pred_check_branch
      %519 = sbr.rel (%p516) target = $region92
    $region91: #{_lambda_.1} parent=5 // pred_region
      %s520 = ssub.s32 %s26, 1
      %s521 = smul.u32 2, %s31
      %p522 = scmp.lt.s32.totalorder %s521, 3
      %s523 = scalar_select %p522, %s521, 3
      %s524 = smul.addr %s523, 8
      %s525 = scalar_lea.vmem %s0, %s524
      %p526 = pneg %p52
      %p527 = pneg %p49
      %p528 = pneg %p73
      %p529 = pneg %p70
      %p530 = pneg %p94
      %p531 = pneg %p91
      %p532 = pneg %p115
      %p533 = pneg %p112
      %p534 = pneg %p136
      %p535 = pneg %p133
      %p536 = pneg %p157
      %p537 = pneg %p154
      %p538 = pneg %p178
      %p539 = pneg %p175
      %p540 = pneg %p199
      %p541 = pneg %p196
      %p542 = pneg %p220
      %p543 = pneg %p217
      %p544 = pneg %p241
      %p545 = pneg %p238
      %p546 = pneg %p262
      %p547 = pneg %p259
      %p548 = pneg %p283
      %p549 = pneg %p280
      %p550 = pneg %p304
      %p551 = pneg %p301
      %p552 = pneg %p325
      %p553 = pneg %p322
      %p554 = pneg %p346
      %p555 = pneg %p343
      %p556 = pneg %p367
      %p557 = pneg %p364
      %p558 = pneg %p388
      %p559 = pneg %p385
      %p560 = pneg %p409
      %p561 = pneg %p406
      %p562 = pneg %p435
      %p563 = pneg %p432
      %s564 = smul.u32 2, %s31
      %p565 = scmp.lt.s32.totalorder %s564, 3
      %s566 = scalar_select %p565, %s564, 3
      %s567 = smul.addr %s566, 8
      %s568 = scalar_lea.vmem %s18, %s567
      %s569 = smul.u32 2, %s31
      %p570 = scmp.lt.s32.totalorder %s569, 3
      %s571 = scalar_select %p570, %s569, 3
      %s572 = smul.addr %s571, 8
      %s573 = scalar_lea.vmem %s0, %s572
      %s574 = smul.u32 2, %s31
      %s575 = smul.u32 2, %s31
      %p576 = scmp.lt.s32.totalorder %s575, 3
      %s577 = scalar_select %p576, %s575, 3
      %s578 = smul.addr %s577, 8
      %s579 = scalar_lea.vmem %s18, %s578
      %s580 = smul.u32 2, %s31
      %v581 = vld [vmem:[%s12] sm:$0xff]
      %v582 = vld [vmem:[%s12 + $0x8] sm:$0xff]
      %v583 = vld [vmem:[%s11] sm:$0xff]
      %v584 = vld [vmem:[%s11 + $0x8] sm:$0xff]
      %s585 = scalar_lea.vmem %s11, 16
      %v586 = vld [vmem:[%s585] sm:$0xff]
      %v587 = vld [vmem:[%s585 + $0x8] sm:$0xff]
      %s588 = scalar_lea.vmem %s11, 32
      %v589 = vld [vmem:[%s588] sm:$0xff]
      %v590 = vld [vmem:[%s588 + $0x8] sm:$0xff]
      %s591 = scalar_lea.vmem %s11, 48
      %v592 = vld [vmem:[%s591] sm:$0xff]
      %v593 = vld [vmem:[%s591 + $0x8] sm:$0xff]
      %v594 = vlaneseq
      %v595 = vshrl.u32 %v594, 7
      %v596 = vadd.s32 %v595, 8
      %v597 = vld [vmem:[%s573] sm:$0xff]
      %v598 = vld [vmem:[%s573 + $0x8] sm:$0xff]
      %v599 = vld [vmem:[%s1] sm:$0x1]
      %601 = vset.pattern.permute.xlu0 0
      %602 = vperm.xlu0 %601, %v597
      %v603 = vpop.permute.xlu0 %602
      %606 = vset.pattern.permute.xlu0 0
      %607 = vperm.xlu0 %606, %v598
      %v608 = vpop.permute.xlu0 %607
      %v611 = vlaneseq
      %v612 = vshrl.u32 %v611, 7
      %v613 = vsub.s32 0, %v612
      %v614 = vrot.slane %v599, %v613
      %v616 = vmul.f32 %v603, %v614
      %v617 = vmul.f32 %v608, %v614
      %v618 = vld [vmem:[%s2] sm:$0x1]
      %v620 = vlaneseq
      %v621 = vshrl.u32 %v620, 7
      %v622 = vsub.s32 0, %v621
      %v623 = vrot.slane %v618, %v622
      %v625 = vadd.f32 %v616, %v623
      %v626 = vadd.f32 %v617, %v623
      %v627 = vld [vmem:[%s3] sm:$0x1]
      %v628 = vld [vmem:[%s4] sm:$0x1]
      %vm629 = vcmask 64512
      %v630 = vsel %vm629, %v625, 0.0
      %631 = vadd.xlane.f32.xlu0 %v630
      %v632 = vpop.xlane.xlu0 %631
      %v633 = vsel %vm629, %v626, 0.0
      %634 = vadd.xlane.f32.xlu0 %v633
      %v635 = vpop.xlane.xlu0 %634
      %v636 = vrcp.pop 8.0
      %v637 = vmul.f32 %v632, %v636
      %v638 = vmul.f32 %v635, %v636
      %v639 = vsub.f32 %v625, %v637
      %v640 = vsub.f32 %v626, %v638
      %v641 = vmul.f32 %v639, %v639
      %v642 = vmul.f32 %v640, %v640
      %v643 = vsel %vm629, %v641, 0.0
      %644 = vadd.xlane.f32.xlu0 %v643
      %v645 = vpop.xlane.xlu0 %644
      %v646 = vsel %vm629, %v642, 0.0
      %647 = vadd.xlane.f32.xlu0 %v646
      %v648 = vpop.xlane.xlu0 %647
      %v649 = vmul.f32 %v645, %v636
      %v650 = vmul.f32 %v648, %v636
      %v651 = vadd.f32 %v649, 1e-05
      %v652 = vadd.f32 %v650, 1e-05
      %v653 = vrsqrt.pop %v651
      %v654 = vrsqrt.pop %v652
      %v655 = vmul.f32 %v639, %v653
      %v656 = vmul.f32 %v640, %v654
      %v658 = vlaneseq
      %v659 = vshrl.u32 %v658, 7
      %v660 = vsub.s32 0, %v659
      %v661 = vrot.slane %v627, %v660
      %v663 = vmul.f32 %v655, %v661
      %v664 = vmul.f32 %v656, %v661
      %v666 = vlaneseq
      %v667 = vshrl.u32 %v666, 7
      %v668 = vsub.s32 0, %v667
      %v669 = vrot.slane %v628, %v668
      %v671 = vadd.f32 %v663, %v669
      %v672 = vadd.f32 %v664, %v669
      %v673 = vld [vmem:[%s5] sm:$0xff]
      %v675 = vsel %vm629, %v671, 0
      %v678 = vsel %vm629, %v672, 0
      %680 = vmatprep.subr.mxu0 0.0
      %681 = vmatpush1.msra.mxu0 %v673
      %682 = vmatprep.subr.mxu0 0.0
      %683 = vmatpush1.msra.mxu0 0.0
      %684 = vmatprep.subr.mxu0 0.0
      %685 = vmatpush1.msra.mxu0 0.0
      %686 = vmatprep.subr.mxu0 0.0
      %687 = vmatpush1.msra.mxu0 0.0
      %688 = vmatprep.subr.mxu0 0.0
      %689 = vmatpush1.msra.mxu0 0.0
      %690 = vmatprep.subr.mxu0 0.0
      %691 = vmatpush1.msra.mxu0 0.0
      %692 = vmatprep.subr.mxu0 0.0
      %693 = vmatpush1.msra.mxu0 0.0
      %694 = vmatprep.subr.mxu0 0.0
      %695 = vmatpush1.msra.mxu0 0.0
      %696 = vmatprep.subr.mxu0 0.0
      %697 = vmatpush1.msra.mxu0 0.0
      %698 = vmatprep.subr.mxu0 0.0
      %699 = vmatpush1.msra.mxu0 0.0
      %700 = vmatprep.subr.mxu0 0.0
      %701 = vmatpush1.msra.mxu0 0.0
      %702 = vmatprep.subr.mxu0 0.0
      %703 = vmatpush1.msra.mxu0 0.0
      %704 = vmatprep.subr.mxu0 0.0
      %705 = vmatpush1.msra.mxu0 0.0
      %706 = vmatprep.subr.mxu0 0.0
      %707 = vmatpush1.msra.mxu0 0.0
      %708 = vmatprep.subr.mxu0 0.0
      %709 = vmatpush1.msra.mxu0 0.0
      %710 = vmatprep.subr.mxu0 0.0
      %711 = vmatpush1.msra.mxu0 0.0
      %712 = vmatprep.subr.mxu0 0.0
      %713 = vmatpush1.msra.mxu0 0.0
      %714 = vmatprep.subr.mxu0 0.0
      %715 = vmatpush1.msra.mxu0 0.0
      %716 = vmatprep.subr.mxu0 0.0
      %717 = vmatpush1.msra.mxu0 0.0
      %718 = vmatprep.subr.mxu0 0.0
      %719 = vmatpush1.msra.mxu0 0.0
      %720 = vmatprep.subr.mxu0 0.0
      %721 = vmatpush1.msra.mxu0 0.0
      %722 = vmatprep.subr.mxu0 0.0
      %723 = vmatpush1.msra.mxu0 0.0
      %724 = vmatprep.subr.mxu0 0.0
      %725 = vmatpush1.msra.mxu0 0.0
      %726 = vmatprep.subr.mxu0 0.0
      %727 = vmatpush1.msra.mxu0 0.0
      %728 = vmatprep.subr.mxu0 0.0
      %729 = vmatpush1.msra.mxu0 0.0
      %730 = vmatprep.subr.mxu0 0.0
      %731 = vmatpush1.msra.mxu0 0.0
      %732 = vmatprep.subr.mxu0 0.0
      %733 = vmatpush1.msra.mxu0 0.0
      %734 = vmatprep.subr.mxu0 0.0
      %735 = vmatpush1.msra.mxu0 0.0
      %736 = vmatprep.subr.mxu0 0.0
      %737 = vmatpush1.msra.mxu0 0.0
      %738 = vmatprep.subr.mxu0 0.0
      %739 = vmatpush1.msra.mxu0 0.0
      %740 = vmatprep.subr.mxu0 0.0
      %741 = vmatpush1.msra.mxu0 0.0
      %742 = vmatprep.subr.mxu0 0.0
      %743 = vmatpush1.msra.mxu0 0.0
      %744 = vmatprep.mubr.f32.mxu0 0.0
      %745 = vmatmul.mubr.f32.gmra.mrb[0].mxu0 %v675
      %v746 = vpop.f32.mrb[0].mxu0
      %v747 = vadd.f32 0.0, %v746
      %v748 = vpop.f32.mrb[0].mxu0
      %749 = vmatprep.mubr.f32.mxu0 0.0
      %750 = vmatmul.mubr.f32.gmra.mrb[0].mxu0 %v678
      %v751 = vpop.f32.mrb[0].mxu0
      %v752 = vadd.f32 0.0, %v751
      %v753 = vpop.f32.mrb[0].mxu0
      %754 = vdwg.mxu0
      %v755 = vld [vmem:[%s7] sm:$0x1]
      %v757 = vlaneseq
      %v758 = vshrl.u32 %v757, 7
      %v759 = vsub.s32 0, %v758
      %v760 = vrot.slane %v755, %v759
      %v762 = vadd.f32 %v760, 0.0
      %vm763 = vcmask 130048
      %v765 = vsel %vm763, %v583, 0
      %v768 = vsel %vm763, %v584, 0
      %770 = vmatprep.subr.mxu0 0.0
      %771 = vmatpush1.msra.mxu0 %v747
      %772 = vmatprep.subr.mxu0 0.0
      %773 = vmatpush1.msra.mxu0 %v752
      %774 = vmatprep.subr.mxu0 0.0
      %775 = vmatpush1.msra.mxu0 0.0
      %776 = vmatprep.subr.mxu0 0.0
      %777 = vmatpush1.msra.mxu0 0.0
      %778 = vmatprep.subr.mxu0 0.0
      %779 = vmatpush1.msra.mxu0 0.0
      %780 = vmatprep.subr.mxu0 0.0
      %781 = vmatpush1.msra.mxu0 0.0
      %782 = vmatprep.subr.mxu0 0.0
      %783 = vmatpush1.msra.mxu0 0.0
      %784 = vmatprep.subr.mxu0 0.0
      %785 = vmatpush1.msra.mxu0 0.0
      %786 = vmatprep.subr.mxu0 0.0
      %787 = vmatpush1.msra.mxu0 0.0
      %788 = vmatprep.subr.mxu0 0.0
      %789 = vmatpush1.msra.mxu0 0.0
      %790 = vmatprep.subr.mxu0 0.0
      %791 = vmatpush1.msra.mxu0 0.0
      %792 = vmatprep.subr.mxu0 0.0
      %793 = vmatpush1.msra.mxu0 0.0
      %794 = vmatprep.subr.mxu0 0.0
      %795 = vmatpush1.msra.mxu0 0.0
      %796 = vmatprep.subr.mxu0 0.0
      %797 = vmatpush1.msra.mxu0 0.0
      %798 = vmatprep.subr.mxu0 0.0
      %799 = vmatpush1.msra.mxu0 0.0
      %800 = vmatprep.subr.mxu0 0.0
      %801 = vmatpush1.msra.mxu0 0.0
      %802 = vmatprep.subr.mxu0 0.0
      %803 = vmatpush1.msra.mxu0 0.0
      %804 = vmatprep.subr.mxu0 0.0
      %805 = vmatpush1.msra.mxu0 0.0
      %806 = vmatprep.subr.mxu0 0.0
      %807 = vmatpush1.msra.mxu0 0.0
      %808 = vmatprep.subr.mxu0 0.0
      %809 = vmatpush1.msra.mxu0 0.0
      %810 = vmatprep.subr.mxu0 0.0
      %811 = vmatpush1.msra.mxu0 0.0
      %812 = vmatprep.subr.mxu0 0.0
      %813 = vmatpush1.msra.mxu0 0.0
      %814 = vmatprep.subr.mxu0 0.0
      %815 = vmatpush1.msra.mxu0 0.0
      %816 = vmatprep.subr.mxu0 0.0
      %817 = vmatpush1.msra.mxu0 0.0
      %818 = vmatprep.subr.mxu0 0.0
      %819 = vmatpush1.msra.mxu0 0.0
      %820 = vmatprep.subr.mxu0 0.0
      %821 = vmatpush1.msra.mxu0 0.0
      %822 = vmatprep.subr.mxu0 0.0
      %823 = vmatpush1.msra.mxu0 0.0
      %824 = vmatprep.subr.mxu0 0.0
      %825 = vmatpush1.msra.mxu0 0.0
      %826 = vmatprep.subr.mxu0 0.0
      %827 = vmatpush1.msra.mxu0 0.0
      %828 = vmatprep.subr.mxu0 0.0
      %829 = vmatpush1.msra.mxu0 0.0
      %830 = vmatprep.subr.mxu0 0.0
      %831 = vmatpush1.msra.mxu0 0.0
      %832 = vmatprep.subr.mxu0 0.0
      %833 = vmatpush1.msra.mxu0 0.0
      %834 = vmatprep.mubr.f32.mxu0 0.0
      %835 = vmatmul.mubr.f32.gmra.mrb[0].mxu0 %v765
      %v836 = vpop.f32.mrb[0].mxu0
      %v837 = vadd.f32 0.0, %v836
      %v838 = vpop.f32.mrb[0].mxu0
      %839 = vmatprep.mubr.f32.mxu0 0.0
      %840 = vmatmul.mubr.f32.gmra.mrb[0].mxu0 %v768
      %v841 = vpop.f32.mrb[0].mxu0
      %v842 = vadd.f32 0.0, %v841
      %v843 = vpop.f32.mrb[0].mxu0
      %844 = vdwg.mxu0
      %v845 = vld [vmem:[%s6] sm:$0x1]
      %v847 = vlaneseq
      %v848 = vshrl.u32 %v847, 7
      %v849 = vsub.s32 0, %v848
      %v850 = vrot.slane %v845, %v849
      %v852 = vmul.f32 %v837, %v850
      %v853 = vmul.f32 %v842, %v850
      %v854 = vadd.f32 %v762, %v852
      %v855 = vadd.f32 %v762, %v853
      %v857 = vsel %vm763, %v586, 0
      %v860 = vsel %vm763, %v587, 0
      %862 = vmatprep.subr.mxu0 0.0
      %863 = vmatpush1.msra.mxu0 %v747
      %864 = vmatprep.subr.mxu0 0.0
      %865 = vmatpush1.msra.mxu0 %v752
      %866 = vmatprep.subr.mxu0 0.0
      %867 = vmatpush1.msra.mxu0 0.0
      %868 = vmatprep.subr.mxu0 0.0
      %869 = vmatpush1.msra.mxu0 0.0
      %870 = vmatprep.subr.mxu0 0.0
      %871 = vmatpush1.msra.mxu0 0.0
      %872 = vmatprep.subr.mxu0 0.0
      %873 = vmatpush1.msra.mxu0 0.0
      %874 = vmatprep.subr.mxu0 0.0
      %875 = vmatpush1.msra.mxu0 0.0
      %876 = vmatprep.subr.mxu0 0.0
      %877 = vmatpush1.msra.mxu0 0.0
      %878 = vmatprep.subr.mxu0 0.0
      %879 = vmatpush1.msra.mxu0 0.0
      %880 = vmatprep.subr.mxu0 0.0
      %881 = vmatpush1.msra.mxu0 0.0
      %882 = vmatprep.subr.mxu0 0.0
      %883 = vmatpush1.msra.mxu0 0.0
      %884 = vmatprep.subr.mxu0 0.0
      %885 = vmatpush1.msra.mxu0 0.0
      %886 = vmatprep.subr.mxu0 0.0
      %887 = vmatpush1.msra.mxu0 0.0
      %888 = vmatprep.subr.mxu0 0.0
      %889 = vmatpush1.msra.mxu0 0.0
      %890 = vmatprep.subr.mxu0 0.0
      %891 = vmatpush1.msra.mxu0 0.0
      %892 = vmatprep.subr.mxu0 0.0
      %893 = vmatpush1.msra.mxu0 0.0
      %894 = vmatprep.subr.mxu0 0.0
      %895 = vmatpush1.msra.mxu0 0.0
      %896 = vmatprep.subr.mxu0 0.0
      %897 = vmatpush1.msra.mxu0 0.0
      %898 = vmatprep.subr.mxu0 0.0
      %899 = vmatpush1.msra.mxu0 0.0
      %900 = vmatprep.subr.mxu0 0.0
      %901 = vmatpush1.msra.mxu0 0.0
      %902 = vmatprep.subr.mxu0 0.0
      %903 = vmatpush1.msra.mxu0 0.0
      %904 = vmatprep.subr.mxu0 0.0
      %905 = vmatpush1.msra.mxu0 0.0
      %906 = vmatprep.subr.mxu0 0.0
      %907 = vmatpush1.msra.mxu0 0.0
      %908 = vmatprep.subr.mxu0 0.0
      %909 = vmatpush1.msra.mxu0 0.0
      %910 = vmatprep.subr.mxu0 0.0
      %911 = vmatpush1.msra.mxu0 0.0
      %912 = vmatprep.subr.mxu0 0.0
      %913 = vmatpush1.msra.mxu0 0.0
      %914 = vmatprep.subr.mxu0 0.0
      %915 = vmatpush1.msra.mxu0 0.0
      %916 = vmatprep.subr.mxu0 0.0
      %917 = vmatpush1.msra.mxu0 0.0
      %918 = vmatprep.subr.mxu0 0.0
      %919 = vmatpush1.msra.mxu0 0.0
      %920 = vmatprep.subr.mxu0 0.0
      %921 = vmatpush1.msra.mxu0 0.0
      %922 = vmatprep.subr.mxu0 0.0
      %923 = vmatpush1.msra.mxu0 0.0
      %924 = vmatprep.subr.mxu0 0.0
      %925 = vmatpush1.msra.mxu0 0.0
      %926 = vmatprep.mubr.f32.mxu0 0.0
      %927 = vmatmul.mubr.f32.gmra.mrb[0].mxu0 %v857
      %v928 = vpop.f32.mrb[0].mxu0
      %v929 = vadd.f32 0.0, %v928
      %v930 = vpop.f32.mrb[0].mxu0
      %931 = vmatprep.mubr.f32.mxu0 0.0
      %932 = vmatmul.mubr.f32.gmra.mrb[0].mxu0 %v860
      %v933 = vpop.f32.mrb[0].mxu0
      %v934 = vadd.f32 0.0, %v933
      %v935 = vpop.f32.mrb[0].mxu0
      %936 = vdwg.mxu0
      %s937 = scalar_lea.vmem %s6, 1
      %v938 = vld [vmem:[%s937] sm:$0x1]
      %v940 = vlaneseq
      %v941 = vshrl.u32 %v940, 7
      %v942 = vsub.s32 0, %v941
      %v943 = vrot.slane %v938, %v942
      %v945 = vmul.f32 %v929, %v943
      %v946 = vmul.f32 %v934, %v943
      %v947 = vadd.f32 %v854, %v945
      %v948 = vadd.f32 %v855, %v946
      %v950 = vsel %vm763, %v589, 0
      %v953 = vsel %vm763, %v590, 0
      %955 = vmatprep.subr.mxu0 0.0
      %956 = vmatpush1.msra.mxu0 %v747
      %957 = vmatprep.subr.mxu0 0.0
      %958 = vmatpush1.msra.mxu0 %v752
      %959 = vmatprep.subr.mxu0 0.0
      %960 = vmatpush1.msra.mxu0 0.0
      %961 = vmatprep.subr.mxu0 0.0
      %962 = vmatpush1.msra.mxu0 0.0
      %963 = vmatprep.subr.mxu0 0.0
      %964 = vmatpush1.msra.mxu0 0.0
      %965 = vmatprep.subr.mxu0 0.0
      %966 = vmatpush1.msra.mxu0 0.0
      %967 = vmatprep.subr.mxu0 0.0
      %968 = vmatpush1.msra.mxu0 0.0
      %969 = vmatprep.subr.mxu0 0.0
      %970 = vmatpush1.msra.mxu0 0.0
      %971 = vmatprep.subr.mxu0 0.0
      %972 = vmatpush1.msra.mxu0 0.0
      %973 = vmatprep.subr.mxu0 0.0
      %974 = vmatpush1.msra.mxu0 0.0
      %975 = vmatprep.subr.mxu0 0.0
      %976 = vmatpush1.msra.mxu0 0.0
      %977 = vmatprep.subr.mxu0 0.0
      %978 = vmatpush1.msra.mxu0 0.0
      %979 = vmatprep.subr.mxu0 0.0
      %980 = vmatpush1.msra.mxu0 0.0
      %981 = vmatprep.subr.mxu0 0.0
      %982 = vmatpush1.msra.mxu0 0.0
      %983 = vmatprep.subr.mxu0 0.0
      %984 = vmatpush1.msra.mxu0 0.0
      %985 = vmatprep.subr.mxu0 0.0
      %986 = vmatpush1.msra.mxu0 0.0
      %987 = vmatprep.subr.mxu0 0.0
      %988 = vmatpush1.msra.mxu0 0.0
      %989 = vmatprep.subr.mxu0 0.0
      %990 = vmatpush1.msra.mxu0 0.0
      %991 = vmatprep.subr.mxu0 0.0
      %992 = vmatpush1.msra.mxu0 0.0
      %993 = vmatprep.subr.mxu0 0.0
      %994 = vmatpush1.msra.mxu0 0.0
      %995 = vmatprep.subr.mxu0 0.0
      %996 = vmatpush1.msra.mxu0 0.0
      %997 = vmatprep.subr.mxu0 0.0
      %998 = vmatpush1.msra.mxu0 0.0
      %999 = vmatprep.subr.mxu0 0.0
      %1000 = vmatpush1.msra.mxu0 0.0
      %1001 = vmatprep.subr.mxu0 0.0
      %1002 = vmatpush1.msra.mxu0 0.0
      %1003 = vmatprep.subr.mxu0 0.0
      %1004 = vmatpush1.msra.mxu0 0.0
      %1005 = vmatprep.subr.mxu0 0.0
      %1006 = vmatpush1.msra.mxu0 0.0
      %1007 = vmatprep.subr.mxu0 0.0
      %1008 = vmatpush1.msra.mxu0 0.0
      %1009 = vmatprep.subr.mxu0 0.0
      %1010 = vmatpush1.msra.mxu0 0.0
      %1011 = vmatprep.subr.mxu0 0.0
      %1012 = vmatpush1.msra.mxu0 0.0
      %1013 = vmatprep.subr.mxu0 0.0
      %1014 = vmatpush1.msra.mxu0 0.0
      %1015 = vmatprep.subr.mxu0 0.0
      %1016 = vmatpush1.msra.mxu0 0.0
      %1017 = vmatprep.subr.mxu0 0.0
      %1018 = vmatpush1.msra.mxu0 0.0
      %1019 = vmatprep.mubr.f32.mxu0 0.0
      %1020 = vmatmul.mubr.f32.gmra.mrb[0].mxu0 %v950
      %v1021 = vpop.f32.mrb[0].mxu0
      %v1022 = vadd.f32 0.0, %v1021
      %v1023 = vpop.f32.mrb[0].mxu0
      %1024 = vmatprep.mubr.f32.mxu0 0.0
      %1025 = vmatmul.mubr.f32.gmra.mrb[0].mxu0 %v953
      %v1026 = vpop.f32.mrb[0].mxu0
      %v1027 = vadd.f32 0.0, %v1026
      %v1028 = vpop.f32.mrb[0].mxu0
      %1029 = vdwg.mxu0
      %s1030 = scalar_lea.vmem %s6, 2
      %v1031 = vld [vmem:[%s1030] sm:$0x1]
      %v1033 = vlaneseq
      %v1034 = vshrl.u32 %v1033, 7
      %v1035 = vsub.s32 0, %v1034
      %v1036 = vrot.slane %v1031, %v1035
      %v1038 = vmul.f32 %v1022, %v1036
      %v1039 = vmul.f32 %v1027, %v1036
      %v1040 = vadd.f32 %v947, %v1038
      %v1041 = vadd.f32 %v948, %v1039
      %v1043 = vsel %vm763, %v592, 0
      %v1046 = vsel %vm763, %v593, 0
      %1048 = vmatprep.subr.mxu0 0.0
      %1049 = vmatpush1.msra.mxu0 %v747
      %1050 = vmatprep.subr.mxu0 0.0
      %1051 = vmatpush1.msra.mxu0 %v752
      %1052 = vmatprep.subr.mxu0 0.0
      %1053 = vmatpush1.msra.mxu0 0.0
      %1054 = vmatprep.subr.mxu0 0.0
      %1055 = vmatpush1.msra.mxu0 0.0
      %1056 = vmatprep.subr.mxu0 0.0
      %1057 = vmatpush1.msra.mxu0 0.0
      %1058 = vmatprep.subr.mxu0 0.0
      %1059 = vmatpush1.msra.mxu0 0.0
      %1060 = vmatprep.subr.mxu0 0.0
      %1061 = vmatpush1.msra.mxu0 0.0
      %1062 = vmatprep.subr.mxu0 0.0
      %1063 = vmatpush1.msra.mxu0 0.0
      %1064 = vmatprep.subr.mxu0 0.0
      %1065 = vmatpush1.msra.mxu0 0.0
      %1066 = vmatprep.subr.mxu0 0.0
      %1067 = vmatpush1.msra.mxu0 0.0
      %1068 = vmatprep.subr.mxu0 0.0
      %1069 = vmatpush1.msra.mxu0 0.0
      %1070 = vmatprep.subr.mxu0 0.0
      %1071 = vmatpush1.msra.mxu0 0.0
      %1072 = vmatprep.subr.mxu0 0.0
      %1073 = vmatpush1.msra.mxu0 0.0
      %1074 = vmatprep.subr.mxu0 0.0
      %1075 = vmatpush1.msra.mxu0 0.0
      %1076 = vmatprep.subr.mxu0 0.0
      %1077 = vmatpush1.msra.mxu0 0.0
      %1078 = vmatprep.subr.mxu0 0.0
      %1079 = vmatpush1.msra.mxu0 0.0
      %1080 = vmatprep.subr.mxu0 0.0
      %1081 = vmatpush1.msra.mxu0 0.0
      %1082 = vmatprep.subr.mxu0 0.0
      %1083 = vmatpush1.msra.mxu0 0.0
      %1084 = vmatprep.subr.mxu0 0.0
      %1085 = vmatpush1.msra.mxu0 0.0
      %1086 = vmatprep.subr.mxu0 0.0
      %1087 = vmatpush1.msra.mxu0 0.0
      %1088 = vmatprep.subr.mxu0 0.0
      %1089 = vmatpush1.msra.mxu0 0.0
      %1090 = vmatprep.subr.mxu0 0.0
      %1091 = vmatpush1.msra.mxu0 0.0
      %1092 = vmatprep.subr.mxu0 0.0
      %1093 = vmatpush1.msra.mxu0 0.0
      %1094 = vmatprep.subr.mxu0 0.0
      %1095 = vmatpush1.msra.mxu0 0.0
      %1096 = vmatprep.subr.mxu0 0.0
      %1097 = vmatpush1.msra.mxu0 0.0
      %1098 = vmatprep.subr.mxu0 0.0
      %1099 = vmatpush1.msra.mxu0 0.0
      %1100 = vmatprep.subr.mxu0 0.0
      %1101 = vmatpush1.msra.mxu0 0.0
      %1102 = vmatprep.subr.mxu0 0.0
      %1103 = vmatpush1.msra.mxu0 0.0
      %1104 = vmatprep.subr.mxu0 0.0
      %1105 = vmatpush1.msra.mxu0 0.0
      %1106 = vmatprep.subr.mxu0 0.0
      %1107 = vmatpush1.msra.mxu0 0.0
      %1108 = vmatprep.subr.mxu0 0.0
      %1109 = vmatpush1.msra.mxu0 0.0
      %1110 = vmatprep.subr.mxu0 0.0
      %1111 = vmatpush1.msra.mxu0 0.0
      %1112 = vmatprep.mubr.f32.mxu0 0.0
      %1113 = vmatmul.mubr.f32.gmra.mrb[0].mxu0 %v1043
      %v1114 = vpop.f32.mrb[0].mxu0
      %v1115 = vadd.f32 0.0, %v1114
      %v1116 = vpop.f32.mrb[0].mxu0
      %1117 = vmatprep.mubr.f32.mxu0 0.0
      %1118 = vmatmul.mubr.f32.gmra.mrb[0].mxu0 %v1046
      %v1119 = vpop.f32.mrb[0].mxu0
      %v1120 = vadd.f32 0.0, %v1119
      %v1121 = vpop.f32.mrb[0].mxu0
      %1122 = vdwg.mxu0
      %s1123 = scalar_lea.vmem %s6, 3
      %v1124 = vld [vmem:[%s1123] sm:$0x1]
      %v1126 = vlaneseq
      %v1127 = vshrl.u32 %v1126, 7
      %v1128 = vsub.s32 0, %v1127
      %v1129 = vrot.slane %v1124, %v1128
      %v1131 = vmul.f32 %v1115, %v1129
      %v1132 = vmul.f32 %v1120, %v1129
      %v1133 = vadd.f32 %v1040, %v1131
      %v1134 = vadd.f32 %v1041, %v1132
      %v1135 = vld [vmem:[%s8] sm:$0xff]
      %v1136 = vld [vmem:[%s8 + $0x8] sm:$0xff]
      %v1137 = vld [vmem:[%s9] sm:$0x1]
      %v1139 = vlaneseq
      %v1140 = vshrl.u32 %v1139, 7
      %v1141 = vsub.s32 0, %v1140
      %v1142 = vrot.slane %v1137, %v1141
      %v1145 = vsel %vm763, %v1133, 0
      %v1148 = vsel %vm763, %v1134, 0
      %1150 = vmatprep.subr.mxu0 0.0
      %1151 = vmatpush1.msra.mxu0 %v1135
      %1152 = vmatprep.subr.mxu0 0.0
      %1153 = vmatpush1.msra.mxu0 %v1136
      %1154 = vmatprep.subr.mxu0 0.0
      %1155 = vmatpush1.msra.mxu0 0.0
      %1156 = vmatprep.subr.mxu0 0.0
      %1157 = vmatpush1.msra.mxu0 0.0
      %1158 = vmatprep.subr.mxu0 0.0
      %1159 = vmatpush1.msra.mxu0 0.0
      %1160 = vmatprep.subr.mxu0 0.0
      %1161 = vmatpush1.msra.mxu0 0.0
      %1162 = vmatprep.subr.mxu0 0.0
      %1163 = vmatpush1.msra.mxu0 0.0
      %1164 = vmatprep.subr.mxu0 0.0
      %1165 = vmatpush1.msra.mxu0 0.0
      %1166 = vmatprep.subr.mxu0 0.0
      %1167 = vmatpush1.msra.mxu0 0.0
      %1168 = vmatprep.subr.mxu0 0.0
      %1169 = vmatpush1.msra.mxu0 0.0
      %1170 = vmatprep.subr.mxu0 0.0
      %1171 = vmatpush1.msra.mxu0 0.0
      %1172 = vmatprep.subr.mxu0 0.0
      %1173 = vmatpush1.msra.mxu0 0.0
      %1174 = vmatprep.subr.mxu0 0.0
      %1175 = vmatpush1.msra.mxu0 0.0
      %1176 = vmatprep.subr.mxu0 0.0
      %1177 = vmatpush1.msra.mxu0 0.0
      %1178 = vmatprep.subr.mxu0 0.0
      %1179 = vmatpush1.msra.mxu0 0.0
      %1180 = vmatprep.subr.mxu0 0.0
      %1181 = vmatpush1.msra.mxu0 0.0
      %1182 = vmatprep.subr.mxu0 0.0
      %1183 = vmatpush1.msra.mxu0 0.0
      %1184 = vmatprep.subr.mxu0 0.0
      %1185 = vmatpush1.msra.mxu0 0.0
      %1186 = vmatprep.subr.mxu0 0.0
      %1187 = vmatpush1.msra.mxu0 0.0
      %1188 = vmatprep.subr.mxu0 0.0
      %1189 = vmatpush1.msra.mxu0 0.0
      %1190 = vmatprep.subr.mxu0 0.0
      %1191 = vmatpush1.msra.mxu0 0.0
      %1192 = vmatprep.subr.mxu0 0.0
      %1193 = vmatpush1.msra.mxu0 0.0
      %1194 = vmatprep.subr.mxu0 0.0
      %1195 = vmatpush1.msra.mxu0 0.0
      %1196 = vmatprep.subr.mxu0 0.0
      %1197 = vmatpush1.msra.mxu0 0.0
      %1198 = vmatprep.subr.mxu0 0.0
      %1199 = vmatpush1.msra.mxu0 0.0
      %1200 = vmatprep.subr.mxu0 0.0
      %1201 = vmatpush1.msra.mxu0 0.0
      %1202 = vmatprep.subr.mxu0 0.0
      %1203 = vmatpush1.msra.mxu0 0.0
      %1204 = vmatprep.subr.mxu0 0.0
      %1205 = vmatpush1.msra.mxu0 0.0
      %1206 = vmatprep.subr.mxu0 0.0
      %1207 = vmatpush1.msra.mxu0 0.0
      %1208 = vmatprep.subr.mxu0 0.0
      %1209 = vmatpush1.msra.mxu0 0.0
      %1210 = vmatprep.subr.mxu0 0.0
      %1211 = vmatpush1.msra.mxu0 0.0
      %1212 = vmatprep.subr.mxu0 0.0
      %1213 = vmatpush1.msra.mxu0 0.0
      %1214 = vmatprep.mubr.f32.mxu0 0.0
      %1215 = vmatmul.mubr.f32.gmra.mrb[0].mxu0 %v1145
      %v1216 = vpop.f32.mrb[0].mxu0
      %v1217 = vadd.f32 %v1142, %v1216
      %v1218 = vpop.f32.mrb[0].mxu0
      %1219 = vmatprep.mubr.f32.mxu0 0.0
      %1220 = vmatmul.mubr.f32.gmra.mrb[0].mxu0 %v1148
      %v1221 = vpop.f32.mrb[0].mxu0
      %v1222 = vadd.f32 %v1142, %v1221
      %v1223 = vpop.f32.mrb[0].mxu0
      %1224 = vdwg.mxu0
      %v1225 = vxor.u32 %v1217, 2147483648
      %v1226 = vxor.u32 %v1222, 2147483648
      %v1227 = vmul.f32 %v1225, 1.442695
      %v1228 = vpow.pop %v1227
      %v1229 = vmul.f32 %v1226, 1.442695
      %v1230 = vpow.pop %v1229
      %v1231 = vadd.f32 %v1228, 1.0
      %v1232 = vadd.f32 %v1230, 1.0
      %v1233 = vrcp.pop %v1231
      %v1234 = vmul.f32 1.0, %v1233
      %v1235 = vrcp.pop %v1232
      %v1236 = vmul.f32 1.0, %v1235
      %v1237 = vld [vmem:[%s10] sm:$0xff]
      %v1238 = vld [vmem:[%s10 + $0x8] sm:$0xff]
      %v1239 = vadd.f32 %v1237, 0.0
      %v1240 = vadd.f32 %v1238, 0.0
      %s1241 = scalar_lea.vmem %s10, 16
      %v1242 = vld [vmem:[%s1241] sm:$0xff]
      %v1243 = vld [vmem:[%s1241 + $0x8] sm:$0xff]
      %1245 = vset.pattern.permute.xlu0 0
      %1246 = vperm.xlu0 %1245, %v1234
      %v1247 = vpop.permute.xlu0 %1246
      %1250 = vset.pattern.permute.xlu0 0
      %1251 = vperm.xlu0 %1250, %v1236
      %v1252 = vpop.permute.xlu0 %1251
      %v1254 = vmul.f32 %v1247, %v1242
      %v1255 = vmul.f32 %v1252, %v1243
      %v1256 = vadd.f32 %v1239, %v1254
      %v1257 = vadd.f32 %v1240, %v1255
      %v1258 = vmul.f32 %v1234, %v1234
      %v1259 = vmul.f32 %v1236, %v1236
      %s1260 = scalar_lea.vmem %s10, 32
      %v1261 = vld [vmem:[%s1260] sm:$0xff]
      %v1262 = vld [vmem:[%s1260 + $0x8] sm:$0xff]
      %1264 = vset.pattern.permute.xlu0 0
      %1265 = vperm.xlu0 %1264, %v1258
      %v1266 = vpop.permute.xlu0 %1265
      %1269 = vset.pattern.permute.xlu0 0
      %1270 = vperm.xlu0 %1269, %v1259
      %v1271 = vpop.permute.xlu0 %1270
      %v1273 = vmul.f32 %v1266, %v1261
      %v1274 = vmul.f32 %v1271, %v1262
      %v1275 = vadd.f32 %v1256, %v1273
      %v1276 = vadd.f32 %v1257, %v1274
      %v1277 = vmul.f32 %v1258, %v1234
      %v1278 = vmul.f32 %v1259, %v1236
      %s1279 = scalar_lea.vmem %s10, 48
      %v1280 = vld [vmem:[%s1279] sm:$0xff]
      %v1281 = vld [vmem:[%s1279 + $0x8] sm:$0xff]
      %1283 = vset.pattern.permute.xlu0 0
      %1284 = vperm.xlu0 %1283, %v1277
      %v1285 = vpop.permute.xlu0 %1284
      %1288 = vset.pattern.permute.xlu0 0
      %1289 = vperm.xlu0 %1288, %v1278
      %v1290 = vpop.permute.xlu0 %1289
      %v1292 = vmul.f32 %v1285, %v1280
      %v1293 = vmul.f32 %v1290, %v1281
      %v1294 = vadd.f32 %v1275, %v1292
      %v1295 = vadd.f32 %v1276, %v1293
      %v1296 = vmul.f32 %v1277, %v1234
      %v1297 = vmul.f32 %v1278, %v1236
      %s1298 = scalar_lea.vmem %s10, 64
      %v1299 = vld [vmem:[%s1298] sm:$0xff]
      %v1300 = vld [vmem:[%s1298 + $0x8] sm:$0xff]
      %1302 = vset.pattern.permute.xlu0 0
      %1303 = vperm.xlu0 %1302, %v1296
      %v1304 = vpop.permute.xlu0 %1303
      %1307 = vset.pattern.permute.xlu0 0
      %1308 = vperm.xlu0 %1307, %v1297
      %v1309 = vpop.permute.xlu0 %1308
      %v1311 = vmul.f32 %v1304, %v1299
      %v1312 = vmul.f32 %v1309, %v1300
      %v1313 = vadd.f32 %v1294, %v1311
      %v1314 = vadd.f32 %v1295, %v1312
      %v1315 = vmul.f32 %v1296, %v1234
      %v1316 = vmul.f32 %v1297, %v1236
      %s1317 = scalar_lea.vmem %s10, 80
      %v1318 = vld [vmem:[%s1317] sm:$0xff]
      %v1319 = vld [vmem:[%s1317 + $0x8] sm:$0xff]
      %1321 = vset.pattern.permute.xlu0 0
      %1322 = vperm.xlu0 %1321, %v1315
      %v1323 = vpop.permute.xlu0 %1322
      %1326 = vset.pattern.permute.xlu0 0
      %1327 = vperm.xlu0 %1326, %v1316
      %v1328 = vpop.permute.xlu0 %1327
      %v1330 = vmul.f32 %v1323, %v1318
      %v1331 = vmul.f32 %v1328, %v1319
      %v1332 = vadd.f32 %v1313, %v1330
      %v1333 = vadd.f32 %v1314, %v1331
      %v1334 = vmul.f32 %v1315, %v1234
      %v1335 = vmul.f32 %v1316, %v1236
      %s1336 = scalar_lea.vmem %s10, 96
      %v1337 = vld [vmem:[%s1336] sm:$0xff]
      %v1338 = vld [vmem:[%s1336 + $0x8] sm:$0xff]
      %1340 = vset.pattern.permute.xlu0 0
      %1341 = vperm.xlu0 %1340, %v1334
      %v1342 = vpop.permute.xlu0 %1341
      %1345 = vset.pattern.permute.xlu0 0
      %1346 = vperm.xlu0 %1345, %v1335
      %v1347 = vpop.permute.xlu0 %1346
      %v1349 = vmul.f32 %v1342, %v1337
      %v1350 = vmul.f32 %v1347, %v1338
      %v1351 = vadd.f32 %v1332, %v1349
      %v1352 = vadd.f32 %v1333, %v1350
      %v1353 = vmul.f32 %v1334, %v1234
      %v1354 = vmul.f32 %v1335, %v1236
      %s1355 = scalar_lea.vmem %s10, 112
      %v1356 = vld [vmem:[%s1355] sm:$0xff]
      %v1357 = vld [vmem:[%s1355 + $0x8] sm:$0xff]
      %1359 = vset.pattern.permute.xlu0 0
      %1360 = vperm.xlu0 %1359, %v1353
      %v1361 = vpop.permute.xlu0 %1360
      %1364 = vset.pattern.permute.xlu0 0
      %1365 = vperm.xlu0 %1364, %v1354
      %v1366 = vpop.permute.xlu0 %1365
      %v1368 = vmul.f32 %v1361, %v1356
      %v1369 = vmul.f32 %v1366, %v1357
      %v1370 = vadd.f32 %v1351, %v1368
      %v1371 = vadd.f32 %v1352, %v1369
      %v1372 = vmul.f32 %v1353, %v1234
      %v1373 = vmul.f32 %v1354, %v1236
      %s1374 = scalar_lea.vmem %s10, 128
      %v1375 = vld [vmem:[%s1374] sm:$0xff]
      %v1376 = vld [vmem:[%s1374 + $0x8] sm:$0xff]
      %1378 = vset.pattern.permute.xlu0 0
      %1379 = vperm.xlu0 %1378, %v1372
      %v1380 = vpop.permute.xlu0 %1379
      %1383 = vset.pattern.permute.xlu0 0
      %1384 = vperm.xlu0 %1383, %v1373
      %v1385 = vpop.permute.xlu0 %1384
      %v1387 = vmul.f32 %v1380, %v1375
      %v1388 = vmul.f32 %v1385, %v1376
      %v1389 = vadd.f32 %v1370, %v1387
      %v1390 = vadd.f32 %v1371, %v1388
      %v1391 = vmul.f32 %v1372, %v1234
      %v1392 = vmul.f32 %v1373, %v1236
      %s1393 = scalar_lea.vmem %s10, 144
      %v1394 = vld [vmem:[%s1393] sm:$0xff]
      %v1395 = vld [vmem:[%s1393 + $0x8] sm:$0xff]
      %1397 = vset.pattern.permute.xlu0 0
      %1398 = vperm.xlu0 %1397, %v1391
      %v1399 = vpop.permute.xlu0 %1398
      %1402 = vset.pattern.permute.xlu0 0
      %1403 = vperm.xlu0 %1402, %v1392
      %v1404 = vpop.permute.xlu0 %1403
      %v1406 = vmul.f32 %v1399, %v1394
      %v1407 = vmul.f32 %v1404, %v1395
      %v1408 = vadd.f32 %v1389, %v1406
      %v1409 = vadd.f32 %v1390, %v1407
      %v1410 = vmul.f32 %v1391, %v1234
      %v1411 = vmul.f32 %v1392, %v1236
      %s1412 = scalar_lea.vmem %s10, 160
      %v1413 = vld [vmem:[%s1412] sm:$0xff]
      %v1414 = vld [vmem:[%s1412 + $0x8] sm:$0xff]
      %1416 = vset.pattern.permute.xlu0 0
      %1417 = vperm.xlu0 %1416, %v1410
      %v1418 = vpop.permute.xlu0 %1417
      %1421 = vset.pattern.permute.xlu0 0
      %1422 = vperm.xlu0 %1421, %v1411
      %v1423 = vpop.permute.xlu0 %1422
      %v1425 = vmul.f32 %v1418, %v1413
      %v1426 = vmul.f32 %v1423, %v1414
      %v1427 = vadd.f32 %v1408, %v1425
      %v1428 = vadd.f32 %v1409, %v1426
      %v1429 = vmul.f32 %v1410, %v1234
      %v1430 = vmul.f32 %v1411, %v1236
      %s1431 = scalar_lea.vmem %s10, 176
      %v1432 = vld [vmem:[%s1431] sm:$0xff]
      %v1433 = vld [vmem:[%s1431 + $0x8] sm:$0xff]
      %1435 = vset.pattern.permute.xlu0 0
      %1436 = vperm.xlu0 %1435, %v1429
      %v1437 = vpop.permute.xlu0 %1436
      %1440 = vset.pattern.permute.xlu0 0
      %1441 = vperm.xlu0 %1440, %v1430
      %v1442 = vpop.permute.xlu0 %1441
      %v1444 = vmul.f32 %v1437, %v1432
      %v1445 = vmul.f32 %v1442, %v1433
      %v1446 = vadd.f32 %v1427, %v1444
      %v1447 = vadd.f32 %v1428, %v1445
      %v1448 = vmul.f32 %v1429, %v1234
      %v1449 = vmul.f32 %v1430, %v1236
      %s1450 = scalar_lea.vmem %s10, 192
      %v1451 = vld [vmem:[%s1450] sm:$0xff]
      %v1452 = vld [vmem:[%s1450 + $0x8] sm:$0xff]
      %1454 = vset.pattern.permute.xlu0 0
      %1455 = vperm.xlu0 %1454, %v1448
      %v1456 = vpop.permute.xlu0 %1455
      %1459 = vset.pattern.permute.xlu0 0
      %1460 = vperm.xlu0 %1459, %v1449
      %v1461 = vpop.permute.xlu0 %1460
      %v1463 = vmul.f32 %v1456, %v1451
      %v1464 = vmul.f32 %v1461, %v1452
      %v1465 = vadd.f32 %v1446, %v1463
      %v1466 = vadd.f32 %v1447, %v1464
      %v1467 = vmul.f32 %v1448, %v1234
      %v1468 = vmul.f32 %v1449, %v1236
      %s1469 = scalar_lea.vmem %s10, 208
      %v1470 = vld [vmem:[%s1469] sm:$0xff]
      %v1471 = vld [vmem:[%s1469 + $0x8] sm:$0xff]
      %1473 = vset.pattern.permute.xlu0 0
      %1474 = vperm.xlu0 %1473, %v1467
      %v1475 = vpop.permute.xlu0 %1474
      %1478 = vset.pattern.permute.xlu0 0
      %1479 = vperm.xlu0 %1478, %v1468
      %v1480 = vpop.permute.xlu0 %1479
      %v1482 = vmul.f32 %v1475, %v1470
      %v1483 = vmul.f32 %v1480, %v1471
      %v1484 = vadd.f32 %v1465, %v1482
      %v1485 = vadd.f32 %v1466, %v1483
      %v1486 = vmul.f32 %v1467, %v1234
      %v1487 = vmul.f32 %v1468, %v1236
      %s1488 = scalar_lea.vmem %s10, 224
      %v1489 = vld [vmem:[%s1488] sm:$0xff]
      %v1490 = vld [vmem:[%s1488 + $0x8] sm:$0xff]
      %1492 = vset.pattern.permute.xlu0 0
      %1493 = vperm.xlu0 %1492, %v1486
      %v1494 = vpop.permute.xlu0 %1493
      %1497 = vset.pattern.permute.xlu0 0
      %1498 = vperm.xlu0 %1497, %v1487
      %v1499 = vpop.permute.xlu0 %1498
      %v1501 = vmul.f32 %v1494, %v1489
      %v1502 = vmul.f32 %v1499, %v1490
      %v1503 = vadd.f32 %v1484, %v1501
      %v1504 = vadd.f32 %v1485, %v1502
      %v1505 = vmul.f32 %v1486, %v1234
      %v1506 = vmul.f32 %v1487, %v1236
      %s1507 = scalar_lea.vmem %s10, 240
      %v1508 = vld [vmem:[%s1507] sm:$0xff]
      %v1509 = vld [vmem:[%s1507 + $0x8] sm:$0xff]
      %1511 = vset.pattern.permute.xlu0 0
      %1512 = vperm.xlu0 %1511, %v1505
      %v1513 = vpop.permute.xlu0 %1512
      %1516 = vset.pattern.permute.xlu0 0
      %1517 = vperm.xlu0 %1516, %v1506
      %v1518 = vpop.permute.xlu0 %1517
      %v1520 = vmul.f32 %v1513, %v1508
      %v1521 = vmul.f32 %v1518, %v1509
      %v1522 = vadd.f32 %v1503, %v1520
      %v1523 = vadd.f32 %v1504, %v1521
      %v1524 = vmul.f32 %v1505, %v1234
      %v1525 = vmul.f32 %v1506, %v1236
      %s1526 = scalar_lea.vmem %s10, 256
      %v1527 = vld [vmem:[%s1526] sm:$0xff]
      %v1528 = vld [vmem:[%s1526 + $0x8] sm:$0xff]
      %1530 = vset.pattern.permute.xlu0 0
      %1531 = vperm.xlu0 %1530, %v1524
      %v1532 = vpop.permute.xlu0 %1531
      %1535 = vset.pattern.permute.xlu0 0
      %1536 = vperm.xlu0 %1535, %v1525
      %v1537 = vpop.permute.xlu0 %1536
      %v1539 = vmul.f32 %v1532, %v1527
      %v1540 = vmul.f32 %v1537, %v1528
      %v1541 = vadd.f32 %v1522, %v1539
      %v1542 = vadd.f32 %v1523, %v1540
      %v1543 = vmul.f32 %v1524, %v1234
      %v1544 = vmul.f32 %v1525, %v1236
      %s1545 = scalar_lea.vmem %s10, 272
      %v1546 = vld [vmem:[%s1545] sm:$0xff]
      %v1547 = vld [vmem:[%s1545 + $0x8] sm:$0xff]
      %1549 = vset.pattern.permute.xlu0 0
      %1550 = vperm.xlu0 %1549, %v1543
      %v1551 = vpop.permute.xlu0 %1550
      %1554 = vset.pattern.permute.xlu0 0
      %1555 = vperm.xlu0 %1554, %v1544
      %v1556 = vpop.permute.xlu0 %1555
      %v1558 = vmul.f32 %v1551, %v1546
      %v1559 = vmul.f32 %v1556, %v1547
      %v1560 = vadd.f32 %v1541, %v1558
      %v1561 = vadd.f32 %v1542, %v1559
      %v1562 = vmul.f32 %v1543, %v1234
      %v1563 = vmul.f32 %v1544, %v1236
      %s1564 = scalar_lea.vmem %s10, 288
      %v1565 = vld [vmem:[%s1564] sm:$0xff]
      %v1566 = vld [vmem:[%s1564 + $0x8] sm:$0xff]
      %1568 = vset.pattern.permute.xlu0 0
      %1569 = vperm.xlu0 %1568, %v1562
      %v1570 = vpop.permute.xlu0 %1569
      %1573 = vset.pattern.permute.xlu0 0
      %1574 = vperm.xlu0 %1573, %v1563
      %v1575 = vpop.permute.xlu0 %1574
      %v1577 = vmul.f32 %v1570, %v1565
      %v1578 = vmul.f32 %v1575, %v1566
      %v1579 = vadd.f32 %v1560, %v1577
      %v1580 = vadd.f32 %v1561, %v1578
      %v1581 = vmul.f32 %v1562, %v1234
      %v1582 = vmul.f32 %v1563, %v1236
      %s1583 = scalar_lea.vmem %s10, 304
      %v1584 = vld [vmem:[%s1583] sm:$0xff]
      %v1585 = vld [vmem:[%s1583 + $0x8] sm:$0xff]
      %1587 = vset.pattern.permute.xlu0 0
      %1588 = vperm.xlu0 %1587, %v1581
      %v1589 = vpop.permute.xlu0 %1588
      %1592 = vset.pattern.permute.xlu0 0
      %1593 = vperm.xlu0 %1592, %v1582
      %v1594 = vpop.permute.xlu0 %1593
      %v1596 = vmul.f32 %v1589, %v1584
      %v1597 = vmul.f32 %v1594, %v1585
      %v1598 = vadd.f32 %v1579, %v1596
      %v1599 = vadd.f32 %v1580, %v1597
      %v1600 = vmul.f32 %v1581, %v1234
      %v1601 = vmul.f32 %v1582, %v1236
      %s1602 = scalar_lea.vmem %s10, 320
      %v1603 = vld [vmem:[%s1602] sm:$0xff]
      %v1604 = vld [vmem:[%s1602 + $0x8] sm:$0xff]
      %1606 = vset.pattern.permute.xlu0 0
      %1607 = vperm.xlu0 %1606, %v1600
      %v1608 = vpop.permute.xlu0 %1607
      %1611 = vset.pattern.permute.xlu0 0
      %1612 = vperm.xlu0 %1611, %v1601
      %v1613 = vpop.permute.xlu0 %1612
      %v1615 = vmul.f32 %v1608, %v1603
      %v1616 = vmul.f32 %v1613, %v1604
      %v1617 = vadd.f32 %v1598, %v1615
      %v1618 = vadd.f32 %v1599, %v1616
      %v1619 = vmul.f32 %v1600, %v1234
      %v1620 = vmul.f32 %v1601, %v1236
      %s1621 = scalar_lea.vmem %s10, 336
      %v1622 = vld [vmem:[%s1621] sm:$0xff]
      %v1623 = vld [vmem:[%s1621 + $0x8] sm:$0xff]
      %1625 = vset.pattern.permute.xlu0 0
      %1626 = vperm.xlu0 %1625, %v1619
      %v1627 = vpop.permute.xlu0 %1626
      %1630 = vset.pattern.permute.xlu0 0
      %1631 = vperm.xlu0 %1630, %v1620
      %v1632 = vpop.permute.xlu0 %1631
      %v1634 = vmul.f32 %v1627, %v1622
      %v1635 = vmul.f32 %v1632, %v1623
      %v1636 = vadd.f32 %v1617, %v1634
      %v1637 = vadd.f32 %v1618, %v1635
      %v1638 = vmul.f32 %v1619, %v1234
      %v1639 = vmul.f32 %v1620, %v1236
      %s1640 = scalar_lea.vmem %s10, 352
      %v1641 = vld [vmem:[%s1640] sm:$0xff]
      %v1642 = vld [vmem:[%s1640 + $0x8] sm:$0xff]
      %1644 = vset.pattern.permute.xlu0 0
      %1645 = vperm.xlu0 %1644, %v1638
      %v1646 = vpop.permute.xlu0 %1645
      %1649 = vset.pattern.permute.xlu0 0
      %1650 = vperm.xlu0 %1649, %v1639
      %v1651 = vpop.permute.xlu0 %1650
      %v1653 = vmul.f32 %v1646, %v1641
      %v1654 = vmul.f32 %v1651, %v1642
      %v1655 = vadd.f32 %v1636, %v1653
      %v1656 = vadd.f32 %v1637, %v1654
      %v1657 = vmul.f32 %v1638, %v1234
      %v1658 = vmul.f32 %v1639, %v1236
      %s1659 = scalar_lea.vmem %s10, 368
      %v1660 = vld [vmem:[%s1659] sm:$0xff]
      %v1661 = vld [vmem:[%s1659 + $0x8] sm:$0xff]
      %1663 = vset.pattern.permute.xlu0 0
      %1664 = vperm.xlu0 %1663, %v1657
      %v1665 = vpop.permute.xlu0 %1664
      %1668 = vset.pattern.permute.xlu0 0
      %1669 = vperm.xlu0 %1668, %v1658
      %v1670 = vpop.permute.xlu0 %1669
      %v1672 = vmul.f32 %v1665, %v1660
      %v1673 = vmul.f32 %v1670, %v1661
      %v1674 = vadd.f32 %v1655, %v1672
      %v1675 = vadd.f32 %v1656, %v1673
      %v1676 = vmul.f32 %v1657, %v1234
      %v1677 = vmul.f32 %v1658, %v1236
      %s1678 = scalar_lea.vmem %s10, 384
      %v1679 = vld [vmem:[%s1678] sm:$0xff]
      %v1680 = vld [vmem:[%s1678 + $0x8] sm:$0xff]
      %1682 = vset.pattern.permute.xlu0 0
      %1683 = vperm.xlu0 %1682, %v1676
      %v1684 = vpop.permute.xlu0 %1683
      %1687 = vset.pattern.permute.xlu0 0
      %1688 = vperm.xlu0 %1687, %v1677
      %v1689 = vpop.permute.xlu0 %1688
      %v1691 = vmul.f32 %v1684, %v1679
      %v1692 = vmul.f32 %v1689, %v1680
      %v1693 = vadd.f32 %v1674, %v1691
      %v1694 = vadd.f32 %v1675, %v1692
      %v1695 = vmul.f32 %v1693, 0.0
      %1697 = vrot.lane.b32.xlu0 %v1217, 127
      %v1698 = vpop.permute.xlu0 %1697
      %v1701 = vsel %vm763, %v1695, 0
      %1703 = vmatprep.subr.mxu0 0.0
      %1704 = vmatpush1.msra.mxu0 %v581
      %1705 = vmatprep.subr.mxu0 0.0
      %1706 = vmatpush1.msra.mxu0 %v582
      %1707 = vmatprep.subr.mxu0 0.0
      %1708 = vmatpush1.msra.mxu0 0.0
      %1709 = vmatprep.subr.mxu0 0.0
      %1710 = vmatpush1.msra.mxu0 0.0
      %1711 = vmatprep.subr.mxu0 0.0
      %1712 = vmatpush1.msra.mxu0 0.0
      %1713 = vmatprep.subr.mxu0 0.0
      %1714 = vmatpush1.msra.mxu0 0.0
      %1715 = vmatprep.subr.mxu0 0.0
      %1716 = vmatpush1.msra.mxu0 0.0
      %1717 = vmatprep.subr.mxu0 0.0
      %1718 = vmatpush1.msra.mxu0 0.0
      %1719 = vmatprep.subr.mxu0 0.0
      %1720 = vmatpush1.msra.mxu0 0.0
      %1721 = vmatprep.subr.mxu0 0.0
      %1722 = vmatpush1.msra.mxu0 0.0
      %1723 = vmatprep.subr.mxu0 0.0
      %1724 = vmatpush1.msra.mxu0 0.0
      %1725 = vmatprep.subr.mxu0 0.0
      %1726 = vmatpush1.msra.mxu0 0.0
      %1727 = vmatprep.subr.mxu0 0.0
      %1728 = vmatpush1.msra.mxu0 0.0
      %1729 = vmatprep.subr.mxu0 0.0
      %1730 = vmatpush1.msra.mxu0 0.0
      %1731 = vmatprep.subr.mxu0 0.0
      %1732 = vmatpush1.msra.mxu0 0.0
      %1733 = vmatprep.subr.mxu0 0.0
      %1734 = vmatpush1.msra.mxu0 0.0
      %1735 = vmatprep.subr.mxu0 0.0
      %1736 = vmatpush1.msra.mxu0 0.0
      %1737 = vmatprep.subr.mxu0 0.0
      %1738 = vmatpush1.msra.mxu0 0.0
      %1739 = vmatprep.subr.mxu0 0.0
      %1740 = vmatpush1.msra.mxu0 0.0
      %1741 = vmatprep.subr.mxu0 0.0
      %1742 = vmatpush1.msra.mxu0 0.0
      %1743 = vmatprep.subr.mxu0 0.0
      %1744 = vmatpush1.msra.mxu0 0.0
      %1745 = vmatprep.subr.mxu0 0.0
      %1746 = vmatpush1.msra.mxu0 0.0
      %1747 = vmatprep.subr.mxu0 0.0
      %1748 = vmatpush1.msra.mxu0 0.0
      %1749 = vmatprep.subr.mxu0 0.0
      %1750 = vmatpush1.msra.mxu0 0.0
      %1751 = vmatprep.subr.mxu0 0.0
      %1752 = vmatpush1.msra.mxu0 0.0
      %1753 = vmatprep.subr.mxu0 0.0
      %1754 = vmatpush1.msra.mxu0 0.0
      %1755 = vmatprep.subr.mxu0 0.0
      %1756 = vmatpush1.msra.mxu0 0.0
      %1757 = vmatprep.subr.mxu0 0.0
      %1758 = vmatpush1.msra.mxu0 0.0
      %1759 = vmatprep.subr.mxu0 0.0
      %1760 = vmatpush1.msra.mxu0 0.0
      %1761 = vmatprep.subr.mxu0 0.0
      %1762 = vmatpush1.msra.mxu0 0.0
      %1763 = vmatprep.subr.mxu0 0.0
      %1764 = vmatpush1.msra.mxu0 0.0
      %1765 = vmatprep.subr.mxu0 0.0
      %1766 = vmatpush1.msra.mxu0 0.0
      %1767 = vmatprep.mubr.f32.mxu0 0.0
      %1768 = vmatmul.mubr.f32.gmra.mrb[0].mxu0 %v1701
      %v1769 = vpop.f32.mrb[0].mxu0
      %v1770 = vadd.f32 %v1698, %v1769
      %v1771 = vpop.f32.mrb[0].mxu0
      %1772 = vdwg.mxu0
      %1774 = vrot.lane.b32.xlu0 %v1770, 17
      %v1775 = vpop.permute.xlu0 %1774
      %v1777 = vmul.f32 %v1217, %v1775
      %1779 = vrot.lane.b32.xlu0 %v1777, 111
      %v1780 = vpop.permute.xlu0 %1779
      %vm1782 = vcmask 24576
      %v1783 = vsel %vm1782, %v1780, 0.0
      %1784 = vadd.xlane.f32.xlu0 %v1783
      %v1785 = vpop.xlane.xlu0 %1784
      %v1786 = vadd.f32 %v1785, %v1217
      %vm1787 = vcmp.eq.s32.totalorder %v595, 0
      %vm1788 = vcmp.eq.s32.totalorder %v596, 0
      %v1789 = vlaneseq
      %v1790 = vshrl.u32 %v1789, 7
      %v1791 = vsub.s32 0, %v1790
      %v1792 = vrot.slane %v1786, %v1791
      %v1793 = vsel %vm1787, %v1792, 0.0
      %v1794 = vsel %vm1788, %v1792, 0.0
      %v1795 = vrot.slane %v1770, 7
      %v1797 = vmul.f32 %v1693, %v1795
      %v1799 = vrot.slane %v1797, 1
      %v1800 = vrot.slane %v1217, 1
      %1801 = vrot.lane.b32.xlu0 %v1800, 127
      %v1802 = vpop.permute.xlu0 %1801
      %v1804 = vsel %vm763, %v1799, 0
      %1806 = vmatprep.subr.mxu0 0.0
      %1807 = vmatpush1.msra.mxu0 %v581
      %1808 = vmatprep.subr.mxu0 0.0
      %1809 = vmatpush1.msra.mxu0 %v582
      %1810 = vmatprep.subr.mxu0 0.0
      %1811 = vmatpush1.msra.mxu0 0.0
      %1812 = vmatprep.subr.mxu0 0.0
      %1813 = vmatpush1.msra.mxu0 0.0
      %1814 = vmatprep.subr.mxu0 0.0
      %1815 = vmatpush1.msra.mxu0 0.0
      %1816 = vmatprep.subr.mxu0 0.0
      %1817 = vmatpush1.msra.mxu0 0.0
      %1818 = vmatprep.subr.mxu0 0.0
      %1819 = vmatpush1.msra.mxu0 0.0
      %1820 = vmatprep.subr.mxu0 0.0
      %1821 = vmatpush1.msra.mxu0 0.0
      %1822 = vmatprep.subr.mxu0 0.0
      %1823 = vmatpush1.msra.mxu0 0.0
      %1824 = vmatprep.subr.mxu0 0.0
      %1825 = vmatpush1.msra.mxu0 0.0
      %1826 = vmatprep.subr.mxu0 0.0
      %1827 = vmatpush1.msra.mxu0 0.0
      %1828 = vmatprep.subr.mxu0 0.0
      %1829 = vmatpush1.msra.mxu0 0.0
      %1830 = vmatprep.subr.mxu0 0.0
      %1831 = vmatpush1.msra.mxu0 0.0
      %1832 = vmatprep.subr.mxu0 0.0
      %1833 = vmatpush1.msra.mxu0 0.0
      %1834 = vmatprep.subr.mxu0 0.0
      %1835 = vmatpush1.msra.mxu0 0.0
      %1836 = vmatprep.subr.mxu0 0.0
      %1837 = vmatpush1.msra.mxu0 0.0
      %1838 = vmatprep.subr.mxu0 0.0
      %1839 = vmatpush1.msra.mxu0 0.0
      %1840 = vmatprep.subr.mxu0 0.0
      %1841 = vmatpush1.msra.mxu0 0.0
      %1842 = vmatprep.subr.mxu0 0.0
      %1843 = vmatpush1.msra.mxu0 0.0
      %1844 = vmatprep.subr.mxu0 0.0
      %1845 = vmatpush1.msra.mxu0 0.0
      %1846 = vmatprep.subr.mxu0 0.0
      %1847 = vmatpush1.msra.mxu0 0.0
      %1848 = vmatprep.subr.mxu0 0.0
      %1849 = vmatpush1.msra.mxu0 0.0
      %1850 = vmatprep.subr.mxu0 0.0
      %1851 = vmatpush1.msra.mxu0 0.0
      %1852 = vmatprep.subr.mxu0 0.0
      %1853 = vmatpush1.msra.mxu0 0.0
      %1854 = vmatprep.subr.mxu0 0.0
      %1855 = vmatpush1.msra.mxu0 0.0
      %1856 = vmatprep.subr.mxu0 0.0
      %1857 = vmatpush1.msra.mxu0 0.0
      %1858 = vmatprep.subr.mxu0 0.0
      %1859 = vmatpush1.msra.mxu0 0.0
      %1860 = vmatprep.subr.mxu0 0.0
      %1861 = vmatpush1.msra.mxu0 0.0
      %1862 = vmatprep.subr.mxu0 0.0
      %1863 = vmatpush1.msra.mxu0 0.0
      %1864 = vmatprep.subr.mxu0 0.0
      %1865 = vmatpush1.msra.mxu0 0.0
      %1866 = vmatprep.subr.mxu0 0.0
      %1867 = vmatpush1.msra.mxu0 0.0
      %1868 = vmatprep.subr.mxu0 0.0
      %1869 = vmatpush1.msra.mxu0 0.0
      %1870 = vmatprep.mubr.f32.mxu0 0.0
      %1871 = vmatmul.mubr.f32.gmra.mrb[0].mxu0 %v1804
      %v1872 = vpop.f32.mrb[0].mxu0
      %v1873 = vadd.f32 %v1802, %v1872
      %v1874 = vpop.f32.mrb[0].mxu0
      %1875 = vdwg.mxu0
      %v1877 = vrot.slane %v1873, 7
      %1878 = vrot.lane.b32.xlu0 %v1877, 17
      %v1879 = vpop.permute.xlu0 %1878
      %v1881 = vmul.f32 %v1217, %v1879
      %1883 = vrot.lane.b32.xlu0 %v1881, 111
      %v1884 = vpop.permute.xlu0 %1883
      %vm1886 = vcmask 25601
      %v1887 = vsel %vm1886, %v1884, 0.0
      %1888 = vadd.xlane.f32.xlu0 %v1887
      %v1889 = vpop.xlane.xlu0 %1888
      %v1890 = vadd.f32 %v1889, %v1217
      %vm1891 = vcmp.eq.s32.totalorder %v595, 1
      %vm1892 = vcmp.eq.s32.totalorder %v596, 1
      %v1893 = vlaneseq
      %v1894 = vshrl.u32 %v1893, 7
      %v1895 = vsub.s32 1, %v1894
      %v1896 = vrot.slane %v1890, %v1895
      %v1897 = vsel %vm1891, %v1896, %v1793
      %v1898 = vsel %vm1892, %v1896, %v1794
      %v1899 = vrot.slane %v1873, 6
      %v1901 = vmul.f32 %v1693, %v1899
      %v1903 = vrot.slane %v1901, 2
      %v1904 = vrot.slane %v1217, 2
      %1905 = vrot.lane.b32.xlu0 %v1904, 127
      %v1906 = vpop.permute.xlu0 %1905
      %v1908 = vsel %vm763, %v1903, 0
      %1910 = vmatprep.subr.mxu0 0.0
      %1911 = vmatpush1.msra.mxu0 %v581
      %1912 = vmatprep.subr.mxu0 0.0
      %1913 = vmatpush1.msra.mxu0 %v582
      %1914 = vmatprep.subr.mxu0 0.0
      %1915 = vmatpush1.msra.mxu0 0.0
      %1916 = vmatprep.subr.mxu0 0.0
      %1917 = vmatpush1.msra.mxu0 0.0
      %1918 = vmatprep.subr.mxu0 0.0
      %1919 = vmatpush1.msra.mxu0 0.0
      %1920 = vmatprep.subr.mxu0 0.0
      %1921 = vmatpush1.msra.mxu0 0.0
      %1922 = vmatprep.subr.mxu0 0.0
      %1923 = vmatpush1.msra.mxu0 0.0
      %1924 = vmatprep.subr.mxu0 0.0
      %1925 = vmatpush1.msra.mxu0 0.0
      %1926 = vmatprep.subr.mxu0 0.0
      %1927 = vmatpush1.msra.mxu0 0.0
      %1928 = vmatprep.subr.mxu0 0.0
      %1929 = vmatpush1.msra.mxu0 0.0
      %1930 = vmatprep.subr.mxu0 0.0
      %1931 = vmatpush1.msra.mxu0 0.0
      %1932 = vmatprep.subr.mxu0 0.0
      %1933 = vmatpush1.msra.mxu0 0.0
      %1934 = vmatprep.subr.mxu0 0.0
      %1935 = vmatpush1.msra.mxu0 0.0
      %1936 = vmatprep.subr.mxu0 0.0
      %1937 = vmatpush1.msra.mxu0 0.0
      %1938 = vmatprep.subr.mxu0 0.0
      %1939 = vmatpush1.msra.mxu0 0.0
      %1940 = vmatprep.subr.mxu0 0.0
      %1941 = vmatpush1.msra.mxu0 0.0
      %1942 = vmatprep.subr.mxu0 0.0
      %1943 = vmatpush1.msra.mxu0 0.0
      %1944 = vmatprep.subr.mxu0 0.0
      %1945 = vmatpush1.msra.mxu0 0.0
      %1946 = vmatprep.subr.mxu0 0.0
      %1947 = vmatpush1.msra.mxu0 0.0
      %1948 = vmatprep.subr.mxu0 0.0
      %1949 = vmatpush1.msra.mxu0 0.0
      %1950 = vmatprep.subr.mxu0 0.0
      %1951 = vmatpush1.msra.mxu0 0.0
      %1952 = vmatprep.subr.mxu0 0.0
      %1953 = vmatpush1.msra.mxu0 0.0
      %1954 = vmatprep.subr.mxu0 0.0
      %1955 = vmatpush1.msra.mxu0 0.0
      %1956 = vmatprep.subr.mxu0 0.0
      %1957 = vmatpush1.msra.mxu0 0.0
      %1958 = vmatprep.subr.mxu0 0.0
      %1959 = vmatpush1.msra.mxu0 0.0
      %1960 = vmatprep.subr.mxu0 0.0
      %1961 = vmatpush1.msra.mxu0 0.0
      %1962 = vmatprep.subr.mxu0 0.0
      %1963 = vmatpush1.msra.mxu0 0.0
      %1964 = vmatprep.subr.mxu0 0.0
      %1965 = vmatpush1.msra.mxu0 0.0
      %1966 = vmatprep.subr.mxu0 0.0
      %1967 = vmatpush1.msra.mxu0 0.0
      %1968 = vmatprep.subr.mxu0 0.0
      %1969 = vmatpush1.msra.mxu0 0.0
      %1970 = vmatprep.subr.mxu0 0.0
      %1971 = vmatpush1.msra.mxu0 0.0
      %1972 = vmatprep.subr.mxu0 0.0
      %1973 = vmatpush1.msra.mxu0 0.0
      %1974 = vmatprep.mubr.f32.mxu0 0.0
      %1975 = vmatmul.mubr.f32.gmra.mrb[0].mxu0 %v1908
      %v1976 = vpop.f32.mrb[0].mxu0
      %v1977 = vadd.f32 %v1906, %v1976
      %v1978 = vpop.f32.mrb[0].mxu0
      %1979 = vdwg.mxu0
      %v1981 = vrot.slane %v1977, 6
      %1982 = vrot.lane.b32.xlu0 %v1981, 17
      %v1983 = vpop.permute.xlu0 %1982
      %v1985 = vmul.f32 %v1217, %v1983
      %1987 = vrot.lane.b32.xlu0 %v1985, 111
      %v1988 = vpop.permute.xlu0 %1987
      %vm1990 = vcmask 26626
      %v1991 = vsel %vm1990, %v1988, 0.0
      %1992 = vadd.xlane.f32.xlu0 %v1991
      %v1993 = vpop.xlane.xlu0 %1992
      %v1994 = vadd.f32 %v1993, %v1217
      %vm1995 = vcmp.eq.s32.totalorder %v595, 2
      %vm1996 = vcmp.eq.s32.totalorder %v596, 2
      %v1997 = vlaneseq
      %v1998 = vshrl.u32 %v1997, 7
      %v1999 = vsub.s32 2, %v1998
      %v2000 = vrot.slane %v1994, %v1999
      %v2001 = vsel %vm1995, %v2000, %v1897
      %v2002 = vsel %vm1996, %v2000, %v1898
      %v2003 = vrot.slane %v1977, 5
      %v2005 = vmul.f32 %v1693, %v2003
      %v2007 = vrot.slane %v2005, 3
      %v2008 = vrot.slane %v1217, 3
      %2009 = vrot.lane.b32.xlu0 %v2008, 127
      %v2010 = vpop.permute.xlu0 %2009
      %v2012 = vsel %vm763, %v2007, 0
      %2014 = vmatprep.subr.mxu0 0.0
      %2015 = vmatpush1.msra.mxu0 %v581
      %2016 = vmatprep.subr.mxu0 0.0
      %2017 = vmatpush1.msra.mxu0 %v582
      %2018 = vmatprep.subr.mxu0 0.0
      %2019 = vmatpush1.msra.mxu0 0.0
      %2020 = vmatprep.subr.mxu0 0.0
      %2021 = vmatpush1.msra.mxu0 0.0
      %2022 = vmatprep.subr.mxu0 0.0
      %2023 = vmatpush1.msra.mxu0 0.0
      %2024 = vmatprep.subr.mxu0 0.0
      %2025 = vmatpush1.msra.mxu0 0.0
      %2026 = vmatprep.subr.mxu0 0.0
      %2027 = vmatpush1.msra.mxu0 0.0
      %2028 = vmatprep.subr.mxu0 0.0
      %2029 = vmatpush1.msra.mxu0 0.0
      %2030 = vmatprep.subr.mxu0 0.0
      %2031 = vmatpush1.msra.mxu0 0.0
      %2032 = vmatprep.subr.mxu0 0.0
      %2033 = vmatpush1.msra.mxu0 0.0
      %2034 = vmatprep.subr.mxu0 0.0
      %2035 = vmatpush1.msra.mxu0 0.0
      %2036 = vmatprep.subr.mxu0 0.0
      %2037 = vmatpush1.msra.mxu0 0.0
      %2038 = vmatprep.subr.mxu0 0.0
      %2039 = vmatpush1.msra.mxu0 0.0
      %2040 = vmatprep.subr.mxu0 0.0
      %2041 = vmatpush1.msra.mxu0 0.0
      %2042 = vmatprep.subr.mxu0 0.0
      %2043 = vmatpush1.msra.mxu0 0.0
      %2044 = vmatprep.subr.mxu0 0.0
      %2045 = vmatpush1.msra.mxu0 0.0
      %2046 = vmatprep.subr.mxu0 0.0
      %2047 = vmatpush1.msra.mxu0 0.0
      %2048 = vmatprep.subr.mxu0 0.0
      %2049 = vmatpush1.msra.mxu0 0.0
      %2050 = vmatprep.subr.mxu0 0.0
      %2051 = vmatpush1.msra.mxu0 0.0
      %2052 = vmatprep.subr.mxu0 0.0
      %2053 = vmatpush1.msra.mxu0 0.0
      %2054 = vmatprep.subr.mxu0 0.0
      %2055 = vmatpush1.msra.mxu0 0.0
      %2056 = vmatprep.subr.mxu0 0.0
      %2057 = vmatpush1.msra.mxu0 0.0
      %2058 = vmatprep.subr.mxu0 0.0
      %2059 = vmatpush1.msra.mxu0 0.0
      %2060 = vmatprep.subr.mxu0 0.0
      %2061 = vmatpush1.msra.mxu0 0.0
      %2062 = vmatprep.subr.mxu0 0.0
      %2063 = vmatpush1.msra.mxu0 0.0
      %2064 = vmatprep.subr.mxu0 0.0
      %2065 = vmatpush1.msra.mxu0 0.0
      %2066 = vmatprep.subr.mxu0 0.0
      %2067 = vmatpush1.msra.mxu0 0.0
      %2068 = vmatprep.subr.mxu0 0.0
      %2069 = vmatpush1.msra.mxu0 0.0
      %2070 = vmatprep.subr.mxu0 0.0
      %2071 = vmatpush1.msra.mxu0 0.0
      %2072 = vmatprep.subr.mxu0 0.0
      %2073 = vmatpush1.msra.mxu0 0.0
      %2074 = vmatprep.subr.mxu0 0.0
      %2075 = vmatpush1.msra.mxu0 0.0
      %2076 = vmatprep.subr.mxu0 0.0
      %2077 = vmatpush1.msra.mxu0 0.0
      %2078 = vmatprep.mubr.f32.mxu0 0.0
      %2079 = vmatmul.mubr.f32.gmra.mrb[0].mxu0 %v2012
      %v2080 = vpop.f32.mrb[0].mxu0
      %v2081 = vadd.f32 %v2010, %v2080
      %v2082 = vpop.f32.mrb[0].mxu0
      %2083 = vdwg.mxu0
      %v2085 = vrot.slane %v2081, 5
      %2086 = vrot.lane.b32.xlu0 %v2085, 17
      %v2087 = vpop.permute.xlu0 %2086
      %v2089 = vmul.f32 %v1217, %v2087
      %2091 = vrot.lane.b32.xlu0 %v2089, 111
      %v2092 = vpop.permute.xlu0 %2091
      %vm2094 = vcmask 27651
      %v2095 = vsel %vm2094, %v2092, 0.0
      %2096 = vadd.xlane.f32.xlu0 %v2095
      %v2097 = vpop.xlane.xlu0 %2096
      %v2098 = vadd.f32 %v2097, %v1217
      %vm2099 = vcmp.eq.s32.totalorder %v595, 3
      %vm2100 = vcmp.eq.s32.totalorder %v596, 3
      %v2101 = vlaneseq
      %v2102 = vshrl.u32 %v2101, 7
      %v2103 = vsub.s32 3, %v2102
      %v2104 = vrot.slane %v2098, %v2103
      %v2105 = vsel %vm2099, %v2104, %v2001
      %v2106 = vsel %vm2100, %v2104, %v2002
      %v2107 = vrot.slane %v2081, 4
      %v2109 = vmul.f32 %v1693, %v2107
      %v2111 = vrot.slane %v2109, 4
      %v2112 = vrot.slane %v1217, 4
      %2113 = vrot.lane.b32.xlu0 %v2112, 127
      %v2114 = vpop.permute.xlu0 %2113
      %v2116 = vsel %vm763, %v2111, 0
      %2118 = vmatprep.subr.mxu0 0.0
      %2119 = vmatpush1.msra.mxu0 %v581
      %2120 = vmatprep.subr.mxu0 0.0
      %2121 = vmatpush1.msra.mxu0 %v582
      %2122 = vmatprep.subr.mxu0 0.0
      %2123 = vmatpush1.msra.mxu0 0.0
      %2124 = vmatprep.subr.mxu0 0.0
      %2125 = vmatpush1.msra.mxu0 0.0
      %2126 = vmatprep.subr.mxu0 0.0
      %2127 = vmatpush1.msra.mxu0 0.0
      %2128 = vmatprep.subr.mxu0 0.0
      %2129 = vmatpush1.msra.mxu0 0.0
      %2130 = vmatprep.subr.mxu0 0.0
      %2131 = vmatpush1.msra.mxu0 0.0
      %2132 = vmatprep.subr.mxu0 0.0
      %2133 = vmatpush1.msra.mxu0 0.0
      %2134 = vmatprep.subr.mxu0 0.0
      %2135 = vmatpush1.msra.mxu0 0.0
      %2136 = vmatprep.subr.mxu0 0.0
      %2137 = vmatpush1.msra.mxu0 0.0
      %2138 = vmatprep.subr.mxu0 0.0
      %2139 = vmatpush1.msra.mxu0 0.0
      %2140 = vmatprep.subr.mxu0 0.0
      %2141 = vmatpush1.msra.mxu0 0.0
      %2142 = vmatprep.subr.mxu0 0.0
      %2143 = vmatpush1.msra.mxu0 0.0
      %2144 = vmatprep.subr.mxu0 0.0
      %2145 = vmatpush1.msra.mxu0 0.0
      %2146 = vmatprep.subr.mxu0 0.0
      %2147 = vmatpush1.msra.mxu0 0.0
      %2148 = vmatprep.subr.mxu0 0.0
      %2149 = vmatpush1.msra.mxu0 0.0
      %2150 = vmatprep.subr.mxu0 0.0
      %2151 = vmatpush1.msra.mxu0 0.0
      %2152 = vmatprep.subr.mxu0 0.0
      %2153 = vmatpush1.msra.mxu0 0.0
      %2154 = vmatprep.subr.mxu0 0.0
      %2155 = vmatpush1.msra.mxu0 0.0
      %2156 = vmatprep.subr.mxu0 0.0
      %2157 = vmatpush1.msra.mxu0 0.0
      %2158 = vmatprep.subr.mxu0 0.0
      %2159 = vmatpush1.msra.mxu0 0.0
      %2160 = vmatprep.subr.mxu0 0.0
      %2161 = vmatpush1.msra.mxu0 0.0
      %2162 = vmatprep.subr.mxu0 0.0
      %2163 = vmatpush1.msra.mxu0 0.0
      %2164 = vmatprep.subr.mxu0 0.0
      %2165 = vmatpush1.msra.mxu0 0.0
      %2166 = vmatprep.subr.mxu0 0.0
      %2167 = vmatpush1.msra.mxu0 0.0
      %2168 = vmatprep.subr.mxu0 0.0
      %2169 = vmatpush1.msra.mxu0 0.0
      %2170 = vmatprep.subr.mxu0 0.0
      %2171 = vmatpush1.msra.mxu0 0.0
      %2172 = vmatprep.subr.mxu0 0.0
      %2173 = vmatpush1.msra.mxu0 0.0
      %2174 = vmatprep.subr.mxu0 0.0
      %2175 = vmatpush1.msra.mxu0 0.0
      %2176 = vmatprep.subr.mxu0 0.0
      %2177 = vmatpush1.msra.mxu0 0.0
      %2178 = vmatprep.subr.mxu0 0.0
      %2179 = vmatpush1.msra.mxu0 0.0
      %2180 = vmatprep.subr.mxu0 0.0
      %2181 = vmatpush1.msra.mxu0 0.0
      %2182 = vmatprep.mubr.f32.mxu0 0.0
      %2183 = vmatmul.mubr.f32.gmra.mrb[0].mxu0 %v2116
      %v2184 = vpop.f32.mrb[0].mxu0
      %v2185 = vadd.f32 %v2114, %v2184
      %v2186 = vpop.f32.mrb[0].mxu0
      %2187 = vdwg.mxu0
      %v2189 = vrot.slane %v2185, 4
      %2190 = vrot.lane.b32.xlu0 %v2189, 17
      %v2191 = vpop.permute.xlu0 %2190
      %v2193 = vmul.f32 %v1217, %v2191
      %2195 = vrot.lane.b32.xlu0 %v2193, 111
      %v2196 = vpop.permute.xlu0 %2195
      %vm2198 = vcmask 28676
      %v2199 = vsel %vm2198, %v2196, 0.0
      %2200 = vadd.xlane.f32.xlu0 %v2199
      %v2201 = vpop.xlane.xlu0 %2200
      %v2202 = vadd.f32 %v2201, %v1217
      %vm2203 = vcmp.eq.s32.totalorder %v595, 4
      %vm2204 = vcmp.eq.s32.totalorder %v596, 4
      %v2205 = vlaneseq
      %v2206 = vshrl.u32 %v2205, 7
      %v2207 = vsub.s32 4, %v2206
      %v2208 = vrot.slane %v2202, %v2207
      %v2209 = vsel %vm2203, %v2208, %v2105
      %v2210 = vsel %vm2204, %v2208, %v2106
      %v2211 = vrot.slane %v2185, 3
      %v2213 = vmul.f32 %v1693, %v2211
      %v2215 = vrot.slane %v2213, 5
      %v2216 = vrot.slane %v1217, 5
      %2217 = vrot.lane.b32.xlu0 %v2216, 127
      %v2218 = vpop.permute.xlu0 %2217
      %v2220 = vsel %vm763, %v2215, 0
      %2222 = vmatprep.subr.mxu0 0.0
      %2223 = vmatpush1.msra.mxu0 %v581
      %2224 = vmatprep.subr.mxu0 0.0
      %2225 = vmatpush1.msra.mxu0 %v582
      %2226 = vmatprep.subr.mxu0 0.0
      %2227 = vmatpush1.msra.mxu0 0.0
      %2228 = vmatprep.subr.mxu0 0.0
      %2229 = vmatpush1.msra.mxu0 0.0
      %2230 = vmatprep.subr.mxu0 0.0
      %2231 = vmatpush1.msra.mxu0 0.0
      %2232 = vmatprep.subr.mxu0 0.0
      %2233 = vmatpush1.msra.mxu0 0.0
      %2234 = vmatprep.subr.mxu0 0.0
      %2235 = vmatpush1.msra.mxu0 0.0
      %2236 = vmatprep.subr.mxu0 0.0
      %2237 = vmatpush1.msra.mxu0 0.0
      %2238 = vmatprep.subr.mxu0 0.0
      %2239 = vmatpush1.msra.mxu0 0.0
      %2240 = vmatprep.subr.mxu0 0.0
      %2241 = vmatpush1.msra.mxu0 0.0
      %2242 = vmatprep.subr.mxu0 0.0
      %2243 = vmatpush1.msra.mxu0 0.0
      %2244 = vmatprep.subr.mxu0 0.0
      %2245 = vmatpush1.msra.mxu0 0.0
      %2246 = vmatprep.subr.mxu0 0.0
      %2247 = vmatpush1.msra.mxu0 0.0
      %2248 = vmatprep.subr.mxu0 0.0
      %2249 = vmatpush1.msra.mxu0 0.0
      %2250 = vmatprep.subr.mxu0 0.0
      %2251 = vmatpush1.msra.mxu0 0.0
      %2252 = vmatprep.subr.mxu0 0.0
      %2253 = vmatpush1.msra.mxu0 0.0
      %2254 = vmatprep.subr.mxu0 0.0
      %2255 = vmatpush1.msra.mxu0 0.0
      %2256 = vmatprep.subr.mxu0 0.0
      %2257 = vmatpush1.msra.mxu0 0.0
      %2258 = vmatprep.subr.mxu0 0.0
      %2259 = vmatpush1.msra.mxu0 0.0
      %2260 = vmatprep.subr.mxu0 0.0
      %2261 = vmatpush1.msra.mxu0 0.0
      %2262 = vmatprep.subr.mxu0 0.0
      %2263 = vmatpush1.msra.mxu0 0.0
      %2264 = vmatprep.subr.mxu0 0.0
      %2265 = vmatpush1.msra.mxu0 0.0
      %2266 = vmatprep.subr.mxu0 0.0
      %2267 = vmatpush1.msra.mxu0 0.0
      %2268 = vmatprep.subr.mxu0 0.0
      %2269 = vmatpush1.msra.mxu0 0.0
      %2270 = vmatprep.subr.mxu0 0.0
      %2271 = vmatpush1.msra.mxu0 0.0
      %2272 = vmatprep.subr.mxu0 0.0
      %2273 = vmatpush1.msra.mxu0 0.0
      %2274 = vmatprep.subr.mxu0 0.0
      %2275 = vmatpush1.msra.mxu0 0.0
      %2276 = vmatprep.subr.mxu0 0.0
      %2277 = vmatpush1.msra.mxu0 0.0
      %2278 = vmatprep.subr.mxu0 0.0
      %2279 = vmatpush1.msra.mxu0 0.0
      %2280 = vmatprep.subr.mxu0 0.0
      %2281 = vmatpush1.msra.mxu0 0.0
      %2282 = vmatprep.subr.mxu0 0.0
      %2283 = vmatpush1.msra.mxu0 0.0
      %2284 = vmatprep.subr.mxu0 0.0
      %2285 = vmatpush1.msra.mxu0 0.0
      %2286 = vmatprep.mubr.f32.mxu0 0.0
      %2287 = vmatmul.mubr.f32.gmra.mrb[0].mxu0 %v2220
      %v2288 = vpop.f32.mrb[0].mxu0
      %v2289 = vadd.f32 %v2218, %v2288
      %v2290 = vpop.f32.mrb[0].mxu0
      %2291 = vdwg.mxu0
      %v2293 = vrot.slane %v2289, 3
      %2294 = vrot.lane.b32.xlu0 %v2293, 17
      %v2295 = vpop.permute.xlu0 %2294
      %v2297 = vmul.f32 %v1217, %v2295
      %2299 = vrot.lane.b32.xlu0 %v2297, 111
      %v2300 = vpop.permute.xlu0 %2299
      %vm2302 = vcmask 29701
      %v2303 = vsel %vm2302, %v2300, 0.0
      %2304 = vadd.xlane.f32.xlu0 %v2303
      %v2305 = vpop.xlane.xlu0 %2304
      %v2306 = vadd.f32 %v2305, %v1217
      %vm2307 = vcmp.eq.s32.totalorder %v595, 5
      %vm2308 = vcmp.eq.s32.totalorder %v596, 5
      %v2309 = vlaneseq
      %v2310 = vshrl.u32 %v2309, 7
      %v2311 = vsub.s32 5, %v2310
      %v2312 = vrot.slane %v2306, %v2311
      %v2313 = vsel %vm2307, %v2312, %v2209
      %v2314 = vsel %vm2308, %v2312, %v2210
      %v2315 = vrot.slane %v2289, 2
      %v2317 = vmul.f32 %v1693, %v2315
      %v2319 = vrot.slane %v2317, 6
      %v2320 = vrot.slane %v1217, 6
      %2321 = vrot.lane.b32.xlu0 %v2320, 127
      %v2322 = vpop.permute.xlu0 %2321
      %v2324 = vsel %vm763, %v2319, 0
      %2326 = vmatprep.subr.mxu0 0.0
      %2327 = vmatpush1.msra.mxu0 %v581
      %2328 = vmatprep.subr.mxu0 0.0
      %2329 = vmatpush1.msra.mxu0 %v582
      %2330 = vmatprep.subr.mxu0 0.0
      %2331 = vmatpush1.msra.mxu0 0.0
      %2332 = vmatprep.subr.mxu0 0.0
      %2333 = vmatpush1.msra.mxu0 0.0
      %2334 = vmatprep.subr.mxu0 0.0
      %2335 = vmatpush1.msra.mxu0 0.0
      %2336 = vmatprep.subr.mxu0 0.0
      %2337 = vmatpush1.msra.mxu0 0.0
      %2338 = vmatprep.subr.mxu0 0.0
      %2339 = vmatpush1.msra.mxu0 0.0
      %2340 = vmatprep.subr.mxu0 0.0
      %2341 = vmatpush1.msra.mxu0 0.0
      %2342 = vmatprep.subr.mxu0 0.0
      %2343 = vmatpush1.msra.mxu0 0.0
      %2344 = vmatprep.subr.mxu0 0.0
      %2345 = vmatpush1.msra.mxu0 0.0
      %2346 = vmatprep.subr.mxu0 0.0
      %2347 = vmatpush1.msra.mxu0 0.0
      %2348 = vmatprep.subr.mxu0 0.0
      %2349 = vmatpush1.msra.mxu0 0.0
      %2350 = vmatprep.subr.mxu0 0.0
      %2351 = vmatpush1.msra.mxu0 0.0
      %2352 = vmatprep.subr.mxu0 0.0
      %2353 = vmatpush1.msra.mxu0 0.0
      %2354 = vmatprep.subr.mxu0 0.0
      %2355 = vmatpush1.msra.mxu0 0.0
      %2356 = vmatprep.subr.mxu0 0.0
      %2357 = vmatpush1.msra.mxu0 0.0
      %2358 = vmatprep.subr.mxu0 0.0
      %2359 = vmatpush1.msra.mxu0 0.0
      %2360 = vmatprep.subr.mxu0 0.0
      %2361 = vmatpush1.msra.mxu0 0.0
      %2362 = vmatprep.subr.mxu0 0.0
      %2363 = vmatpush1.msra.mxu0 0.0
      %2364 = vmatprep.subr.mxu0 0.0
      %2365 = vmatpush1.msra.mxu0 0.0
      %2366 = vmatprep.subr.mxu0 0.0
      %2367 = vmatpush1.msra.mxu0 0.0
      %2368 = vmatprep.subr.mxu0 0.0
      %2369 = vmatpush1.msra.mxu0 0.0
      %2370 = vmatprep.subr.mxu0 0.0
      %2371 = vmatpush1.msra.mxu0 0.0
      %2372 = vmatprep.subr.mxu0 0.0
      %2373 = vmatpush1.msra.mxu0 0.0
      %2374 = vmatprep.subr.mxu0 0.0
      %2375 = vmatpush1.msra.mxu0 0.0
      %2376 = vmatprep.subr.mxu0 0.0
      %2377 = vmatpush1.msra.mxu0 0.0
      %2378 = vmatprep.subr.mxu0 0.0
      %2379 = vmatpush1.msra.mxu0 0.0
      %2380 = vmatprep.subr.mxu0 0.0
      %2381 = vmatpush1.msra.mxu0 0.0
      %2382 = vmatprep.subr.mxu0 0.0
      %2383 = vmatpush1.msra.mxu0 0.0
      %2384 = vmatprep.subr.mxu0 0.0
      %2385 = vmatpush1.msra.mxu0 0.0
      %2386 = vmatprep.subr.mxu0 0.0
      %2387 = vmatpush1.msra.mxu0 0.0
      %2388 = vmatprep.subr.mxu0 0.0
      %2389 = vmatpush1.msra.mxu0 0.0
      %2390 = vmatprep.mubr.f32.mxu0 0.0
      %2391 = vmatmul.mubr.f32.gmra.mrb[0].mxu0 %v2324
      %v2392 = vpop.f32.mrb[0].mxu0
      %v2393 = vadd.f32 %v2322, %v2392
      %v2394 = vpop.f32.mrb[0].mxu0
      %2395 = vdwg.mxu0
      %v2397 = vrot.slane %v2393, 2
      %2398 = vrot.lane.b32.xlu0 %v2397, 17
      %v2399 = vpop.permute.xlu0 %2398
      %v2401 = vmul.f32 %v1217, %v2399
      %2403 = vrot.lane.b32.xlu0 %v2401, 111
      %v2404 = vpop.permute.xlu0 %2403
      %vm2406 = vcmask 30726
      %v2407 = vsel %vm2406, %v2404, 0.0
      %2408 = vadd.xlane.f32.xlu0 %v2407
      %v2409 = vpop.xlane.xlu0 %2408
      %v2410 = vadd.f32 %v2409, %v1217
      %vm2411 = vcmp.eq.s32.totalorder %v595, 6
      %vm2412 = vcmp.eq.s32.totalorder %v596, 6
      %v2413 = vlaneseq
      %v2414 = vshrl.u32 %v2413, 7
      %v2415 = vsub.s32 6, %v2414
      %v2416 = vrot.slane %v2410, %v2415
      %v2417 = vsel %vm2411, %v2416, %v2313
      %v2418 = vsel %vm2412, %v2416, %v2314
      %v2419 = vrot.slane %v2393, 1
      %v2421 = vmul.f32 %v1693, %v2419
      %v2423 = vrot.slane %v2421, 7
      %v2424 = vrot.slane %v1217, 7
      %2425 = vrot.lane.b32.xlu0 %v2424, 127
      %v2426 = vpop.permute.xlu0 %2425
      %v2428 = vsel %vm763, %v2423, 0
      %2430 = vmatprep.subr.mxu0 0.0
      %2431 = vmatpush1.msra.mxu0 %v581
      %2432 = vmatprep.subr.mxu0 0.0
      %2433 = vmatpush1.msra.mxu0 %v582
      %2434 = vmatprep.subr.mxu0 0.0
      %2435 = vmatpush1.msra.mxu0 0.0
      %2436 = vmatprep.subr.mxu0 0.0
      %2437 = vmatpush1.msra.mxu0 0.0
      %2438 = vmatprep.subr.mxu0 0.0
      %2439 = vmatpush1.msra.mxu0 0.0
      %2440 = vmatprep.subr.mxu0 0.0
      %2441 = vmatpush1.msra.mxu0 0.0
      %2442 = vmatprep.subr.mxu0 0.0
      %2443 = vmatpush1.msra.mxu0 0.0
      %2444 = vmatprep.subr.mxu0 0.0
      %2445 = vmatpush1.msra.mxu0 0.0
      %2446 = vmatprep.subr.mxu0 0.0
      %2447 = vmatpush1.msra.mxu0 0.0
      %2448 = vmatprep.subr.mxu0 0.0
      %2449 = vmatpush1.msra.mxu0 0.0
      %2450 = vmatprep.subr.mxu0 0.0
      %2451 = vmatpush1.msra.mxu0 0.0
      %2452 = vmatprep.subr.mxu0 0.0
      %2453 = vmatpush1.msra.mxu0 0.0
      %2454 = vmatprep.subr.mxu0 0.0
      %2455 = vmatpush1.msra.mxu0 0.0
      %2456 = vmatprep.subr.mxu0 0.0
      %2457 = vmatpush1.msra.mxu0 0.0
      %2458 = vmatprep.subr.mxu0 0.0
      %2459 = vmatpush1.msra.mxu0 0.0
      %2460 = vmatprep.subr.mxu0 0.0
      %2461 = vmatpush1.msra.mxu0 0.0
      %2462 = vmatprep.subr.mxu0 0.0
      %2463 = vmatpush1.msra.mxu0 0.0
      %2464 = vmatprep.subr.mxu0 0.0
      %2465 = vmatpush1.msra.mxu0 0.0
      %2466 = vmatprep.subr.mxu0 0.0
      %2467 = vmatpush1.msra.mxu0 0.0
      %2468 = vmatprep.subr.mxu0 0.0
      %2469 = vmatpush1.msra.mxu0 0.0
      %2470 = vmatprep.subr.mxu0 0.0
      %2471 = vmatpush1.msra.mxu0 0.0
      %2472 = vmatprep.subr.mxu0 0.0
      %2473 = vmatpush1.msra.mxu0 0.0
      %2474 = vmatprep.subr.mxu0 0.0
      %2475 = vmatpush1.msra.mxu0 0.0
      %2476 = vmatprep.subr.mxu0 0.0
      %2477 = vmatpush1.msra.mxu0 0.0
      %2478 = vmatprep.subr.mxu0 0.0
      %2479 = vmatpush1.msra.mxu0 0.0
      %2480 = vmatprep.subr.mxu0 0.0
      %2481 = vmatpush1.msra.mxu0 0.0
      %2482 = vmatprep.subr.mxu0 0.0
      %2483 = vmatpush1.msra.mxu0 0.0
      %2484 = vmatprep.subr.mxu0 0.0
      %2485 = vmatpush1.msra.mxu0 0.0
      %2486 = vmatprep.subr.mxu0 0.0
      %2487 = vmatpush1.msra.mxu0 0.0
      %2488 = vmatprep.subr.mxu0 0.0
      %2489 = vmatpush1.msra.mxu0 0.0
      %2490 = vmatprep.subr.mxu0 0.0
      %2491 = vmatpush1.msra.mxu0 0.0
      %2492 = vmatprep.subr.mxu0 0.0
      %2493 = vmatpush1.msra.mxu0 0.0
      %2494 = vmatprep.mubr.f32.mxu0 0.0
      %2495 = vmatmul.mubr.f32.gmra.mrb[0].mxu0 %v2428
      %v2496 = vpop.f32.mrb[0].mxu0
      %v2497 = vadd.f32 %v2426, %v2496
      %v2498 = vpop.f32.mrb[0].mxu0
      %2499 = vdwg.mxu0
      %v2501 = vrot.slane %v2497, 1
      %2502 = vrot.lane.b32.xlu0 %v2501, 17
      %v2503 = vpop.permute.xlu0 %2502
      %v2505 = vmul.f32 %v1217, %v2503
      %2507 = vrot.lane.b32.xlu0 %v2505, 111
      %v2508 = vpop.permute.xlu0 %2507
      %vm2510 = vcmask 31751
      %v2511 = vsel %vm2510, %v2508, 0.0
      %2512 = vadd.xlane.f32.xlu0 %v2511
      %v2513 = vpop.xlane.xlu0 %2512
      %v2514 = vadd.f32 %v2513, %v1217
      %vm2515 = vcmp.eq.s32.totalorder %v595, 7
      %vm2516 = vcmp.eq.s32.totalorder %v596, 7
      %v2517 = vlaneseq
      %v2518 = vshrl.u32 %v2517, 7
      %v2519 = vsub.s32 7, %v2518
      %v2520 = vrot.slane %v2514, %v2519
      %v2521 = vsel %vm2515, %v2520, %v2417
      %v2522 = vsel %vm2516, %v2520, %v2418
      %v2523 = vmul.f32 %v1694, %v2497
      %2525 = vrot.lane.b32.xlu0 %v1222, 127
      %v2526 = vpop.permute.xlu0 %2525
      %v2529 = vsel %vm763, %v2523, 0
      %2531 = vmatprep.subr.mxu0 0.0
      %2532 = vmatpush1.msra.mxu0 %v581
      %2533 = vmatprep.subr.mxu0 0.0
      %2534 = vmatpush1.msra.mxu0 %v582
      %2535 = vmatprep.subr.mxu0 0.0
      %2536 = vmatpush1.msra.mxu0 0.0
      %2537 = vmatprep.subr.mxu0 0.0
      %2538 = vmatpush1.msra.mxu0 0.0
      %2539 = vmatprep.subr.mxu0 0.0
      %2540 = vmatpush1.msra.mxu0 0.0
      %2541 = vmatprep.subr.mxu0 0.0
      %2542 = vmatpush1.msra.mxu0 0.0
      %2543 = vmatprep.subr.mxu0 0.0
      %2544 = vmatpush1.msra.mxu0 0.0
      %2545 = vmatprep.subr.mxu0 0.0
      %2546 = vmatpush1.msra.mxu0 0.0
      %2547 = vmatprep.subr.mxu0 0.0
      %2548 = vmatpush1.msra.mxu0 0.0
      %2549 = vmatprep.subr.mxu0 0.0
      %2550 = vmatpush1.msra.mxu0 0.0
      %2551 = vmatprep.subr.mxu0 0.0
      %2552 = vmatpush1.msra.mxu0 0.0
      %2553 = vmatprep.subr.mxu0 0.0
      %2554 = vmatpush1.msra.mxu0 0.0
      %2555 = vmatprep.subr.mxu0 0.0
      %2556 = vmatpush1.msra.mxu0 0.0
      %2557 = vmatprep.subr.mxu0 0.0
      %2558 = vmatpush1.msra.mxu0 0.0
      %2559 = vmatprep.subr.mxu0 0.0
      %2560 = vmatpush1.msra.mxu0 0.0
      %2561 = vmatprep.subr.mxu0 0.0
      %2562 = vmatpush1.msra.mxu0 0.0
      %2563 = vmatprep.subr.mxu0 0.0
      %2564 = vmatpush1.msra.mxu0 0.0
      %2565 = vmatprep.subr.mxu0 0.0
      %2566 = vmatpush1.msra.mxu0 0.0
      %2567 = vmatprep.subr.mxu0 0.0
      %2568 = vmatpush1.msra.mxu0 0.0
      %2569 = vmatprep.subr.mxu0 0.0
      %2570 = vmatpush1.msra.mxu0 0.0
      %2571 = vmatprep.subr.mxu0 0.0
      %2572 = vmatpush1.msra.mxu0 0.0
      %2573 = vmatprep.subr.mxu0 0.0
      %2574 = vmatpush1.msra.mxu0 0.0
      %2575 = vmatprep.subr.mxu0 0.0
      %2576 = vmatpush1.msra.mxu0 0.0
      %2577 = vmatprep.subr.mxu0 0.0
      %2578 = vmatpush1.msra.mxu0 0.0
      %2579 = vmatprep.subr.mxu0 0.0
      %2580 = vmatpush1.msra.mxu0 0.0
      %2581 = vmatprep.subr.mxu0 0.0
      %2582 = vmatpush1.msra.mxu0 0.0
      %2583 = vmatprep.subr.mxu0 0.0
      %2584 = vmatpush1.msra.mxu0 0.0
      %2585 = vmatprep.subr.mxu0 0.0
      %2586 = vmatpush1.msra.mxu0 0.0
      %2587 = vmatprep.subr.mxu0 0.0
      %2588 = vmatpush1.msra.mxu0 0.0
      %2589 = vmatprep.subr.mxu0 0.0
      %2590 = vmatpush1.msra.mxu0 0.0
      %2591 = vmatprep.subr.mxu0 0.0
      %2592 = vmatpush1.msra.mxu0 0.0
      %2593 = vmatprep.subr.mxu0 0.0
      %2594 = vmatpush1.msra.mxu0 0.0
      %2595 = vmatprep.mubr.f32.mxu0 0.0
      %2596 = vmatmul.mubr.f32.gmra.mrb[0].mxu0 %v2529
      %v2597 = vpop.f32.mrb[0].mxu0
      %v2598 = vadd.f32 %v2526, %v2597
      %v2599 = vpop.f32.mrb[0].mxu0
      %2600 = vdwg.mxu0
      %2602 = vrot.lane.b32.xlu0 %v2598, 17
      %v2603 = vpop.permute.xlu0 %2602
      %v2605 = vmul.f32 %v1222, %v2603
      %2607 = vrot.lane.b32.xlu0 %v2605, 111
      %v2608 = vpop.permute.xlu0 %2607
      %v2610 = vsel %vm1782, %v2608, 0.0
      %2611 = vadd.xlane.f32.xlu0 %v2610
      %v2612 = vpop.xlane.xlu0 %2611
      %v2613 = vadd.f32 %v2612, %v1222
      %vm2614 = vcmp.eq.s32.totalorder %v595, 8
      %vm2615 = vcmp.eq.s32.totalorder %v596, 8
      %v2616 = vlaneseq
      %v2617 = vshrl.u32 %v2616, 7
      %v2618 = vsub.s32 0, %v2617
      %v2619 = vrot.slane %v2613, %v2618
      %v2620 = vsel %vm2614, %v2619, %v2521
      %v2621 = vsel %vm2615, %v2619, %v2522
      %v2622 = vrot.slane %v2598, 7
      %v2624 = vmul.f32 %v1694, %v2622
      %v2626 = vrot.slane %v2624, 1
      %v2627 = vrot.slane %v1222, 1
      %2628 = vrot.lane.b32.xlu0 %v2627, 127
      %v2629 = vpop.permute.xlu0 %2628
      %v2631 = vsel %vm763, %v2626, 0
      %2633 = vmatprep.subr.mxu0 0.0
      %2634 = vmatpush1.msra.mxu0 %v581
      %2635 = vmatprep.subr.mxu0 0.0
      %2636 = vmatpush1.msra.mxu0 %v582
      %2637 = vmatprep.subr.mxu0 0.0
      %2638 = vmatpush1.msra.mxu0 0.0
      %2639 = vmatprep.subr.mxu0 0.0
      %2640 = vmatpush1.msra.mxu0 0.0
      %2641 = vmatprep.subr.mxu0 0.0
      %2642 = vmatpush1.msra.mxu0 0.0
      %2643 = vmatprep.subr.mxu0 0.0
      %2644 = vmatpush1.msra.mxu0 0.0
      %2645 = vmatprep.subr.mxu0 0.0
      %2646 = vmatpush1.msra.mxu0 0.0
      %2647 = vmatprep.subr.mxu0 0.0
      %2648 = vmatpush1.msra.mxu0 0.0
      %2649 = vmatprep.subr.mxu0 0.0
      %2650 = vmatpush1.msra.mxu0 0.0
      %2651 = vmatprep.subr.mxu0 0.0
      %2652 = vmatpush1.msra.mxu0 0.0
      %2653 = vmatprep.subr.mxu0 0.0
      %2654 = vmatpush1.msra.mxu0 0.0
      %2655 = vmatprep.subr.mxu0 0.0
      %2656 = vmatpush1.msra.mxu0 0.0
      %2657 = vmatprep.subr.mxu0 0.0
      %2658 = vmatpush1.msra.mxu0 0.0
      %2659 = vmatprep.subr.mxu0 0.0
      %2660 = vmatpush1.msra.mxu0 0.0
      %2661 = vmatprep.subr.mxu0 0.0
      %2662 = vmatpush1.msra.mxu0 0.0
      %2663 = vmatprep.subr.mxu0 0.0
      %2664 = vmatpush1.msra.mxu0 0.0
      %2665 = vmatprep.subr.mxu0 0.0
      %2666 = vmatpush1.msra.mxu0 0.0
      %2667 = vmatprep.subr.mxu0 0.0
      %2668 = vmatpush1.msra.mxu0 0.0
      %2669 = vmatprep.subr.mxu0 0.0
      %2670 = vmatpush1.msra.mxu0 0.0
      %2671 = vmatprep.subr.mxu0 0.0
      %2672 = vmatpush1.msra.mxu0 0.0
      %2673 = vmatprep.subr.mxu0 0.0
      %2674 = vmatpush1.msra.mxu0 0.0
      %2675 = vmatprep.subr.mxu0 0.0
      %2676 = vmatpush1.msra.mxu0 0.0
      %2677 = vmatprep.subr.mxu0 0.0
      %2678 = vmatpush1.msra.mxu0 0.0
      %2679 = vmatprep.subr.mxu0 0.0
      %2680 = vmatpush1.msra.mxu0 0.0
      %2681 = vmatprep.subr.mxu0 0.0
      %2682 = vmatpush1.msra.mxu0 0.0
      %2683 = vmatprep.subr.mxu0 0.0
      %2684 = vmatpush1.msra.mxu0 0.0
      %2685 = vmatprep.subr.mxu0 0.0
      %2686 = vmatpush1.msra.mxu0 0.0
      %2687 = vmatprep.subr.mxu0 0.0
      %2688 = vmatpush1.msra.mxu0 0.0
      %2689 = vmatprep.subr.mxu0 0.0
      %2690 = vmatpush1.msra.mxu0 0.0
      %2691 = vmatprep.subr.mxu0 0.0
      %2692 = vmatpush1.msra.mxu0 0.0
      %2693 = vmatprep.subr.mxu0 0.0
      %2694 = vmatpush1.msra.mxu0 0.0
      %2695 = vmatprep.subr.mxu0 0.0
      %2696 = vmatpush1.msra.mxu0 0.0
      %2697 = vmatprep.mubr.f32.mxu0 0.0
      %2698 = vmatmul.mubr.f32.gmra.mrb[0].mxu0 %v2631
      %v2699 = vpop.f32.mrb[0].mxu0
      %v2700 = vadd.f32 %v2629, %v2699
      %v2701 = vpop.f32.mrb[0].mxu0
      %2702 = vdwg.mxu0
      %v2704 = vrot.slane %v2700, 7
      %2705 = vrot.lane.b32.xlu0 %v2704, 17
      %v2706 = vpop.permute.xlu0 %2705
      %v2708 = vmul.f32 %v1222, %v2706
      %2710 = vrot.lane.b32.xlu0 %v2708, 111
      %v2711 = vpop.permute.xlu0 %2710
      %v2713 = vsel %vm1886, %v2711, 0.0
      %2714 = vadd.xlane.f32.xlu0 %v2713
      %v2715 = vpop.xlane.xlu0 %2714
      %v2716 = vadd.f32 %v2715, %v1222
      %vm2717 = vcmp.eq.s32.totalorder %v595, 9
      %vm2718 = vcmp.eq.s32.totalorder %v596, 9
      %v2719 = vlaneseq
      %v2720 = vshrl.u32 %v2719, 7
      %v2721 = vsub.s32 1, %v2720
      %v2722 = vrot.slane %v2716, %v2721
      %v2723 = vsel %vm2717, %v2722, %v2620
      %v2724 = vsel %vm2718, %v2722, %v2621
      %v2725 = vrot.slane %v2700, 6
      %v2727 = vmul.f32 %v1694, %v2725
      %v2729 = vrot.slane %v2727, 2
      %v2730 = vrot.slane %v1222, 2
      %2731 = vrot.lane.b32.xlu0 %v2730, 127
      %v2732 = vpop.permute.xlu0 %2731
      %v2734 = vsel %vm763, %v2729, 0
      %2736 = vmatprep.subr.mxu0 0.0
      %2737 = vmatpush1.msra.mxu0 %v581
      %2738 = vmatprep.subr.mxu0 0.0
      %2739 = vmatpush1.msra.mxu0 %v582
      %2740 = vmatprep.subr.mxu0 0.0
      %2741 = vmatpush1.msra.mxu0 0.0
      %2742 = vmatprep.subr.mxu0 0.0
      %2743 = vmatpush1.msra.mxu0 0.0
      %2744 = vmatprep.subr.mxu0 0.0
      %2745 = vmatpush1.msra.mxu0 0.0
      %2746 = vmatprep.subr.mxu0 0.0
      %2747 = vmatpush1.msra.mxu0 0.0
      %2748 = vmatprep.subr.mxu0 0.0
      %2749 = vmatpush1.msra.mxu0 0.0
      %2750 = vmatprep.subr.mxu0 0.0
      %2751 = vmatpush1.msra.mxu0 0.0
      %2752 = vmatprep.subr.mxu0 0.0
      %2753 = vmatpush1.msra.mxu0 0.0
      %2754 = vmatprep.subr.mxu0 0.0
      %2755 = vmatpush1.msra.mxu0 0.0
      %2756 = vmatprep.subr.mxu0 0.0
      %2757 = vmatpush1.msra.mxu0 0.0
      %2758 = vmatprep.subr.mxu0 0.0
      %2759 = vmatpush1.msra.mxu0 0.0
      %2760 = vmatprep.subr.mxu0 0.0
      %2761 = vmatpush1.msra.mxu0 0.0
      %2762 = vmatprep.subr.mxu0 0.0
      %2763 = vmatpush1.msra.mxu0 0.0
      %2764 = vmatprep.subr.mxu0 0.0
      %2765 = vmatpush1.msra.mxu0 0.0
      %2766 = vmatprep.subr.mxu0 0.0
      %2767 = vmatpush1.msra.mxu0 0.0
      %2768 = vmatprep.subr.mxu0 0.0
      %2769 = vmatpush1.msra.mxu0 0.0
      %2770 = vmatprep.subr.mxu0 0.0
      %2771 = vmatpush1.msra.mxu0 0.0
      %2772 = vmatprep.subr.mxu0 0.0
      %2773 = vmatpush1.msra.mxu0 0.0
      %2774 = vmatprep.subr.mxu0 0.0
      %2775 = vmatpush1.msra.mxu0 0.0
      %2776 = vmatprep.subr.mxu0 0.0
      %2777 = vmatpush1.msra.mxu0 0.0
      %2778 = vmatprep.subr.mxu0 0.0
      %2779 = vmatpush1.msra.mxu0 0.0
      %2780 = vmatprep.subr.mxu0 0.0
      %2781 = vmatpush1.msra.mxu0 0.0
      %2782 = vmatprep.subr.mxu0 0.0
      %2783 = vmatpush1.msra.mxu0 0.0
      %2784 = vmatprep.subr.mxu0 0.0
      %2785 = vmatpush1.msra.mxu0 0.0
      %2786 = vmatprep.subr.mxu0 0.0
      %2787 = vmatpush1.msra.mxu0 0.0
      %2788 = vmatprep.subr.mxu0 0.0
      %2789 = vmatpush1.msra.mxu0 0.0
      %2790 = vmatprep.subr.mxu0 0.0
      %2791 = vmatpush1.msra.mxu0 0.0
      %2792 = vmatprep.subr.mxu0 0.0
      %2793 = vmatpush1.msra.mxu0 0.0
      %2794 = vmatprep.subr.mxu0 0.0
      %2795 = vmatpush1.msra.mxu0 0.0
      %2796 = vmatprep.subr.mxu0 0.0
      %2797 = vmatpush1.msra.mxu0 0.0
      %2798 = vmatprep.subr.mxu0 0.0
      %2799 = vmatpush1.msra.mxu0 0.0
      %2800 = vmatprep.mubr.f32.mxu0 0.0
      %2801 = vmatmul.mubr.f32.gmra.mrb[0].mxu0 %v2734
      %v2802 = vpop.f32.mrb[0].mxu0
      %v2803 = vadd.f32 %v2732, %v2802
      %v2804 = vpop.f32.mrb[0].mxu0
      %2805 = vdwg.mxu0
      %v2807 = vrot.slane %v2803, 6
      %2808 = vrot.lane.b32.xlu0 %v2807, 17
      %v2809 = vpop.permute.xlu0 %2808
      %v2811 = vmul.f32 %v1222, %v2809
      %2813 = vrot.lane.b32.xlu0 %v2811, 111
      %v2814 = vpop.permute.xlu0 %2813
      %v2816 = vsel %vm1990, %v2814, 0.0
      %2817 = vadd.xlane.f32.xlu0 %v2816
      %v2818 = vpop.xlane.xlu0 %2817
      %v2819 = vadd.f32 %v2818, %v1222
      %vm2820 = vcmp.eq.s32.totalorder %v595, 10
      %vm2821 = vcmp.eq.s32.totalorder %v596, 10
      %v2822 = vlaneseq
      %v2823 = vshrl.u32 %v2822, 7
      %v2824 = vsub.s32 2, %v2823
      %v2825 = vrot.slane %v2819, %v2824
      %v2826 = vsel %vm2820, %v2825, %v2723
      %v2827 = vsel %vm2821, %v2825, %v2724
      %v2828 = vrot.slane %v2803, 5
      %v2830 = vmul.f32 %v1694, %v2828
      %v2832 = vrot.slane %v2830, 3
      %v2833 = vrot.slane %v1222, 3
      %2834 = vrot.lane.b32.xlu0 %v2833, 127
      %v2835 = vpop.permute.xlu0 %2834
      %v2837 = vsel %vm763, %v2832, 0
      %2839 = vmatprep.subr.mxu0 0.0
      %2840 = vmatpush1.msra.mxu0 %v581
      %2841 = vmatprep.subr.mxu0 0.0
      %2842 = vmatpush1.msra.mxu0 %v582
      %2843 = vmatprep.subr.mxu0 0.0
      %2844 = vmatpush1.msra.mxu0 0.0
      %2845 = vmatprep.subr.mxu0 0.0
      %2846 = vmatpush1.msra.mxu0 0.0
      %2847 = vmatprep.subr.mxu0 0.0
      %2848 = vmatpush1.msra.mxu0 0.0
      %2849 = vmatprep.subr.mxu0 0.0
      %2850 = vmatpush1.msra.mxu0 0.0
      %2851 = vmatprep.subr.mxu0 0.0
      %2852 = vmatpush1.msra.mxu0 0.0
      %2853 = vmatprep.subr.mxu0 0.0
      %2854 = vmatpush1.msra.mxu0 0.0
      %2855 = vmatprep.subr.mxu0 0.0
      %2856 = vmatpush1.msra.mxu0 0.0
      %2857 = vmatprep.subr.mxu0 0.0
      %2858 = vmatpush1.msra.mxu0 0.0
      %2859 = vmatprep.subr.mxu0 0.0
      %2860 = vmatpush1.msra.mxu0 0.0
      %2861 = vmatprep.subr.mxu0 0.0
      %2862 = vmatpush1.msra.mxu0 0.0
      %2863 = vmatprep.subr.mxu0 0.0
      %2864 = vmatpush1.msra.mxu0 0.0
      %2865 = vmatprep.subr.mxu0 0.0
      %2866 = vmatpush1.msra.mxu0 0.0
      %2867 = vmatprep.subr.mxu0 0.0
      %2868 = vmatpush1.msra.mxu0 0.0
      %2869 = vmatprep.subr.mxu0 0.0
      %2870 = vmatpush1.msra.mxu0 0.0
      %2871 = vmatprep.subr.mxu0 0.0
      %2872 = vmatpush1.msra.mxu0 0.0
      %2873 = vmatprep.subr.mxu0 0.0
      %2874 = vmatpush1.msra.mxu0 0.0
      %2875 = vmatprep.subr.mxu0 0.0
      %2876 = vmatpush1.msra.mxu0 0.0
      %2877 = vmatprep.subr.mxu0 0.0
      %2878 = vmatpush1.msra.mxu0 0.0
      %2879 = vmatprep.subr.mxu0 0.0
      %2880 = vmatpush1.msra.mxu0 0.0
      %2881 = vmatprep.subr.mxu0 0.0
      %2882 = vmatpush1.msra.mxu0 0.0
      %2883 = vmatprep.subr.mxu0 0.0
      %2884 = vmatpush1.msra.mxu0 0.0
      %2885 = vmatprep.subr.mxu0 0.0
      %2886 = vmatpush1.msra.mxu0 0.0
      %2887 = vmatprep.subr.mxu0 0.0
      %2888 = vmatpush1.msra.mxu0 0.0
      %2889 = vmatprep.subr.mxu0 0.0
      %2890 = vmatpush1.msra.mxu0 0.0
      %2891 = vmatprep.subr.mxu0 0.0
      %2892 = vmatpush1.msra.mxu0 0.0
      %2893 = vmatprep.subr.mxu0 0.0
      %2894 = vmatpush1.msra.mxu0 0.0
      %2895 = vmatprep.subr.mxu0 0.0
      %2896 = vmatpush1.msra.mxu0 0.0
      %2897 = vmatprep.subr.mxu0 0.0
      %2898 = vmatpush1.msra.mxu0 0.0
      %2899 = vmatprep.subr.mxu0 0.0
      %2900 = vmatpush1.msra.mxu0 0.0
      %2901 = vmatprep.subr.mxu0 0.0
      %2902 = vmatpush1.msra.mxu0 0.0
      %2903 = vmatprep.mubr.f32.mxu0 0.0
      %2904 = vmatmul.mubr.f32.gmra.mrb[0].mxu0 %v2837
      %v2905 = vpop.f32.mrb[0].mxu0
      %v2906 = vadd.f32 %v2835, %v2905
      %v2907 = vpop.f32.mrb[0].mxu0
      %2908 = vdwg.mxu0
      %v2910 = vrot.slane %v2906, 5
      %2911 = vrot.lane.b32.xlu0 %v2910, 17
      %v2912 = vpop.permute.xlu0 %2911
      %v2914 = vmul.f32 %v1222, %v2912
      %2916 = vrot.lane.b32.xlu0 %v2914, 111
      %v2917 = vpop.permute.xlu0 %2916
      %v2919 = vsel %vm2094, %v2917, 0.0
      %2920 = vadd.xlane.f32.xlu0 %v2919
      %v2921 = vpop.xlane.xlu0 %2920
      %v2922 = vadd.f32 %v2921, %v1222
      %vm2923 = vcmp.eq.s32.totalorder %v595, 11
      %vm2924 = vcmp.eq.s32.totalorder %v596, 11
      %v2925 = vlaneseq
      %v2926 = vshrl.u32 %v2925, 7
      %v2927 = vsub.s32 3, %v2926
      %v2928 = vrot.slane %v2922, %v2927
      %v2929 = vsel %vm2923, %v2928, %v2826
      %v2930 = vsel %vm2924, %v2928, %v2827
      %v2931 = vrot.slane %v2906, 4
      %v2933 = vmul.f32 %v1694, %v2931
      %v2935 = vrot.slane %v2933, 4
      %v2936 = vrot.slane %v1222, 4
      %2937 = vrot.lane.b32.xlu0 %v2936, 127
      %v2938 = vpop.permute.xlu0 %2937
      %v2940 = vsel %vm763, %v2935, 0
      %2942 = vmatprep.subr.mxu0 0.0
      %2943 = vmatpush1.msra.mxu0 %v581
      %2944 = vmatprep.subr.mxu0 0.0
      %2945 = vmatpush1.msra.mxu0 %v582
      %2946 = vmatprep.subr.mxu0 0.0
      %2947 = vmatpush1.msra.mxu0 0.0
      %2948 = vmatprep.subr.mxu0 0.0
      %2949 = vmatpush1.msra.mxu0 0.0
      %2950 = vmatprep.subr.mxu0 0.0
      %2951 = vmatpush1.msra.mxu0 0.0
      %2952 = vmatprep.subr.mxu0 0.0
      %2953 = vmatpush1.msra.mxu0 0.0
      %2954 = vmatprep.subr.mxu0 0.0
      %2955 = vmatpush1.msra.mxu0 0.0
      %2956 = vmatprep.subr.mxu0 0.0
      %2957 = vmatpush1.msra.mxu0 0.0
      %2958 = vmatprep.subr.mxu0 0.0
      %2959 = vmatpush1.msra.mxu0 0.0
      %2960 = vmatprep.subr.mxu0 0.0
      %2961 = vmatpush1.msra.mxu0 0.0
      %2962 = vmatprep.subr.mxu0 0.0
      %2963 = vmatpush1.msra.mxu0 0.0
      %2964 = vmatprep.subr.mxu0 0.0
      %2965 = vmatpush1.msra.mxu0 0.0
      %2966 = vmatprep.subr.mxu0 0.0
      %2967 = vmatpush1.msra.mxu0 0.0
      %2968 = vmatprep.subr.mxu0 0.0
      %2969 = vmatpush1.msra.mxu0 0.0
      %2970 = vmatprep.subr.mxu0 0.0
      %2971 = vmatpush1.msra.mxu0 0.0
      %2972 = vmatprep.subr.mxu0 0.0
      %2973 = vmatpush1.msra.mxu0 0.0
      %2974 = vmatprep.subr.mxu0 0.0
      %2975 = vmatpush1.msra.mxu0 0.0
      %2976 = vmatprep.subr.mxu0 0.0
      %2977 = vmatpush1.msra.mxu0 0.0
      %2978 = vmatprep.subr.mxu0 0.0
      %2979 = vmatpush1.msra.mxu0 0.0
      %2980 = vmatprep.subr.mxu0 0.0
      %2981 = vmatpush1.msra.mxu0 0.0
      %2982 = vmatprep.subr.mxu0 0.0
      %2983 = vmatpush1.msra.mxu0 0.0
      %2984 = vmatprep.subr.mxu0 0.0
      %2985 = vmatpush1.msra.mxu0 0.0
      %2986 = vmatprep.subr.mxu0 0.0
      %2987 = vmatpush1.msra.mxu0 0.0
      %2988 = vmatprep.subr.mxu0 0.0
      %2989 = vmatpush1.msra.mxu0 0.0
      %2990 = vmatprep.subr.mxu0 0.0
      %2991 = vmatpush1.msra.mxu0 0.0
      %2992 = vmatprep.subr.mxu0 0.0
      %2993 = vmatpush1.msra.mxu0 0.0
      %2994 = vmatprep.subr.mxu0 0.0
      %2995 = vmatpush1.msra.mxu0 0.0
      %2996 = vmatprep.subr.mxu0 0.0
      %2997 = vmatpush1.msra.mxu0 0.0
      %2998 = vmatprep.subr.mxu0 0.0
      %2999 = vmatpush1.msra.mxu0 0.0
      %3000 = vmatprep.subr.mxu0 0.0
      %3001 = vmatpush1.msra.mxu0 0.0
      %3002 = vmatprep.subr.mxu0 0.0
      %3003 = vmatpush1.msra.mxu0 0.0
      %3004 = vmatprep.subr.mxu0 0.0
      %3005 = vmatpush1.msra.mxu0 0.0
      %3006 = vmatprep.mubr.f32.mxu0 0.0
      %3007 = vmatmul.mubr.f32.gmra.mrb[0].mxu0 %v2940
      %v3008 = vpop.f32.mrb[0].mxu0
      %v3009 = vadd.f32 %v2938, %v3008
      %v3010 = vpop.f32.mrb[0].mxu0
      %3011 = vdwg.mxu0
      %v3013 = vrot.slane %v3009, 4
      %3014 = vrot.lane.b32.xlu0 %v3013, 17
      %v3015 = vpop.permute.xlu0 %3014
      %v3017 = vmul.f32 %v1222, %v3015
      %3019 = vrot.lane.b32.xlu0 %v3017, 111
      %v3020 = vpop.permute.xlu0 %3019
      %v3022 = vsel %vm2198, %v3020, 0.0
      %3023 = vadd.xlane.f32.xlu0 %v3022
      %v3024 = vpop.xlane.xlu0 %3023
      %v3025 = vadd.f32 %v3024, %v1222
      %vm3026 = vcmp.eq.s32.totalorder %v595, 12
      %vm3027 = vcmp.eq.s32.totalorder %v596, 12
      %v3028 = vlaneseq
      %v3029 = vshrl.u32 %v3028, 7
      %v3030 = vsub.s32 4, %v3029
      %v3031 = vrot.slane %v3025, %v3030
      %v3032 = vsel %vm3026, %v3031, %v2929
      %v3033 = vsel %vm3027, %v3031, %v2930
      %v3034 = vrot.slane %v3009, 3
      %v3036 = vmul.f32 %v1694, %v3034
      %v3038 = vrot.slane %v3036, 5
      %v3039 = vrot.slane %v1222, 5
      %3040 = vrot.lane.b32.xlu0 %v3039, 127
      %v3041 = vpop.permute.xlu0 %3040
      %v3043 = vsel %vm763, %v3038, 0
      %3045 = vmatprep.subr.mxu0 0.0
      %3046 = vmatpush1.msra.mxu0 %v581
      %3047 = vmatprep.subr.mxu0 0.0
      %3048 = vmatpush1.msra.mxu0 %v582
      %3049 = vmatprep.subr.mxu0 0.0
      %3050 = vmatpush1.msra.mxu0 0.0
      %3051 = vmatprep.subr.mxu0 0.0
      %3052 = vmatpush1.msra.mxu0 0.0
      %3053 = vmatprep.subr.mxu0 0.0
      %3054 = vmatpush1.msra.mxu0 0.0
      %3055 = vmatprep.subr.mxu0 0.0
      %3056 = vmatpush1.msra.mxu0 0.0
      %3057 = vmatprep.subr.mxu0 0.0
      %3058 = vmatpush1.msra.mxu0 0.0
      %3059 = vmatprep.subr.mxu0 0.0
      %3060 = vmatpush1.msra.mxu0 0.0
      %3061 = vmatprep.subr.mxu0 0.0
      %3062 = vmatpush1.msra.mxu0 0.0
      %3063 = vmatprep.subr.mxu0 0.0
      %3064 = vmatpush1.msra.mxu0 0.0
      %3065 = vmatprep.subr.mxu0 0.0
      %3066 = vmatpush1.msra.mxu0 0.0
      %3067 = vmatprep.subr.mxu0 0.0
      %3068 = vmatpush1.msra.mxu0 0.0
      %3069 = vmatprep.subr.mxu0 0.0
      %3070 = vmatpush1.msra.mxu0 0.0
      %3071 = vmatprep.subr.mxu0 0.0
      %3072 = vmatpush1.msra.mxu0 0.0
      %3073 = vmatprep.subr.mxu0 0.0
      %3074 = vmatpush1.msra.mxu0 0.0
      %3075 = vmatprep.subr.mxu0 0.0
      %3076 = vmatpush1.msra.mxu0 0.0
      %3077 = vmatprep.subr.mxu0 0.0
      %3078 = vmatpush1.msra.mxu0 0.0
      %3079 = vmatprep.subr.mxu0 0.0
      %3080 = vmatpush1.msra.mxu0 0.0
      %3081 = vmatprep.subr.mxu0 0.0
      %3082 = vmatpush1.msra.mxu0 0.0
      %3083 = vmatprep.subr.mxu0 0.0
      %3084 = vmatpush1.msra.mxu0 0.0
      %3085 = vmatprep.subr.mxu0 0.0
      %3086 = vmatpush1.msra.mxu0 0.0
      %3087 = vmatprep.subr.mxu0 0.0
      %3088 = vmatpush1.msra.mxu0 0.0
      %3089 = vmatprep.subr.mxu0 0.0
      %3090 = vmatpush1.msra.mxu0 0.0
      %3091 = vmatprep.subr.mxu0 0.0
      %3092 = vmatpush1.msra.mxu0 0.0
      %3093 = vmatprep.subr.mxu0 0.0
      %3094 = vmatpush1.msra.mxu0 0.0
      %3095 = vmatprep.subr.mxu0 0.0
      %3096 = vmatpush1.msra.mxu0 0.0
      %3097 = vmatprep.subr.mxu0 0.0
      %3098 = vmatpush1.msra.mxu0 0.0
      %3099 = vmatprep.subr.mxu0 0.0
      %3100 = vmatpush1.msra.mxu0 0.0
      %3101 = vmatprep.subr.mxu0 0.0
      %3102 = vmatpush1.msra.mxu0 0.0
      %3103 = vmatprep.subr.mxu0 0.0
      %3104 = vmatpush1.msra.mxu0 0.0
      %3105 = vmatprep.subr.mxu0 0.0
      %3106 = vmatpush1.msra.mxu0 0.0
      %3107 = vmatprep.subr.mxu0 0.0
      %3108 = vmatpush1.msra.mxu0 0.0
      %3109 = vmatprep.mubr.f32.mxu0 0.0
      %3110 = vmatmul.mubr.f32.gmra.mrb[0].mxu0 %v3043
      %v3111 = vpop.f32.mrb[0].mxu0
      %v3112 = vadd.f32 %v3041, %v3111
      %v3113 = vpop.f32.mrb[0].mxu0
      %3114 = vdwg.mxu0
      %v3116 = vrot.slane %v3112, 3
      %3117 = vrot.lane.b32.xlu0 %v3116, 17
      %v3118 = vpop.permute.xlu0 %3117
      %v3120 = vmul.f32 %v1222, %v3118
      %3122 = vrot.lane.b32.xlu0 %v3120, 111
      %v3123 = vpop.permute.xlu0 %3122
      %v3125 = vsel %vm2302, %v3123, 0.0
      %3126 = vadd.xlane.f32.xlu0 %v3125
      %v3127 = vpop.xlane.xlu0 %3126
      %v3128 = vadd.f32 %v3127, %v1222
      %vm3129 = vcmp.eq.s32.totalorder %v595, 13
      %vm3130 = vcmp.eq.s32.totalorder %v596, 13
      %v3131 = vlaneseq
      %v3132 = vshrl.u32 %v3131, 7
      %v3133 = vsub.s32 5, %v3132
      %v3134 = vrot.slane %v3128, %v3133
      %v3135 = vsel %vm3129, %v3134, %v3032
      %v3136 = vsel %vm3130, %v3134, %v3033
      %v3137 = vrot.slane %v3112, 2
      %v3139 = vmul.f32 %v1694, %v3137
      %v3141 = vrot.slane %v3139, 6
      %v3142 = vrot.slane %v1222, 6
      %3143 = vrot.lane.b32.xlu0 %v3142, 127
      %v3144 = vpop.permute.xlu0 %3143
      %v3146 = vsel %vm763, %v3141, 0
      %3148 = vmatprep.subr.mxu0 0.0
      %3149 = vmatpush1.msra.mxu0 %v581
      %3150 = vmatprep.subr.mxu0 0.0
      %3151 = vmatpush1.msra.mxu0 %v582
      %3152 = vmatprep.subr.mxu0 0.0
      %3153 = vmatpush1.msra.mxu0 0.0
      %3154 = vmatprep.subr.mxu0 0.0
      %3155 = vmatpush1.msra.mxu0 0.0
      %3156 = vmatprep.subr.mxu0 0.0
      %3157 = vmatpush1.msra.mxu0 0.0
      %3158 = vmatprep.subr.mxu0 0.0
      %3159 = vmatpush1.msra.mxu0 0.0
      %3160 = vmatprep.subr.mxu0 0.0
      %3161 = vmatpush1.msra.mxu0 0.0
      %3162 = vmatprep.subr.mxu0 0.0
      %3163 = vmatpush1.msra.mxu0 0.0
      %3164 = vmatprep.subr.mxu0 0.0
      %3165 = vmatpush1.msra.mxu0 0.0
      %3166 = vmatprep.subr.mxu0 0.0
      %3167 = vmatpush1.msra.mxu0 0.0
      %3168 = vmatprep.subr.mxu0 0.0
      %3169 = vmatpush1.msra.mxu0 0.0
      %3170 = vmatprep.subr.mxu0 0.0
      %3171 = vmatpush1.msra.mxu0 0.0
      %3172 = vmatprep.subr.mxu0 0.0
      %3173 = vmatpush1.msra.mxu0 0.0
      %3174 = vmatprep.subr.mxu0 0.0
      %3175 = vmatpush1.msra.mxu0 0.0
      %3176 = vmatprep.subr.mxu0 0.0
      %3177 = vmatpush1.msra.mxu0 0.0
      %3178 = vmatprep.subr.mxu0 0.0
      %3179 = vmatpush1.msra.mxu0 0.0
      %3180 = vmatprep.subr.mxu0 0.0
      %3181 = vmatpush1.msra.mxu0 0.0
      %3182 = vmatprep.subr.mxu0 0.0
      %3183 = vmatpush1.msra.mxu0 0.0
      %3184 = vmatprep.subr.mxu0 0.0
      %3185 = vmatpush1.msra.mxu0 0.0
      %3186 = vmatprep.subr.mxu0 0.0
      %3187 = vmatpush1.msra.mxu0 0.0
      %3188 = vmatprep.subr.mxu0 0.0
      %3189 = vmatpush1.msra.mxu0 0.0
      %3190 = vmatprep.subr.mxu0 0.0
      %3191 = vmatpush1.msra.mxu0 0.0
      %3192 = vmatprep.subr.mxu0 0.0
      %3193 = vmatpush1.msra.mxu0 0.0
      %3194 = vmatprep.subr.mxu0 0.0
      %3195 = vmatpush1.msra.mxu0 0.0
      %3196 = vmatprep.subr.mxu0 0.0
      %3197 = vmatpush1.msra.mxu0 0.0
      %3198 = vmatprep.subr.mxu0 0.0
      %3199 = vmatpush1.msra.mxu0 0.0
      %3200 = vmatprep.subr.mxu0 0.0
      %3201 = vmatpush1.msra.mxu0 0.0
      %3202 = vmatprep.subr.mxu0 0.0
      %3203 = vmatpush1.msra.mxu0 0.0
      %3204 = vmatprep.subr.mxu0 0.0
      %3205 = vmatpush1.msra.mxu0 0.0
      %3206 = vmatprep.subr.mxu0 0.0
      %3207 = vmatpush1.msra.mxu0 0.0
      %3208 = vmatprep.subr.mxu0 0.0
      %3209 = vmatpush1.msra.mxu0 0.0
      %3210 = vmatprep.subr.mxu0 0.0
      %3211 = vmatpush1.msra.mxu0 0.0
      %3212 = vmatprep.mubr.f32.mxu0 0.0
      %3213 = vmatmul.mubr.f32.gmra.mrb[0].mxu0 %v3146
      %v3214 = vpop.f32.mrb[0].mxu0
      %v3215 = vadd.f32 %v3144, %v3214
      %v3216 = vpop.f32.mrb[0].mxu0
      %3217 = vdwg.mxu0
      %v3219 = vrot.slane %v3215, 2
      %3220 = vrot.lane.b32.xlu0 %v3219, 17
      %v3221 = vpop.permute.xlu0 %3220
      %v3223 = vmul.f32 %v1222, %v3221
      %3225 = vrot.lane.b32.xlu0 %v3223, 111
      %v3226 = vpop.permute.xlu0 %3225
      %v3228 = vsel %vm2406, %v3226, 0.0
      %3229 = vadd.xlane.f32.xlu0 %v3228
      %v3230 = vpop.xlane.xlu0 %3229
      %v3231 = vadd.f32 %v3230, %v1222
      %vm3232 = vcmp.eq.s32.totalorder %v595, 14
      %vm3233 = vcmp.eq.s32.totalorder %v596, 14
      %v3234 = vlaneseq
      %v3235 = vshrl.u32 %v3234, 7
      %v3236 = vsub.s32 6, %v3235
      %v3237 = vrot.slane %v3231, %v3236
      %v3238 = vsel %vm3232, %v3237, %v3135
      %v3239 = vsel %vm3233, %v3237, %v3136
      %v3240 = vrot.slane %v3215, 1
      %v3242 = vmul.f32 %v1694, %v3240
      %v3244 = vrot.slane %v3242, 7
      %v3245 = vrot.slane %v1222, 7
      %3246 = vrot.lane.b32.xlu0 %v3245, 127
      %v3247 = vpop.permute.xlu0 %3246
      %v3249 = vsel %vm763, %v3244, 0
      %3251 = vmatprep.subr.mxu0 0.0
      %3252 = vmatpush1.msra.mxu0 %v581
      %3253 = vmatprep.subr.mxu0 0.0
      %3254 = vmatpush1.msra.mxu0 %v582
      %3255 = vmatprep.subr.mxu0 0.0
      %3256 = vmatpush1.msra.mxu0 0.0
      %3257 = vmatprep.subr.mxu0 0.0
      %3258 = vmatpush1.msra.mxu0 0.0
      %3259 = vmatprep.subr.mxu0 0.0
      %3260 = vmatpush1.msra.mxu0 0.0
      %3261 = vmatprep.subr.mxu0 0.0
      %3262 = vmatpush1.msra.mxu0 0.0
      %3263 = vmatprep.subr.mxu0 0.0
      %3264 = vmatpush1.msra.mxu0 0.0
      %3265 = vmatprep.subr.mxu0 0.0
      %3266 = vmatpush1.msra.mxu0 0.0
      %3267 = vmatprep.subr.mxu0 0.0
      %3268 = vmatpush1.msra.mxu0 0.0
      %3269 = vmatprep.subr.mxu0 0.0
      %3270 = vmatpush1.msra.mxu0 0.0
      %3271 = vmatprep.subr.mxu0 0.0
      %3272 = vmatpush1.msra.mxu0 0.0
      %3273 = vmatprep.subr.mxu0 0.0
      %3274 = vmatpush1.msra.mxu0 0.0
      %3275 = vmatprep.subr.mxu0 0.0
      %3276 = vmatpush1.msra.mxu0 0.0
      %3277 = vmatprep.subr.mxu0 0.0
      %3278 = vmatpush1.msra.mxu0 0.0
      %3279 = vmatprep.subr.mxu0 0.0
      %3280 = vmatpush1.msra.mxu0 0.0
      %3281 = vmatprep.subr.mxu0 0.0
      %3282 = vmatpush1.msra.mxu0 0.0
      %3283 = vmatprep.subr.mxu0 0.0
      %3284 = vmatpush1.msra.mxu0 0.0
      %3285 = vmatprep.subr.mxu0 0.0
      %3286 = vmatpush1.msra.mxu0 0.0
      %3287 = vmatprep.subr.mxu0 0.0
      %3288 = vmatpush1.msra.mxu0 0.0
      %3289 = vmatprep.subr.mxu0 0.0
      %3290 = vmatpush1.msra.mxu0 0.0
      %3291 = vmatprep.subr.mxu0 0.0
      %3292 = vmatpush1.msra.mxu0 0.0
      %3293 = vmatprep.subr.mxu0 0.0
      %3294 = vmatpush1.msra.mxu0 0.0
      %3295 = vmatprep.subr.mxu0 0.0
      %3296 = vmatpush1.msra.mxu0 0.0
      %3297 = vmatprep.subr.mxu0 0.0
      %3298 = vmatpush1.msra.mxu0 0.0
      %3299 = vmatprep.subr.mxu0 0.0
      %3300 = vmatpush1.msra.mxu0 0.0
      %3301 = vmatprep.subr.mxu0 0.0
      %3302 = vmatpush1.msra.mxu0 0.0
      %3303 = vmatprep.subr.mxu0 0.0
      %3304 = vmatpush1.msra.mxu0 0.0
      %3305 = vmatprep.subr.mxu0 0.0
      %3306 = vmatpush1.msra.mxu0 0.0
      %3307 = vmatprep.subr.mxu0 0.0
      %3308 = vmatpush1.msra.mxu0 0.0
      %3309 = vmatprep.subr.mxu0 0.0
      %3310 = vmatpush1.msra.mxu0 0.0
      %3311 = vmatprep.subr.mxu0 0.0
      %3312 = vmatpush1.msra.mxu0 0.0
      %3313 = vmatprep.subr.mxu0 0.0
      %3314 = vmatpush1.msra.mxu0 0.0
      %3315 = vmatprep.mubr.f32.mxu0 0.0
      %3316 = vmatmul.mubr.f32.gmra.mrb[0].mxu0 %v3249
      %v3317 = vpop.f32.mrb[0].mxu0
      %v3318 = vadd.f32 %v3247, %v3317
      %v3319 = vpop.f32.mrb[0].mxu0
      %3320 = vdwg.mxu0
      %v3322 = vrot.slane %v3318, 1
      %3323 = vrot.lane.b32.xlu0 %v3322, 17
      %v3324 = vpop.permute.xlu0 %3323
      %v3326 = vmul.f32 %v1222, %v3324
      %3328 = vrot.lane.b32.xlu0 %v3326, 111
      %v3329 = vpop.permute.xlu0 %3328
      %v3331 = vsel %vm2510, %v3329, 0.0
      %3332 = vadd.xlane.f32.xlu0 %v3331
      %v3333 = vpop.xlane.xlu0 %3332
      %v3334 = vadd.f32 %v3333, %v1222
      %vm3335 = vcmp.eq.s32.totalorder %v595, 15
      %vm3336 = vcmp.eq.s32.totalorder %v596, 15
      %v3337 = vlaneseq
      %v3338 = vshrl.u32 %v3337, 7
      %v3339 = vsub.s32 7, %v3338
      %v3340 = vrot.slane %v3334, %v3339
      %v3341 = vsel %vm3335, %v3340, %v3238
      %v3342 = vsel %vm3336, %v3340, %v3239
      %v3343 = vxor.u32 %v3341, 2147483648
      %v3344 = vxor.u32 %v3342, 2147483648
      %v3345 = vmul.f32 %v3343, 1.442695
      %v3346 = vpow.pop %v3345
      %v3347 = vmul.f32 %v3344, 1.442695
      %v3348 = vpow.pop %v3347
      %v3349 = vadd.f32 %v3346, 1.0
      %v3350 = vadd.f32 %v3348, 1.0
      %v3351 = vrcp.pop %v3349
      %v3352 = vmul.f32 1.0, %v3351
      %v3353 = vrcp.pop %v3350
      %v3354 = vmul.f32 1.0, %v3353
      %v3355 = vmul.f32 %v3341, %v3352
      %v3356 = vmul.f32 %v3342, %v3354
      %3358 = vset.pattern.permute.xlu0 21
      %3359 = vperm.xlu0 %3358, %v3355
      %v3360 = vpop.permute.xlu0 %3359
      %3363 = vset.pattern.permute.xlu0 21
      %3364 = vperm.xlu0 %3363, %v3356
      %v3365 = vpop.permute.xlu0 %3364
      %v3367 = vmul.f32 %v747, %v3360
      %v3368 = vmul.f32 %v752, %v3365
      %v3369 = vld [vmem:[%s13] sm:$0xff]
      %v3370 = vld [vmem:[%s13 + $0x8] sm:$0xff]
      %3373 = vrot.lane.b32.xlu0 %v3367, 112
      %v3374 = vpop.permute.xlu0 %3373
      %3375 = vrot.lane.b32.xlu0 %v3368, 112
      %v3376 = vpop.permute.xlu0 %3375
      %v3377 = vsel %vm763, %v3374, 0
      %v3379 = vsel %vm763, %v3376, 0
      %3381 = vmatprep.subr.mxu0 0.0
      %3382 = vmatpush1.msra.mxu0 %v3369
      %3383 = vmatprep.subr.mxu0 0.0
      %3384 = vmatpush1.msra.mxu0 %v3370
      %3385 = vmatprep.subr.mxu0 0.0
      %3386 = vmatpush1.msra.mxu0 0.0
      %3387 = vmatprep.subr.mxu0 0.0
      %3388 = vmatpush1.msra.mxu0 0.0
      %3389 = vmatprep.subr.mxu0 0.0
      %3390 = vmatpush1.msra.mxu0 0.0
      %3391 = vmatprep.subr.mxu0 0.0
      %3392 = vmatpush1.msra.mxu0 0.0
      %3393 = vmatprep.subr.mxu0 0.0
      %3394 = vmatpush1.msra.mxu0 0.0
      %3395 = vmatprep.subr.mxu0 0.0
      %3396 = vmatpush1.msra.mxu0 0.0
      %3397 = vmatprep.subr.mxu0 0.0
      %3398 = vmatpush1.msra.mxu0 0.0
      %3399 = vmatprep.subr.mxu0 0.0
      %3400 = vmatpush1.msra.mxu0 0.0
      %3401 = vmatprep.subr.mxu0 0.0
      %3402 = vmatpush1.msra.mxu0 0.0
      %3403 = vmatprep.subr.mxu0 0.0
      %3404 = vmatpush1.msra.mxu0 0.0
      %3405 = vmatprep.subr.mxu0 0.0
      %3406 = vmatpush1.msra.mxu0 0.0
      %3407 = vmatprep.subr.mxu0 0.0
      %3408 = vmatpush1.msra.mxu0 0.0
      %3409 = vmatprep.subr.mxu0 0.0
      %3410 = vmatpush1.msra.mxu0 0.0
      %3411 = vmatprep.subr.mxu0 0.0
      %3412 = vmatpush1.msra.mxu0 0.0
      %3413 = vmatprep.subr.mxu0 0.0
      %3414 = vmatpush1.msra.mxu0 0.0
      %3415 = vmatprep.subr.mxu0 0.0
      %3416 = vmatpush1.msra.mxu0 0.0
      %3417 = vmatprep.subr.mxu0 0.0
      %3418 = vmatpush1.msra.mxu0 0.0
      %3419 = vmatprep.subr.mxu0 0.0
      %3420 = vmatpush1.msra.mxu0 0.0
      %3421 = vmatprep.subr.mxu0 0.0
      %3422 = vmatpush1.msra.mxu0 0.0
      %3423 = vmatprep.subr.mxu0 0.0
      %3424 = vmatpush1.msra.mxu0 0.0
      %3425 = vmatprep.subr.mxu0 0.0
      %3426 = vmatpush1.msra.mxu0 0.0
      %3427 = vmatprep.subr.mxu0 0.0
      %3428 = vmatpush1.msra.mxu0 0.0
      %3429 = vmatprep.subr.mxu0 0.0
      %3430 = vmatpush1.msra.mxu0 0.0
      %3431 = vmatprep.subr.mxu0 0.0
      %3432 = vmatpush1.msra.mxu0 0.0
      %3433 = vmatprep.subr.mxu0 0.0
      %3434 = vmatpush1.msra.mxu0 0.0
      %3435 = vmatprep.subr.mxu0 0.0
      %3436 = vmatpush1.msra.mxu0 0.0
      %3437 = vmatprep.subr.mxu0 0.0
      %3438 = vmatpush1.msra.mxu0 0.0
      %3439 = vmatprep.subr.mxu0 0.0
      %3440 = vmatpush1.msra.mxu0 0.0
      %3441 = vmatprep.subr.mxu0 0.0
      %3442 = vmatpush1.msra.mxu0 0.0
      %3443 = vmatprep.subr.mxu0 0.0
      %3444 = vmatpush1.msra.mxu0 0.0
      %3445 = vmatprep.mubr.f32.mxu0 0.0
      %3446 = vmatmul.mubr.f32.gmra.mrb[0].mxu0 %v3377
      %v3447 = vpop.f32.mrb[0].mxu0
      %v3448 = vadd.f32 %v625, %v3447
      %v3449 = vpop.f32.mrb[0].mxu0
      %3450 = vmatprep.mubr.f32.mxu0 0.0
      %3451 = vmatmul.mubr.f32.gmra.mrb[0].mxu0 %v3379
      %v3452 = vpop.f32.mrb[0].mxu0
      %v3453 = vadd.f32 %v626, %v3452
      %v3454 = vpop.f32.mrb[0].mxu0
      %3455 = vdwg.mxu0
      %s3456 = scalar_lea.vmem %s3, 1
      %v3457 = vld [vmem:[%s3456] sm:$0x1]
      %s3458 = scalar_lea.vmem %s4, 1
      %v3459 = vld [vmem:[%s3458] sm:$0x1]
      %v3460 = vsel %vm629, %v3448, 0.0
      %3461 = vadd.xlane.f32.xlu0 %v3460
      %v3462 = vpop.xlane.xlu0 %3461
      %v3463 = vsel %vm629, %v3453, 0.0
      %3464 = vadd.xlane.f32.xlu0 %v3463
      %v3465 = vpop.xlane.xlu0 %3464
      %v3466 = vmul.f32 %v3462, %v636
      %v3467 = vmul.f32 %v3465, %v636
      %v3468 = vsub.f32 %v3448, %v3466
      %v3469 = vsub.f32 %v3453, %v3467
      %v3470 = vmul.f32 %v3468, %v3468
      %v3471 = vmul.f32 %v3469, %v3469
      %v3472 = vsel %vm629, %v3470, 0.0
      %3473 = vadd.xlane.f32.xlu0 %v3472
      %v3474 = vpop.xlane.xlu0 %3473
      %v3475 = vsel %vm629, %v3471, 0.0
      %3476 = vadd.xlane.f32.xlu0 %v3475
      %v3477 = vpop.xlane.xlu0 %3476
      %v3478 = vmul.f32 %v3474, %v636
      %v3479 = vmul.f32 %v3477, %v636
      %v3480 = vadd.f32 %v3478, 1e-05
      %v3481 = vadd.f32 %v3479, 1e-05
      %v3482 = vrsqrt.pop %v3480
      %v3483 = vrsqrt.pop %v3481
      %v3484 = vmul.f32 %v3468, %v3482
      %v3485 = vmul.f32 %v3469, %v3483
      %v3487 = vlaneseq
      %v3488 = vshrl.u32 %v3487, 7
      %v3489 = vsub.s32 0, %v3488
      %v3490 = vrot.slane %v3457, %v3489
      %v3492 = vmul.f32 %v3484, %v3490
      %v3493 = vmul.f32 %v3485, %v3490
      %v3495 = vlaneseq
      %v3496 = vshrl.u32 %v3495, 7
      %v3497 = vsub.s32 0, %v3496
      %v3498 = vrot.slane %v3459, %v3497
      %v3500 = vadd.f32 %v3492, %v3498
      %v3501 = vadd.f32 %v3493, %v3498
      %s3502 = scalar_lea.vmem %s5, 8
      %v3503 = vld [vmem:[%s3502] sm:$0xff]
      %v3505 = vsel %vm629, %v3500, 0
      %v3508 = vsel %vm629, %v3501, 0
      %3510 = vmatprep.subr.mxu0 0.0
      %3511 = vmatpush1.msra.mxu0 %v3503
      %3512 = vmatprep.subr.mxu0 0.0
      %3513 = vmatpush1.msra.mxu0 0.0
      %3514 = vmatprep.subr.mxu0 0.0
      %3515 = vmatpush1.msra.mxu0 0.0
      %3516 = vmatprep.subr.mxu0 0.0
      %3517 = vmatpush1.msra.mxu0 0.0
      %3518 = vmatprep.subr.mxu0 0.0
      %3519 = vmatpush1.msra.mxu0 0.0
      %3520 = vmatprep.subr.mxu0 0.0
      %3521 = vmatpush1.msra.mxu0 0.0
      %3522 = vmatprep.subr.mxu0 0.0
      %3523 = vmatpush1.msra.mxu0 0.0
      %3524 = vmatprep.subr.mxu0 0.0
      %3525 = vmatpush1.msra.mxu0 0.0
      %3526 = vmatprep.subr.mxu0 0.0
      %3527 = vmatpush1.msra.mxu0 0.0
      %3528 = vmatprep.subr.mxu0 0.0
      %3529 = vmatpush1.msra.mxu0 0.0
      %3530 = vmatprep.subr.mxu0 0.0
      %3531 = vmatpush1.msra.mxu0 0.0
      %3532 = vmatprep.subr.mxu0 0.0
      %3533 = vmatpush1.msra.mxu0 0.0
      %3534 = vmatprep.subr.mxu0 0.0
      %3535 = vmatpush1.msra.mxu0 0.0
      %3536 = vmatprep.subr.mxu0 0.0
      %3537 = vmatpush1.msra.mxu0 0.0
      %3538 = vmatprep.subr.mxu0 0.0
      %3539 = vmatpush1.msra.mxu0 0.0
      %3540 = vmatprep.subr.mxu0 0.0
      %3541 = vmatpush1.msra.mxu0 0.0
      %3542 = vmatprep.subr.mxu0 0.0
      %3543 = vmatpush1.msra.mxu0 0.0
      %3544 = vmatprep.subr.mxu0 0.0
      %3545 = vmatpush1.msra.mxu0 0.0
      %3546 = vmatprep.subr.mxu0 0.0
      %3547 = vmatpush1.msra.mxu0 0.0
      %3548 = vmatprep.subr.mxu0 0.0
      %3549 = vmatpush1.msra.mxu0 0.0
      %3550 = vmatprep.subr.mxu0 0.0
      %3551 = vmatpush1.msra.mxu0 0.0
      %3552 = vmatprep.subr.mxu0 0.0
      %3553 = vmatpush1.msra.mxu0 0.0
      %3554 = vmatprep.subr.mxu0 0.0
      %3555 = vmatpush1.msra.mxu0 0.0
      %3556 = vmatprep.subr.mxu0 0.0
      %3557 = vmatpush1.msra.mxu0 0.0
      %3558 = vmatprep.subr.mxu0 0.0
      %3559 = vmatpush1.msra.mxu0 0.0
      %3560 = vmatprep.subr.mxu0 0.0
      %3561 = vmatpush1.msra.mxu0 0.0
      %3562 = vmatprep.subr.mxu0 0.0
      %3563 = vmatpush1.msra.mxu0 0.0
      %3564 = vmatprep.subr.mxu0 0.0
      %3565 = vmatpush1.msra.mxu0 0.0
      %3566 = vmatprep.subr.mxu0 0.0
      %3567 = vmatpush1.msra.mxu0 0.0
      %3568 = vmatprep.subr.mxu0 0.0
      %3569 = vmatpush1.msra.mxu0 0.0
      %3570 = vmatprep.subr.mxu0 0.0
      %3571 = vmatpush1.msra.mxu0 0.0
      %3572 = vmatprep.subr.mxu0 0.0
      %3573 = vmatpush1.msra.mxu0 0.0
      %3574 = vmatprep.mubr.f32.mxu0 0.0
      %3575 = vmatmul.mubr.f32.gmra.mrb[0].mxu0 %v3505
      %v3576 = vpop.f32.mrb[0].mxu0
      %v3577 = vadd.f32 0.0, %v3576
      %v3578 = vpop.f32.mrb[0].mxu0
      %3579 = vmatprep.mubr.f32.mxu0 0.0
      %3580 = vmatmul.mubr.f32.gmra.mrb[0].mxu0 %v3508
      %v3581 = vpop.f32.mrb[0].mxu0
      %v3582 = vadd.f32 0.0, %v3581
      %v3583 = vpop.f32.mrb[0].mxu0
      %3584 = vdwg.mxu0
      %s3585 = scalar_lea.vmem %s7, 1
      %v3586 = vld [vmem:[%s3585] sm:$0x1]
      %v3588 = vlaneseq
      %v3589 = vshrl.u32 %v3588, 7
      %v3590 = vsub.s32 0, %v3589
      %v3591 = vrot.slane %v3586, %v3590
      %v3593 = vadd.f32 %v3591, 0.0
      %3594 = vmatprep.subr.mxu0 0.0
      %3595 = vmatpush1.msra.mxu0 %v3577
      %3596 = vmatprep.subr.mxu0 0.0
      %3597 = vmatpush1.msra.mxu0 %v3582
      %3598 = vmatprep.subr.mxu0 0.0
      %3599 = vmatpush1.msra.mxu0 0.0
      %3600 = vmatprep.subr.mxu0 0.0
      %3601 = vmatpush1.msra.mxu0 0.0
      %3602 = vmatprep.subr.mxu0 0.0
      %3603 = vmatpush1.msra.mxu0 0.0
      %3604 = vmatprep.subr.mxu0 0.0
      %3605 = vmatpush1.msra.mxu0 0.0
      %3606 = vmatprep.subr.mxu0 0.0
      %3607 = vmatpush1.msra.mxu0 0.0
      %3608 = vmatprep.subr.mxu0 0.0
      %3609 = vmatpush1.msra.mxu0 0.0
      %3610 = vmatprep.subr.mxu0 0.0
      %3611 = vmatpush1.msra.mxu0 0.0
      %3612 = vmatprep.subr.mxu0 0.0
      %3613 = vmatpush1.msra.mxu0 0.0
      %3614 = vmatprep.subr.mxu0 0.0
      %3615 = vmatpush1.msra.mxu0 0.0
      %3616 = vmatprep.subr.mxu0 0.0
      %3617 = vmatpush1.msra.mxu0 0.0
      %3618 = vmatprep.subr.mxu0 0.0
      %3619 = vmatpush1.msra.mxu0 0.0
      %3620 = vmatprep.subr.mxu0 0.0
      %3621 = vmatpush1.msra.mxu0 0.0
      %3622 = vmatprep.subr.mxu0 0.0
      %3623 = vmatpush1.msra.mxu0 0.0
      %3624 = vmatprep.subr.mxu0 0.0
      %3625 = vmatpush1.msra.mxu0 0.0
      %3626 = vmatprep.subr.mxu0 0.0
      %3627 = vmatpush1.msra.mxu0 0.0
      %3628 = vmatprep.subr.mxu0 0.0
      %3629 = vmatpush1.msra.mxu0 0.0
      %3630 = vmatprep.subr.mxu0 0.0
      %3631 = vmatpush1.msra.mxu0 0.0
      %3632 = vmatprep.subr.mxu0 0.0
      %3633 = vmatpush1.msra.mxu0 0.0
      %3634 = vmatprep.subr.mxu0 0.0
      %3635 = vmatpush1.msra.mxu0 0.0
      %3636 = vmatprep.subr.mxu0 0.0
      %3637 = vmatpush1.msra.mxu0 0.0
      %3638 = vmatprep.subr.mxu0 0.0
      %3639 = vmatpush1.msra.mxu0 0.0
      %3640 = vmatprep.subr.mxu0 0.0
      %3641 = vmatpush1.msra.mxu0 0.0
      %3642 = vmatprep.subr.mxu0 0.0
      %3643 = vmatpush1.msra.mxu0 0.0
      %3644 = vmatprep.subr.mxu0 0.0
      %3645 = vmatpush1.msra.mxu0 0.0
      %3646 = vmatprep.subr.mxu0 0.0
      %3647 = vmatpush1.msra.mxu0 0.0
      %3648 = vmatprep.subr.mxu0 0.0
      %3649 = vmatpush1.msra.mxu0 0.0
      %3650 = vmatprep.subr.mxu0 0.0
      %3651 = vmatpush1.msra.mxu0 0.0
      %3652 = vmatprep.subr.mxu0 0.0
      %3653 = vmatpush1.msra.mxu0 0.0
      %3654 = vmatprep.subr.mxu0 0.0
      %3655 = vmatpush1.msra.mxu0 0.0
      %3656 = vmatprep.subr.mxu0 0.0
      %3657 = vmatpush1.msra.mxu0 0.0
      %3658 = vmatprep.mubr.f32.mxu0 0.0
      %3659 = vmatmul.mubr.f32.gmra.mrb[0].mxu0 %v765
      %v3660 = vpop.f32.mrb[0].mxu0
      %v3661 = vadd.f32 0.0, %v3660
      %v3662 = vpop.f32.mrb[0].mxu0
      %3663 = vmatprep.mubr.f32.mxu0 0.0
      %3664 = vmatmul.mubr.f32.gmra.mrb[0].mxu0 %v768
      %v3665 = vpop.f32.mrb[0].mxu0
      %v3666 = vadd.f32 0.0, %v3665
      %v3667 = vpop.f32.mrb[0].mxu0
      %3668 = vdwg.mxu0
      %s3669 = scalar_lea.vmem %s6, 4
      %v3670 = vld [vmem:[%s3669] sm:$0x1]
      %v3672 = vlaneseq
      %v3673 = vshrl.u32 %v3672, 7
      %v3674 = vsub.s32 0, %v3673
      %v3675 = vrot.slane %v3670, %v3674
      %v3677 = vmul.f32 %v3661, %v3675
      %v3678 = vmul.f32 %v3666, %v3675
      %v3679 = vadd.f32 %v3593, %v3677
      %v3680 = vadd.f32 %v3593, %v3678
      %3681 = vmatprep.subr.mxu0 0.0
      %3682 = vmatpush1.msra.mxu0 %v3577
      %3683 = vmatprep.subr.mxu0 0.0
      %3684 = vmatpush1.msra.mxu0 %v3582
      %3685 = vmatprep.subr.mxu0 0.0
      %3686 = vmatpush1.msra.mxu0 0.0
      %3687 = vmatprep.subr.mxu0 0.0
      %3688 = vmatpush1.msra.mxu0 0.0
      %3689 = vmatprep.subr.mxu0 0.0
      %3690 = vmatpush1.msra.mxu0 0.0
      %3691 = vmatprep.subr.mxu0 0.0
      %3692 = vmatpush1.msra.mxu0 0.0
      %3693 = vmatprep.subr.mxu0 0.0
      %3694 = vmatpush1.msra.mxu0 0.0
      %3695 = vmatprep.subr.mxu0 0.0
      %3696 = vmatpush1.msra.mxu0 0.0
      %3697 = vmatprep.subr.mxu0 0.0
      %3698 = vmatpush1.msra.mxu0 0.0
      %3699 = vmatprep.subr.mxu0 0.0
      %3700 = vmatpush1.msra.mxu0 0.0
      %3701 = vmatprep.subr.mxu0 0.0
      %3702 = vmatpush1.msra.mxu0 0.0
      %3703 = vmatprep.subr.mxu0 0.0
      %3704 = vmatpush1.msra.mxu0 0.0
      %3705 = vmatprep.subr.mxu0 0.0
      %3706 = vmatpush1.msra.mxu0 0.0
      %3707 = vmatprep.subr.mxu0 0.0
      %3708 = vmatpush1.msra.mxu0 0.0
      %3709 = vmatprep.subr.mxu0 0.0
      %3710 = vmatpush1.msra.mxu0 0.0
      %3711 = vmatprep.subr.mxu0 0.0
      %3712 = vmatpush1.msra.mxu0 0.0
      %3713 = vmatprep.subr.mxu0 0.0
      %3714 = vmatpush1.msra.mxu0 0.0
      %3715 = vmatprep.subr.mxu0 0.0
      %3716 = vmatpush1.msra.mxu0 0.0
      %3717 = vmatprep.subr.mxu0 0.0
      %3718 = vmatpush1.msra.mxu0 0.0
      %3719 = vmatprep.subr.mxu0 0.0
      %3720 = vmatpush1.msra.mxu0 0.0
      %3721 = vmatprep.subr.mxu0 0.0
      %3722 = vmatpush1.msra.mxu0 0.0
      %3723 = vmatprep.subr.mxu0 0.0
      %3724 = vmatpush1.msra.mxu0 0.0
      %3725 = vmatprep.subr.mxu0 0.0
      %3726 = vmatpush1.msra.mxu0 0.0
      %3727 = vmatprep.subr.mxu0 0.0
      %3728 = vmatpush1.msra.mxu0 0.0
      %3729 = vmatprep.subr.mxu0 0.0
      %3730 = vmatpush1.msra.mxu0 0.0
      %3731 = vmatprep.subr.mxu0 0.0
      %3732 = vmatpush1.msra.mxu0 0.0
      %3733 = vmatprep.subr.mxu0 0.0
      %3734 = vmatpush1.msra.mxu0 0.0
      %3735 = vmatprep.subr.mxu0 0.0
      %3736 = vmatpush1.msra.mxu0 0.0
      %3737 = vmatprep.subr.mxu0 0.0
      %3738 = vmatpush1.msra.mxu0 0.0
      %3739 = vmatprep.subr.mxu0 0.0
      %3740 = vmatpush1.msra.mxu0 0.0
      %3741 = vmatprep.subr.mxu0 0.0
      %3742 = vmatpush1.msra.mxu0 0.0
      %3743 = vmatprep.subr.mxu0 0.0
      %3744 = vmatpush1.msra.mxu0 0.0
      %3745 = vmatprep.mubr.f32.mxu0 0.0
      %3746 = vmatmul.mubr.f32.gmra.mrb[0].mxu0 %v857
      %v3747 = vpop.f32.mrb[0].mxu0
      %v3748 = vadd.f32 0.0, %v3747
      %v3749 = vpop.f32.mrb[0].mxu0
      %3750 = vmatprep.mubr.f32.mxu0 0.0
      %3751 = vmatmul.mubr.f32.gmra.mrb[0].mxu0 %v860
      %v3752 = vpop.f32.mrb[0].mxu0
      %v3753 = vadd.f32 0.0, %v3752
      %v3754 = vpop.f32.mrb[0].mxu0
      %3755 = vdwg.mxu0
      %s3756 = scalar_lea.vmem %s6, 5
      %v3757 = vld [vmem:[%s3756] sm:$0x1]
      %v3759 = vlaneseq
      %v3760 = vshrl.u32 %v3759, 7
      %v3761 = vsub.s32 0, %v3760
      %v3762 = vrot.slane %v3757, %v3761
      %v3764 = vmul.f32 %v3748, %v3762
      %v3765 = vmul.f32 %v3753, %v3762
      %v3766 = vadd.f32 %v3679, %v3764
      %v3767 = vadd.f32 %v3680, %v3765
      %3768 = vmatprep.subr.mxu0 0.0
      %3769 = vmatpush1.msra.mxu0 %v3577
      %3770 = vmatprep.subr.mxu0 0.0
      %3771 = vmatpush1.msra.mxu0 %v3582
      %3772 = vmatprep.subr.mxu0 0.0
      %3773 = vmatpush1.msra.mxu0 0.0
      %3774 = vmatprep.subr.mxu0 0.0
      %3775 = vmatpush1.msra.mxu0 0.0
      %3776 = vmatprep.subr.mxu0 0.0
      %3777 = vmatpush1.msra.mxu0 0.0
      %3778 = vmatprep.subr.mxu0 0.0
      %3779 = vmatpush1.msra.mxu0 0.0
      %3780 = vmatprep.subr.mxu0 0.0
      %3781 = vmatpush1.msra.mxu0 0.0
      %3782 = vmatprep.subr.mxu0 0.0
      %3783 = vmatpush1.msra.mxu0 0.0
      %3784 = vmatprep.subr.mxu0 0.0
      %3785 = vmatpush1.msra.mxu0 0.0
      %3786 = vmatprep.subr.mxu0 0.0
      %3787 = vmatpush1.msra.mxu0 0.0
      %3788 = vmatprep.subr.mxu0 0.0
      %3789 = vmatpush1.msra.mxu0 0.0
      %3790 = vmatprep.subr.mxu0 0.0
      %3791 = vmatpush1.msra.mxu0 0.0
      %3792 = vmatprep.subr.mxu0 0.0
      %3793 = vmatpush1.msra.mxu0 0.0
      %3794 = vmatprep.subr.mxu0 0.0
      %3795 = vmatpush1.msra.mxu0 0.0
      %3796 = vmatprep.subr.mxu0 0.0
      %3797 = vmatpush1.msra.mxu0 0.0
      %3798 = vmatprep.subr.mxu0 0.0
      %3799 = vmatpush1.msra.mxu0 0.0
      %3800 = vmatprep.subr.mxu0 0.0
      %3801 = vmatpush1.msra.mxu0 0.0
      %3802 = vmatprep.subr.mxu0 0.0
      %3803 = vmatpush1.msra.mxu0 0.0
      %3804 = vmatprep.subr.mxu0 0.0
      %3805 = vmatpush1.msra.mxu0 0.0
      %3806 = vmatprep.subr.mxu0 0.0
      %3807 = vmatpush1.msra.mxu0 0.0
      %3808 = vmatprep.subr.mxu0 0.0
      %3809 = vmatpush1.msra.mxu0 0.0
      %3810 = vmatprep.subr.mxu0 0.0
      %3811 = vmatpush1.msra.mxu0 0.0
      %3812 = vmatprep.subr.mxu0 0.0
      %3813 = vmatpush1.msra.mxu0 0.0
      %3814 = vmatprep.subr.mxu0 0.0
      %3815 = vmatpush1.msra.mxu0 0.0
      %3816 = vmatprep.subr.mxu0 0.0
      %3817 = vmatpush1.msra.mxu0 0.0
      %3818 = vmatprep.subr.mxu0 0.0
      %3819 = vmatpush1.msra.mxu0 0.0
      %3820 = vmatprep.subr.mxu0 0.0
      %3821 = vmatpush1.msra.mxu0 0.0
      %3822 = vmatprep.subr.mxu0 0.0
      %3823 = vmatpush1.msra.mxu0 0.0
      %3824 = vmatprep.subr.mxu0 0.0
      %3825 = vmatpush1.msra.mxu0 0.0
      %3826 = vmatprep.subr.mxu0 0.0
      %3827 = vmatpush1.msra.mxu0 0.0
      %3828 = vmatprep.subr.mxu0 0.0
      %3829 = vmatpush1.msra.mxu0 0.0
      %3830 = vmatprep.subr.mxu0 0.0
      %3831 = vmatpush1.msra.mxu0 0.0
      %3832 = vmatprep.mubr.f32.mxu0 0.0
      %3833 = vmatmul.mubr.f32.gmra.mrb[0].mxu0 %v950
      %v3834 = vpop.f32.mrb[0].mxu0
      %v3835 = vadd.f32 0.0, %v3834
      %v3836 = vpop.f32.mrb[0].mxu0
      %3837 = vmatprep.mubr.f32.mxu0 0.0
      %3838 = vmatmul.mubr.f32.gmra.mrb[0].mxu0 %v953
      %v3839 = vpop.f32.mrb[0].mxu0
      %v3840 = vadd.f32 0.0, %v3839
      %v3841 = vpop.f32.mrb[0].mxu0
      %3842 = vdwg.mxu0
      %s3843 = scalar_lea.vmem %s6, 6
      %v3844 = vld [vmem:[%s3843] sm:$0x1]
      %v3846 = vlaneseq
      %v3847 = vshrl.u32 %v3846, 7
      %v3848 = vsub.s32 0, %v3847
      %v3849 = vrot.slane %v3844, %v3848
      %v3851 = vmul.f32 %v3835, %v3849
      %v3852 = vmul.f32 %v3840, %v3849
      %v3853 = vadd.f32 %v3766, %v3851
      %v3854 = vadd.f32 %v3767, %v3852
      %3855 = vmatprep.subr.mxu0 0.0
      %3856 = vmatpush1.msra.mxu0 %v3577
      %3857 = vmatprep.subr.mxu0 0.0
      %3858 = vmatpush1.msra.mxu0 %v3582
      %3859 = vmatprep.subr.mxu0 0.0
      %3860 = vmatpush1.msra.mxu0 0.0
      %3861 = vmatprep.subr.mxu0 0.0
      %3862 = vmatpush1.msra.mxu0 0.0
      %3863 = vmatprep.subr.mxu0 0.0
      %3864 = vmatpush1.msra.mxu0 0.0
      %3865 = vmatprep.subr.mxu0 0.0
      %3866 = vmatpush1.msra.mxu0 0.0
      %3867 = vmatprep.subr.mxu0 0.0
      %3868 = vmatpush1.msra.mxu0 0.0
      %3869 = vmatprep.subr.mxu0 0.0
      %3870 = vmatpush1.msra.mxu0 0.0
      %3871 = vmatprep.subr.mxu0 0.0
      %3872 = vmatpush1.msra.mxu0 0.0
      %3873 = vmatprep.subr.mxu0 0.0
      %3874 = vmatpush1.msra.mxu0 0.0
      %3875 = vmatprep.subr.mxu0 0.0
      %3876 = vmatpush1.msra.mxu0 0.0
      %3877 = vmatprep.subr.mxu0 0.0
      %3878 = vmatpush1.msra.mxu0 0.0
      %3879 = vmatprep.subr.mxu0 0.0
      %3880 = vmatpush1.msra.mxu0 0.0
      %3881 = vmatprep.subr.mxu0 0.0
      %3882 = vmatpush1.msra.mxu0 0.0
      %3883 = vmatprep.subr.mxu0 0.0
      %3884 = vmatpush1.msra.mxu0 0.0
      %3885 = vmatprep.subr.mxu0 0.0
      %3886 = vmatpush1.msra.mxu0 0.0
      %3887 = vmatprep.subr.mxu0 0.0
      %3888 = vmatpush1.msra.mxu0 0.0
      %3889 = vmatprep.subr.mxu0 0.0
      %3890 = vmatpush1.msra.mxu0 0.0
      %3891 = vmatprep.subr.mxu0 0.0
      %3892 = vmatpush1.msra.mxu0 0.0
      %3893 = vmatprep.subr.mxu0 0.0
      %3894 = vmatpush1.msra.mxu0 0.0
      %3895 = vmatprep.subr.mxu0 0.0
      %3896 = vmatpush1.msra.mxu0 0.0
      %3897 = vmatprep.subr.mxu0 0.0
      %3898 = vmatpush1.msra.mxu0 0.0
      %3899 = vmatprep.subr.mxu0 0.0
      %3900 = vmatpush1.msra.mxu0 0.0
      %3901 = vmatprep.subr.mxu0 0.0
      %3902 = vmatpush1.msra.mxu0 0.0
      %3903 = vmatprep.subr.mxu0 0.0
      %3904 = vmatpush1.msra.mxu0 0.0
      %3905 = vmatprep.subr.mxu0 0.0
      %3906 = vmatpush1.msra.mxu0 0.0
      %3907 = vmatprep.subr.mxu0 0.0
      %3908 = vmatpush1.msra.mxu0 0.0
      %3909 = vmatprep.subr.mxu0 0.0
      %3910 = vmatpush1.msra.mxu0 0.0
      %3911 = vmatprep.subr.mxu0 0.0
      %3912 = vmatpush1.msra.mxu0 0.0
      %3913 = vmatprep.subr.mxu0 0.0
      %3914 = vmatpush1.msra.mxu0 0.0
      %3915 = vmatprep.subr.mxu0 0.0
      %3916 = vmatpush1.msra.mxu0 0.0
      %3917 = vmatprep.subr.mxu0 0.0
      %3918 = vmatpush1.msra.mxu0 0.0
      %3919 = vmatprep.mubr.f32.mxu0 0.0
      %3920 = vmatmul.mubr.f32.gmra.mrb[0].mxu0 %v1043
      %v3921 = vpop.f32.mrb[0].mxu0
      %v3922 = vadd.f32 0.0, %v3921
      %v3923 = vpop.f32.mrb[0].mxu0
      %3924 = vmatprep.mubr.f32.mxu0 0.0
      %3925 = vmatmul.mubr.f32.gmra.mrb[0].mxu0 %v1046
      %v3926 = vpop.f32.mrb[0].mxu0
      %v3927 = vadd.f32 0.0, %v3926
      %v3928 = vpop.f32.mrb[0].mxu0
      %3929 = vdwg.mxu0
      %s3930 = scalar_lea.vmem %s6, 7
      %v3931 = vld [vmem:[%s3930] sm:$0x1]
      %v3933 = vlaneseq
      %v3934 = vshrl.u32 %v3933, 7
      %v3935 = vsub.s32 0, %v3934
      %v3936 = vrot.slane %v3931, %v3935
      %v3938 = vmul.f32 %v3922, %v3936
      %v3939 = vmul.f32 %v3927, %v3936
      %v3940 = vadd.f32 %v3853, %v3938
      %v3941 = vadd.f32 %v3854, %v3939
      %s3942 = scalar_lea.vmem %s8, 16
      %v3943 = vld [vmem:[%s3942] sm:$0xff]
      %v3944 = vld [vmem:[%s3942 + $0x8] sm:$0xff]
      %s3945 = scalar_lea.vmem %s9, 1
      %v3946 = vld [vmem:[%s3945] sm:$0x1]
      %v3948 = vlaneseq
      %v3949 = vshrl.u32 %v3948, 7
      %v3950 = vsub.s32 0, %v3949
      %v3951 = vrot.slane %v3946, %v3950
      %v3954 = vsel %vm763, %v3940, 0
      %v3957 = vsel %vm763, %v3941, 0
      %3959 = vmatprep.subr.mxu0 0.0
      %3960 = vmatpush1.msra.mxu0 %v3943
      %3961 = vmatprep.subr.mxu0 0.0
      %3962 = vmatpush1.msra.mxu0 %v3944
      %3963 = vmatprep.subr.mxu0 0.0
      %3964 = vmatpush1.msra.mxu0 0.0
      %3965 = vmatprep.subr.mxu0 0.0
      %3966 = vmatpush1.msra.mxu0 0.0
      %3967 = vmatprep.subr.mxu0 0.0
      %3968 = vmatpush1.msra.mxu0 0.0
      %3969 = vmatprep.subr.mxu0 0.0
      %3970 = vmatpush1.msra.mxu0 0.0
      %3971 = vmatprep.subr.mxu0 0.0
      %3972 = vmatpush1.msra.mxu0 0.0
      %3973 = vmatprep.subr.mxu0 0.0
      %3974 = vmatpush1.msra.mxu0 0.0
      %3975 = vmatprep.subr.mxu0 0.0
      %3976 = vmatpush1.msra.mxu0 0.0
      %3977 = vmatprep.subr.mxu0 0.0
      %3978 = vmatpush1.msra.mxu0 0.0
      %3979 = vmatprep.subr.mxu0 0.0
      %3980 = vmatpush1.msra.mxu0 0.0
      %3981 = vmatprep.subr.mxu0 0.0
      %3982 = vmatpush1.msra.mxu0 0.0
      %3983 = vmatprep.subr.mxu0 0.0
      %3984 = vmatpush1.msra.mxu0 0.0
      %3985 = vmatprep.subr.mxu0 0.0
      %3986 = vmatpush1.msra.mxu0 0.0
      %3987 = vmatprep.subr.mxu0 0.0
      %3988 = vmatpush1.msra.mxu0 0.0
      %3989 = vmatprep.subr.mxu0 0.0
      %3990 = vmatpush1.msra.mxu0 0.0
      %3991 = vmatprep.subr.mxu0 0.0
      %3992 = vmatpush1.msra.mxu0 0.0
      %3993 = vmatprep.subr.mxu0 0.0
      %3994 = vmatpush1.msra.mxu0 0.0
      %3995 = vmatprep.subr.mxu0 0.0
      %3996 = vmatpush1.msra.mxu0 0.0
      %3997 = vmatprep.subr.mxu0 0.0
      %3998 = vmatpush1.msra.mxu0 0.0
      %3999 = vmatprep.subr.mxu0 0.0
      %4000 = vmatpush1.msra.mxu0 0.0
      %4001 = vmatprep.subr.mxu0 0.0
      %4002 = vmatpush1.msra.mxu0 0.0
      %4003 = vmatprep.subr.mxu0 0.0
      %4004 = vmatpush1.msra.mxu0 0.0
      %4005 = vmatprep.subr.mxu0 0.0
      %4006 = vmatpush1.msra.mxu0 0.0
      %4007 = vmatprep.subr.mxu0 0.0
      %4008 = vmatpush1.msra.mxu0 0.0
      %4009 = vmatprep.subr.mxu0 0.0
      %4010 = vmatpush1.msra.mxu0 0.0
      %4011 = vmatprep.subr.mxu0 0.0
      %4012 = vmatpush1.msra.mxu0 0.0
      %4013 = vmatprep.subr.mxu0 0.0
      %4014 = vmatpush1.msra.mxu0 0.0
      %4015 = vmatprep.subr.mxu0 0.0
      %4016 = vmatpush1.msra.mxu0 0.0
      %4017 = vmatprep.subr.mxu0 0.0
      %4018 = vmatpush1.msra.mxu0 0.0
      %4019 = vmatprep.subr.mxu0 0.0
      %4020 = vmatpush1.msra.mxu0 0.0
      %4021 = vmatprep.subr.mxu0 0.0
      %4022 = vmatpush1.msra.mxu0 0.0
      %4023 = vmatprep.mubr.f32.mxu0 0.0
      %4024 = vmatmul.mubr.f32.gmra.mrb[0].mxu0 %v3954
      %v4025 = vpop.f32.mrb[0].mxu0
      %v4026 = vadd.f32 %v3951, %v4025
      %v4027 = vpop.f32.mrb[0].mxu0
      %4028 = vmatprep.mubr.f32.mxu0 0.0
      %4029 = vmatmul.mubr.f32.gmra.mrb[0].mxu0 %v3957
      %v4030 = vpop.f32.mrb[0].mxu0
      %v4031 = vadd.f32 %v3951, %v4030
      %v4032 = vpop.f32.mrb[0].mxu0
      %4033 = vdwg.mxu0
      %v4034 = vxor.u32 %v4026, 2147483648
      %v4035 = vxor.u32 %v4031, 2147483648
      %v4036 = vmul.f32 %v4034, 1.442695
      %v4037 = vpow.pop %v4036
      %v4038 = vmul.f32 %v4035, 1.442695
      %v4039 = vpow.pop %v4038
      %v4040 = vadd.f32 %v4037, 1.0
      %v4041 = vadd.f32 %v4039, 1.0
      %v4042 = vrcp.pop %v4040
      %v4043 = vmul.f32 1.0, %v4042
      %v4044 = vrcp.pop %v4041
      %v4045 = vmul.f32 1.0, %v4044
      %s4046 = scalar_lea.vmem %s10, 400
      %v4047 = vld [vmem:[%s4046] sm:$0xff]
      %v4048 = vld [vmem:[%s4046 + $0x8] sm:$0xff]
      %v4049 = vadd.f32 %v4047, 0.0
      %v4050 = vadd.f32 %v4048, 0.0
      %s4051 = scalar_lea.vmem %s10, 416
      %v4052 = vld [vmem:[%s4051] sm:$0xff]
      %v4053 = vld [vmem:[%s4051 + $0x8] sm:$0xff]
      %4055 = vset.pattern.permute.xlu0 0
      %4056 = vperm.xlu0 %4055, %v4043
      %v4057 = vpop.permute.xlu0 %4056
      %4060 = vset.pattern.permute.xlu0 0
      %4061 = vperm.xlu0 %4060, %v4045
      %v4062 = vpop.permute.xlu0 %4061
      %v4064 = vmul.f32 %v4057, %v4052
      %v4065 = vmul.f32 %v4062, %v4053
      %v4066 = vadd.f32 %v4049, %v4064
      %v4067 = vadd.f32 %v4050, %v4065
      %v4068 = vmul.f32 %v4043, %v4043
      %v4069 = vmul.f32 %v4045, %v4045
      %s4070 = scalar_lea.vmem %s10, 432
      %v4071 = vld [vmem:[%s4070] sm:$0xff]
      %v4072 = vld [vmem:[%s4070 + $0x8] sm:$0xff]
      %4074 = vset.pattern.permute.xlu0 0
      %4075 = vperm.xlu0 %4074, %v4068
      %v4076 = vpop.permute.xlu0 %4075
      %4079 = vset.pattern.permute.xlu0 0
      %4080 = vperm.xlu0 %4079, %v4069
      %v4081 = vpop.permute.xlu0 %4080
      %v4083 = vmul.f32 %v4076, %v4071
      %v4084 = vmul.f32 %v4081, %v4072
      %v4085 = vadd.f32 %v4066, %v4083
      %v4086 = vadd.f32 %v4067, %v4084
      %v4087 = vmul.f32 %v4068, %v4043
      %v4088 = vmul.f32 %v4069, %v4045
      %s4089 = scalar_lea.vmem %s10, 448
      %v4090 = vld [vmem:[%s4089] sm:$0xff]
      %v4091 = vld [vmem:[%s4089 + $0x8] sm:$0xff]
      %4093 = vset.pattern.permute.xlu0 0
      %4094 = vperm.xlu0 %4093, %v4087
      %v4095 = vpop.permute.xlu0 %4094
      %4098 = vset.pattern.permute.xlu0 0
      %4099 = vperm.xlu0 %4098, %v4088
      %v4100 = vpop.permute.xlu0 %4099
      %v4102 = vmul.f32 %v4095, %v4090
      %v4103 = vmul.f32 %v4100, %v4091
      %v4104 = vadd.f32 %v4085, %v4102
      %v4105 = vadd.f32 %v4086, %v4103
      %v4106 = vmul.f32 %v4087, %v4043
      %v4107 = vmul.f32 %v4088, %v4045
      %s4108 = scalar_lea.vmem %s10, 464
      %v4109 = vld [vmem:[%s4108] sm:$0xff]
      %v4110 = vld [vmem:[%s4108 + $0x8] sm:$0xff]
      %4112 = vset.pattern.permute.xlu0 0
      %4113 = vperm.xlu0 %4112, %v4106
      %v4114 = vpop.permute.xlu0 %4113
      %4117 = vset.pattern.permute.xlu0 0
      %4118 = vperm.xlu0 %4117, %v4107
      %v4119 = vpop.permute.xlu0 %4118
      %v4121 = vmul.f32 %v4114, %v4109
      %v4122 = vmul.f32 %v4119, %v4110
      %v4123 = vadd.f32 %v4104, %v4121
      %v4124 = vadd.f32 %v4105, %v4122
      %v4125 = vmul.f32 %v4106, %v4043
      %v4126 = vmul.f32 %v4107, %v4045
      %s4127 = scalar_lea.vmem %s10, 480
      %v4128 = vld [vmem:[%s4127] sm:$0xff]
      %v4129 = vld [vmem:[%s4127 + $0x8] sm:$0xff]
      %4131 = vset.pattern.permute.xlu0 0
      %4132 = vperm.xlu0 %4131, %v4125
      %v4133 = vpop.permute.xlu0 %4132
      %4136 = vset.pattern.permute.xlu0 0
      %4137 = vperm.xlu0 %4136, %v4126
      %v4138 = vpop.permute.xlu0 %4137
      %v4140 = vmul.f32 %v4133, %v4128
      %v4141 = vmul.f32 %v4138, %v4129
      %v4142 = vadd.f32 %v4123, %v4140
      %v4143 = vadd.f32 %v4124, %v4141
      %v4144 = vmul.f32 %v4125, %v4043
      %v4145 = vmul.f32 %v4126, %v4045
      %s4146 = scalar_lea.vmem %s10, 496
      %v4147 = vld [vmem:[%s4146] sm:$0xff]
      %v4148 = vld [vmem:[%s4146 + $0x8] sm:$0xff]
      %4150 = vset.pattern.permute.xlu0 0
      %4151 = vperm.xlu0 %4150, %v4144
      %v4152 = vpop.permute.xlu0 %4151
      %4155 = vset.pattern.permute.xlu0 0
      %4156 = vperm.xlu0 %4155, %v4145
      %v4157 = vpop.permute.xlu0 %4156
      %v4159 = vmul.f32 %v4152, %v4147
      %v4160 = vmul.f32 %v4157, %v4148
      %v4161 = vadd.f32 %v4142, %v4159
      %v4162 = vadd.f32 %v4143, %v4160
      %v4163 = vmul.f32 %v4144, %v4043
      %v4164 = vmul.f32 %v4145, %v4045
      %s4165 = scalar_lea.vmem %s10, 512
      %v4166 = vld [vmem:[%s4165] sm:$0xff]
      %v4167 = vld [vmem:[%s4165 + $0x8] sm:$0xff]
      %4169 = vset.pattern.permute.xlu0 0
      %4170 = vperm.xlu0 %4169, %v4163
      %v4171 = vpop.permute.xlu0 %4170
      %4174 = vset.pattern.permute.xlu0 0
      %4175 = vperm.xlu0 %4174, %v4164
      %v4176 = vpop.permute.xlu0 %4175
      %v4178 = vmul.f32 %v4171, %v4166
      %v4179 = vmul.f32 %v4176, %v4167
      %v4180 = vadd.f32 %v4161, %v4178
      %v4181 = vadd.f32 %v4162, %v4179
      %v4182 = vmul.f32 %v4163, %v4043
      %v4183 = vmul.f32 %v4164, %v4045
      %s4184 = scalar_lea.vmem %s10, 528
      %v4185 = vld [vmem:[%s4184] sm:$0xff]
      %v4186 = vld [vmem:[%s4184 + $0x8] sm:$0xff]
      %4188 = vset.pattern.permute.xlu0 0
      %4189 = vperm.xlu0 %4188, %v4182
      %v4190 = vpop.permute.xlu0 %4189
      %4193 = vset.pattern.permute.xlu0 0
      %4194 = vperm.xlu0 %4193, %v4183
      %v4195 = vpop.permute.xlu0 %4194
      %v4197 = vmul.f32 %v4190, %v4185
      %v4198 = vmul.f32 %v4195, %v4186
      %v4199 = vadd.f32 %v4180, %v4197
      %v4200 = vadd.f32 %v4181, %v4198
      %v4201 = vmul.f32 %v4182, %v4043
      %v4202 = vmul.f32 %v4183, %v4045
      %s4203 = scalar_lea.vmem %s10, 544
      %v4204 = vld [vmem:[%s4203] sm:$0xff]
      %v4205 = vld [vmem:[%s4203 + $0x8] sm:$0xff]
      %4207 = vset.pattern.permute.xlu0 0
      %4208 = vperm.xlu0 %4207, %v4201
      %v4209 = vpop.permute.xlu0 %4208
      %4212 = vset.pattern.permute.xlu0 0
      %4213 = vperm.xlu0 %4212, %v4202
      %v4214 = vpop.permute.xlu0 %4213
      %v4216 = vmul.f32 %v4209, %v4204
      %v4217 = vmul.f32 %v4214, %v4205
      %v4218 = vadd.f32 %v4199, %v4216
      %v4219 = vadd.f32 %v4200, %v4217
      %v4220 = vmul.f32 %v4201, %v4043
      %v4221 = vmul.f32 %v4202, %v4045
      %s4222 = scalar_lea.vmem %s10, 560
      %v4223 = vld [vmem:[%s4222] sm:$0xff]
      %v4224 = vld [vmem:[%s4222 + $0x8] sm:$0xff]
      %4226 = vset.pattern.permute.xlu0 0
      %4227 = vperm.xlu0 %4226, %v4220
      %v4228 = vpop.permute.xlu0 %4227
      %4231 = vset.pattern.permute.xlu0 0
      %4232 = vperm.xlu0 %4231, %v4221
      %v4233 = vpop.permute.xlu0 %4232
      %v4235 = vmul.f32 %v4228, %v4223
      %v4236 = vmul.f32 %v4233, %v4224
      %v4237 = vadd.f32 %v4218, %v4235
      %v4238 = vadd.f32 %v4219, %v4236
      %v4239 = vmul.f32 %v4220, %v4043
      %v4240 = vmul.f32 %v4221, %v4045
      %s4241 = scalar_lea.vmem %s10, 576
      %v4242 = vld [vmem:[%s4241] sm:$0xff]
      %v4243 = vld [vmem:[%s4241 + $0x8] sm:$0xff]
      %4245 = vset.pattern.permute.xlu0 0
      %4246 = vperm.xlu0 %4245, %v4239
      %v4247 = vpop.permute.xlu0 %4246
      %4250 = vset.pattern.permute.xlu0 0
      %4251 = vperm.xlu0 %4250, %v4240
      %v4252 = vpop.permute.xlu0 %4251
      %v4254 = vmul.f32 %v4247, %v4242
      %v4255 = vmul.f32 %v4252, %v4243
      %v4256 = vadd.f32 %v4237, %v4254
      %v4257 = vadd.f32 %v4238, %v4255
      %v4258 = vmul.f32 %v4239, %v4043
      %v4259 = vmul.f32 %v4240, %v4045
      %s4260 = scalar_lea.vmem %s10, 592
      %v4261 = vld [vmem:[%s4260] sm:$0xff]
      %v4262 = vld [vmem:[%s4260 + $0x8] sm:$0xff]
      %4264 = vset.pattern.permute.xlu0 0
      %4265 = vperm.xlu0 %4264, %v4258
      %v4266 = vpop.permute.xlu0 %4265
      %4269 = vset.pattern.permute.xlu0 0
      %4270 = vperm.xlu0 %4269, %v4259
      %v4271 = vpop.permute.xlu0 %4270
      %v4273 = vmul.f32 %v4266, %v4261
      %v4274 = vmul.f32 %v4271, %v4262
      %v4275 = vadd.f32 %v4256, %v4273
      %v4276 = vadd.f32 %v4257, %v4274
      %v4277 = vmul.f32 %v4258, %v4043
      %v4278 = vmul.f32 %v4259, %v4045
      %s4279 = scalar_lea.vmem %s10, 608
      %v4280 = vld [vmem:[%s4279] sm:$0xff]
      %v4281 = vld [vmem:[%s4279 + $0x8] sm:$0xff]
      %4283 = vset.pattern.permute.xlu0 0
      %4284 = vperm.xlu0 %4283, %v4277
      %v4285 = vpop.permute.xlu0 %4284
      %4288 = vset.pattern.permute.xlu0 0
      %4289 = vperm.xlu0 %4288, %v4278
      %v4290 = vpop.permute.xlu0 %4289
      %v4292 = vmul.f32 %v4285, %v4280
      %v4293 = vmul.f32 %v4290, %v4281
      %v4294 = vadd.f32 %v4275, %v4292
      %v4295 = vadd.f32 %v4276, %v4293
      %v4296 = vmul.f32 %v4277, %v4043
      %v4297 = vmul.f32 %v4278, %v4045
      %s4298 = scalar_lea.vmem %s10, 624
      %v4299 = vld [vmem:[%s4298] sm:$0xff]
      %v4300 = vld [vmem:[%s4298 + $0x8] sm:$0xff]
      %4302 = vset.pattern.permute.xlu0 0
      %4303 = vperm.xlu0 %4302, %v4296
      %v4304 = vpop.permute.xlu0 %4303
      %4307 = vset.pattern.permute.xlu0 0
      %4308 = vperm.xlu0 %4307, %v4297
      %v4309 = vpop.permute.xlu0 %4308
      %v4311 = vmul.f32 %v4304, %v4299
      %v4312 = vmul.f32 %v4309, %v4300
      %v4313 = vadd.f32 %v4294, %v4311
      %v4314 = vadd.f32 %v4295, %v4312
      %v4315 = vmul.f32 %v4296, %v4043
      %v4316 = vmul.f32 %v4297, %v4045
      %s4317 = scalar_lea.vmem %s10, 640
      %v4318 = vld [vmem:[%s4317] sm:$0xff]
      %v4319 = vld [vmem:[%s4317 + $0x8] sm:$0xff]
      %4321 = vset.pattern.permute.xlu0 0
      %4322 = vperm.xlu0 %4321, %v4315
      %v4323 = vpop.permute.xlu0 %4322
      %4326 = vset.pattern.permute.xlu0 0
      %4327 = vperm.xlu0 %4326, %v4316
      %v4328 = vpop.permute.xlu0 %4327
      %v4330 = vmul.f32 %v4323, %v4318
      %v4331 = vmul.f32 %v4328, %v4319
      %v4332 = vadd.f32 %v4313, %v4330
      %v4333 = vadd.f32 %v4314, %v4331
      %v4334 = vmul.f32 %v4315, %v4043
      %v4335 = vmul.f32 %v4316, %v4045
      %s4336 = scalar_lea.vmem %s10, 656
      %v4337 = vld [vmem:[%s4336] sm:$0xff]
      %v4338 = vld [vmem:[%s4336 + $0x8] sm:$0xff]
      %4340 = vset.pattern.permute.xlu0 0
      %4341 = vperm.xlu0 %4340, %v4334
      %v4342 = vpop.permute.xlu0 %4341
      %4345 = vset.pattern.permute.xlu0 0
      %4346 = vperm.xlu0 %4345, %v4335
      %v4347 = vpop.permute.xlu0 %4346
      %v4349 = vmul.f32 %v4342, %v4337
      %v4350 = vmul.f32 %v4347, %v4338
      %v4351 = vadd.f32 %v4332, %v4349
      %v4352 = vadd.f32 %v4333, %v4350
      %v4353 = vmul.f32 %v4334, %v4043
      %v4354 = vmul.f32 %v4335, %v4045
      %s4355 = scalar_lea.vmem %s10, 672
      %v4356 = vld [vmem:[%s4355] sm:$0xff]
      %v4357 = vld [vmem:[%s4355 + $0x8] sm:$0xff]
      %4359 = vset.pattern.permute.xlu0 0
      %4360 = vperm.xlu0 %4359, %v4353
      %v4361 = vpop.permute.xlu0 %4360
      %4364 = vset.pattern.permute.xlu0 0
      %4365 = vperm.xlu0 %4364, %v4354
      %v4366 = vpop.permute.xlu0 %4365
      %v4368 = vmul.f32 %v4361, %v4356
      %v4369 = vmul.f32 %v4366, %v4357
      %v4370 = vadd.f32 %v4351, %v4368
      %v4371 = vadd.f32 %v4352, %v4369
      %v4372 = vmul.f32 %v4353, %v4043
      %v4373 = vmul.f32 %v4354, %v4045
      %s4374 = scalar_lea.vmem %s10, 688
      %v4375 = vld [vmem:[%s4374] sm:$0xff]
      %v4376 = vld [vmem:[%s4374 + $0x8] sm:$0xff]
      %4378 = vset.pattern.permute.xlu0 0
      %4379 = vperm.xlu0 %4378, %v4372
      %v4380 = vpop.permute.xlu0 %4379
      %4383 = vset.pattern.permute.xlu0 0
      %4384 = vperm.xlu0 %4383, %v4373
      %v4385 = vpop.permute.xlu0 %4384
      %v4387 = vmul.f32 %v4380, %v4375
      %v4388 = vmul.f32 %v4385, %v4376
      %v4389 = vadd.f32 %v4370, %v4387
      %v4390 = vadd.f32 %v4371, %v4388
      %v4391 = vmul.f32 %v4372, %v4043
      %v4392 = vmul.f32 %v4373, %v4045
      %s4393 = scalar_lea.vmem %s10, 704
      %v4394 = vld [vmem:[%s4393] sm:$0xff]
      %v4395 = vld [vmem:[%s4393 + $0x8] sm:$0xff]
      %4397 = vset.pattern.permute.xlu0 0
      %4398 = vperm.xlu0 %4397, %v4391
      %v4399 = vpop.permute.xlu0 %4398
      %4402 = vset.pattern.permute.xlu0 0
      %4403 = vperm.xlu0 %4402, %v4392
      %v4404 = vpop.permute.xlu0 %4403
      %v4406 = vmul.f32 %v4399, %v4394
      %v4407 = vmul.f32 %v4404, %v4395
      %v4408 = vadd.f32 %v4389, %v4406
      %v4409 = vadd.f32 %v4390, %v4407
      %v4410 = vmul.f32 %v4391, %v4043
      %v4411 = vmul.f32 %v4392, %v4045
      %s4412 = scalar_lea.vmem %s10, 720
      %v4413 = vld [vmem:[%s4412] sm:$0xff]
      %v4414 = vld [vmem:[%s4412 + $0x8] sm:$0xff]
      %4416 = vset.pattern.permute.xlu0 0
      %4417 = vperm.xlu0 %4416, %v4410
      %v4418 = vpop.permute.xlu0 %4417
      %4421 = vset.pattern.permute.xlu0 0
      %4422 = vperm.xlu0 %4421, %v4411
      %v4423 = vpop.permute.xlu0 %4422
      %v4425 = vmul.f32 %v4418, %v4413
      %v4426 = vmul.f32 %v4423, %v4414
      %v4427 = vadd.f32 %v4408, %v4425
      %v4428 = vadd.f32 %v4409, %v4426
      %v4429 = vmul.f32 %v4410, %v4043
      %v4430 = vmul.f32 %v4411, %v4045
      %s4431 = scalar_lea.vmem %s10, 736
      %v4432 = vld [vmem:[%s4431] sm:$0xff]
      %v4433 = vld [vmem:[%s4431 + $0x8] sm:$0xff]
      %4435 = vset.pattern.permute.xlu0 0
      %4436 = vperm.xlu0 %4435, %v4429
      %v4437 = vpop.permute.xlu0 %4436
      %4440 = vset.pattern.permute.xlu0 0
      %4441 = vperm.xlu0 %4440, %v4430
      %v4442 = vpop.permute.xlu0 %4441
      %v4444 = vmul.f32 %v4437, %v4432
      %v4445 = vmul.f32 %v4442, %v4433
      %v4446 = vadd.f32 %v4427, %v4444
      %v4447 = vadd.f32 %v4428, %v4445
      %v4448 = vmul.f32 %v4429, %v4043
      %v4449 = vmul.f32 %v4430, %v4045
      %s4450 = scalar_lea.vmem %s10, 752
      %v4451 = vld [vmem:[%s4450] sm:$0xff]
      %v4452 = vld [vmem:[%s4450 + $0x8] sm:$0xff]
      %4454 = vset.pattern.permute.xlu0 0
      %4455 = vperm.xlu0 %4454, %v4448
      %v4456 = vpop.permute.xlu0 %4455
      %4459 = vset.pattern.permute.xlu0 0
      %4460 = vperm.xlu0 %4459, %v4449
      %v4461 = vpop.permute.xlu0 %4460
      %v4463 = vmul.f32 %v4456, %v4451
      %v4464 = vmul.f32 %v4461, %v4452
      %v4465 = vadd.f32 %v4446, %v4463
      %v4466 = vadd.f32 %v4447, %v4464
      %v4467 = vmul.f32 %v4448, %v4043
      %v4468 = vmul.f32 %v4449, %v4045
      %s4469 = scalar_lea.vmem %s10, 768
      %v4470 = vld [vmem:[%s4469] sm:$0xff]
      %v4471 = vld [vmem:[%s4469 + $0x8] sm:$0xff]
      %4473 = vset.pattern.permute.xlu0 0
      %4474 = vperm.xlu0 %4473, %v4467
      %v4475 = vpop.permute.xlu0 %4474
      %4478 = vset.pattern.permute.xlu0 0
      %4479 = vperm.xlu0 %4478, %v4468
      %v4480 = vpop.permute.xlu0 %4479
      %v4482 = vmul.f32 %v4475, %v4470
      %v4483 = vmul.f32 %v4480, %v4471
      %v4484 = vadd.f32 %v4465, %v4482
      %v4485 = vadd.f32 %v4466, %v4483
      %v4486 = vmul.f32 %v4467, %v4043
      %v4487 = vmul.f32 %v4468, %v4045
      %s4488 = scalar_lea.vmem %s10, 784
      %v4489 = vld [vmem:[%s4488] sm:$0xff]
      %v4490 = vld [vmem:[%s4488 + $0x8] sm:$0xff]
      %4492 = vset.pattern.permute.xlu0 0
      %4493 = vperm.xlu0 %4492, %v4486
      %v4494 = vpop.permute.xlu0 %4493
      %4497 = vset.pattern.permute.xlu0 0
      %4498 = vperm.xlu0 %4497, %v4487
      %v4499 = vpop.permute.xlu0 %4498
      %v4501 = vmul.f32 %v4494, %v4489
      %v4502 = vmul.f32 %v4499, %v4490
      %v4503 = vadd.f32 %v4484, %v4501
      %v4504 = vadd.f32 %v4485, %v4502
      %v4505 = vmul.f32 %v4503, 0.0
      %4507 = vrot.lane.b32.xlu0 %v4026, 127
      %v4508 = vpop.permute.xlu0 %4507
      %v4511 = vsel %vm763, %v4505, 0
      %4513 = vmatprep.subr.mxu0 0.0
      %4514 = vmatpush1.msra.mxu0 %v581
      %4515 = vmatprep.subr.mxu0 0.0
      %4516 = vmatpush1.msra.mxu0 %v582
      %4517 = vmatprep.subr.mxu0 0.0
      %4518 = vmatpush1.msra.mxu0 0.0
      %4519 = vmatprep.subr.mxu0 0.0
      %4520 = vmatpush1.msra.mxu0 0.0
      %4521 = vmatprep.subr.mxu0 0.0
      %4522 = vmatpush1.msra.mxu0 0.0
      %4523 = vmatprep.subr.mxu0 0.0
      %4524 = vmatpush1.msra.mxu0 0.0
      %4525 = vmatprep.subr.mxu0 0.0
      %4526 = vmatpush1.msra.mxu0 0.0
      %4527 = vmatprep.subr.mxu0 0.0
      %4528 = vmatpush1.msra.mxu0 0.0
      %4529 = vmatprep.subr.mxu0 0.0
      %4530 = vmatpush1.msra.mxu0 0.0
      %4531 = vmatprep.subr.mxu0 0.0
      %4532 = vmatpush1.msra.mxu0 0.0
      %4533 = vmatprep.subr.mxu0 0.0
      %4534 = vmatpush1.msra.mxu0 0.0
      %4535 = vmatprep.subr.mxu0 0.0
      %4536 = vmatpush1.msra.mxu0 0.0
      %4537 = vmatprep.subr.mxu0 0.0
      %4538 = vmatpush1.msra.mxu0 0.0
      %4539 = vmatprep.subr.mxu0 0.0
      %4540 = vmatpush1.msra.mxu0 0.0
      %4541 = vmatprep.subr.mxu0 0.0
      %4542 = vmatpush1.msra.mxu0 0.0
      %4543 = vmatprep.subr.mxu0 0.0
      %4544 = vmatpush1.msra.mxu0 0.0
      %4545 = vmatprep.subr.mxu0 0.0
      %4546 = vmatpush1.msra.mxu0 0.0
      %4547 = vmatprep.subr.mxu0 0.0
      %4548 = vmatpush1.msra.mxu0 0.0
      %4549 = vmatprep.subr.mxu0 0.0
      %4550 = vmatpush1.msra.mxu0 0.0
      %4551 = vmatprep.subr.mxu0 0.0
      %4552 = vmatpush1.msra.mxu0 0.0
      %4553 = vmatprep.subr.mxu0 0.0
      %4554 = vmatpush1.msra.mxu0 0.0
      %4555 = vmatprep.subr.mxu0 0.0
      %4556 = vmatpush1.msra.mxu0 0.0
      %4557 = vmatprep.subr.mxu0 0.0
      %4558 = vmatpush1.msra.mxu0 0.0
      %4559 = vmatprep.subr.mxu0 0.0
      %4560 = vmatpush1.msra.mxu0 0.0
      %4561 = vmatprep.subr.mxu0 0.0
      %4562 = vmatpush1.msra.mxu0 0.0
      %4563 = vmatprep.subr.mxu0 0.0
      %4564 = vmatpush1.msra.mxu0 0.0
      %4565 = vmatprep.subr.mxu0 0.0
      %4566 = vmatpush1.msra.mxu0 0.0
      %4567 = vmatprep.subr.mxu0 0.0
      %4568 = vmatpush1.msra.mxu0 0.0
      %4569 = vmatprep.subr.mxu0 0.0
      %4570 = vmatpush1.msra.mxu0 0.0
      %4571 = vmatprep.subr.mxu0 0.0
      %4572 = vmatpush1.msra.mxu0 0.0
      %4573 = vmatprep.subr.mxu0 0.0
      %4574 = vmatpush1.msra.mxu0 0.0
      %4575 = vmatprep.subr.mxu0 0.0
      %4576 = vmatpush1.msra.mxu0 0.0
      %4577 = vmatprep.mubr.f32.mxu0 0.0
      %4578 = vmatmul.mubr.f32.gmra.mrb[0].mxu0 %v4511
      %v4579 = vpop.f32.mrb[0].mxu0
      %v4580 = vadd.f32 %v4508, %v4579
      %v4581 = vpop.f32.mrb[0].mxu0
      %4582 = vdwg.mxu0
      %4584 = vrot.lane.b32.xlu0 %v4580, 17
      %v4585 = vpop.permute.xlu0 %4584
      %v4587 = vmul.f32 %v4026, %v4585
      %4589 = vrot.lane.b32.xlu0 %v4587, 111
      %v4590 = vpop.permute.xlu0 %4589
      %v4592 = vsel %vm1782, %v4590, 0.0
      %4593 = vadd.xlane.f32.xlu0 %v4592
      %v4594 = vpop.xlane.xlu0 %4593
      %v4595 = vadd.f32 %v4594, %v4026
      %v4596 = vlaneseq
      %v4597 = vshrl.u32 %v4596, 7
      %v4598 = vsub.s32 0, %v4597
      %v4599 = vrot.slane %v4595, %v4598
      %v4600 = vsel %vm1787, %v4599, 0.0
      %v4601 = vsel %vm1788, %v4599, 0.0
      %v4602 = vrot.slane %v4580, 7
      %v4604 = vmul.f32 %v4503, %v4602
      %v4606 = vrot.slane %v4604, 1
      %v4607 = vrot.slane %v4026, 1
      %4608 = vrot.lane.b32.xlu0 %v4607, 127
      %v4609 = vpop.permute.xlu0 %4608
      %v4611 = vsel %vm763, %v4606, 0
      %4613 = vmatprep.subr.mxu0 0.0
      %4614 = vmatpush1.msra.mxu0 %v581
      %4615 = vmatprep.subr.mxu0 0.0
      %4616 = vmatpush1.msra.mxu0 %v582
      %4617 = vmatprep.subr.mxu0 0.0
      %4618 = vmatpush1.msra.mxu0 0.0
      %4619 = vmatprep.subr.mxu0 0.0
      %4620 = vmatpush1.msra.mxu0 0.0
      %4621 = vmatprep.subr.mxu0 0.0
      %4622 = vmatpush1.msra.mxu0 0.0
      %4623 = vmatprep.subr.mxu0 0.0
      %4624 = vmatpush1.msra.mxu0 0.0
      %4625 = vmatprep.subr.mxu0 0.0
      %4626 = vmatpush1.msra.mxu0 0.0
      %4627 = vmatprep.subr.mxu0 0.0
      %4628 = vmatpush1.msra.mxu0 0.0
      %4629 = vmatprep.subr.mxu0 0.0
      %4630 = vmatpush1.msra.mxu0 0.0
      %4631 = vmatprep.subr.mxu0 0.0
      %4632 = vmatpush1.msra.mxu0 0.0
      %4633 = vmatprep.subr.mxu0 0.0
      %4634 = vmatpush1.msra.mxu0 0.0
      %4635 = vmatprep.subr.mxu0 0.0
      %4636 = vmatpush1.msra.mxu0 0.0
      %4637 = vmatprep.subr.mxu0 0.0
      %4638 = vmatpush1.msra.mxu0 0.0
      %4639 = vmatprep.subr.mxu0 0.0
      %4640 = vmatpush1.msra.mxu0 0.0
      %4641 = vmatprep.subr.mxu0 0.0
      %4642 = vmatpush1.msra.mxu0 0.0
      %4643 = vmatprep.subr.mxu0 0.0
      %4644 = vmatpush1.msra.mxu0 0.0
      %4645 = vmatprep.subr.mxu0 0.0
      %4646 = vmatpush1.msra.mxu0 0.0
      %4647 = vmatprep.subr.mxu0 0.0
      %4648 = vmatpush1.msra.mxu0 0.0
      %4649 = vmatprep.subr.mxu0 0.0
      %4650 = vmatpush1.msra.mxu0 0.0
      %4651 = vmatprep.subr.mxu0 0.0
      %4652 = vmatpush1.msra.mxu0 0.0
      %4653 = vmatprep.subr.mxu0 0.0
      %4654 = vmatpush1.msra.mxu0 0.0
      %4655 = vmatprep.subr.mxu0 0.0
      %4656 = vmatpush1.msra.mxu0 0.0
      %4657 = vmatprep.subr.mxu0 0.0
      %4658 = vmatpush1.msra.mxu0 0.0
      %4659 = vmatprep.subr.mxu0 0.0
      %4660 = vmatpush1.msra.mxu0 0.0
      %4661 = vmatprep.subr.mxu0 0.0
      %4662 = vmatpush1.msra.mxu0 0.0
      %4663 = vmatprep.subr.mxu0 0.0
      %4664 = vmatpush1.msra.mxu0 0.0
      %4665 = vmatprep.subr.mxu0 0.0
      %4666 = vmatpush1.msra.mxu0 0.0
      %4667 = vmatprep.subr.mxu0 0.0
      %4668 = vmatpush1.msra.mxu0 0.0
      %4669 = vmatprep.subr.mxu0 0.0
      %4670 = vmatpush1.msra.mxu0 0.0
      %4671 = vmatprep.subr.mxu0 0.0
      %4672 = vmatpush1.msra.mxu0 0.0
      %4673 = vmatprep.subr.mxu0 0.0
      %4674 = vmatpush1.msra.mxu0 0.0
      %4675 = vmatprep.subr.mxu0 0.0
      %4676 = vmatpush1.msra.mxu0 0.0
      %4677 = vmatprep.mubr.f32.mxu0 0.0
      %4678 = vmatmul.mubr.f32.gmra.mrb[0].mxu0 %v4611
      %v4679 = vpop.f32.mrb[0].mxu0
      %v4680 = vadd.f32 %v4609, %v4679
      %v4681 = vpop.f32.mrb[0].mxu0
      %4682 = vdwg.mxu0
      %v4684 = vrot.slane %v4680, 7
      %4685 = vrot.lane.b32.xlu0 %v4684, 17
      %v4686 = vpop.permute.xlu0 %4685
      %v4688 = vmul.f32 %v4026, %v4686
      %4690 = vrot.lane.b32.xlu0 %v4688, 111
      %v4691 = vpop.permute.xlu0 %4690
      %v4693 = vsel %vm1886, %v4691, 0.0
      %4694 = vadd.xlane.f32.xlu0 %v4693
      %v4695 = vpop.xlane.xlu0 %4694
      %v4696 = vadd.f32 %v4695, %v4026
      %v4697 = vlaneseq
      %v4698 = vshrl.u32 %v4697, 7
      %v4699 = vsub.s32 1, %v4698
      %v4700 = vrot.slane %v4696, %v4699
      %v4701 = vsel %vm1891, %v4700, %v4600
      %v4702 = vsel %vm1892, %v4700, %v4601
      %v4703 = vrot.slane %v4680, 6
      %v4705 = vmul.f32 %v4503, %v4703
      %v4707 = vrot.slane %v4705, 2
      %v4708 = vrot.slane %v4026, 2
      %4709 = vrot.lane.b32.xlu0 %v4708, 127
      %v4710 = vpop.permute.xlu0 %4709
      %v4712 = vsel %vm763, %v4707, 0
      %4714 = vmatprep.subr.mxu0 0.0
      %4715 = vmatpush1.msra.mxu0 %v581
      %4716 = vmatprep.subr.mxu0 0.0
      %4717 = vmatpush1.msra.mxu0 %v582
      %4718 = vmatprep.subr.mxu0 0.0
      %4719 = vmatpush1.msra.mxu0 0.0
      %4720 = vmatprep.subr.mxu0 0.0
      %4721 = vmatpush1.msra.mxu0 0.0
      %4722 = vmatprep.subr.mxu0 0.0
      %4723 = vmatpush1.msra.mxu0 0.0
      %4724 = vmatprep.subr.mxu0 0.0
      %4725 = vmatpush1.msra.mxu0 0.0
      %4726 = vmatprep.subr.mxu0 0.0
      %4727 = vmatpush1.msra.mxu0 0.0
      %4728 = vmatprep.subr.mxu0 0.0
      %4729 = vmatpush1.msra.mxu0 0.0
      %4730 = vmatprep.subr.mxu0 0.0
      %4731 = vmatpush1.msra.mxu0 0.0
      %4732 = vmatprep.subr.mxu0 0.0
      %4733 = vmatpush1.msra.mxu0 0.0
      %4734 = vmatprep.subr.mxu0 0.0
      %4735 = vmatpush1.msra.mxu0 0.0
      %4736 = vmatprep.subr.mxu0 0.0
      %4737 = vmatpush1.msra.mxu0 0.0
      %4738 = vmatprep.subr.mxu0 0.0
      %4739 = vmatpush1.msra.mxu0 0.0
      %4740 = vmatprep.subr.mxu0 0.0
      %4741 = vmatpush1.msra.mxu0 0.0
      %4742 = vmatprep.subr.mxu0 0.0
      %4743 = vmatpush1.msra.mxu0 0.0
      %4744 = vmatprep.subr.mxu0 0.0
      %4745 = vmatpush1.msra.mxu0 0.0
      %4746 = vmatprep.subr.mxu0 0.0
      %4747 = vmatpush1.msra.mxu0 0.0
      %4748 = vmatprep.subr.mxu0 0.0
      %4749 = vmatpush1.msra.mxu0 0.0
      %4750 = vmatprep.subr.mxu0 0.0
      %4751 = vmatpush1.msra.mxu0 0.0
      %4752 = vmatprep.subr.mxu0 0.0
      %4753 = vmatpush1.msra.mxu0 0.0
      %4754 = vmatprep.subr.mxu0 0.0
      %4755 = vmatpush1.msra.mxu0 0.0
      %4756 = vmatprep.subr.mxu0 0.0
      %4757 = vmatpush1.msra.mxu0 0.0
      %4758 = vmatprep.subr.mxu0 0.0
      %4759 = vmatpush1.msra.mxu0 0.0
      %4760 = vmatprep.subr.mxu0 0.0
      %4761 = vmatpush1.msra.mxu0 0.0
      %4762 = vmatprep.subr.mxu0 0.0
      %4763 = vmatpush1.msra.mxu0 0.0
      %4764 = vmatprep.subr.mxu0 0.0
      %4765 = vmatpush1.msra.mxu0 0.0
      %4766 = vmatprep.subr.mxu0 0.0
      %4767 = vmatpush1.msra.mxu0 0.0
      %4768 = vmatprep.subr.mxu0 0.0
      %4769 = vmatpush1.msra.mxu0 0.0
      %4770 = vmatprep.subr.mxu0 0.0
      %4771 = vmatpush1.msra.mxu0 0.0
      %4772 = vmatprep.subr.mxu0 0.0
      %4773 = vmatpush1.msra.mxu0 0.0
      %4774 = vmatprep.subr.mxu0 0.0
      %4775 = vmatpush1.msra.mxu0 0.0
      %4776 = vmatprep.subr.mxu0 0.0
      %4777 = vmatpush1.msra.mxu0 0.0
      %4778 = vmatprep.mubr.f32.mxu0 0.0
      %4779 = vmatmul.mubr.f32.gmra.mrb[0].mxu0 %v4712
      %v4780 = vpop.f32.mrb[0].mxu0
      %v4781 = vadd.f32 %v4710, %v4780
      %v4782 = vpop.f32.mrb[0].mxu0
      %4783 = vdwg.mxu0
      %v4785 = vrot.slane %v4781, 6
      %4786 = vrot.lane.b32.xlu0 %v4785, 17
      %v4787 = vpop.permute.xlu0 %4786
      %v4789 = vmul.f32 %v4026, %v4787
      %4791 = vrot.lane.b32.xlu0 %v4789, 111
      %v4792 = vpop.permute.xlu0 %4791
      %v4794 = vsel %vm1990, %v4792, 0.0
      %4795 = vadd.xlane.f32.xlu0 %v4794
      %v4796 = vpop.xlane.xlu0 %4795
      %v4797 = vadd.f32 %v4796, %v4026
      %v4798 = vlaneseq
      %v4799 = vshrl.u32 %v4798, 7
      %v4800 = vsub.s32 2, %v4799
      %v4801 = vrot.slane %v4797, %v4800
      %v4802 = vsel %vm1995, %v4801, %v4701
      %v4803 = vsel %vm1996, %v4801, %v4702
      %v4804 = vrot.slane %v4781, 5
      %v4806 = vmul.f32 %v4503, %v4804
      %v4808 = vrot.slane %v4806, 3
      %v4809 = vrot.slane %v4026, 3
      %4810 = vrot.lane.b32.xlu0 %v4809, 127
      %v4811 = vpop.permute.xlu0 %4810
      %v4813 = vsel %vm763, %v4808, 0
      %4815 = vmatprep.subr.mxu0 0.0
      %4816 = vmatpush1.msra.mxu0 %v581
      %4817 = vmatprep.subr.mxu0 0.0
      %4818 = vmatpush1.msra.mxu0 %v582
      %4819 = vmatprep.subr.mxu0 0.0
      %4820 = vmatpush1.msra.mxu0 0.0
      %4821 = vmatprep.subr.mxu0 0.0
      %4822 = vmatpush1.msra.mxu0 0.0
      %4823 = vmatprep.subr.mxu0 0.0
      %4824 = vmatpush1.msra.mxu0 0.0
      %4825 = vmatprep.subr.mxu0 0.0
      %4826 = vmatpush1.msra.mxu0 0.0
      %4827 = vmatprep.subr.mxu0 0.0
      %4828 = vmatpush1.msra.mxu0 0.0
      %4829 = vmatprep.subr.mxu0 0.0
      %4830 = vmatpush1.msra.mxu0 0.0
      %4831 = vmatprep.subr.mxu0 0.0
      %4832 = vmatpush1.msra.mxu0 0.0
      %4833 = vmatprep.subr.mxu0 0.0
      %4834 = vmatpush1.msra.mxu0 0.0
      %4835 = vmatprep.subr.mxu0 0.0
      %4836 = vmatpush1.msra.mxu0 0.0
      %4837 = vmatprep.subr.mxu0 0.0
      %4838 = vmatpush1.msra.mxu0 0.0
      %4839 = vmatprep.subr.mxu0 0.0
      %4840 = vmatpush1.msra.mxu0 0.0
      %4841 = vmatprep.subr.mxu0 0.0
      %4842 = vmatpush1.msra.mxu0 0.0
      %4843 = vmatprep.subr.mxu0 0.0
      %4844 = vmatpush1.msra.mxu0 0.0
      %4845 = vmatprep.subr.mxu0 0.0
      %4846 = vmatpush1.msra.mxu0 0.0
      %4847 = vmatprep.subr.mxu0 0.0
      %4848 = vmatpush1.msra.mxu0 0.0
      %4849 = vmatprep.subr.mxu0 0.0
      %4850 = vmatpush1.msra.mxu0 0.0
      %4851 = vmatprep.subr.mxu0 0.0
      %4852 = vmatpush1.msra.mxu0 0.0
      %4853 = vmatprep.subr.mxu0 0.0
      %4854 = vmatpush1.msra.mxu0 0.0
      %4855 = vmatprep.subr.mxu0 0.0
      %4856 = vmatpush1.msra.mxu0 0.0
      %4857 = vmatprep.subr.mxu0 0.0
      %4858 = vmatpush1.msra.mxu0 0.0
      %4859 = vmatprep.subr.mxu0 0.0
      %4860 = vmatpush1.msra.mxu0 0.0
      %4861 = vmatprep.subr.mxu0 0.0
      %4862 = vmatpush1.msra.mxu0 0.0
      %4863 = vmatprep.subr.mxu0 0.0
      %4864 = vmatpush1.msra.mxu0 0.0
      %4865 = vmatprep.subr.mxu0 0.0
      %4866 = vmatpush1.msra.mxu0 0.0
      %4867 = vmatprep.subr.mxu0 0.0
      %4868 = vmatpush1.msra.mxu0 0.0
      %4869 = vmatprep.subr.mxu0 0.0
      %4870 = vmatpush1.msra.mxu0 0.0
      %4871 = vmatprep.subr.mxu0 0.0
      %4872 = vmatpush1.msra.mxu0 0.0
      %4873 = vmatprep.subr.mxu0 0.0
      %4874 = vmatpush1.msra.mxu0 0.0
      %4875 = vmatprep.subr.mxu0 0.0
      %4876 = vmatpush1.msra.mxu0 0.0
      %4877 = vmatprep.subr.mxu0 0.0
      %4878 = vmatpush1.msra.mxu0 0.0
      %4879 = vmatprep.mubr.f32.mxu0 0.0
      %4880 = vmatmul.mubr.f32.gmra.mrb[0].mxu0 %v4813
      %v4881 = vpop.f32.mrb[0].mxu0
      %v4882 = vadd.f32 %v4811, %v4881
      %v4883 = vpop.f32.mrb[0].mxu0
      %4884 = vdwg.mxu0
      %v4886 = vrot.slane %v4882, 5
      %4887 = vrot.lane.b32.xlu0 %v4886, 17
      %v4888 = vpop.permute.xlu0 %4887
      %v4890 = vmul.f32 %v4026, %v4888
      %4892 = vrot.lane.b32.xlu0 %v4890, 111
      %v4893 = vpop.permute.xlu0 %4892
      %v4895 = vsel %vm2094, %v4893, 0.0
      %4896 = vadd.xlane.f32.xlu0 %v4895
      %v4897 = vpop.xlane.xlu0 %4896
      %v4898 = vadd.f32 %v4897, %v4026
      %v4899 = vlaneseq
      %v4900 = vshrl.u32 %v4899, 7
      %v4901 = vsub.s32 3, %v4900
      %v4902 = vrot.slane %v4898, %v4901
      %v4903 = vsel %vm2099, %v4902, %v4802
      %v4904 = vsel %vm2100, %v4902, %v4803
      %v4905 = vrot.slane %v4882, 4
      %v4907 = vmul.f32 %v4503, %v4905
      %v4909 = vrot.slane %v4907, 4
      %v4910 = vrot.slane %v4026, 4
      %4911 = vrot.lane.b32.xlu0 %v4910, 127
      %v4912 = vpop.permute.xlu0 %4911
      %v4914 = vsel %vm763, %v4909, 0
      %4916 = vmatprep.subr.mxu0 0.0
      %4917 = vmatpush1.msra.mxu0 %v581
      %4918 = vmatprep.subr.mxu0 0.0
      %4919 = vmatpush1.msra.mxu0 %v582
      %4920 = vmatprep.subr.mxu0 0.0
      %4921 = vmatpush1.msra.mxu0 0.0
      %4922 = vmatprep.subr.mxu0 0.0
      %4923 = vmatpush1.msra.mxu0 0.0
      %4924 = vmatprep.subr.mxu0 0.0
      %4925 = vmatpush1.msra.mxu0 0.0
      %4926 = vmatprep.subr.mxu0 0.0
      %4927 = vmatpush1.msra.mxu0 0.0
      %4928 = vmatprep.subr.mxu0 0.0
      %4929 = vmatpush1.msra.mxu0 0.0
      %4930 = vmatprep.subr.mxu0 0.0
      %4931 = vmatpush1.msra.mxu0 0.0
      %4932 = vmatprep.subr.mxu0 0.0
      %4933 = vmatpush1.msra.mxu0 0.0
      %4934 = vmatprep.subr.mxu0 0.0
      %4935 = vmatpush1.msra.mxu0 0.0
      %4936 = vmatprep.subr.mxu0 0.0
      %4937 = vmatpush1.msra.mxu0 0.0
      %4938 = vmatprep.subr.mxu0 0.0
      %4939 = vmatpush1.msra.mxu0 0.0
      %4940 = vmatprep.subr.mxu0 0.0
      %4941 = vmatpush1.msra.mxu0 0.0
      %4942 = vmatprep.subr.mxu0 0.0
      %4943 = vmatpush1.msra.mxu0 0.0
      %4944 = vmatprep.subr.mxu0 0.0
      %4945 = vmatpush1.msra.mxu0 0.0
      %4946 = vmatprep.subr.mxu0 0.0
      %4947 = vmatpush1.msra.mxu0 0.0
      %4948 = vmatprep.subr.mxu0 0.0
      %4949 = vmatpush1.msra.mxu0 0.0
      %4950 = vmatprep.subr.mxu0 0.0
      %4951 = vmatpush1.msra.mxu0 0.0
      %4952 = vmatprep.subr.mxu0 0.0
      %4953 = vmatpush1.msra.mxu0 0.0
      %4954 = vmatprep.subr.mxu0 0.0
      %4955 = vmatpush1.msra.mxu0 0.0
      %4956 = vmatprep.subr.mxu0 0.0
      %4957 = vmatpush1.msra.mxu0 0.0
      %4958 = vmatprep.subr.mxu0 0.0
      %4959 = vmatpush1.msra.mxu0 0.0
      %4960 = vmatprep.subr.mxu0 0.0
      %4961 = vmatpush1.msra.mxu0 0.0
      %4962 = vmatprep.subr.mxu0 0.0
      %4963 = vmatpush1.msra.mxu0 0.0
      %4964 = vmatprep.subr.mxu0 0.0
      %4965 = vmatpush1.msra.mxu0 0.0
      %4966 = vmatprep.subr.mxu0 0.0
      %4967 = vmatpush1.msra.mxu0 0.0
      %4968 = vmatprep.subr.mxu0 0.0
      %4969 = vmatpush1.msra.mxu0 0.0
      %4970 = vmatprep.subr.mxu0 0.0
      %4971 = vmatpush1.msra.mxu0 0.0
      %4972 = vmatprep.subr.mxu0 0.0
      %4973 = vmatpush1.msra.mxu0 0.0
      %4974 = vmatprep.subr.mxu0 0.0
      %4975 = vmatpush1.msra.mxu0 0.0
      %4976 = vmatprep.subr.mxu0 0.0
      %4977 = vmatpush1.msra.mxu0 0.0
      %4978 = vmatprep.subr.mxu0 0.0
      %4979 = vmatpush1.msra.mxu0 0.0
      %4980 = vmatprep.mubr.f32.mxu0 0.0
      %4981 = vmatmul.mubr.f32.gmra.mrb[0].mxu0 %v4914
      %v4982 = vpop.f32.mrb[0].mxu0
      %v4983 = vadd.f32 %v4912, %v4982
      %v4984 = vpop.f32.mrb[0].mxu0
      %4985 = vdwg.mxu0
      %v4987 = vrot.slane %v4983, 4
      %4988 = vrot.lane.b32.xlu0 %v4987, 17
      %v4989 = vpop.permute.xlu0 %4988
      %v4991 = vmul.f32 %v4026, %v4989
      %4993 = vrot.lane.b32.xlu0 %v4991, 111
      %v4994 = vpop.permute.xlu0 %4993
      %v4996 = vsel %vm2198, %v4994, 0.0
      %4997 = vadd.xlane.f32.xlu0 %v4996
      %v4998 = vpop.xlane.xlu0 %4997
      %v4999 = vadd.f32 %v4998, %v4026
      %v5000 = vlaneseq
      %v5001 = vshrl.u32 %v5000, 7
      %v5002 = vsub.s32 4, %v5001
      %v5003 = vrot.slane %v4999, %v5002
      %v5004 = vsel %vm2203, %v5003, %v4903
      %v5005 = vsel %vm2204, %v5003, %v4904
      %v5006 = vrot.slane %v4983, 3
      %v5008 = vmul.f32 %v4503, %v5006
      %v5010 = vrot.slane %v5008, 5
      %v5011 = vrot.slane %v4026, 5
      %5012 = vrot.lane.b32.xlu0 %v5011, 127
      %v5013 = vpop.permute.xlu0 %5012
      %v5015 = vsel %vm763, %v5010, 0
      %5017 = vmatprep.subr.mxu0 0.0
      %5018 = vmatpush1.msra.mxu0 %v581
      %5019 = vmatprep.subr.mxu0 0.0
      %5020 = vmatpush1.msra.mxu0 %v582
      %5021 = vmatprep.subr.mxu0 0.0
      %5022 = vmatpush1.msra.mxu0 0.0
      %5023 = vmatprep.subr.mxu0 0.0
      %5024 = vmatpush1.msra.mxu0 0.0
      %5025 = vmatprep.subr.mxu0 0.0
      %5026 = vmatpush1.msra.mxu0 0.0
      %5027 = vmatprep.subr.mxu0 0.0
      %5028 = vmatpush1.msra.mxu0 0.0
      %5029 = vmatprep.subr.mxu0 0.0
      %5030 = vmatpush1.msra.mxu0 0.0
      %5031 = vmatprep.subr.mxu0 0.0
      %5032 = vmatpush1.msra.mxu0 0.0
      %5033 = vmatprep.subr.mxu0 0.0
      %5034 = vmatpush1.msra.mxu0 0.0
      %5035 = vmatprep.subr.mxu0 0.0
      %5036 = vmatpush1.msra.mxu0 0.0
      %5037 = vmatprep.subr.mxu0 0.0
      %5038 = vmatpush1.msra.mxu0 0.0
      %5039 = vmatprep.subr.mxu0 0.0
      %5040 = vmatpush1.msra.mxu0 0.0
      %5041 = vmatprep.subr.mxu0 0.0
      %5042 = vmatpush1.msra.mxu0 0.0
      %5043 = vmatprep.subr.mxu0 0.0
      %5044 = vmatpush1.msra.mxu0 0.0
      %5045 = vmatprep.subr.mxu0 0.0
      %5046 = vmatpush1.msra.mxu0 0.0
      %5047 = vmatprep.subr.mxu0 0.0
      %5048 = vmatpush1.msra.mxu0 0.0
      %5049 = vmatprep.subr.mxu0 0.0
      %5050 = vmatpush1.msra.mxu0 0.0
      %5051 = vmatprep.subr.mxu0 0.0
      %5052 = vmatpush1.msra.mxu0 0.0
      %5053 = vmatprep.subr.mxu0 0.0
      %5054 = vmatpush1.msra.mxu0 0.0
      %5055 = vmatprep.subr.mxu0 0.0
      %5056 = vmatpush1.msra.mxu0 0.0
      %5057 = vmatprep.subr.mxu0 0.0
      %5058 = vmatpush1.msra.mxu0 0.0
      %5059 = vmatprep.subr.mxu0 0.0
      %5060 = vmatpush1.msra.mxu0 0.0
      %5061 = vmatprep.subr.mxu0 0.0
      %5062 = vmatpush1.msra.mxu0 0.0
      %5063 = vmatprep.subr.mxu0 0.0
      %5064 = vmatpush1.msra.mxu0 0.0
      %5065 = vmatprep.subr.mxu0 0.0
      %5066 = vmatpush1.msra.mxu0 0.0
      %5067 = vmatprep.subr.mxu0 0.0
      %5068 = vmatpush1.msra.mxu0 0.0
      %5069 = vmatprep.subr.mxu0 0.0
      %5070 = vmatpush1.msra.mxu0 0.0
      %5071 = vmatprep.subr.mxu0 0.0
      %5072 = vmatpush1.msra.mxu0 0.0
      %5073 = vmatprep.subr.mxu0 0.0
      %5074 = vmatpush1.msra.mxu0 0.0
      %5075 = vmatprep.subr.mxu0 0.0
      %5076 = vmatpush1.msra.mxu0 0.0
      %5077 = vmatprep.subr.mxu0 0.0
      %5078 = vmatpush1.msra.mxu0 0.0
      %5079 = vmatprep.subr.mxu0 0.0
      %5080 = vmatpush1.msra.mxu0 0.0
      %5081 = vmatprep.mubr.f32.mxu0 0.0
      %5082 = vmatmul.mubr.f32.gmra.mrb[0].mxu0 %v5015
      %v5083 = vpop.f32.mrb[0].mxu0
      %v5084 = vadd.f32 %v5013, %v5083
      %v5085 = vpop.f32.mrb[0].mxu0
      %5086 = vdwg.mxu0
      %v5088 = vrot.slane %v5084, 3
      %5089 = vrot.lane.b32.xlu0 %v5088, 17
      %v5090 = vpop.permute.xlu0 %5089
      %v5092 = vmul.f32 %v4026, %v5090
      %5094 = vrot.lane.b32.xlu0 %v5092, 111
      %v5095 = vpop.permute.xlu0 %5094
      %v5097 = vsel %vm2302, %v5095, 0.0
      %5098 = vadd.xlane.f32.xlu0 %v5097
      %v5099 = vpop.xlane.xlu0 %5098
      %v5100 = vadd.f32 %v5099, %v4026
      %v5101 = vlaneseq
      %v5102 = vshrl.u32 %v5101, 7
      %v5103 = vsub.s32 5, %v5102
      %v5104 = vrot.slane %v5100, %v5103
      %v5105 = vsel %vm2307, %v5104, %v5004
      %v5106 = vsel %vm2308, %v5104, %v5005
      %v5107 = vrot.slane %v5084, 2
      %v5109 = vmul.f32 %v4503, %v5107
      %v5111 = vrot.slane %v5109, 6
      %v5112 = vrot.slane %v4026, 6
      %5113 = vrot.lane.b32.xlu0 %v5112, 127
      %v5114 = vpop.permute.xlu0 %5113
      %v5116 = vsel %vm763, %v5111, 0
      %5118 = vmatprep.subr.mxu0 0.0
      %5119 = vmatpush1.msra.mxu0 %v581
      %5120 = vmatprep.subr.mxu0 0.0
      %5121 = vmatpush1.msra.mxu0 %v582
      %5122 = vmatprep.subr.mxu0 0.0
      %5123 = vmatpush1.msra.mxu0 0.0
      %5124 = vmatprep.subr.mxu0 0.0
      %5125 = vmatpush1.msra.mxu0 0.0
      %5126 = vmatprep.subr.mxu0 0.0
      %5127 = vmatpush1.msra.mxu0 0.0
      %5128 = vmatprep.subr.mxu0 0.0
      %5129 = vmatpush1.msra.mxu0 0.0
      %5130 = vmatprep.subr.mxu0 0.0
      %5131 = vmatpush1.msra.mxu0 0.0
      %5132 = vmatprep.subr.mxu0 0.0
      %5133 = vmatpush1.msra.mxu0 0.0
      %5134 = vmatprep.subr.mxu0 0.0
      %5135 = vmatpush1.msra.mxu0 0.0
      %5136 = vmatprep.subr.mxu0 0.0
      %5137 = vmatpush1.msra.mxu0 0.0
      %5138 = vmatprep.subr.mxu0 0.0
      %5139 = vmatpush1.msra.mxu0 0.0
      %5140 = vmatprep.subr.mxu0 0.0
      %5141 = vmatpush1.msra.mxu0 0.0
      %5142 = vmatprep.subr.mxu0 0.0
      %5143 = vmatpush1.msra.mxu0 0.0
      %5144 = vmatprep.subr.mxu0 0.0
      %5145 = vmatpush1.msra.mxu0 0.0
      %5146 = vmatprep.subr.mxu0 0.0
      %5147 = vmatpush1.msra.mxu0 0.0
      %5148 = vmatprep.subr.mxu0 0.0
      %5149 = vmatpush1.msra.mxu0 0.0
      %5150 = vmatprep.subr.mxu0 0.0
      %5151 = vmatpush1.msra.mxu0 0.0
      %5152 = vmatprep.subr.mxu0 0.0
      %5153 = vmatpush1.msra.mxu0 0.0
      %5154 = vmatprep.subr.mxu0 0.0
      %5155 = vmatpush1.msra.mxu0 0.0
      %5156 = vmatprep.subr.mxu0 0.0
      %5157 = vmatpush1.msra.mxu0 0.0
      %5158 = vmatprep.subr.mxu0 0.0
      %5159 = vmatpush1.msra.mxu0 0.0
      %5160 = vmatprep.subr.mxu0 0.0
      %5161 = vmatpush1.msra.mxu0 0.0
      %5162 = vmatprep.subr.mxu0 0.0
      %5163 = vmatpush1.msra.mxu0 0.0
      %5164 = vmatprep.subr.mxu0 0.0
      %5165 = vmatpush1.msra.mxu0 0.0
      %5166 = vmatprep.subr.mxu0 0.0
      %5167 = vmatpush1.msra.mxu0 0.0
      %5168 = vmatprep.subr.mxu0 0.0
      %5169 = vmatpush1.msra.mxu0 0.0
      %5170 = vmatprep.subr.mxu0 0.0
      %5171 = vmatpush1.msra.mxu0 0.0
      %5172 = vmatprep.subr.mxu0 0.0
      %5173 = vmatpush1.msra.mxu0 0.0
      %5174 = vmatprep.subr.mxu0 0.0
      %5175 = vmatpush1.msra.mxu0 0.0
      %5176 = vmatprep.subr.mxu0 0.0
      %5177 = vmatpush1.msra.mxu0 0.0
      %5178 = vmatprep.subr.mxu0 0.0
      %5179 = vmatpush1.msra.mxu0 0.0
      %5180 = vmatprep.subr.mxu0 0.0
      %5181 = vmatpush1.msra.mxu0 0.0
      %5182 = vmatprep.mubr.f32.mxu0 0.0
      %5183 = vmatmul.mubr.f32.gmra.mrb[0].mxu0 %v5116
      %v5184 = vpop.f32.mrb[0].mxu0
      %v5185 = vadd.f32 %v5114, %v5184
      %v5186 = vpop.f32.mrb[0].mxu0
      %5187 = vdwg.mxu0
      %v5189 = vrot.slane %v5185, 2
      %5190 = vrot.lane.b32.xlu0 %v5189, 17
      %v5191 = vpop.permute.xlu0 %5190
      %v5193 = vmul.f32 %v4026, %v5191
      %5195 = vrot.lane.b32.xlu0 %v5193, 111
      %v5196 = vpop.permute.xlu0 %5195
      %v5198 = vsel %vm2406, %v5196, 0.0
      %5199 = vadd.xlane.f32.xlu0 %v5198
      %v5200 = vpop.xlane.xlu0 %5199
      %v5201 = vadd.f32 %v5200, %v4026
      %v5202 = vlaneseq
      %v5203 = vshrl.u32 %v5202, 7
      %v5204 = vsub.s32 6, %v5203
      %v5205 = vrot.slane %v5201, %v5204
      %v5206 = vsel %vm2411, %v5205, %v5105
      %v5207 = vsel %vm2412, %v5205, %v5106
      %v5208 = vrot.slane %v5185, 1
      %v5210 = vmul.f32 %v4503, %v5208
      %v5212 = vrot.slane %v5210, 7
      %v5213 = vrot.slane %v4026, 7
      %5214 = vrot.lane.b32.xlu0 %v5213, 127
      %v5215 = vpop.permute.xlu0 %5214
      %v5217 = vsel %vm763, %v5212, 0
      %5219 = vmatprep.subr.mxu0 0.0
      %5220 = vmatpush1.msra.mxu0 %v581
      %5221 = vmatprep.subr.mxu0 0.0
      %5222 = vmatpush1.msra.mxu0 %v582
      %5223 = vmatprep.subr.mxu0 0.0
      %5224 = vmatpush1.msra.mxu0 0.0
      %5225 = vmatprep.subr.mxu0 0.0
      %5226 = vmatpush1.msra.mxu0 0.0
      %5227 = vmatprep.subr.mxu0 0.0
      %5228 = vmatpush1.msra.mxu0 0.0
      %5229 = vmatprep.subr.mxu0 0.0
      %5230 = vmatpush1.msra.mxu0 0.0
      %5231 = vmatprep.subr.mxu0 0.0
      %5232 = vmatpush1.msra.mxu0 0.0
      %5233 = vmatprep.subr.mxu0 0.0
      %5234 = vmatpush1.msra.mxu0 0.0
      %5235 = vmatprep.subr.mxu0 0.0
      %5236 = vmatpush1.msra.mxu0 0.0
      %5237 = vmatprep.subr.mxu0 0.0
      %5238 = vmatpush1.msra.mxu0 0.0
      %5239 = vmatprep.subr.mxu0 0.0
      %5240 = vmatpush1.msra.mxu0 0.0
      %5241 = vmatprep.subr.mxu0 0.0
      %5242 = vmatpush1.msra.mxu0 0.0
      %5243 = vmatprep.subr.mxu0 0.0
      %5244 = vmatpush1.msra.mxu0 0.0
      %5245 = vmatprep.subr.mxu0 0.0
      %5246 = vmatpush1.msra.mxu0 0.0
      %5247 = vmatprep.subr.mxu0 0.0
      %5248 = vmatpush1.msra.mxu0 0.0
      %5249 = vmatprep.subr.mxu0 0.0
      %5250 = vmatpush1.msra.mxu0 0.0
      %5251 = vmatprep.subr.mxu0 0.0
      %5252 = vmatpush1.msra.mxu0 0.0
      %5253 = vmatprep.subr.mxu0 0.0
      %5254 = vmatpush1.msra.mxu0 0.0
      %5255 = vmatprep.subr.mxu0 0.0
      %5256 = vmatpush1.msra.mxu0 0.0
      %5257 = vmatprep.subr.mxu0 0.0
      %5258 = vmatpush1.msra.mxu0 0.0
      %5259 = vmatprep.subr.mxu0 0.0
      %5260 = vmatpush1.msra.mxu0 0.0
      %5261 = vmatprep.subr.mxu0 0.0
      %5262 = vmatpush1.msra.mxu0 0.0
      %5263 = vmatprep.subr.mxu0 0.0
      %5264 = vmatpush1.msra.mxu0 0.0
      %5265 = vmatprep.subr.mxu0 0.0
      %5266 = vmatpush1.msra.mxu0 0.0
      %5267 = vmatprep.subr.mxu0 0.0
      %5268 = vmatpush1.msra.mxu0 0.0
      %5269 = vmatprep.subr.mxu0 0.0
      %5270 = vmatpush1.msra.mxu0 0.0
      %5271 = vmatprep.subr.mxu0 0.0
      %5272 = vmatpush1.msra.mxu0 0.0
      %5273 = vmatprep.subr.mxu0 0.0
      %5274 = vmatpush1.msra.mxu0 0.0
      %5275 = vmatprep.subr.mxu0 0.0
      %5276 = vmatpush1.msra.mxu0 0.0
      %5277 = vmatprep.subr.mxu0 0.0
      %5278 = vmatpush1.msra.mxu0 0.0
      %5279 = vmatprep.subr.mxu0 0.0
      %5280 = vmatpush1.msra.mxu0 0.0
      %5281 = vmatprep.subr.mxu0 0.0
      %5282 = vmatpush1.msra.mxu0 0.0
      %5283 = vmatprep.mubr.f32.mxu0 0.0
      %5284 = vmatmul.mubr.f32.gmra.mrb[0].mxu0 %v5217
      %v5285 = vpop.f32.mrb[0].mxu0
      %v5286 = vadd.f32 %v5215, %v5285
      %v5287 = vpop.f32.mrb[0].mxu0
      %5288 = vdwg.mxu0
      %v5290 = vrot.slane %v5286, 1
      %5291 = vrot.lane.b32.xlu0 %v5290, 17
      %v5292 = vpop.permute.xlu0 %5291
      %v5294 = vmul.f32 %v4026, %v5292
      %5296 = vrot.lane.b32.xlu0 %v5294, 111
      %v5297 = vpop.permute.xlu0 %5296
      %v5299 = vsel %vm2510, %v5297, 0.0
      %5300 = vadd.xlane.f32.xlu0 %v5299
      %v5301 = vpop.xlane.xlu0 %5300
      %v5302 = vadd.f32 %v5301, %v4026
      %v5303 = vlaneseq
      %v5304 = vshrl.u32 %v5303, 7
      %v5305 = vsub.s32 7, %v5304
      %v5306 = vrot.slane %v5302, %v5305
      %v5307 = vsel %vm2515, %v5306, %v5206
      %v5308 = vsel %vm2516, %v5306, %v5207
      %v5309 = vmul.f32 %v4504, %v5286
      %5311 = vrot.lane.b32.xlu0 %v4031, 127
      %v5312 = vpop.permute.xlu0 %5311
      %v5315 = vsel %vm763, %v5309, 0
      %5317 = vmatprep.subr.mxu0 0.0
      %5318 = vmatpush1.msra.mxu0 %v581
      %5319 = vmatprep.subr.mxu0 0.0
      %5320 = vmatpush1.msra.mxu0 %v582
      %5321 = vmatprep.subr.mxu0 0.0
      %5322 = vmatpush1.msra.mxu0 0.0
      %5323 = vmatprep.subr.mxu0 0.0
      %5324 = vmatpush1.msra.mxu0 0.0
      %5325 = vmatprep.subr.mxu0 0.0
      %5326 = vmatpush1.msra.mxu0 0.0
      %5327 = vmatprep.subr.mxu0 0.0
      %5328 = vmatpush1.msra.mxu0 0.0
      %5329 = vmatprep.subr.mxu0 0.0
      %5330 = vmatpush1.msra.mxu0 0.0
      %5331 = vmatprep.subr.mxu0 0.0
      %5332 = vmatpush1.msra.mxu0 0.0
      %5333 = vmatprep.subr.mxu0 0.0
      %5334 = vmatpush1.msra.mxu0 0.0
      %5335 = vmatprep.subr.mxu0 0.0
      %5336 = vmatpush1.msra.mxu0 0.0
      %5337 = vmatprep.subr.mxu0 0.0
      %5338 = vmatpush1.msra.mxu0 0.0
      %5339 = vmatprep.subr.mxu0 0.0
      %5340 = vmatpush1.msra.mxu0 0.0
      %5341 = vmatprep.subr.mxu0 0.0
      %5342 = vmatpush1.msra.mxu0 0.0
      %5343 = vmatprep.subr.mxu0 0.0
      %5344 = vmatpush1.msra.mxu0 0.0
      %5345 = vmatprep.subr.mxu0 0.0
      %5346 = vmatpush1.msra.mxu0 0.0
      %5347 = vmatprep.subr.mxu0 0.0
      %5348 = vmatpush1.msra.mxu0 0.0
      %5349 = vmatprep.subr.mxu0 0.0
      %5350 = vmatpush1.msra.mxu0 0.0
      %5351 = vmatprep.subr.mxu0 0.0
      %5352 = vmatpush1.msra.mxu0 0.0
      %5353 = vmatprep.subr.mxu0 0.0
      %5354 = vmatpush1.msra.mxu0 0.0
      %5355 = vmatprep.subr.mxu0 0.0
      %5356 = vmatpush1.msra.mxu0 0.0
      %5357 = vmatprep.subr.mxu0 0.0
      %5358 = vmatpush1.msra.mxu0 0.0
      %5359 = vmatprep.subr.mxu0 0.0
      %5360 = vmatpush1.msra.mxu0 0.0
      %5361 = vmatprep.subr.mxu0 0.0
      %5362 = vmatpush1.msra.mxu0 0.0
      %5363 = vmatprep.subr.mxu0 0.0
      %5364 = vmatpush1.msra.mxu0 0.0
      %5365 = vmatprep.subr.mxu0 0.0
      %5366 = vmatpush1.msra.mxu0 0.0
      %5367 = vmatprep.subr.mxu0 0.0
      %5368 = vmatpush1.msra.mxu0 0.0
      %5369 = vmatprep.subr.mxu0 0.0
      %5370 = vmatpush1.msra.mxu0 0.0
      %5371 = vmatprep.subr.mxu0 0.0
      %5372 = vmatpush1.msra.mxu0 0.0
      %5373 = vmatprep.subr.mxu0 0.0
      %5374 = vmatpush1.msra.mxu0 0.0
      %5375 = vmatprep.subr.mxu0 0.0
      %5376 = vmatpush1.msra.mxu0 0.0
      %5377 = vmatprep.subr.mxu0 0.0
      %5378 = vmatpush1.msra.mxu0 0.0
      %5379 = vmatprep.subr.mxu0 0.0
      %5380 = vmatpush1.msra.mxu0 0.0
      %5381 = vmatprep.mubr.f32.mxu0 0.0
      %5382 = vmatmul.mubr.f32.gmra.mrb[0].mxu0 %v5315
      %v5383 = vpop.f32.mrb[0].mxu0
      %v5384 = vadd.f32 %v5312, %v5383
      %v5385 = vpop.f32.mrb[0].mxu0
      %5386 = vdwg.mxu0
      %5388 = vrot.lane.b32.xlu0 %v5384, 17
      %v5389 = vpop.permute.xlu0 %5388
      %v5391 = vmul.f32 %v4031, %v5389
      %5393 = vrot.lane.b32.xlu0 %v5391, 111
      %v5394 = vpop.permute.xlu0 %5393
      %v5396 = vsel %vm1782, %v5394, 0.0
      %5397 = vadd.xlane.f32.xlu0 %v5396
      %v5398 = vpop.xlane.xlu0 %5397
      %v5399 = vadd.f32 %v5398, %v4031
      %v5400 = vlaneseq
      %v5401 = vshrl.u32 %v5400, 7
      %v5402 = vsub.s32 0, %v5401
      %v5403 = vrot.slane %v5399, %v5402
      %v5404 = vsel %vm2614, %v5403, %v5307
      %v5405 = vsel %vm2615, %v5403, %v5308
      %v5406 = vrot.slane %v5384, 7
      %v5408 = vmul.f32 %v4504, %v5406
      %v5410 = vrot.slane %v5408, 1
      %v5411 = vrot.slane %v4031, 1
      %5412 = vrot.lane.b32.xlu0 %v5411, 127
      %v5413 = vpop.permute.xlu0 %5412
      %v5415 = vsel %vm763, %v5410, 0
      %5417 = vmatprep.subr.mxu0 0.0
      %5418 = vmatpush1.msra.mxu0 %v581
      %5419 = vmatprep.subr.mxu0 0.0
      %5420 = vmatpush1.msra.mxu0 %v582
      %5421 = vmatprep.subr.mxu0 0.0
      %5422 = vmatpush1.msra.mxu0 0.0
      %5423 = vmatprep.subr.mxu0 0.0
      %5424 = vmatpush1.msra.mxu0 0.0
      %5425 = vmatprep.subr.mxu0 0.0
      %5426 = vmatpush1.msra.mxu0 0.0
      %5427 = vmatprep.subr.mxu0 0.0
      %5428 = vmatpush1.msra.mxu0 0.0
      %5429 = vmatprep.subr.mxu0 0.0
      %5430 = vmatpush1.msra.mxu0 0.0
      %5431 = vmatprep.subr.mxu0 0.0
      %5432 = vmatpush1.msra.mxu0 0.0
      %5433 = vmatprep.subr.mxu0 0.0
      %5434 = vmatpush1.msra.mxu0 0.0
      %5435 = vmatprep.subr.mxu0 0.0
      %5436 = vmatpush1.msra.mxu0 0.0
      %5437 = vmatprep.subr.mxu0 0.0
      %5438 = vmatpush1.msra.mxu0 0.0
      %5439 = vmatprep.subr.mxu0 0.0
      %5440 = vmatpush1.msra.mxu0 0.0
      %5441 = vmatprep.subr.mxu0 0.0
      %5442 = vmatpush1.msra.mxu0 0.0
      %5443 = vmatprep.subr.mxu0 0.0
      %5444 = vmatpush1.msra.mxu0 0.0
      %5445 = vmatprep.subr.mxu0 0.0
      %5446 = vmatpush1.msra.mxu0 0.0
      %5447 = vmatprep.subr.mxu0 0.0
      %5448 = vmatpush1.msra.mxu0 0.0
      %5449 = vmatprep.subr.mxu0 0.0
      %5450 = vmatpush1.msra.mxu0 0.0
      %5451 = vmatprep.subr.mxu0 0.0
      %5452 = vmatpush1.msra.mxu0 0.0
      %5453 = vmatprep.subr.mxu0 0.0
      %5454 = vmatpush1.msra.mxu0 0.0
      %5455 = vmatprep.subr.mxu0 0.0
      %5456 = vmatpush1.msra.mxu0 0.0
      %5457 = vmatprep.subr.mxu0 0.0
      %5458 = vmatpush1.msra.mxu0 0.0
      %5459 = vmatprep.subr.mxu0 0.0
      %5460 = vmatpush1.msra.mxu0 0.0
      %5461 = vmatprep.subr.mxu0 0.0
      %5462 = vmatpush1.msra.mxu0 0.0
      %5463 = vmatprep.subr.mxu0 0.0
      %5464 = vmatpush1.msra.mxu0 0.0
      %5465 = vmatprep.subr.mxu0 0.0
      %5466 = vmatpush1.msra.mxu0 0.0
      %5467 = vmatprep.subr.mxu0 0.0
      %5468 = vmatpush1.msra.mxu0 0.0
      %5469 = vmatprep.subr.mxu0 0.0
      %5470 = vmatpush1.msra.mxu0 0.0
      %5471 = vmatprep.subr.mxu0 0.0
      %5472 = vmatpush1.msra.mxu0 0.0
      %5473 = vmatprep.subr.mxu0 0.0
      %5474 = vmatpush1.msra.mxu0 0.0
      %5475 = vmatprep.subr.mxu0 0.0
      %5476 = vmatpush1.msra.mxu0 0.0
      %5477 = vmatprep.subr.mxu0 0.0
      %5478 = vmatpush1.msra.mxu0 0.0
      %5479 = vmatprep.subr.mxu0 0.0
      %5480 = vmatpush1.msra.mxu0 0.0
      %5481 = vmatprep.mubr.f32.mxu0 0.0
      %5482 = vmatmul.mubr.f32.gmra.mrb[0].mxu0 %v5415
      %v5483 = vpop.f32.mrb[0].mxu0
      %v5484 = vadd.f32 %v5413, %v5483
      %v5485 = vpop.f32.mrb[0].mxu0
      %5486 = vdwg.mxu0
      %v5488 = vrot.slane %v5484, 7
      %5489 = vrot.lane.b32.xlu0 %v5488, 17
      %v5490 = vpop.permute.xlu0 %5489
      %v5492 = vmul.f32 %v4031, %v5490
      %5494 = vrot.lane.b32.xlu0 %v5492, 111
      %v5495 = vpop.permute.xlu0 %5494
      %v5497 = vsel %vm1886, %v5495, 0.0
      %5498 = vadd.xlane.f32.xlu0 %v5497
      %v5499 = vpop.xlane.xlu0 %5498
      %v5500 = vadd.f32 %v5499, %v4031
      %v5501 = vlaneseq
      %v5502 = vshrl.u32 %v5501, 7
      %v5503 = vsub.s32 1, %v5502
      %v5504 = vrot.slane %v5500, %v5503
      %v5505 = vsel %vm2717, %v5504, %v5404
      %v5506 = vsel %vm2718, %v5504, %v5405
      %v5507 = vrot.slane %v5484, 6
      %v5509 = vmul.f32 %v4504, %v5507
      %v5511 = vrot.slane %v5509, 2
      %v5512 = vrot.slane %v4031, 2
      %5513 = vrot.lane.b32.xlu0 %v5512, 127
      %v5514 = vpop.permute.xlu0 %5513
      %v5516 = vsel %vm763, %v5511, 0
      %5518 = vmatprep.subr.mxu0 0.0
      %5519 = vmatpush1.msra.mxu0 %v581
      %5520 = vmatprep.subr.mxu0 0.0
      %5521 = vmatpush1.msra.mxu0 %v582
      %5522 = vmatprep.subr.mxu0 0.0
      %5523 = vmatpush1.msra.mxu0 0.0
      %5524 = vmatprep.subr.mxu0 0.0
      %5525 = vmatpush1.msra.mxu0 0.0
      %5526 = vmatprep.subr.mxu0 0.0
      %5527 = vmatpush1.msra.mxu0 0.0
      %5528 = vmatprep.subr.mxu0 0.0
      %5529 = vmatpush1.msra.mxu0 0.0
      %5530 = vmatprep.subr.mxu0 0.0
      %5531 = vmatpush1.msra.mxu0 0.0
      %5532 = vmatprep.subr.mxu0 0.0
      %5533 = vmatpush1.msra.mxu0 0.0
      %5534 = vmatprep.subr.mxu0 0.0
      %5535 = vmatpush1.msra.mxu0 0.0
      %5536 = vmatprep.subr.mxu0 0.0
      %5537 = vmatpush1.msra.mxu0 0.0
      %5538 = vmatprep.subr.mxu0 0.0
      %5539 = vmatpush1.msra.mxu0 0.0
      %5540 = vmatprep.subr.mxu0 0.0
      %5541 = vmatpush1.msra.mxu0 0.0
      %5542 = vmatprep.subr.mxu0 0.0
      %5543 = vmatpush1.msra.mxu0 0.0
      %5544 = vmatprep.subr.mxu0 0.0
      %5545 = vmatpush1.msra.mxu0 0.0
      %5546 = vmatprep.subr.mxu0 0.0
      %5547 = vmatpush1.msra.mxu0 0.0
      %5548 = vmatprep.subr.mxu0 0.0
      %5549 = vmatpush1.msra.mxu0 0.0
      %5550 = vmatprep.subr.mxu0 0.0
      %5551 = vmatpush1.msra.mxu0 0.0
      %5552 = vmatprep.subr.mxu0 0.0
      %5553 = vmatpush1.msra.mxu0 0.0
      %5554 = vmatprep.subr.mxu0 0.0
      %5555 = vmatpush1.msra.mxu0 0.0
      %5556 = vmatprep.subr.mxu0 0.0
      %5557 = vmatpush1.msra.mxu0 0.0
      %5558 = vmatprep.subr.mxu0 0.0
      %5559 = vmatpush1.msra.mxu0 0.0
      %5560 = vmatprep.subr.mxu0 0.0
      %5561 = vmatpush1.msra.mxu0 0.0
      %5562 = vmatprep.subr.mxu0 0.0
      %5563 = vmatpush1.msra.mxu0 0.0
      %5564 = vmatprep.subr.mxu0 0.0
      %5565 = vmatpush1.msra.mxu0 0.0
      %5566 = vmatprep.subr.mxu0 0.0
      %5567 = vmatpush1.msra.mxu0 0.0
      %5568 = vmatprep.subr.mxu0 0.0
      %5569 = vmatpush1.msra.mxu0 0.0
      %5570 = vmatprep.subr.mxu0 0.0
      %5571 = vmatpush1.msra.mxu0 0.0
      %5572 = vmatprep.subr.mxu0 0.0
      %5573 = vmatpush1.msra.mxu0 0.0
      %5574 = vmatprep.subr.mxu0 0.0
      %5575 = vmatpush1.msra.mxu0 0.0
      %5576 = vmatprep.subr.mxu0 0.0
      %5577 = vmatpush1.msra.mxu0 0.0
      %5578 = vmatprep.subr.mxu0 0.0
      %5579 = vmatpush1.msra.mxu0 0.0
      %5580 = vmatprep.subr.mxu0 0.0
      %5581 = vmatpush1.msra.mxu0 0.0
      %5582 = vmatprep.mubr.f32.mxu0 0.0
      %5583 = vmatmul.mubr.f32.gmra.mrb[0].mxu0 %v5516
      %v5584 = vpop.f32.mrb[0].mxu0
      %v5585 = vadd.f32 %v5514, %v5584
      %v5586 = vpop.f32.mrb[0].mxu0
      %5587 = vdwg.mxu0
      %v5589 = vrot.slane %v5585, 6
      %5590 = vrot.lane.b32.xlu0 %v5589, 17
      %v5591 = vpop.permute.xlu0 %5590
      %v5593 = vmul.f32 %v4031, %v5591
      %5595 = vrot.lane.b32.xlu0 %v5593, 111
      %v5596 = vpop.permute.xlu0 %5595
      %v5598 = vsel %vm1990, %v5596, 0.0
      %5599 = vadd.xlane.f32.xlu0 %v5598
      %v5600 = vpop.xlane.xlu0 %5599
      %v5601 = vadd.f32 %v5600, %v4031
      %v5602 = vlaneseq
      %v5603 = vshrl.u32 %v5602, 7
      %v5604 = vsub.s32 2, %v5603
      %v5605 = vrot.slane %v5601, %v5604
      %v5606 = vsel %vm2820, %v5605, %v5505
      %v5607 = vsel %vm2821, %v5605, %v5506
      %v5608 = vrot.slane %v5585, 5
      %v5610 = vmul.f32 %v4504, %v5608
      %v5612 = vrot.slane %v5610, 3
      %v5613 = vrot.slane %v4031, 3
      %5614 = vrot.lane.b32.xlu0 %v5613, 127
      %v5615 = vpop.permute.xlu0 %5614
      %v5617 = vsel %vm763, %v5612, 0
      %5619 = vmatprep.subr.mxu0 0.0
      %5620 = vmatpush1.msra.mxu0 %v581
      %5621 = vmatprep.subr.mxu0 0.0
      %5622 = vmatpush1.msra.mxu0 %v582
      %5623 = vmatprep.subr.mxu0 0.0
      %5624 = vmatpush1.msra.mxu0 0.0
      %5625 = vmatprep.subr.mxu0 0.0
      %5626 = vmatpush1.msra.mxu0 0.0
      %5627 = vmatprep.subr.mxu0 0.0
      %5628 = vmatpush1.msra.mxu0 0.0
      %5629 = vmatprep.subr.mxu0 0.0
      %5630 = vmatpush1.msra.mxu0 0.0
      %5631 = vmatprep.subr.mxu0 0.0
      %5632 = vmatpush1.msra.mxu0 0.0
      %5633 = vmatprep.subr.mxu0 0.0
      %5634 = vmatpush1.msra.mxu0 0.0
      %5635 = vmatprep.subr.mxu0 0.0
      %5636 = vmatpush1.msra.mxu0 0.0
      %5637 = vmatprep.subr.mxu0 0.0
      %5638 = vmatpush1.msra.mxu0 0.0
      %5639 = vmatprep.subr.mxu0 0.0
      %5640 = vmatpush1.msra.mxu0 0.0
      %5641 = vmatprep.subr.mxu0 0.0
      %5642 = vmatpush1.msra.mxu0 0.0
      %5643 = vmatprep.subr.mxu0 0.0
      %5644 = vmatpush1.msra.mxu0 0.0
      %5645 = vmatprep.subr.mxu0 0.0
      %5646 = vmatpush1.msra.mxu0 0.0
      %5647 = vmatprep.subr.mxu0 0.0
      %5648 = vmatpush1.msra.mxu0 0.0
      %5649 = vmatprep.subr.mxu0 0.0
      %5650 = vmatpush1.msra.mxu0 0.0
      %5651 = vmatprep.subr.mxu0 0.0
      %5652 = vmatpush1.msra.mxu0 0.0
      %5653 = vmatprep.subr.mxu0 0.0
      %5654 = vmatpush1.msra.mxu0 0.0
      %5655 = vmatprep.subr.mxu0 0.0
      %5656 = vmatpush1.msra.mxu0 0.0
      %5657 = vmatprep.subr.mxu0 0.0
      %5658 = vmatpush1.msra.mxu0 0.0
      %5659 = vmatprep.subr.mxu0 0.0
      %5660 = vmatpush1.msra.mxu0 0.0
      %5661 = vmatprep.subr.mxu0 0.0
      %5662 = vmatpush1.msra.mxu0 0.0
      %5663 = vmatprep.subr.mxu0 0.0
      %5664 = vmatpush1.msra.mxu0 0.0
      %5665 = vmatprep.subr.mxu0 0.0
      %5666 = vmatpush1.msra.mxu0 0.0
      %5667 = vmatprep.subr.mxu0 0.0
      %5668 = vmatpush1.msra.mxu0 0.0
      %5669 = vmatprep.subr.mxu0 0.0
      %5670 = vmatpush1.msra.mxu0 0.0
      %5671 = vmatprep.subr.mxu0 0.0
      %5672 = vmatpush1.msra.mxu0 0.0
      %5673 = vmatprep.subr.mxu0 0.0
      %5674 = vmatpush1.msra.mxu0 0.0
      %5675 = vmatprep.subr.mxu0 0.0
      %5676 = vmatpush1.msra.mxu0 0.0
      %5677 = vmatprep.subr.mxu0 0.0
      %5678 = vmatpush1.msra.mxu0 0.0
      %5679 = vmatprep.subr.mxu0 0.0
      %5680 = vmatpush1.msra.mxu0 0.0
      %5681 = vmatprep.subr.mxu0 0.0
      %5682 = vmatpush1.msra.mxu0 0.0
      %5683 = vmatprep.mubr.f32.mxu0 0.0
      %5684 = vmatmul.mubr.f32.gmra.mrb[0].mxu0 %v5617
      %v5685 = vpop.f32.mrb[0].mxu0
      %v5686 = vadd.f32 %v5615, %v5685
      %v5687 = vpop.f32.mrb[0].mxu0
      %5688 = vdwg.mxu0
      %v5690 = vrot.slane %v5686, 5
      %5691 = vrot.lane.b32.xlu0 %v5690, 17
      %v5692 = vpop.permute.xlu0 %5691
      %v5694 = vmul.f32 %v4031, %v5692
      %5696 = vrot.lane.b32.xlu0 %v5694, 111
      %v5697 = vpop.permute.xlu0 %5696
      %v5699 = vsel %vm2094, %v5697, 0.0
      %5700 = vadd.xlane.f32.xlu0 %v5699
      %v5701 = vpop.xlane.xlu0 %5700
      %v5702 = vadd.f32 %v5701, %v4031
      %v5703 = vlaneseq
      %v5704 = vshrl.u32 %v5703, 7
      %v5705 = vsub.s32 3, %v5704
      %v5706 = vrot.slane %v5702, %v5705
      %v5707 = vsel %vm2923, %v5706, %v5606
      %v5708 = vsel %vm2924, %v5706, %v5607
      %v5709 = vrot.slane %v5686, 4
      %v5711 = vmul.f32 %v4504, %v5709
      %v5713 = vrot.slane %v5711, 4
      %v5714 = vrot.slane %v4031, 4
      %5715 = vrot.lane.b32.xlu0 %v5714, 127
      %v5716 = vpop.permute.xlu0 %5715
      %v5718 = vsel %vm763, %v5713, 0
      %5720 = vmatprep.subr.mxu0 0.0
      %5721 = vmatpush1.msra.mxu0 %v581
      %5722 = vmatprep.subr.mxu0 0.0
      %5723 = vmatpush1.msra.mxu0 %v582
      %5724 = vmatprep.subr.mxu0 0.0
      %5725 = vmatpush1.msra.mxu0 0.0
      %5726 = vmatprep.subr.mxu0 0.0
      %5727 = vmatpush1.msra.mxu0 0.0
      %5728 = vmatprep.subr.mxu0 0.0
      %5729 = vmatpush1.msra.mxu0 0.0
      %5730 = vmatprep.subr.mxu0 0.0
      %5731 = vmatpush1.msra.mxu0 0.0
      %5732 = vmatprep.subr.mxu0 0.0
      %5733 = vmatpush1.msra.mxu0 0.0
      %5734 = vmatprep.subr.mxu0 0.0
      %5735 = vmatpush1.msra.mxu0 0.0
      %5736 = vmatprep.subr.mxu0 0.0
      %5737 = vmatpush1.msra.mxu0 0.0
      %5738 = vmatprep.subr.mxu0 0.0
      %5739 = vmatpush1.msra.mxu0 0.0
      %5740 = vmatprep.subr.mxu0 0.0
      %5741 = vmatpush1.msra.mxu0 0.0
      %5742 = vmatprep.subr.mxu0 0.0
      %5743 = vmatpush1.msra.mxu0 0.0
      %5744 = vmatprep.subr.mxu0 0.0
      %5745 = vmatpush1.msra.mxu0 0.0
      %5746 = vmatprep.subr.mxu0 0.0
      %5747 = vmatpush1.msra.mxu0 0.0
      %5748 = vmatprep.subr.mxu0 0.0
      %5749 = vmatpush1.msra.mxu0 0.0
      %5750 = vmatprep.subr.mxu0 0.0
      %5751 = vmatpush1.msra.mxu0 0.0
      %5752 = vmatprep.subr.mxu0 0.0
      %5753 = vmatpush1.msra.mxu0 0.0
      %5754 = vmatprep.subr.mxu0 0.0
      %5755 = vmatpush1.msra.mxu0 0.0
      %5756 = vmatprep.subr.mxu0 0.0
      %5757 = vmatpush1.msra.mxu0 0.0
      %5758 = vmatprep.subr.mxu0 0.0
      %5759 = vmatpush1.msra.mxu0 0.0
      %5760 = vmatprep.subr.mxu0 0.0
      %5761 = vmatpush1.msra.mxu0 0.0
      %5762 = vmatprep.subr.mxu0 0.0
      %5763 = vmatpush1.msra.mxu0 0.0
      %5764 = vmatprep.subr.mxu0 0.0
      %5765 = vmatpush1.msra.mxu0 0.0
      %5766 = vmatprep.subr.mxu0 0.0
      %5767 = vmatpush1.msra.mxu0 0.0
      %5768 = vmatprep.subr.mxu0 0.0
      %5769 = vmatpush1.msra.mxu0 0.0
      %5770 = vmatprep.subr.mxu0 0.0
      %5771 = vmatpush1.msra.mxu0 0.0
      %5772 = vmatprep.subr.mxu0 0.0
      %5773 = vmatpush1.msra.mxu0 0.0
      %5774 = vmatprep.subr.mxu0 0.0
      %5775 = vmatpush1.msra.mxu0 0.0
      %5776 = vmatprep.subr.mxu0 0.0
      %5777 = vmatpush1.msra.mxu0 0.0
      %5778 = vmatprep.subr.mxu0 0.0
      %5779 = vmatpush1.msra.mxu0 0.0
      %5780 = vmatprep.subr.mxu0 0.0
      %5781 = vmatpush1.msra.mxu0 0.0
      %5782 = vmatprep.subr.mxu0 0.0
      %5783 = vmatpush1.msra.mxu0 0.0
      %5784 = vmatprep.mubr.f32.mxu0 0.0
      %5785 = vmatmul.mubr.f32.gmra.mrb[0].mxu0 %v5718
      %v5786 = vpop.f32.mrb[0].mxu0
      %v5787 = vadd.f32 %v5716, %v5786
      %v5788 = vpop.f32.mrb[0].mxu0
      %5789 = vdwg.mxu0
      %v5791 = vrot.slane %v5787, 4
      %5792 = vrot.lane.b32.xlu0 %v5791, 17
      %v5793 = vpop.permute.xlu0 %5792
      %v5795 = vmul.f32 %v4031, %v5793
      %5797 = vrot.lane.b32.xlu0 %v5795, 111
      %v5798 = vpop.permute.xlu0 %5797
      %v5800 = vsel %vm2198, %v5798, 0.0
      %5801 = vadd.xlane.f32.xlu0 %v5800
      %v5802 = vpop.xlane.xlu0 %5801
      %v5803 = vadd.f32 %v5802, %v4031
      %v5804 = vlaneseq
      %v5805 = vshrl.u32 %v5804, 7
      %v5806 = vsub.s32 4, %v5805
      %v5807 = vrot.slane %v5803, %v5806
      %v5808 = vsel %vm3026, %v5807, %v5707
      %v5809 = vsel %vm3027, %v5807, %v5708
      %v5810 = vrot.slane %v5787, 3
      %v5812 = vmul.f32 %v4504, %v5810
      %v5814 = vrot.slane %v5812, 5
      %v5815 = vrot.slane %v4031, 5
      %5816 = vrot.lane.b32.xlu0 %v5815, 127
      %v5817 = vpop.permute.xlu0 %5816
      %v5819 = vsel %vm763, %v5814, 0
      %5821 = vmatprep.subr.mxu0 0.0
      %5822 = vmatpush1.msra.mxu0 %v581
      %5823 = vmatprep.subr.mxu0 0.0
      %5824 = vmatpush1.msra.mxu0 %v582
      %5825 = vmatprep.subr.mxu0 0.0
      %5826 = vmatpush1.msra.mxu0 0.0
      %5827 = vmatprep.subr.mxu0 0.0
      %5828 = vmatpush1.msra.mxu0 0.0
      %5829 = vmatprep.subr.mxu0 0.0
      %5830 = vmatpush1.msra.mxu0 0.0
      %5831 = vmatprep.subr.mxu0 0.0
      %5832 = vmatpush1.msra.mxu0 0.0
      %5833 = vmatprep.subr.mxu0 0.0
      %5834 = vmatpush1.msra.mxu0 0.0
      %5835 = vmatprep.subr.mxu0 0.0
      %5836 = vmatpush1.msra.mxu0 0.0
      %5837 = vmatprep.subr.mxu0 0.0
      %5838 = vmatpush1.msra.mxu0 0.0
      %5839 = vmatprep.subr.mxu0 0.0
      %5840 = vmatpush1.msra.mxu0 0.0
      %5841 = vmatprep.subr.mxu0 0.0
      %5842 = vmatpush1.msra.mxu0 0.0
      %5843 = vmatprep.subr.mxu0 0.0
      %5844 = vmatpush1.msra.mxu0 0.0
      %5845 = vmatprep.subr.mxu0 0.0
      %5846 = vmatpush1.msra.mxu0 0.0
      %5847 = vmatprep.subr.mxu0 0.0
      %5848 = vmatpush1.msra.mxu0 0.0
      %5849 = vmatprep.subr.mxu0 0.0
      %5850 = vmatpush1.msra.mxu0 0.0
      %5851 = vmatprep.subr.mxu0 0.0
      %5852 = vmatpush1.msra.mxu0 0.0
      %5853 = vmatprep.subr.mxu0 0.0
      %5854 = vmatpush1.msra.mxu0 0.0
      %5855 = vmatprep.subr.mxu0 0.0
      %5856 = vmatpush1.msra.mxu0 0.0
      %5857 = vmatprep.subr.mxu0 0.0
      %5858 = vmatpush1.msra.mxu0 0.0
      %5859 = vmatprep.subr.mxu0 0.0
      %5860 = vmatpush1.msra.mxu0 0.0
      %5861 = vmatprep.subr.mxu0 0.0
      %5862 = vmatpush1.msra.mxu0 0.0
      %5863 = vmatprep.subr.mxu0 0.0
      %5864 = vmatpush1.msra.mxu0 0.0
      %5865 = vmatprep.subr.mxu0 0.0
      %5866 = vmatpush1.msra.mxu0 0.0
      %5867 = vmatprep.subr.mxu0 0.0
      %5868 = vmatpush1.msra.mxu0 0.0
      %5869 = vmatprep.subr.mxu0 0.0
      %5870 = vmatpush1.msra.mxu0 0.0
      %5871 = vmatprep.subr.mxu0 0.0
      %5872 = vmatpush1.msra.mxu0 0.0
      %5873 = vmatprep.subr.mxu0 0.0
      %5874 = vmatpush1.msra.mxu0 0.0
      %5875 = vmatprep.subr.mxu0 0.0
      %5876 = vmatpush1.msra.mxu0 0.0
      %5877 = vmatprep.subr.mxu0 0.0
      %5878 = vmatpush1.msra.mxu0 0.0
      %5879 = vmatprep.subr.mxu0 0.0
      %5880 = vmatpush1.msra.mxu0 0.0
      %5881 = vmatprep.subr.mxu0 0.0
      %5882 = vmatpush1.msra.mxu0 0.0
      %5883 = vmatprep.subr.mxu0 0.0
      %5884 = vmatpush1.msra.mxu0 0.0
      %5885 = vmatprep.mubr.f32.mxu0 0.0
      %5886 = vmatmul.mubr.f32.gmra.mrb[0].mxu0 %v5819
      %v5887 = vpop.f32.mrb[0].mxu0
      %v5888 = vadd.f32 %v5817, %v5887
      %v5889 = vpop.f32.mrb[0].mxu0
      %5890 = vdwg.mxu0
      %v5892 = vrot.slane %v5888, 3
      %5893 = vrot.lane.b32.xlu0 %v5892, 17
      %v5894 = vpop.permute.xlu0 %5893
      %v5896 = vmul.f32 %v4031, %v5894
      %5898 = vrot.lane.b32.xlu0 %v5896, 111
      %v5899 = vpop.permute.xlu0 %5898
      %v5901 = vsel %vm2302, %v5899, 0.0
      %5902 = vadd.xlane.f32.xlu0 %v5901
      %v5903 = vpop.xlane.xlu0 %5902
      %v5904 = vadd.f32 %v5903, %v4031
      %v5905 = vlaneseq
      %v5906 = vshrl.u32 %v5905, 7
      %v5907 = vsub.s32 5, %v5906
      %v5908 = vrot.slane %v5904, %v5907
      %v5909 = vsel %vm3129, %v5908, %v5808
      %v5910 = vsel %vm3130, %v5908, %v5809
      %v5911 = vrot.slane %v5888, 2
      %v5913 = vmul.f32 %v4504, %v5911
      %v5915 = vrot.slane %v5913, 6
      %v5916 = vrot.slane %v4031, 6
      %5917 = vrot.lane.b32.xlu0 %v5916, 127
      %v5918 = vpop.permute.xlu0 %5917
      %v5920 = vsel %vm763, %v5915, 0
      %5922 = vmatprep.subr.mxu0 0.0
      %5923 = vmatpush1.msra.mxu0 %v581
      %5924 = vmatprep.subr.mxu0 0.0
      %5925 = vmatpush1.msra.mxu0 %v582
      %5926 = vmatprep.subr.mxu0 0.0
      %5927 = vmatpush1.msra.mxu0 0.0
      %5928 = vmatprep.subr.mxu0 0.0
      %5929 = vmatpush1.msra.mxu0 0.0
      %5930 = vmatprep.subr.mxu0 0.0
      %5931 = vmatpush1.msra.mxu0 0.0
      %5932 = vmatprep.subr.mxu0 0.0
      %5933 = vmatpush1.msra.mxu0 0.0
      %5934 = vmatprep.subr.mxu0 0.0
      %5935 = vmatpush1.msra.mxu0 0.0
      %5936 = vmatprep.subr.mxu0 0.0
      %5937 = vmatpush1.msra.mxu0 0.0
      %5938 = vmatprep.subr.mxu0 0.0
      %5939 = vmatpush1.msra.mxu0 0.0
      %5940 = vmatprep.subr.mxu0 0.0
      %5941 = vmatpush1.msra.mxu0 0.0
      %5942 = vmatprep.subr.mxu0 0.0
      %5943 = vmatpush1.msra.mxu0 0.0
      %5944 = vmatprep.subr.mxu0 0.0
      %5945 = vmatpush1.msra.mxu0 0.0
      %5946 = vmatprep.subr.mxu0 0.0
      %5947 = vmatpush1.msra.mxu0 0.0
      %5948 = vmatprep.subr.mxu0 0.0
      %5949 = vmatpush1.msra.mxu0 0.0
      %5950 = vmatprep.subr.mxu0 0.0
      %5951 = vmatpush1.msra.mxu0 0.0
      %5952 = vmatprep.subr.mxu0 0.0
      %5953 = vmatpush1.msra.mxu0 0.0
      %5954 = vmatprep.subr.mxu0 0.0
      %5955 = vmatpush1.msra.mxu0 0.0
      %5956 = vmatprep.subr.mxu0 0.0
      %5957 = vmatpush1.msra.mxu0 0.0
      %5958 = vmatprep.subr.mxu0 0.0
      %5959 = vmatpush1.msra.mxu0 0.0
      %5960 = vmatprep.subr.mxu0 0.0
      %5961 = vmatpush1.msra.mxu0 0.0
      %5962 = vmatprep.subr.mxu0 0.0
      %5963 = vmatpush1.msra.mxu0 0.0
      %5964 = vmatprep.subr.mxu0 0.0
      %5965 = vmatpush1.msra.mxu0 0.0
      %5966 = vmatprep.subr.mxu0 0.0
      %5967 = vmatpush1.msra.mxu0 0.0
      %5968 = vmatprep.subr.mxu0 0.0
      %5969 = vmatpush1.msra.mxu0 0.0
      %5970 = vmatprep.subr.mxu0 0.0
      %5971 = vmatpush1.msra.mxu0 0.0
      %5972 = vmatprep.subr.mxu0 0.0
      %5973 = vmatpush1.msra.mxu0 0.0
      %5974 = vmatprep.subr.mxu0 0.0
      %5975 = vmatpush1.msra.mxu0 0.0
      %5976 = vmatprep.subr.mxu0 0.0
      %5977 = vmatpush1.msra.mxu0 0.0
      %5978 = vmatprep.subr.mxu0 0.0
      %5979 = vmatpush1.msra.mxu0 0.0
      %5980 = vmatprep.subr.mxu0 0.0
      %5981 = vmatpush1.msra.mxu0 0.0
      %5982 = vmatprep.subr.mxu0 0.0
      %5983 = vmatpush1.msra.mxu0 0.0
      %5984 = vmatprep.subr.mxu0 0.0
      %5985 = vmatpush1.msra.mxu0 0.0
      %5986 = vmatprep.mubr.f32.mxu0 0.0
      %5987 = vmatmul.mubr.f32.gmra.mrb[0].mxu0 %v5920
      %v5988 = vpop.f32.mrb[0].mxu0
      %v5989 = vadd.f32 %v5918, %v5988
      %v5990 = vpop.f32.mrb[0].mxu0
      %5991 = vdwg.mxu0
      %v5993 = vrot.slane %v5989, 2
      %5994 = vrot.lane.b32.xlu0 %v5993, 17
      %v5995 = vpop.permute.xlu0 %5994
      %v5997 = vmul.f32 %v4031, %v5995
      %5999 = vrot.lane.b32.xlu0 %v5997, 111
      %v6000 = vpop.permute.xlu0 %5999
      %v6002 = vsel %vm2406, %v6000, 0.0
      %6003 = vadd.xlane.f32.xlu0 %v6002
      %v6004 = vpop.xlane.xlu0 %6003
      %v6005 = vadd.f32 %v6004, %v4031
      %v6006 = vlaneseq
      %v6007 = vshrl.u32 %v6006, 7
      %v6008 = vsub.s32 6, %v6007
      %v6009 = vrot.slane %v6005, %v6008
      %v6010 = vsel %vm3232, %v6009, %v5909
      %v6011 = vsel %vm3233, %v6009, %v5910
      %v6012 = vrot.slane %v5989, 1
      %v6014 = vmul.f32 %v4504, %v6012
      %v6016 = vrot.slane %v6014, 7
      %v6017 = vrot.slane %v4031, 7
      %6018 = vrot.lane.b32.xlu0 %v6017, 127
      %v6019 = vpop.permute.xlu0 %6018
      %v6021 = vsel %vm763, %v6016, 0
      %6023 = vmatprep.subr.mxu0 0.0
      %6024 = vmatpush1.msra.mxu0 %v581
      %6025 = vmatprep.subr.mxu0 0.0
      %6026 = vmatpush1.msra.mxu0 %v582
      %6027 = vmatprep.subr.mxu0 0.0
      %6028 = vmatpush1.msra.mxu0 0.0
      %6029 = vmatprep.subr.mxu0 0.0
      %6030 = vmatpush1.msra.mxu0 0.0
      %6031 = vmatprep.subr.mxu0 0.0
      %6032 = vmatpush1.msra.mxu0 0.0
      %6033 = vmatprep.subr.mxu0 0.0
      %6034 = vmatpush1.msra.mxu0 0.0
      %6035 = vmatprep.subr.mxu0 0.0
      %6036 = vmatpush1.msra.mxu0 0.0
      %6037 = vmatprep.subr.mxu0 0.0
      %6038 = vmatpush1.msra.mxu0 0.0
      %6039 = vmatprep.subr.mxu0 0.0
      %6040 = vmatpush1.msra.mxu0 0.0
      %6041 = vmatprep.subr.mxu0 0.0
      %6042 = vmatpush1.msra.mxu0 0.0
      %6043 = vmatprep.subr.mxu0 0.0
      %6044 = vmatpush1.msra.mxu0 0.0
      %6045 = vmatprep.subr.mxu0 0.0
      %6046 = vmatpush1.msra.mxu0 0.0
      %6047 = vmatprep.subr.mxu0 0.0
      %6048 = vmatpush1.msra.mxu0 0.0
      %6049 = vmatprep.subr.mxu0 0.0
      %6050 = vmatpush1.msra.mxu0 0.0
      %6051 = vmatprep.subr.mxu0 0.0
      %6052 = vmatpush1.msra.mxu0 0.0
      %6053 = vmatprep.subr.mxu0 0.0
      %6054 = vmatpush1.msra.mxu0 0.0
      %6055 = vmatprep.subr.mxu0 0.0
      %6056 = vmatpush1.msra.mxu0 0.0
      %6057 = vmatprep.subr.mxu0 0.0
      %6058 = vmatpush1.msra.mxu0 0.0
      %6059 = vmatprep.subr.mxu0 0.0
      %6060 = vmatpush1.msra.mxu0 0.0
      %6061 = vmatprep.subr.mxu0 0.0
      %6062 = vmatpush1.msra.mxu0 0.0
      %6063 = vmatprep.subr.mxu0 0.0
      %6064 = vmatpush1.msra.mxu0 0.0
      %6065 = vmatprep.subr.mxu0 0.0
      %6066 = vmatpush1.msra.mxu0 0.0
      %6067 = vmatprep.subr.mxu0 0.0
      %6068 = vmatpush1.msra.mxu0 0.0
      %6069 = vmatprep.subr.mxu0 0.0
      %6070 = vmatpush1.msra.mxu0 0.0
      %6071 = vmatprep.subr.mxu0 0.0
      %6072 = vmatpush1.msra.mxu0 0.0
      %6073 = vmatprep.subr.mxu0 0.0
      %6074 = vmatpush1.msra.mxu0 0.0
      %6075 = vmatprep.subr.mxu0 0.0
      %6076 = vmatpush1.msra.mxu0 0.0
      %6077 = vmatprep.subr.mxu0 0.0
      %6078 = vmatpush1.msra.mxu0 0.0
      %6079 = vmatprep.subr.mxu0 0.0
      %6080 = vmatpush1.msra.mxu0 0.0
      %6081 = vmatprep.subr.mxu0 0.0
      %6082 = vmatpush1.msra.mxu0 0.0
      %6083 = vmatprep.subr.mxu0 0.0
      %6084 = vmatpush1.msra.mxu0 0.0
      %6085 = vmatprep.subr.mxu0 0.0
      %6086 = vmatpush1.msra.mxu0 0.0
      %6087 = vmatprep.mubr.f32.mxu0 0.0
      %6088 = vmatmul.mubr.f32.gmra.mrb[0].mxu0 %v6021
      %v6089 = vpop.f32.mrb[0].mxu0
      %v6090 = vadd.f32 %v6019, %v6089
      %v6091 = vpop.f32.mrb[0].mxu0
      %6092 = vdwg.mxu0
      %v6094 = vrot.slane %v6090, 1
      %6095 = vrot.lane.b32.xlu0 %v6094, 17
      %v6096 = vpop.permute.xlu0 %6095
      %v6098 = vmul.f32 %v4031, %v6096
      %6100 = vrot.lane.b32.xlu0 %v6098, 111
      %v6101 = vpop.permute.xlu0 %6100
      %v6103 = vsel %vm2510, %v6101, 0.0
      %6104 = vadd.xlane.f32.xlu0 %v6103
      %v6105 = vpop.xlane.xlu0 %6104
      %v6106 = vadd.f32 %v6105, %v4031
      %v6107 = vlaneseq
      %v6108 = vshrl.u32 %v6107, 7
      %v6109 = vsub.s32 7, %v6108
      %v6110 = vrot.slane %v6106, %v6109
      %v6111 = vsel %vm3335, %v6110, %v6010
      %v6112 = vsel %vm3336, %v6110, %v6011
      %v6113 = vxor.u32 %v6111, 2147483648
      %v6114 = vxor.u32 %v6112, 2147483648
      %v6115 = vmul.f32 %v6113, 1.442695
      %v6116 = vpow.pop %v6115
      %v6117 = vmul.f32 %v6114, 1.442695
      %v6118 = vpow.pop %v6117
      %v6119 = vadd.f32 %v6116, 1.0
      %v6120 = vadd.f32 %v6118, 1.0
      %v6121 = vrcp.pop %v6119
      %v6122 = vmul.f32 1.0, %v6121
      %v6123 = vrcp.pop %v6120
      %v6124 = vmul.f32 1.0, %v6123
      %v6125 = vmul.f32 %v6111, %v6122
      %v6126 = vmul.f32 %v6112, %v6124
      %6128 = vset.pattern.permute.xlu0 21
      %6129 = vperm.xlu0 %6128, %v6125
      %v6130 = vpop.permute.xlu0 %6129
      %6133 = vset.pattern.permute.xlu0 21
      %6134 = vperm.xlu0 %6133, %v6126
      %v6135 = vpop.permute.xlu0 %6134
      %v6137 = vmul.f32 %v3577, %v6130
      %v6138 = vmul.f32 %v3582, %v6135
      %s6139 = scalar_lea.vmem %s13, 16
      %v6140 = vld [vmem:[%s6139] sm:$0xff]
      %v6141 = vld [vmem:[%s6139 + $0x8] sm:$0xff]
      %6144 = vrot.lane.b32.xlu0 %v6137, 112
      %v6145 = vpop.permute.xlu0 %6144
      %6146 = vrot.lane.b32.xlu0 %v6138, 112
      %v6147 = vpop.permute.xlu0 %6146
      %v6148 = vsel %vm763, %v6145, 0
      %v6150 = vsel %vm763, %v6147, 0
      %6152 = vmatprep.subr.mxu0 0.0
      %6153 = vmatpush1.msra.mxu0 %v6140
      %6154 = vmatprep.subr.mxu0 0.0
      %6155 = vmatpush1.msra.mxu0 %v6141
      %6156 = vmatprep.subr.mxu0 0.0
      %6157 = vmatpush1.msra.mxu0 0.0
      %6158 = vmatprep.subr.mxu0 0.0
      %6159 = vmatpush1.msra.mxu0 0.0
      %6160 = vmatprep.subr.mxu0 0.0
      %6161 = vmatpush1.msra.mxu0 0.0
      %6162 = vmatprep.subr.mxu0 0.0
      %6163 = vmatpush1.msra.mxu0 0.0
      %6164 = vmatprep.subr.mxu0 0.0
      %6165 = vmatpush1.msra.mxu0 0.0
      %6166 = vmatprep.subr.mxu0 0.0
      %6167 = vmatpush1.msra.mxu0 0.0
      %6168 = vmatprep.subr.mxu0 0.0
      %6169 = vmatpush1.msra.mxu0 0.0
      %6170 = vmatprep.subr.mxu0 0.0
      %6171 = vmatpush1.msra.mxu0 0.0
      %6172 = vmatprep.subr.mxu0 0.0
      %6173 = vmatpush1.msra.mxu0 0.0
      %6174 = vmatprep.subr.mxu0 0.0
      %6175 = vmatpush1.msra.mxu0 0.0
      %6176 = vmatprep.subr.mxu0 0.0
      %6177 = vmatpush1.msra.mxu0 0.0
      %6178 = vmatprep.subr.mxu0 0.0
      %6179 = vmatpush1.msra.mxu0 0.0
      %6180 = vmatprep.subr.mxu0 0.0
      %6181 = vmatpush1.msra.mxu0 0.0
      %6182 = vmatprep.subr.mxu0 0.0
      %6183 = vmatpush1.msra.mxu0 0.0
      %6184 = vmatprep.subr.mxu0 0.0
      %6185 = vmatpush1.msra.mxu0 0.0
      %6186 = vmatprep.subr.mxu0 0.0
      %6187 = vmatpush1.msra.mxu0 0.0
      %6188 = vmatprep.subr.mxu0 0.0
      %6189 = vmatpush1.msra.mxu0 0.0
      %6190 = vmatprep.subr.mxu0 0.0
      %6191 = vmatpush1.msra.mxu0 0.0
      %6192 = vmatprep.subr.mxu0 0.0
      %6193 = vmatpush1.msra.mxu0 0.0
      %6194 = vmatprep.subr.mxu0 0.0
      %6195 = vmatpush1.msra.mxu0 0.0
      %6196 = vmatprep.subr.mxu0 0.0
      %6197 = vmatpush1.msra.mxu0 0.0
      %6198 = vmatprep.subr.mxu0 0.0
      %6199 = vmatpush1.msra.mxu0 0.0
      %6200 = vmatprep.subr.mxu0 0.0
      %6201 = vmatpush1.msra.mxu0 0.0
      %6202 = vmatprep.subr.mxu0 0.0
      %6203 = vmatpush1.msra.mxu0 0.0
      %6204 = vmatprep.subr.mxu0 0.0
      %6205 = vmatpush1.msra.mxu0 0.0
      %6206 = vmatprep.subr.mxu0 0.0
      %6207 = vmatpush1.msra.mxu0 0.0
      %6208 = vmatprep.subr.mxu0 0.0
      %6209 = vmatpush1.msra.mxu0 0.0
      %6210 = vmatprep.subr.mxu0 0.0
      %6211 = vmatpush1.msra.mxu0 0.0
      %6212 = vmatprep.subr.mxu0 0.0
      %6213 = vmatpush1.msra.mxu0 0.0
      %6214 = vmatprep.subr.mxu0 0.0
      %6215 = vmatpush1.msra.mxu0 0.0
      %6216 = vmatprep.mubr.f32.mxu0 0.0
      %6217 = vmatmul.mubr.f32.gmra.mrb[0].mxu0 %v6148
      %v6218 = vpop.f32.mrb[0].mxu0
      %v6219 = vadd.f32 %v3448, %v6218
      %v6220 = vpop.f32.mrb[0].mxu0
      %6221 = vmatprep.mubr.f32.mxu0 0.0
      %6222 = vmatmul.mubr.f32.gmra.mrb[0].mxu0 %v6150
      %v6223 = vpop.f32.mrb[0].mxu0
      %v6224 = vadd.f32 %v3453, %v6223
      %v6225 = vpop.f32.mrb[0].mxu0
      %6226 = vdwg.mxu0
      %v6227 = vld [vmem:[%s14] sm:$0x1]
      %v6228 = vld [vmem:[%s15] sm:$0x1]
      %v6229 = vsel %vm629, %v6219, 0.0
      %6230 = vadd.xlane.f32.xlu0 %v6229
      %v6231 = vpop.xlane.xlu0 %6230
      %v6232 = vsel %vm629, %v6224, 0.0
      %6233 = vadd.xlane.f32.xlu0 %v6232
      %v6234 = vpop.xlane.xlu0 %6233
      %v6235 = vmul.f32 %v6231, %v636
      %v6236 = vmul.f32 %v6234, %v636
      %v6237 = vsub.f32 %v6219, %v6235
      %v6238 = vsub.f32 %v6224, %v6236
      %v6239 = vmul.f32 %v6237, %v6237
      %v6240 = vmul.f32 %v6238, %v6238
      %v6241 = vsel %vm629, %v6239, 0.0
      %6242 = vadd.xlane.f32.xlu0 %v6241
      %v6243 = vpop.xlane.xlu0 %6242
      %v6244 = vsel %vm629, %v6240, 0.0
      %6245 = vadd.xlane.f32.xlu0 %v6244
      %v6246 = vpop.xlane.xlu0 %6245
      %v6247 = vmul.f32 %v6243, %v636
      %v6248 = vmul.f32 %v6246, %v636
      %v6249 = vadd.f32 %v6247, 1e-05
      %v6250 = vadd.f32 %v6248, 1e-05
      %v6251 = vrsqrt.pop %v6249
      %v6252 = vrsqrt.pop %v6250
      %v6253 = vmul.f32 %v6237, %v6251
      %v6254 = vmul.f32 %v6238, %v6252
      %v6256 = vlaneseq
      %v6257 = vshrl.u32 %v6256, 7
      %v6258 = vsub.s32 0, %v6257
      %v6259 = vrot.slane %v6227, %v6258
      %v6261 = vmul.f32 %v6253, %v6259
      %v6262 = vmul.f32 %v6254, %v6259
      %v6264 = vlaneseq
      %v6265 = vshrl.u32 %v6264, 7
      %v6266 = vsub.s32 0, %v6265
      %v6267 = vrot.slane %v6228, %v6266
      %v6269 = vadd.f32 %v6261, %v6267
      %v6270 = vadd.f32 %v6262, %v6267
      %v6271 = vld [vmem:[%s16] sm:$0xff]
      %v6272 = vld [vmem:[#allocation2] sm:$0x1]
      %v6274 = vlaneseq
      %v6275 = vshrl.u32 %v6274, 7
      %v6276 = vsub.s32 0, %v6275
      %v6277 = vrot.slane %v6272, %v6276
      %v6280 = vsel %vm629, %v6269, 0
      %v6283 = vsel %vm629, %v6270, 0
      %6285 = vmatprep.subr.mxu0 0.0
      %6286 = vmatpush1.msra.mxu0 %v6271
      %6287 = vmatprep.subr.mxu0 0.0
      %6288 = vmatpush1.msra.mxu0 0.0
      %6289 = vmatprep.subr.mxu0 0.0
      %6290 = vmatpush1.msra.mxu0 0.0
      %6291 = vmatprep.subr.mxu0 0.0
      %6292 = vmatpush1.msra.mxu0 0.0
      %6293 = vmatprep.subr.mxu0 0.0
      %6294 = vmatpush1.msra.mxu0 0.0
      %6295 = vmatprep.subr.mxu0 0.0
      %6296 = vmatpush1.msra.mxu0 0.0
      %6297 = vmatprep.subr.mxu0 0.0
      %6298 = vmatpush1.msra.mxu0 0.0
      %6299 = vmatprep.subr.mxu0 0.0
      %6300 = vmatpush1.msra.mxu0 0.0
      %6301 = vmatprep.subr.mxu0 0.0
      %6302 = vmatpush1.msra.mxu0 0.0
      %6303 = vmatprep.subr.mxu0 0.0
      %6304 = vmatpush1.msra.mxu0 0.0
      %6305 = vmatprep.subr.mxu0 0.0
      %6306 = vmatpush1.msra.mxu0 0.0
      %6307 = vmatprep.subr.mxu0 0.0
      %6308 = vmatpush1.msra.mxu0 0.0
      %6309 = vmatprep.subr.mxu0 0.0
      %6310 = vmatpush1.msra.mxu0 0.0
      %6311 = vmatprep.subr.mxu0 0.0
      %6312 = vmatpush1.msra.mxu0 0.0
      %6313 = vmatprep.subr.mxu0 0.0
      %6314 = vmatpush1.msra.mxu0 0.0
      %6315 = vmatprep.subr.mxu0 0.0
      %6316 = vmatpush1.msra.mxu0 0.0
      %6317 = vmatprep.subr.mxu0 0.0
      %6318 = vmatpush1.msra.mxu0 0.0
      %6319 = vmatprep.subr.mxu0 0.0
      %6320 = vmatpush1.msra.mxu0 0.0
      %6321 = vmatprep.subr.mxu0 0.0
      %6322 = vmatpush1.msra.mxu0 0.0
      %6323 = vmatprep.subr.mxu0 0.0
      %6324 = vmatpush1.msra.mxu0 0.0
      %6325 = vmatprep.subr.mxu0 0.0
      %6326 = vmatpush1.msra.mxu0 0.0
      %6327 = vmatprep.subr.mxu0 0.0
      %6328 = vmatpush1.msra.mxu0 0.0
      %6329 = vmatprep.subr.mxu0 0.0
      %6330 = vmatpush1.msra.mxu0 0.0
      %6331 = vmatprep.subr.mxu0 0.0
      %6332 = vmatpush1.msra.mxu0 0.0
      %6333 = vmatprep.subr.mxu0 0.0
      %6334 = vmatpush1.msra.mxu0 0.0
      %6335 = vmatprep.subr.mxu0 0.0
      %6336 = vmatpush1.msra.mxu0 0.0
      %6337 = vmatprep.subr.mxu0 0.0
      %6338 = vmatpush1.msra.mxu0 0.0
      %6339 = vmatprep.subr.mxu0 0.0
      %6340 = vmatpush1.msra.mxu0 0.0
      %6341 = vmatprep.subr.mxu0 0.0
      %6342 = vmatpush1.msra.mxu0 0.0
      %6343 = vmatprep.subr.mxu0 0.0
      %6344 = vmatpush1.msra.mxu0 0.0
      %6345 = vmatprep.subr.mxu0 0.0
      %6346 = vmatpush1.msra.mxu0 0.0
      %6347 = vmatprep.subr.mxu0 0.0
      %6348 = vmatpush1.msra.mxu0 0.0
      %6349 = vmatprep.mubr.f32.mxu0 0.0
      %6350 = vmatmul.mubr.f32.gmra.mrb[0].mxu0 %v6280
      %v6351 = vpop.f32.mrb[0].mxu0
      %v6352 = vadd.f32 %v6277, %v6351
      %v6353 = vpop.f32.mrb[0].mxu0
      %6354 = vmatprep.mubr.f32.mxu0 0.0
      %6355 = vmatmul.mubr.f32.gmra.mrb[0].mxu0 %v6283
      %v6356 = vpop.f32.mrb[0].mxu0
      %v6357 = vadd.f32 %v6277, %v6356
      %v6358 = vpop.f32.mrb[0].mxu0
      %6359 = vdwg.mxu0
      %vm6360 = vcmask 7168
      %6361 = vst.msk [vmem:[%s579] sm:$0xff] %vm6360, %v6352
      %6362 = vst.msk [vmem:[%s579 + $0x8] sm:$0xff] %vm6360, %v6357
      %s6363 = smul.u32 2, %s31
      %p6364 = scmp.lt.s32.totalorder %s6363, 3
      %s6365 = scalar_select %p6364, %s6363, 3
      %s6366 = smul.addr %s6365, 8
      %s6367 = scalar_lea.vmem %s18, %s6366
      // Predicated region
      $region93: #{_lambda_.1} parent=91 // pred_check
        %p6368 = pneg %p432
      $region94: #{_lambda_.1} parent=91 // pred_check_branch
        %6370 = sbr.rel (%p6368) target = $region96
      $region95: #{_lambda_.1} parent=91 // pred_region
        %s6371 = smul.u32 2, %s31
      $region96: #{_lambda_.1} parent=91 // pred_fallthru
        _
    $region92: #{_lambda_.1} parent=5 // pred_fallthru
      _
    %p6372 = scmp.le.s32.totalorder 2, %s26
    // Predicated region
    $region97: #{_lambda_.1} parent=5 // pred_check
      %p6373 = pneg %p6372
    $region98: #{_lambda_.1} parent=5 // pred_check_branch
      %6375 = sbr.rel (%p6373) target = $region100
    $region99: #{_lambda_.1} parent=5 // pred_region
      %s6376 = ssub.s32 %s26, 2
      // Predicated region
      $region101: #{_lambda_.1} parent=99 // pred_check
        %p6377 = pneg %p438
      $region102: #{_lambda_.1} parent=99 // pred_check_branch
        %6379 = sbr.rel (%p6377) target = $region104
      $region103: #{_lambda_.1} parent=99 // pred_region
        %s6380 = smul.u32 2, %s32
        %p6381 = scmp.lt.s32.totalorder %s6380, 3
        %s6382 = scalar_select %p6381, %s6380, 3
        %s6383 = smul.addr %s6382, 8
        %s6384 = scalar_lea.vmem %s18, %s6383
      $region104: #{_lambda_.1} parent=99 // pred_fallthru
        _
    $region100: #{_lambda_.1} parent=5 // pred_fallthru
      _
  $region6: #{_lambda_.1} parent=0 // loop_footer
    %s30 = sadd.s32 1, %s26
  $region7: #{_lambda_.1} parent=0 // loop_footer_branch
    %25 = sbr.rel target = $region3
  $region8: #{_lambda_.1} parent=0 // loop_exit
    _

</llo_original>
